<compile_context>
chip_gen: v5e
topology: v5e:2x2
jax: 0.10.0
libtpu: 0.0.40
codegen_flags: <defaults>
</compile_context>

<pallas_src>
import jax
import jax.numpy as jnp
from jax.experimental import pallas as pl
from jax.experimental.pallas import tpu as pltpu


# ----------------------------------------------------------------------------
# helpers
# ----------------------------------------------------------------------------
def _pick_batch_block(batch, cap=4):
    for cand in range(min(batch, cap), 0, -1):
        if batch % cand == 0:
            return cand
    return 1


def _pick_strip(rows, pref):
    # largest even divisor of `rows` that is <= pref (rows is assumed even)
    s = min(pref, rows)
    while rows % s or s % 2:
        s -= 1
    return s


# ----------------------------------------------------------------------------
# Kernel 1: fused conv1 -> relu -> pool -> conv2 -> relu -> pool
# grid over batch blocks; each conv is an im2col bf16 matmul done in row strips
# ----------------------------------------------------------------------------
def conv_stack(x_nhwc, w1col, b1, w2col, b2, *, bblk=None, s1_pref=8, s2_pref=4):
    B, H, W, Cin = x_nhwc.shape
    C1 = w1col.shape[1]
    C2 = w2col.shape[1]
    assert H % 4 == 0 and W % 4 == 0, "spatial dims must be divisible by 4"
    H2, W2, H4, W4 = H // 2, W // 2, H // 4, W // 4
    if bblk is None:
        bblk = _pick_batch_block(B)
    s1 = _pick_strip(H, s1_pref)    # conv1: s1 input rows  -> s1//2 pooled rows
    s2 = _pick_strip(H2, s2_pref)   # conv2: s2 pooled rows -> s2//2 output rows

    def kernel(x_ref, w1_ref, b1_ref, w2_ref, b2_ref, o_ref, xp1_ref, xp2_ref):
        f32 = jnp.float32
        # ---- zero only the 1-pixel halo; the interior is fully overwritten ---
        xp1_ref[:, 0:1, :, :] = jnp.zeros((bblk, 1, W + 2, Cin), f32)
        xp1_ref[:, H + 1:H + 2, :, :] = jnp.zeros((bblk, 1, W + 2, Cin), f32)
        xp1_ref[:, :, 0:1, :] = jnp.zeros((bblk, H + 2, 1, Cin), f32)
        xp1_ref[:, :, W + 1:W + 2, :] = jnp.zeros((bblk, H + 2, 1, Cin), f32)
        xp2_ref[:, 0:1, :, :] = jnp.zeros((bblk, 1, W2 + 2, C1), f32)
        xp2_ref[:, H2 + 1:H2 + 2, :, :] = jnp.zeros((bblk, 1, W2 + 2, C1), f32)
        xp2_ref[:, :, 0:1, :] = jnp.zeros((bblk, H2 + 2, 1, C1), f32)
        xp2_ref[:, :, W2 + 1:W2 + 2, :] = jnp.zeros((bblk, H2 + 2, 1, C1), f32)

        # ---- stage input into the padded scratch (pad = 1) --------------------
        xp1_ref[:, 1:H + 1, 1:W + 1, :] = x_ref[...]

        # ---- phase 1: conv1 -> relu -> 2x2 pool, processed in row strips ------
        for r0 in range(0, H, s1):
            slab = xp1_ref[:, r0:r0 + s1 + 2, :, :]          # (bblk, s1+2, W+2, Cin)
            taps = [slab[:, dy:dy + s1, dx:dx + W, :]
                    for dy in range(3) for dx in range(3)]
            p = jnp.concatenate(taps, axis=-1).reshape(bblk * s1 * W, 9 * Cin)
            a = jnp.dot(p.astype(jnp.bfloat16), w1_ref[...],
                        preferred_element_type=f32)
            a = jnp.maximum(a + b1_ref[...], 0.0)            # bias + ReLU
            a = a.reshape(bblk * s1 * W2, 2, C1)
            a = jnp.maximum(a[:, 0, :], a[:, 1, :])          # pool along W
            a = a.reshape(bblk * (s1 // 2), 2, W2, C1)
            a = jnp.maximum(a[:, 0, :, :], a[:, 1, :, :])    # pool along H
            xp2_ref[:, 1 + r0 // 2:1 + r0 // 2 + s1 // 2, 1:W2 + 1, :] = (
                a.reshape(bblk, s1 // 2, W2, C1))

        # ---- phase 2: conv2 -> relu -> 2x2 pool, row strips, bf16 writeback ---
        for r0 in range(0, H2, s2):
            slab = xp2_ref[:, r0:r0 + s2 + 2, :, :]          # (bblk, s2+2, W2+2, C1)
            taps = [slab[:, dy:dy + s2, dx:dx + W2, :]
                    for dy in range(3) for dx in range(3)]
            q = jnp.concatenate(taps, axis=-1).reshape(bblk * s2 * W2, 9 * C1)
            c = jnp.dot(q.astype(jnp.bfloat16), w2_ref[...],
                        preferred_element_type=f32)
            c = jnp.maximum(c + b2_ref[...], 0.0)
            c = c.reshape(bblk * s2 * W4, 2, C2)
            c = jnp.maximum(c[:, 0, :], c[:, 1, :])
            c = c.reshape(bblk * (s2 // 2), 2, W4, C2)
            c = jnp.maximum(c[:, 0, :, :], c[:, 1, :, :])    # (bblk*(s2//2), W4, C2)
            row0 = (r0 // 2) * W4
            o_ref[:, row0:row0 + (s2 // 2) * W4, :] = (
                c.reshape(bblk, (s2 // 2) * W4, C2).astype(o_ref.dtype))

    return pl.pallas_call(
        kernel,
        out_shape=jax.ShapeDtypeStruct((B, H4 * W4, C2), jnp.bfloat16),
        grid=(B // bblk,),
        in_specs=[
            pl.BlockSpec((bblk, H, W, Cin), lambda b: (b, 0, 0, 0)),
            pl.BlockSpec(w1col.shape, lambda b: (0, 0)),
            pl.BlockSpec(b1.shape, lambda b: (0, 0)),
            pl.BlockSpec(w2col.shape, lambda b: (0, 0)),
            pl.BlockSpec(b2.shape, lambda b: (0, 0)),
        ],
        out_specs=pl.BlockSpec((bblk, H4 * W4, C2), lambda b: (b, 0, 0)),
        scratch_shapes=[
            pltpu.VMEM((bblk, H + 2, W + 2, Cin), jnp.float32),
            pltpu.VMEM((bblk, H2 + 2, W2 + 2, C1), jnp.float32),
        ],
        compiler_params=pltpu.CompilerParams(
            dimension_semantics=("parallel",),
            vmem_limit_bytes=32 * 1024 * 1024),
    )(x_nhwc, w1col, b1, w2col, b2)


# ----------------------------------------------------------------------------
# Kernel 2: fused head  dropout(p=0.5) -> fc1 (K-tiled) -> ReLU -> [mean|logvar]
# Grid over fc1's K dimension; f32 accumulator in VMEM scratch.
# ----------------------------------------------------------------------------
def _head_kernel(x_ref, m_ref, w1_ref, b1_ref, wh_ref, bh_ref, out_ref, acc_ref):
    k = pl.program_id(0)

    @pl.when(k == 0)
    def _():
        acc_ref[...] = jnp.zeros_like(acc_ref)

    # inverted dropout: mask is pre-scaled to {0, 2} in bf16
    xd = x_ref[...] * m_ref[...]
    acc_ref[...] += jnp.dot(xd, w1_ref[...], preferred_element_type=jnp.float32)

    @pl.when(k == pl.num_programs(0) - 1)
    def _():
        h = jnp.maximum(acc_ref[...] + b1_ref[...], 0.0)           # fc1 + ReLU
        out = jnp.dot(h.astype(jnp.bfloat16), wh_ref[...],
                      preferred_element_type=jnp.float32) + bh_ref[...]
        out_ref[...] = out.astype(out_ref.dtype)                   # (B, 2*C)


def head(x_flat, mask, w1, b1, wh, bh, *, tk_max=8192):
    B, F = x_flat.shape
    HID = w1.shape[1]
    CO = wh.shape[1]
    if F > tk_max:
        tk = tk_max
        F_pad = -(-F // tk) * tk
        pad = F_pad - F
        if pad:
            # zero K-padding: padded features/mask/weight rows contribute 0.
            # TODO(synk): pad w_fc1 once offline when importing a checkpoint.
            x_flat = jnp.pad(x_flat, ((0, 0), (0, pad)))
            mask = jnp.pad(mask, ((0, 0), (0, pad)))
            w1 = jnp.pad(w1, ((0, pad), (0, 0)))
    else:
        tk = F
        F_pad = F
    nk = F_pad // tk
    return pl.pallas_call(
        _head_kernel,
        out_shape=jax.ShapeDtypeStruct((B, CO), jnp.float32),
        grid=(nk,),
        in_specs=[
            pl.BlockSpec((B, tk), lambda k: (0, k)),
            pl.BlockSpec((B, tk), lambda k: (0, k)),
            pl.BlockSpec((tk, HID), lambda k: (k, 0)),
            pl.BlockSpec((1, HID), lambda k: (0, 0)),
            pl.BlockSpec((HID, CO), lambda k: (0, 0)),
            pl.BlockSpec((1, CO), lambda k: (0, 0)),
        ],
        out_specs=pl.BlockSpec((B, CO), lambda k: (0, 0)),
        scratch_shapes=[pltpu.VMEM((B, HID), jnp.float32)],
        compiler_params=pltpu.CompilerParams(
            dimension_semantics=("arbitrary",),
            vmem_limit_bytes=32 * 1024 * 1024),
    )(x_flat, mask, w1, b1, wh, bh)


# ----------------------------------------------------------------------------
# Full forward (glue: NCHW->NHWC transpose + flatten + dropout mask in JAX)
# ----------------------------------------------------------------------------
def _dropout_mask(key, shape):
    # training-mode nn.Dropout(p=0.5): keep w.p. 0.5, pre-scaled to {0, 2} bf16.
    return jax.random.bernoulli(key, 0.5, shape).astype(jnp.bfloat16) * 2.0


@jax.jit
def model_forward(params, x_nchw, dropout_key):
    x = jnp.transpose(x_nchw, (0, 2, 3, 1))                 # NCHW -> NHWC
    feat = conv_stack(x, params["w1col"], params["b1"],
                      params["w2col"], params["b2"])        # (B, H4*W4, 64) bf16
    flat = feat.reshape(feat.shape[0], -1)                  # NHWC flatten order
    mask = _dropout_mask(dropout_key, flat.shape)
    out = head(flat, mask, params["w_fc1"], params["b_fc1"],
               params["w_head"], params["b_head"])
    c = out.shape[1] // 2
    logits, log_var = out[:, :c], out[:, c:]
    return logits, log_var, logits


def init_params(key, hidden_size=128, num_classes=1, spatial=16):
    ks = jax.random.split(key, 7)
    flat_dim = 64 * (spatial // 4) * (spatial // 4)
    s = 0.05
    w_conv1 = s * jax.random.normal(ks[0], (3, 3, 3, 32), jnp.float32)   # HWIO
    w_conv2 = s * jax.random.normal(ks[1], (3, 3, 32, 64), jnp.float32)  # HWIO
    w_fc1 = s * jax.random.normal(ks[2], (flat_dim, hidden_size), jnp.float32)
    w_mean = s * jax.random.normal(ks[3], (hidden_size, num_classes), jnp.float32)
    w_lvar = s * jax.random.normal(ks[4], (hidden_size, num_classes), jnp.float32)
    # Weight layouts the kernels consume (one-time offline transform when
    # importing a torch checkpoint):
    #   conv : torch (Cout,Cin,3,3) -> HWIO (3,3,Cin,Cout) -> reshape (9*Cin,Cout)
    #   fc1  : transpose + permute rows from NCHW-flatten to NHWC-flatten order
    #   head : concat fc_mean / fc_logvar weights along the output dim
    return dict(
        w1col=w_conv1.reshape(9 * 3, 32).astype(jnp.bfloat16),
        b1=s * jax.random.normal(ks[5], (1, 32), jnp.float32),
        w2col=w_conv2.reshape(9 * 32, 64).astype(jnp.bfloat16),
        b2=s * jax.random.normal(ks[6], (1, 64), jnp.float32),
        w_fc1=w_fc1.astype(jnp.bfloat16),
        b_fc1=jnp.zeros((1, hidden_size), jnp.float32),
        w_head=jnp.concatenate([w_mean, w_lvar], axis=1).astype(jnp.bfloat16),
        b_head=jnp.zeros((1, 2 * num_classes), jnp.float32),
    )


# ----------------------------------------------------------------------------
# Pure-JAX reference (same bf16-operand / f32-accumulate math, same mask)
# ----------------------------------------------------------------------------
def _pool2x2_ref(y):
    B, H, W, C = y.shape
    return y.reshape(B, H // 2, 2, W // 2, 2, C).max(axis=(2, 4))


def _conv_relu_pool_ref(x_nhwc, wcol, b):
    cin = wcol.shape[0] // 9
    w = wcol.reshape(3, 3, cin, wcol.shape[1])
    y = jax.lax.conv_general_dilated(
        x_nhwc.astype(jnp.bfloat16), w, (1, 1), "SAME",
        dimension_numbers=("NHWC", "HWIO", "NHWC"),
        preferred_element_type=jnp.float32)
    return _pool2x2_ref(jnp.maximum(y + b, 0.0))


def ref_forward(params, x_nchw, dropout_key):
    x = jnp.transpose(x_nchw, (0, 2, 3, 1))
    y = _conv_relu_pool_ref(x, params["w1col"], params["b1"])
    y = _conv_relu_pool_ref(y, params["w2col"], params["b2"])
    flat = y.reshape(y.shape[0], -1).astype(jnp.bfloat16)
    mask = _dropout_mask(dropout_key, flat.shape)
    xd = flat * mask
    h = jnp.maximum(
        jnp.dot(xd, params["w_fc1"],
                preferred_element_type=jnp.float32) + params["b_fc1"], 0.0)
    out = jnp.dot(h.astype(jnp.bfloat16), params["w_head"],
                  preferred_element_type=jnp.float32) + params["b_head"]
    c = out.shape[1] // 2
    return out[:, :c], out[:, c:], out[:, :c]


if __name__ == "__main__":
    key = jax.random.PRNGKey(0)
    k_x, k_p, k_d = jax.random.split(key, 3)

    B, spatial = 2, 16
    x = jax.random.normal(k_x, (B, 3, spatial, spatial), jnp.float32)  # NCHW
    params = init_params(k_p, hidden_size=128, num_classes=1, spatial=spatial)

    logits, log_var, logits2 = jax.block_until_ready(
        model_forward(params, x, k_d))

    # --- checks -------------------------------------------------------------
    # Conv stage vs. pure-JAX conv reference.
    x_nhwc = jnp.transpose(x, (0, 2, 3, 1))
    feat = conv_stack(x_nhwc, params["w1col"], params["b1"],
                      params["w2col"], params["b2"])
    s4 = spatial // 4
    feat_ref = _conv_relu_pool_ref(
        _conv_relu_pool_ref(x_nhwc, params["w1col"], params["b1"]),
        params["w2col"], params["b2"])
    assert jnp.allclose(feat.astype(jnp.float32).reshape(B, s4, s4, 64),
                        feat_ref, rtol=2e-2, atol=2e-2)

    # End-to-end vs. reference (shares the identical dropout mask).
    r_logits, r_logvar, _ = ref_forward(params, x, k_d)
    assert logits.shape == (B, 1) and log_var.shape == (B, 1)
    assert jnp.allclose(logits, r_logits, rtol=2e-2, atol=2e-2)
    assert jnp.allclose(log_var, r_logvar, rtol=2e-2, atol=2e-2)
    assert bool(jnp.all(jnp.isfinite(logits))) and bool(jnp.all(jnp.isfinite(log_var)))
    assert bool(jnp.all(logits == logits2))

    print("KERNEL_OK")
</pallas_src>

<mosaic_0001>
module attributes {stable_mosaic.version = 11 : i64} {
  func.func @kernel(%arg0: i32, %arg1: memref<2x16x16x3xf32, #tpu.memory_space<vmem>>, %arg2: memref<27x32xbf16, #tpu.memory_space<vmem>>, %arg3: memref<1x32xf32, #tpu.memory_space<vmem>>, %arg4: memref<288x64xbf16, #tpu.memory_space<vmem>>, %arg5: memref<1x64xf32, #tpu.memory_space<vmem>>, %arg6: memref<2x16x64xbf16, #tpu.memory_space<vmem>>, %arg7: memref<2x18x18x3xf32, #tpu.memory_space<vmem>>, %arg8: memref<2x10x10x32xf32, #tpu.memory_space<vmem>>) attributes {dimension_semantics = [#tpu.dimension_semantics<parallel>], iteration_bounds = array<i64: 1>, scalar_prefetch = 0 : i64, scratch_operands = 2 : i64, tpu.core_type = #tpu.core_type<tc>, window_params = [{transform_indices = @transform_0, window_bounds = array<i64: 2, 16, 16, 3>}, {pipeline_mode = #tpu.pipeline_mode<synchronous>, transform_indices = @transform_1, window_bounds = array<i64: 27, 32>}, {pipeline_mode = #tpu.pipeline_mode<synchronous>, transform_indices = @transform_2, window_bounds = array<i64: 1, 32>}, {pipeline_mode = #tpu.pipeline_mode<synchronous>, transform_indices = @transform_3, window_bounds = array<i64: 288, 64>}, {pipeline_mode = #tpu.pipeline_mode<synchronous>, transform_indices = @transform_4, window_bounds = array<i64: 1, 64>}, {transform_indices = @transform_5, window_bounds = array<i64: 2, 16, 64>}]} {
    %cst = arith.constant 0.000000e+00 : f32
    %0 = vector.broadcast %cst : f32 to vector<2x1x18x3xf32>
    %c0 = arith.constant 0 : index
    %c0_0 = arith.constant 0 : index
    %c0_1 = arith.constant 0 : index
    %c0_2 = arith.constant 0 : index
    %1 = vector.load %arg7[%c0, %c0_0, %c0_1, %c0_2] : memref<2x18x18x3xf32, #tpu.memory_space<vmem>>, vector<2x1x18x3xf32>
    tpu.vector_store %arg7[%c0, %c0_0, %c0_1, %c0_2], %0 {strides = array<i32>} : memref<2x18x18x3xf32, #tpu.memory_space<vmem>>, vector<2x1x18x3xf32>,
    %cst_3 = arith.constant 0.000000e+00 : f32
    %2 = vector.broadcast %cst_3 : f32 to vector<2x1x18x3xf32>
    %c0_4 = arith.constant 0 : index
    %c17 = arith.constant 17 : index
    %c0_5 = arith.constant 0 : index
    %c0_6 = arith.constant 0 : index
    %3 = vector.load %arg7[%c0_4, %c17, %c0_5, %c0_6] : memref<2x18x18x3xf32, #tpu.memory_space<vmem>>, vector<2x1x18x3xf32>
    tpu.vector_store %arg7[%c0_4, %c17, %c0_5, %c0_6], %2 {strides = array<i32>} : memref<2x18x18x3xf32, #tpu.memory_space<vmem>>, vector<2x1x18x3xf32>,
    %cst_7 = arith.constant 0.000000e+00 : f32
    %4 = vector.broadcast %cst_7 : f32 to vector<2x18x1x3xf32>
    %c0_8 = arith.constant 0 : index
    %c0_9 = arith.constant 0 : index
    %c0_10 = arith.constant 0 : index
    %c0_11 = arith.constant 0 : index
    %5 = vector.load %arg7[%c0_8, %c0_9, %c0_10, %c0_11] : memref<2x18x18x3xf32, #tpu.memory_space<vmem>>, vector<2x18x1x3xf32>
    tpu.vector_store %arg7[%c0_8, %c0_9, %c0_10, %c0_11], %4 {strides = array<i32>} : memref<2x18x18x3xf32, #tpu.memory_space<vmem>>, vector<2x18x1x3xf32>,
    %cst_12 = arith.constant 0.000000e+00 : f32
    %6 = vector.broadcast %cst_12 : f32 to vector<2x18x1x3xf32>
    %c0_13 = arith.constant 0 : index
    %c0_14 = arith.constant 0 : index
    %c17_15 = arith.constant 17 : index
    %c0_16 = arith.constant 0 : index
    %7 = vector.load %arg7[%c0_13, %c0_14, %c17_15, %c0_16] : memref<2x18x18x3xf32, #tpu.memory_space<vmem>>, vector<2x18x1x3xf32>
    tpu.vector_store %arg7[%c0_13, %c0_14, %c17_15, %c0_16], %6 {strides = array<i32>} : memref<2x18x18x3xf32, #tpu.memory_space<vmem>>, vector<2x18x1x3xf32>,
    %cst_17 = arith.constant 0.000000e+00 : f32
    %8 = vector.broadcast %cst_17 : f32 to vector<2x1x10x32xf32>
    %c0_18 = arith.constant 0 : index
    %c0_19 = arith.constant 0 : index
    %c0_20 = arith.constant 0 : index
    %c0_21 = arith.constant 0 : index
    %9 = vector.load %arg8[%c0_18, %c0_19, %c0_20, %c0_21] : memref<2x10x10x32xf32, #tpu.memory_space<vmem>>, vector<2x1x10x32xf32>
    tpu.vector_store %arg8[%c0_18, %c0_19, %c0_20, %c0_21], %8 {strides = array<i32>} : memref<2x10x10x32xf32, #tpu.memory_space<vmem>>, vector<2x1x10x32xf32>,
    %cst_22 = arith.constant 0.000000e+00 : f32
    %10 = vector.broadcast %cst_22 : f32 to vector<2x1x10x32xf32>
    %c0_23 = arith.constant 0 : index
    %c9 = arith.constant 9 : index
    %c0_24 = arith.constant 0 : index
    %c0_25 = arith.constant 0 : index
    %11 = vector.load %arg8[%c0_23, %c9, %c0_24, %c0_25] : memref<2x10x10x32xf32, #tpu.memory_space<vmem>>, vector<2x1x10x32xf32>
    tpu.vector_store %arg8[%c0_23, %c9, %c0_24, %c0_25], %10 {strides = array<i32>} : memref<2x10x10x32xf32, #tpu.memory_space<vmem>>, vector<2x1x10x32xf32>,
    %cst_26 = arith.constant 0.000000e+00 : f32
    %12 = vector.broadcast %cst_26 : f32 to vector<2x10x1x32xf32>
    %c0_27 = arith.constant 0 : index
    %c0_28 = arith.constant 0 : index
    %c0_29 = arith.constant 0 : index
    %c0_30 = arith.constant 0 : index
    %13 = vector.load %arg8[%c0_27, %c0_28, %c0_29, %c0_30] : memref<2x10x10x32xf32, #tpu.memory_space<vmem>>, vector<2x10x1x32xf32>
    tpu.vector_store %arg8[%c0_27, %c0_28, %c0_29, %c0_30], %12 {strides = array<i32>} : memref<2x10x10x32xf32, #tpu.memory_space<vmem>>, vector<2x10x1x32xf32>,
    %cst_31 = arith.constant 0.000000e+00 : f32
    %14 = vector.broadcast %cst_31 : f32 to vector<2x10x1x32xf32>
    %c0_32 = arith.constant 0 : index
    %c0_33 = arith.constant 0 : index
    %c9_34 = arith.constant 9 : index
    %c0_35 = arith.constant 0 : index
    %15 = vector.load %arg8[%c0_32, %c0_33, %c9_34, %c0_35] : memref<2x10x10x32xf32, #tpu.memory_space<vmem>>, vector<2x10x1x32xf32>
    tpu.vector_store %arg8[%c0_32, %c0_33, %c9_34, %c0_35], %14 {strides = array<i32>} : memref<2x10x10x32xf32, #tpu.memory_space<vmem>>, vector<2x10x1x32xf32>,
    %c0_36 = arith.constant 0 : index
    %c0_37 = arith.constant 0 : index
    %c0_38 = arith.constant 0 : index
    %c0_39 = arith.constant 0 : index
    %16 = vector.load %arg1[%c0_36, %c0_37, %c0_38, %c0_39] : memref<2x16x16x3xf32, #tpu.memory_space<vmem>>, vector<2x16x16x3xf32>
    %c0_40 = arith.constant 0 : index
    %c1 = arith.constant 1 : index
    %c1_41 = arith.constant 1 : index
    %c0_42 = arith.constant 0 : index
    %17 = vector.load %arg7[%c0_40, %c1, %c1_41, %c0_42] : memref<2x18x18x3xf32, #tpu.memory_space<vmem>>, vector<2x16x16x3xf32>
    tpu.vector_store %arg7[%c0_40, %c1, %c1_41, %c0_42], %16 {strides = array<i32>} : memref<2x18x18x3xf32, #tpu.memory_space<vmem>>, vector<2x16x16x3xf32>,
    %c0_43 = arith.constant 0 : index
    %c0_44 = arith.constant 0 : index
    %c0_45 = arith.constant 0 : index
    %c0_46 = arith.constant 0 : index
    %18 = vector.load %arg7[%c0_43, %c0_44, %c0_45, %c0_46] : memref<2x18x18x3xf32, #tpu.memory_space<vmem>>, vector<2x10x18x3xf32>
    %19 = vector.extract_strided_slice %18 {offsets = [0, 0, 0, 0], sizes = [2, 8, 16, 3], strides = [1, 1, 1, 1]} : vector<2x10x18x3xf32> to vector<2x8x16x3xf32>
    %20 = vector.extract_strided_slice %18 {offsets = [0, 0, 1, 0], sizes = [2, 8, 16, 3], strides = [1, 1, 1, 1]} : vector<2x10x18x3xf32> to vector<2x8x16x3xf32>
    %21 = vector.extract_strided_slice %18 {offsets = [0, 0, 2, 0], sizes = [2, 8, 16, 3], strides = [1, 1, 1, 1]} : vector<2x10x18x3xf32> to vector<2x8x16x3xf32>
    %22 = vector.extract_strided_slice %18 {offsets = [0, 1, 0, 0], sizes = [2, 8, 16, 3], strides = [1, 1, 1, 1]} : vector<2x10x18x3xf32> to vector<2x8x16x3xf32>
    %23 = vector.extract_strided_slice %18 {offsets = [0, 1, 1, 0], sizes = [2, 8, 16, 3], strides = [1, 1, 1, 1]} : vector<2x10x18x3xf32> to vector<2x8x16x3xf32>
    %24 = vector.extract_strided_slice %18 {offsets = [0, 1, 2, 0], sizes = [2, 8, 16, 3], strides = [1, 1, 1, 1]} : vector<2x10x18x3xf32> to vector<2x8x16x3xf32>
    %25 = vector.extract_strided_slice %18 {offsets = [0, 2, 0, 0], sizes = [2, 8, 16, 3], strides = [1, 1, 1, 1]} : vector<2x10x18x3xf32> to vector<2x8x16x3xf32>
    %26 = vector.extract_strided_slice %18 {offsets = [0, 2, 1, 0], sizes = [2, 8, 16, 3], strides = [1, 1, 1, 1]} : vector<2x10x18x3xf32> to vector<2x8x16x3xf32>
    %27 = vector.extract_strided_slice %18 {offsets = [0, 2, 2, 0], sizes = [2, 8, 16, 3], strides = [1, 1, 1, 1]} : vector<2x10x18x3xf32> to vector<2x8x16x3xf32>
    %28 = tpu.concatenate %19, %20, %21, %22, %23, %24, %25, %26, %27 in 3 : vector<2x8x16x3xf32>, vector<2x8x16x3xf32>, vector<2x8x16x3xf32>, vector<2x8x16x3xf32>, vector<2x8x16x3xf32>, vector<2x8x16x3xf32>, vector<2x8x16x3xf32>, vector<2x8x16x3xf32>, vector<2x8x16x3xf32> -> vector<2x8x16x27xf32>
    %29 = vector.shape_cast %28 : vector<2x8x16x27xf32> to vector<256x27xf32>
    %30 = arith.truncf %29 : vector<256x27xf32> to vector<256x27xbf16>
    %c0_47 = arith.constant 0 : index
    %c0_48 = arith.constant 0 : index
    %31 = vector.load %arg2[%c0_47, %c0_48] : memref<27x32xbf16, #tpu.memory_space<vmem>>, vector<27x32xbf16>
    %cst_49 = arith.constant dense<0.000000e+00> : vector<256x32xf32>
    %32 = tpu.matmul %30, %31, %cst_49 {dimension_numbers = #tpu.dot_dimension_numbers<[1], [0], [0], [1], [0, 0, 1, 1], [], []>} : vector<256x27xbf16>, vector<27x32xbf16>, vector<256x32xf32> -> vector<256x32xf32>
    %c0_50 = arith.constant 0 : index
    %c0_51 = arith.constant 0 : index
    %33 = vector.load %arg3[%c0_50, %c0_51] : memref<1x32xf32, #tpu.memory_space<vmem>>, vector<1x32xf32>
    %34 = vector.broadcast %33 : vector<1x32xf32> to vector<256x32xf32>
    %35 = arith.addf %32, %34 : vector<256x32xf32>
    %cst_52 = arith.constant 0.000000e+00 : f32
    %36 = vector.broadcast %cst_52 : f32 to vector<256x32xf32>
    %37 = arith.maximumf %35, %36 : vector<256x32xf32>
    %38 = vector.shape_cast %37 : vector<256x32xf32> to vector<128x2x32xf32>
    %39 = vector.extract_strided_slice %38 {offsets = [0, 0, 0], sizes = [128, 1, 32], strides = [1, 1, 1]} : vector<128x2x32xf32> to vector<128x1x32xf32>
    %40 = vector.shape_cast %39 : vector<128x1x32xf32> to vector<128x32xf32>
    %41 = vector.extract_strided_slice %38 {offsets = [0, 1, 0], sizes = [128, 1, 32], strides = [1, 1, 1]} : vector<128x2x32xf32> to vector<128x1x32xf32>
    %42 = vector.shape_cast %41 : vector<128x1x32xf32> to vector<128x32xf32>
    %43 = arith.maximumf %40, %42 : vector<128x32xf32>
    %44 = vector.shape_cast %43 : vector<128x32xf32> to vector<8x2x8x32xf32>
    %45 = vector.extract_strided_slice %44 {offsets = [0, 0, 0, 0], sizes = [8, 1, 8, 32], strides = [1, 1, 1, 1]} : vector<8x2x8x32xf32> to vector<8x1x8x32xf32>
    %46 = vector.shape_cast %45 : vector<8x1x8x32xf32> to vector<8x8x32xf32>
    %47 = vector.extract_strided_slice %44 {offsets = [0, 1, 0, 0], sizes = [8, 1, 8, 32], strides = [1, 1, 1, 1]} : vector<8x2x8x32xf32> to vector<8x1x8x32xf32>
    %48 = vector.shape_cast %47 : vector<8x1x8x32xf32> to vector<8x8x32xf32>
    %49 = arith.maximumf %46, %48 : vector<8x8x32xf32>
    %50 = vector.shape_cast %49 : vector<8x8x32xf32> to vector<2x4x8x32xf32>
    %c0_53 = arith.constant 0 : index
    %c1_54 = arith.constant 1 : index
    %c1_55 = arith.constant 1 : index
    %c0_56 = arith.constant 0 : index
    %51 = vector.load %arg8[%c0_53, %c1_54, %c1_55, %c0_56] : memref<2x10x10x32xf32, #tpu.memory_space<vmem>>, vector<2x4x8x32xf32>
    tpu.vector_store %arg8[%c0_53, %c1_54, %c1_55, %c0_56], %50 {strides = array<i32>} : memref<2x10x10x32xf32, #tpu.memory_space<vmem>>, vector<2x4x8x32xf32>,
    %c0_57 = arith.constant 0 : index
    %c8 = arith.constant 8 : index
    %c0_58 = arith.constant 0 : index
    %c0_59 = arith.constant 0 : index
    %52 = vector.load %arg7[%c0_57, %c8, %c0_58, %c0_59] : memref<2x18x18x3xf32, #tpu.memory_space<vmem>>, vector<2x10x18x3xf32>
    %53 = vector.extract_strided_slice %52 {offsets = [0, 0, 0, 0], sizes = [2, 8, 16, 3], strides = [1, 1, 1, 1]} : vector<2x10x18x3xf32> to vector<2x8x16x3xf32>
    %54 = vector.extract_strided_slice %52 {offsets = [0, 0, 1, 0], sizes = [2, 8, 16, 3], strides = [1, 1, 1, 1]} : vector<2x10x18x3xf32> to vector<2x8x16x3xf32>
    %55 = vector.extract_strided_slice %52 {offsets = [0, 0, 2, 0], sizes = [2, 8, 16, 3], strides = [1, 1, 1, 1]} : vector<2x10x18x3xf32> to vector<2x8x16x3xf32>
    %56 = vector.extract_strided_slice %52 {offsets = [0, 1, 0, 0], sizes = [2, 8, 16, 3], strides = [1, 1, 1, 1]} : vector<2x10x18x3xf32> to vector<2x8x16x3xf32>
    %57 = vector.extract_strided_slice %52 {offsets = [0, 1, 1, 0], sizes = [2, 8, 16, 3], strides = [1, 1, 1, 1]} : vector<2x10x18x3xf32> to vector<2x8x16x3xf32>
    %58 = vector.extract_strided_slice %52 {offsets = [0, 1, 2, 0], sizes = [2, 8, 16, 3], strides = [1, 1, 1, 1]} : vector<2x10x18x3xf32> to vector<2x8x16x3xf32>
    %59 = vector.extract_strided_slice %52 {offsets = [0, 2, 0, 0], sizes = [2, 8, 16, 3], strides = [1, 1, 1, 1]} : vector<2x10x18x3xf32> to vector<2x8x16x3xf32>
    %60 = vector.extract_strided_slice %52 {offsets = [0, 2, 1, 0], sizes = [2, 8, 16, 3], strides = [1, 1, 1, 1]} : vector<2x10x18x3xf32> to vector<2x8x16x3xf32>
    %61 = vector.extract_strided_slice %52 {offsets = [0, 2, 2, 0], sizes = [2, 8, 16, 3], strides = [1, 1, 1, 1]} : vector<2x10x18x3xf32> to vector<2x8x16x3xf32>
    %62 = tpu.concatenate %53, %54, %55, %56, %57, %58, %59, %60, %61 in 3 : vector<2x8x16x3xf32>, vector<2x8x16x3xf32>, vector<2x8x16x3xf32>, vector<2x8x16x3xf32>, vector<2x8x16x3xf32>, vector<2x8x16x3xf32>, vector<2x8x16x3xf32>, vector<2x8x16x3xf32>, vector<2x8x16x3xf32> -> vector<2x8x16x27xf32>
    %63 = vector.shape_cast %62 : vector<2x8x16x27xf32> to vector<256x27xf32>
    %64 = arith.truncf %63 : vector<256x27xf32> to vector<256x27xbf16>
    %c0_60 = arith.constant 0 : index
    %c0_61 = arith.constant 0 : index
    %65 = vector.load %arg2[%c0_60, %c0_61] : memref<27x32xbf16, #tpu.memory_space<vmem>>, vector<27x32xbf16>
    %cst_62 = arith.constant dense<0.000000e+00> : vector<256x32xf32>
    %66 = tpu.matmul %64, %65, %cst_62 {dimension_numbers = #tpu.dot_dimension_numbers<[1], [0], [0], [1], [0, 0, 1, 1], [], []>} : vector<256x27xbf16>, vector<27x32xbf16>, vector<256x32xf32> -> vector<256x32xf32>
    %c0_63 = arith.constant 0 : index
    %c0_64 = arith.constant 0 : index
    %67 = vector.load %arg3[%c0_63, %c0_64] : memref<1x32xf32, #tpu.memory_space<vmem>>, vector<1x32xf32>
    %68 = vector.broadcast %67 : vector<1x32xf32> to vector<256x32xf32>
    %69 = arith.addf %66, %68 : vector<256x32xf32>
    %cst_65 = arith.constant 0.000000e+00 : f32
    %70 = vector.broadcast %cst_65 : f32 to vector<256x32xf32>
    %71 = arith.maximumf %69, %70 : vector<256x32xf32>
    %72 = vector.shape_cast %71 : vector<256x32xf32> to vector<128x2x32xf32>
    %73 = vector.extract_strided_slice %72 {offsets = [0, 0, 0], sizes = [128, 1, 32], strides = [1, 1, 1]} : vector<128x2x32xf32> to vector<128x1x32xf32>
    %74 = vector.shape_cast %73 : vector<128x1x32xf32> to vector<128x32xf32>
    %75 = vector.extract_strided_slice %72 {offsets = [0, 1, 0], sizes = [128, 1, 32], strides = [1, 1, 1]} : vector<128x2x32xf32> to vector<128x1x32xf32>
    %76 = vector.shape_cast %75 : vector<128x1x32xf32> to vector<128x32xf32>
    %77 = arith.maximumf %74, %76 : vector<128x32xf32>
    %78 = vector.shape_cast %77 : vector<128x32xf32> to vector<8x2x8x32xf32>
    %79 = vector.extract_strided_slice %78 {offsets = [0, 0, 0, 0], sizes = [8, 1, 8, 32], strides = [1, 1, 1, 1]} : vector<8x2x8x32xf32> to vector<8x1x8x32xf32>
    %80 = vector.shape_cast %79 : vector<8x1x8x32xf32> to vector<8x8x32xf32>
    %81 = vector.extract_strided_slice %78 {offsets = [0, 1, 0, 0], sizes = [8, 1, 8, 32], strides = [1, 1, 1, 1]} : vector<8x2x8x32xf32> to vector<8x1x8x32xf32>
    %82 = vector.shape_cast %81 : vector<8x1x8x32xf32> to vector<8x8x32xf32>
    %83 = arith.maximumf %80, %82 : vector<8x8x32xf32>
    %84 = vector.shape_cast %83 : vector<8x8x32xf32> to vector<2x4x8x32xf32>
    %c0_66 = arith.constant 0 : index
    %c5 = arith.constant 5 : index
    %c1_67 = arith.constant 1 : index
    %c0_68 = arith.constant 0 : index
    %85 = vector.load %arg8[%c0_66, %c5, %c1_67, %c0_68] : memref<2x10x10x32xf32, #tpu.memory_space<vmem>>, vector<2x4x8x32xf32>
    tpu.vector_store %arg8[%c0_66, %c5, %c1_67, %c0_68], %84 {strides = array<i32>} : memref<2x10x10x32xf32, #tpu.memory_space<vmem>>, vector<2x4x8x32xf32>,
    %c0_69 = arith.constant 0 : index
    %c0_70 = arith.constant 0 : index
    %c0_71 = arith.constant 0 : index
    %c0_72 = arith.constant 0 : index
    %86 = vector.load %arg8[%c0_69, %c0_70, %c0_71, %c0_72] : memref<2x10x10x32xf32, #tpu.memory_space<vmem>>, vector<2x6x10x32xf32>
    %87 = vector.extract_strided_slice %86 {offsets = [0, 0, 0, 0], sizes = [2, 4, 8, 32], strides = [1, 1, 1, 1]} : vector<2x6x10x32xf32> to vector<2x4x8x32xf32>
    %88 = vector.extract_strided_slice %86 {offsets = [0, 0, 1, 0], sizes = [2, 4, 8, 32], strides = [1, 1, 1, 1]} : vector<2x6x10x32xf32> to vector<2x4x8x32xf32>
    %89 = vector.extract_strided_slice %86 {offsets = [0, 0, 2, 0], sizes = [2, 4, 8, 32], strides = [1, 1, 1, 1]} : vector<2x6x10x32xf32> to vector<2x4x8x32xf32>
    %90 = vector.extract_strided_slice %86 {offsets = [0, 1, 0, 0], sizes = [2, 4, 8, 32], strides = [1, 1, 1, 1]} : vector<2x6x10x32xf32> to vector<2x4x8x32xf32>
    %91 = vector.extract_strided_slice %86 {offsets = [0, 1, 1, 0], sizes = [2, 4, 8, 32], strides = [1, 1, 1, 1]} : vector<2x6x10x32xf32> to vector<2x4x8x32xf32>
    %92 = vector.extract_strided_slice %86 {offsets = [0, 1, 2, 0], sizes = [2, 4, 8, 32], strides = [1, 1, 1, 1]} : vector<2x6x10x32xf32> to vector<2x4x8x32xf32>
    %93 = vector.extract_strided_slice %86 {offsets = [0, 2, 0, 0], sizes = [2, 4, 8, 32], strides = [1, 1, 1, 1]} : vector<2x6x10x32xf32> to vector<2x4x8x32xf32>
    %94 = vector.extract_strided_slice %86 {offsets = [0, 2, 1, 0], sizes = [2, 4, 8, 32], strides = [1, 1, 1, 1]} : vector<2x6x10x32xf32> to vector<2x4x8x32xf32>
    %95 = vector.extract_strided_slice %86 {offsets = [0, 2, 2, 0], sizes = [2, 4, 8, 32], strides = [1, 1, 1, 1]} : vector<2x6x10x32xf32> to vector<2x4x8x32xf32>
    %96 = tpu.concatenate %87, %88, %89, %90, %91, %92, %93, %94, %95 in 3 : vector<2x4x8x32xf32>, vector<2x4x8x32xf32>, vector<2x4x8x32xf32>, vector<2x4x8x32xf32>, vector<2x4x8x32xf32>, vector<2x4x8x32xf32>, vector<2x4x8x32xf32>, vector<2x4x8x32xf32>, vector<2x4x8x32xf32> -> vector<2x4x8x288xf32>
    %97 = vector.shape_cast %96 : vector<2x4x8x288xf32> to vector<64x288xf32>
    %98 = arith.truncf %97 : vector<64x288xf32> to vector<64x288xbf16>
    %c0_73 = arith.constant 0 : index
    %c0_74 = arith.constant 0 : index
    %99 = vector.load %arg4[%c0_73, %c0_74] : memref<288x64xbf16, #tpu.memory_space<vmem>>, vector<288x64xbf16>
    %cst_75 = arith.constant dense<0.000000e+00> : vector<64x64xf32>
    %100 = tpu.matmul %98, %99, %cst_75 {dimension_numbers = #tpu.dot_dimension_numbers<[1], [0], [0], [1], [0, 0, 1, 1], [], []>} : vector<64x288xbf16>, vector<288x64xbf16>, vector<64x64xf32> -> vector<64x64xf32>
    %c0_76 = arith.constant 0 : index
    %c0_77 = arith.constant 0 : index
    %101 = vector.load %arg5[%c0_76, %c0_77] : memref<1x64xf32, #tpu.memory_space<vmem>>, vector<1x64xf32>
    %102 = vector.broadcast %101 : vector<1x64xf32> to vector<64x64xf32>
    %103 = arith.addf %100, %102 : vector<64x64xf32>
    %cst_78 = arith.constant 0.000000e+00 : f32
    %104 = vector.broadcast %cst_78 : f32 to vector<64x64xf32>
    %105 = arith.maximumf %103, %104 : vector<64x64xf32>
    %106 = vector.shape_cast %105 : vector<64x64xf32> to vector<32x2x64xf32>
    %107 = vector.extract_strided_slice %106 {offsets = [0, 0, 0], sizes = [32, 1, 64], strides = [1, 1, 1]} : vector<32x2x64xf32> to vector<32x1x64xf32>
    %108 = vector.shape_cast %107 : vector<32x1x64xf32> to vector<32x64xf32>
    %109 = vector.extract_strided_slice %106 {offsets = [0, 1, 0], sizes = [32, 1, 64], strides = [1, 1, 1]} : vector<32x2x64xf32> to vector<32x1x64xf32>
    %110 = vector.shape_cast %109 : vector<32x1x64xf32> to vector<32x64xf32>
    %111 = arith.maximumf %108, %110 : vector<32x64xf32>
    %112 = vector.shape_cast %111 : vector<32x64xf32> to vector<4x2x4x64xf32>
    %113 = vector.extract_strided_slice %112 {offsets = [0, 0, 0, 0], sizes = [4, 1, 4, 64], strides = [1, 1, 1, 1]} : vector<4x2x4x64xf32> to vector<4x1x4x64xf32>
    %114 = vector.shape_cast %113 : vector<4x1x4x64xf32> to vector<4x4x64xf32>
    %115 = vector.extract_strided_slice %112 {offsets = [0, 1, 0, 0], sizes = [4, 1, 4, 64], strides = [1, 1, 1, 1]} : vector<4x2x4x64xf32> to vector<4x1x4x64xf32>
    %116 = vector.shape_cast %115 : vector<4x1x4x64xf32> to vector<4x4x64xf32>
    %117 = arith.maximumf %114, %116 : vector<4x4x64xf32>
    %118 = vector.shape_cast %117 : vector<4x4x64xf32> to vector<2x8x64xf32>
    %119 = arith.truncf %118 : vector<2x8x64xf32> to vector<2x8x64xbf16>
    %c0_79 = arith.constant 0 : index
    %c0_80 = arith.constant 0 : index
    %c0_81 = arith.constant 0 : index
    %120 = vector.load %arg6[%c0_79, %c0_80, %c0_81] : memref<2x16x64xbf16, #tpu.memory_space<vmem>>, vector<2x8x64xbf16>
    tpu.vector_store %arg6[%c0_79, %c0_80, %c0_81], %119 {strides = array<i32>} : memref<2x16x64xbf16, #tpu.memory_space<vmem>>, vector<2x8x64xbf16>,
    %c0_82 = arith.constant 0 : index
    %c4 = arith.constant 4 : index
    %c0_83 = arith.constant 0 : index
    %c0_84 = arith.constant 0 : index
    %121 = vector.load %arg8[%c0_82, %c4, %c0_83, %c0_84] : memref<2x10x10x32xf32, #tpu.memory_space<vmem>>, vector<2x6x10x32xf32>
    %122 = vector.extract_strided_slice %121 {offsets = [0, 0, 0, 0], sizes = [2, 4, 8, 32], strides = [1, 1, 1, 1]} : vector<2x6x10x32xf32> to vector<2x4x8x32xf32>
    %123 = vector.extract_strided_slice %121 {offsets = [0, 0, 1, 0], sizes = [2, 4, 8, 32], strides = [1, 1, 1, 1]} : vector<2x6x10x32xf32> to vector<2x4x8x32xf32>
    %124 = vector.extract_strided_slice %121 {offsets = [0, 0, 2, 0], sizes = [2, 4, 8, 32], strides = [1, 1, 1, 1]} : vector<2x6x10x32xf32> to vector<2x4x8x32xf32>
    %125 = vector.extract_strided_slice %121 {offsets = [0, 1, 0, 0], sizes = [2, 4, 8, 32], strides = [1, 1, 1, 1]} : vector<2x6x10x32xf32> to vector<2x4x8x32xf32>
    %126 = vector.extract_strided_slice %121 {offsets = [0, 1, 1, 0], sizes = [2, 4, 8, 32], strides = [1, 1, 1, 1]} : vector<2x6x10x32xf32> to vector<2x4x8x32xf32>
    %127 = vector.extract_strided_slice %121 {offsets = [0, 1, 2, 0], sizes = [2, 4, 8, 32], strides = [1, 1, 1, 1]} : vector<2x6x10x32xf32> to vector<2x4x8x32xf32>
    %128 = vector.extract_strided_slice %121 {offsets = [0, 2, 0, 0], sizes = [2, 4, 8, 32], strides = [1, 1, 1, 1]} : vector<2x6x10x32xf32> to vector<2x4x8x32xf32>
    %129 = vector.extract_strided_slice %121 {offsets = [0, 2, 1, 0], sizes = [2, 4, 8, 32], strides = [1, 1, 1, 1]} : vector<2x6x10x32xf32> to vector<2x4x8x32xf32>
    %130 = vector.extract_strided_slice %121 {offsets = [0, 2, 2, 0], sizes = [2, 4, 8, 32], strides = [1, 1, 1, 1]} : vector<2x6x10x32xf32> to vector<2x4x8x32xf32>
    %131 = tpu.concatenate %122, %123, %124, %125, %126, %127, %128, %129, %130 in 3 : vector<2x4x8x32xf32>, vector<2x4x8x32xf32>, vector<2x4x8x32xf32>, vector<2x4x8x32xf32>, vector<2x4x8x32xf32>, vector<2x4x8x32xf32>, vector<2x4x8x32xf32>, vector<2x4x8x32xf32>, vector<2x4x8x32xf32> -> vector<2x4x8x288xf32>
    %132 = vector.shape_cast %131 : vector<2x4x8x288xf32> to vector<64x288xf32>
    %133 = arith.truncf %132 : vector<64x288xf32> to vector<64x288xbf16>
    %c0_85 = arith.constant 0 : index
    %c0_86 = arith.constant 0 : index
    %134 = vector.load %arg4[%c0_85, %c0_86] : memref<288x64xbf16, #tpu.memory_space<vmem>>, vector<288x64xbf16>
    %cst_87 = arith.constant dense<0.000000e+00> : vector<64x64xf32>
    %135 = tpu.matmul %133, %134, %cst_87 {dimension_numbers = #tpu.dot_dimension_numbers<[1], [0], [0], [1], [0, 0, 1, 1], [], []>} : vector<64x288xbf16>, vector<288x64xbf16>, vector<64x64xf32> -> vector<64x64xf32>
    %c0_88 = arith.constant 0 : index
    %c0_89 = arith.constant 0 : index
    %136 = vector.load %arg5[%c0_88, %c0_89] : memref<1x64xf32, #tpu.memory_space<vmem>>, vector<1x64xf32>
    %137 = vector.broadcast %136 : vector<1x64xf32> to vector<64x64xf32>
    %138 = arith.addf %135, %137 : vector<64x64xf32>
    %cst_90 = arith.constant 0.000000e+00 : f32
    %139 = vector.broadcast %cst_90 : f32 to vector<64x64xf32>
    %140 = arith.maximumf %138, %139 : vector<64x64xf32>
    %141 = vector.shape_cast %140 : vector<64x64xf32> to vector<32x2x64xf32>
    %142 = vector.extract_strided_slice %141 {offsets = [0, 0, 0], sizes = [32, 1, 64], strides = [1, 1, 1]} : vector<32x2x64xf32> to vector<32x1x64xf32>
    %143 = vector.shape_cast %142 : vector<32x1x64xf32> to vector<32x64xf32>
    %144 = vector.extract_strided_slice %141 {offsets = [0, 1, 0], sizes = [32, 1, 64], strides = [1, 1, 1]} : vector<32x2x64xf32> to vector<32x1x64xf32>
    %145 = vector.shape_cast %144 : vector<32x1x64xf32> to vector<32x64xf32>
    %146 = arith.maximumf %143, %145 : vector<32x64xf32>
    %147 = vector.shape_cast %146 : vector<32x64xf32> to vector<4x2x4x64xf32>
    %148 = vector.extract_strided_slice %147 {offsets = [0, 0, 0, 0], sizes = [4, 1, 4, 64], strides = [1, 1, 1, 1]} : vector<4x2x4x64xf32> to vector<4x1x4x64xf32>
    %149 = vector.shape_cast %148 : vector<4x1x4x64xf32> to vector<4x4x64xf32>
    %150 = vector.extract_strided_slice %147 {offsets = [0, 1, 0, 0], sizes = [4, 1, 4, 64], strides = [1, 1, 1, 1]} : vector<4x2x4x64xf32> to vector<4x1x4x64xf32>
    %151 = vector.shape_cast %150 : vector<4x1x4x64xf32> to vector<4x4x64xf32>
    %152 = arith.maximumf %149, %151 : vector<4x4x64xf32>
    %153 = vector.shape_cast %152 : vector<4x4x64xf32> to vector<2x8x64xf32>
    %154 = arith.truncf %153 : vector<2x8x64xf32> to vector<2x8x64xbf16>
    %c0_91 = arith.constant 0 : index
    %c8_92 = arith.constant 8 : index
    %c0_93 = arith.constant 0 : index
    %155 = vector.load %arg6[%c0_91, %c8_92, %c0_93] : memref<2x16x64xbf16, #tpu.memory_space<vmem>>, vector<2x8x64xbf16>
    tpu.vector_store %arg6[%c0_91, %c8_92, %c0_93], %154 {strides = array<i32>} : memref<2x16x64xbf16, #tpu.memory_space<vmem>>, vector<2x8x64xbf16>,
    return
  }
  func.func @transform_0(%arg0: i32) -> (i32, i32, i32, i32) {
    %c0_i32 = arith.constant 0 : i32
    %c0_i32_0 = arith.constant 0 : i32
    %c0_i32_1 = arith.constant 0 : i32
    %c0_i32_2 = arith.constant 0 : i32
    return %arg0, %c0_i32, %c0_i32_0, %c0_i32_1 : i32, i32, i32, i32
  }
  func.func @transform_1(%arg0: i32) -> (i32, i32) {
    %c0_i32 = arith.constant 0 : i32
    %c0_i32_0 = arith.constant 0 : i32
    %c0_i32_1 = arith.constant 0 : i32
    return %c0_i32, %c0_i32_0 : i32, i32
  }
  func.func @transform_2(%arg0: i32) -> (i32, i32) {
    %c0_i32 = arith.constant 0 : i32
    %c0_i32_0 = arith.constant 0 : i32
    %c0_i32_1 = arith.constant 0 : i32
    return %c0_i32, %c0_i32_0 : i32, i32
  }
  func.func @transform_3(%arg0: i32) -> (i32, i32) {
    %c0_i32 = arith.constant 0 : i32
    %c0_i32_0 = arith.constant 0 : i32
    %c0_i32_1 = arith.constant 0 : i32
    return %c0_i32, %c0_i32_0 : i32, i32
  }
  func.func @transform_4(%arg0: i32) -> (i32, i32) {
    %c0_i32 = arith.constant 0 : i32
    %c0_i32_0 = arith.constant 0 : i32
    %c0_i32_1 = arith.constant 0 : i32
    return %c0_i32, %c0_i32_0 : i32, i32
  }
  func.func @transform_5(%arg0: i32) -> (i32, i32, i32) {
    %c0_i32 = arith.constant 0 : i32
    %c0_i32_0 = arith.constant 0 : i32
    %c0_i32_1 = arith.constant 0 : i32
    return %arg0, %c0_i32, %c0_i32_0 : i32, i32, i32
  }
}

module attributes {stable_mosaic.version = 11 : i64} {
  func.func @_head_kernel(%arg0: i32, %arg1: memref<2x1024xbf16, #tpu.memory_space<vmem>>, %arg2: memref<2x1024xbf16, #tpu.memory_space<vmem>>, %arg3: memref<1024x128xbf16, #tpu.memory_space<vmem>>, %arg4: memref<1x128xf32, #tpu.memory_space<vmem>>, %arg5: memref<128x2xbf16, #tpu.memory_space<vmem>>, %arg6: memref<1x2xf32, #tpu.memory_space<vmem>>, %arg7: memref<2x2xf32, #tpu.memory_space<vmem>>, %arg8: memref<2x128xf32, #tpu.memory_space<vmem>>) attributes {dimension_semantics = [#tpu.dimension_semantics<arbitrary>], iteration_bounds = array<i64: 1>, scalar_prefetch = 0 : i64, scratch_operands = 1 : i64, tpu.core_type = #tpu.core_type<tc>, window_params = [{transform_indices = @transform_0, window_bounds = array<i64: 2, 1024>}, {transform_indices = @transform_1, window_bounds = array<i64: 2, 1024>}, {transform_indices = @transform_2, window_bounds = array<i64: 1024, 128>}, {pipeline_mode = #tpu.pipeline_mode<synchronous>, transform_indices = @transform_3, window_bounds = array<i64: 1, 128>}, {pipeline_mode = #tpu.pipeline_mode<synchronous>, transform_indices = @transform_4, window_bounds = array<i64: 128, 2>}, {pipeline_mode = #tpu.pipeline_mode<synchronous>, transform_indices = @transform_5, window_bounds = array<i64: 1, 2>}, {pipeline_mode = #tpu.pipeline_mode<synchronous>, transform_indices = @transform_6, window_bounds = array<i64: 2, 2>}]} {
    %c0_i32 = arith.constant 0 : i32
    %0 = arith.cmpi eq, %arg0, %c0_i32 : i32
    %1 = arith.extui %0 : i1 to i32
    %c0_i32_0 = arith.constant 0 : i32
    %2 = arith.cmpi ne, %1, %c0_i32_0 : i32
    scf.if %2 {
      %cst_12 = arith.constant 0.000000e+00 : f32
      %14 = vector.broadcast %cst_12 : f32 to vector<2x128xf32>
      %c0_13 = arith.constant 0 : index
      %c0_14 = arith.constant 0 : index
      %15 = vector.load %arg8[%c0_13, %c0_14] : memref<2x128xf32, #tpu.memory_space<vmem>>, vector<2x128xf32>
      tpu.vector_store %arg8[%c0_13, %c0_14], %14 {strides = array<i32>} : memref<2x128xf32, #tpu.memory_space<vmem>>, vector<2x128xf32>,
    } else {
    }
    %c0 = arith.constant 0 : index
    %c0_1 = arith.constant 0 : index
    %3 = vector.load %arg1[%c0, %c0_1] : memref<2x1024xbf16, #tpu.memory_space<vmem>>, vector<2x1024xbf16>
    %c0_2 = arith.constant 0 : index
    %c0_3 = arith.constant 0 : index
    %4 = vector.load %arg2[%c0_2, %c0_3] : memref<2x1024xbf16, #tpu.memory_space<vmem>>, vector<2x1024xbf16>
    %5 = arith.mulf %3, %4 : vector<2x1024xbf16>
    %c0_4 = arith.constant 0 : index
    %c0_5 = arith.constant 0 : index
    %6 = vector.load %arg8[%c0_4, %c0_5] : memref<2x128xf32, #tpu.memory_space<vmem>>, vector<2x128xf32>
    %c0_6 = arith.constant 0 : index
    %c0_7 = arith.constant 0 : index
    %7 = vector.load %arg3[%c0_6, %c0_7] : memref<1024x128xbf16, #tpu.memory_space<vmem>>, vector<1024x128xbf16>
    %cst = arith.constant dense<0.000000e+00> : vector<2x128xf32>
    %8 = tpu.matmul %5, %7, %cst {dimension_numbers = #tpu.dot_dimension_numbers<[1], [0], [0], [1], [0, 0, 1, 1], [], []>} : vector<2x1024xbf16>, vector<1024x128xbf16>, vector<2x128xf32> -> vector<2x128xf32>
    %9 = arith.addf %6, %8 : vector<2x128xf32>
    %c0_8 = arith.constant 0 : index
    %c0_9 = arith.constant 0 : index
    %10 = vector.load %arg8[%c0_8, %c0_9] : memref<2x128xf32, #tpu.memory_space<vmem>>, vector<2x128xf32>
    tpu.vector_store %arg8[%c0_8, %c0_9], %9 {strides = array<i32>} : memref<2x128xf32, #tpu.memory_space<vmem>>, vector<2x128xf32>,
    %c0_i32_10 = arith.constant 0 : i32
    %11 = arith.cmpi eq, %arg0, %c0_i32_10 : i32
    %12 = arith.extui %11 : i1 to i32
    %c0_i32_11 = arith.constant 0 : i32
    %13 = arith.cmpi ne, %12, %c0_i32_11 : i32
    scf.if %13 {
      %c0_12 = arith.constant 0 : index
      %c0_13 = arith.constant 0 : index
      %14 = vector.load %arg8[%c0_12, %c0_13] : memref<2x128xf32, #tpu.memory_space<vmem>>, vector<2x128xf32>
      %c0_14 = arith.constant 0 : index
      %c0_15 = arith.constant 0 : index
      %15 = vector.load %arg4[%c0_14, %c0_15] : memref<1x128xf32, #tpu.memory_space<vmem>>, vector<1x128xf32>
      %16 = vector.broadcast %15 : vector<1x128xf32> to vector<2x128xf32>
      %17 = arith.addf %14, %16 : vector<2x128xf32>
      %cst_16 = arith.constant 0.000000e+00 : f32
      %18 = vector.broadcast %cst_16 : f32 to vector<2x128xf32>
      %19 = arith.maximumf %17, %18 : vector<2x128xf32>
      %20 = arith.truncf %19 : vector<2x128xf32> to vector<2x128xbf16>
      %c0_17 = arith.constant 0 : index
      %c0_18 = arith.constant 0 : index
      %21 = vector.load %arg5[%c0_17, %c0_18] : memref<128x2xbf16, #tpu.memory_space<vmem>>, vector<128x2xbf16>
      %cst_19 = arith.constant dense<0.000000e+00> : vector<2x2xf32>
      %22 = tpu.matmul %20, %21, %cst_19 {dimension_numbers = #tpu.dot_dimension_numbers<[1], [0], [0], [1], [0, 0, 1, 1], [], []>} : vector<2x128xbf16>, vector<128x2xbf16>, vector<2x2xf32> -> vector<2x2xf32>
      %c0_20 = arith.constant 0 : index
      %c0_21 = arith.constant 0 : index
      %23 = vector.load %arg6[%c0_20, %c0_21] : memref<1x2xf32, #tpu.memory_space<vmem>>, vector<1x2xf32>
      %24 = vector.broadcast %23 : vector<1x2xf32> to vector<2x2xf32>
      %25 = arith.addf %22, %24 : vector<2x2xf32>
      %c0_22 = arith.constant 0 : index
      %c0_23 = arith.constant 0 : index
      %26 = vector.load %arg7[%c0_22, %c0_23] : memref<2x2xf32, #tpu.memory_space<vmem>>, vector<2x2xf32>
      tpu.vector_store %arg7[%c0_22, %c0_23], %25 {strides = array<i32>} : memref<2x2xf32, #tpu.memory_space<vmem>>, vector<2x2xf32>,
    } else {
    }
    return
  }
  func.func @transform_0(%arg0: i32) -> (i32, i32) {
    %c0_i32 = arith.constant 0 : i32
    %c0_i32_0 = arith.constant 0 : i32
    return %c0_i32, %arg0 : i32, i32
  }
  func.func @transform_1(%arg0: i32) -> (i32, i32) {
    %c0_i32 = arith.constant 0 : i32
    %c0_i32_0 = arith.constant 0 : i32
    return %c0_i32, %arg0 : i32, i32
  }
  func.func @transform_2(%arg0: i32) -> (i32, i32) {
    %c0_i32 = arith.constant 0 : i32
    %c0_i32_0 = arith.constant 0 : i32
    return %arg0, %c0_i32 : i32, i32
  }
  func.func @transform_3(%arg0: i32) -> (i32, i32) {
    %c0_i32 = arith.constant 0 : i32
    %c0_i32_0 = arith.constant 0 : i32
    %c0_i32_1 = arith.constant 0 : i32
    return %c0_i32, %c0_i32_0 : i32, i32
  }
  func.func @transform_4(%arg0: i32) -> (i32, i32) {
    %c0_i32 = arith.constant 0 : i32
    %c0_i32_0 = arith.constant 0 : i32
    %c0_i32_1 = arith.constant 0 : i32
    return %c0_i32, %c0_i32_0 : i32, i32
  }
  func.func @transform_5(%arg0: i32) -> (i32, i32) {
    %c0_i32 = arith.constant 0 : i32
    %c0_i32_0 = arith.constant 0 : i32
    %c0_i32_1 = arith.constant 0 : i32
    return %c0_i32, %c0_i32_0 : i32, i32
  }
  func.func @transform_6(%arg0: i32) -> (i32, i32) {
    %c0_i32 = arith.constant 0 : i32
    %c0_i32_0 = arith.constant 0 : i32
    %c0_i32_1 = arith.constant 0 : i32
    return %c0_i32, %c0_i32_0 : i32, i32
  }
}

</mosaic_0001>

<llo_original>
// kernel: model_forward.3
$region0: #{model_forward.3}
  #allocation0 [shape = 'u32[]', space=smem, size = 0x4, offset = 0x4, fixed_abs, tag = 'smem constant byte address 0x4 - core index']
  #allocation1 [shape = 'u32[72,128]{1,0:T(1,128)}', space=vmem, size = 0x9000, scoped, tag = 'internal scratch']
  #allocation2 [shape = 'f32[2,128]{1,0:T(2,128)}', space=vmem, size = 0x400, scoped, tag = 'scratch operand']
  %s0 = inlined_call_operand.vmem [shape: bf16[2,1024], index: 0, kind: input, shape index: {}]
  %s1 = inlined_call_operand.vmem [shape: bf16[2,1024], index: 1, kind: input, shape index: {}]
  %s2 = inlined_call_operand.vmem [shape: bf16[1024,128], index: 2, kind: input, shape index: {}]
  %s3 = inlined_call_operand.vmem [shape: f32[1,128], index: 3, kind: input, shape index: {}]
  %s4 = inlined_call_operand.vmem [shape: bf16[128,2], index: 4, kind: input, shape index: {}]
  %s5 = inlined_call_operand.vmem [shape: f32[1,2], index: 5, kind: input, shape index: {}]
  %s6 = inlined_call_operand.vmem [shape: f32[2,2], index: 6, kind: output, shape index: {}]
  %s7 = sld [smem:[#allocation0]]
  $region42: #{model_forward.3} parent=0
    _
  %s9 = ssub.s32 1, %s7
  %s10 = scalar_select 0, %s9, %s7
  // Predicated region
  $region2: #{model_forward.3} parent=0 // pred_check
    _
  $region3: #{model_forward.3} parent=0 // pred_check_branch
    %12 = sbr.rel (0) target = $region5
  $region4: #{model_forward.3} parent=0 // pred_region
    _
  $region5: #{model_forward.3} parent=0 // pred_fallthru
    _
  // Predicated region
  $region6: #{model_forward.3} parent=0 // pred_check
    _
  $region7: #{model_forward.3} parent=0 // pred_check_branch
    %14 = sbr.rel (0) target = $region9
  $region8: #{model_forward.3} parent=0 // pred_region
    _
  $region9: #{model_forward.3} parent=0 // pred_fallthru
    _
  // Predicated region
  $region10: #{model_forward.3} parent=0 // pred_check
    _
  $region11: #{model_forward.3} parent=0 // pred_check_branch
    %16 = sbr.rel (0) target = $region13
  $region12: #{model_forward.3} parent=0 // pred_region
    _
  $region13: #{model_forward.3} parent=0 // pred_fallthru
    _
  // Predicated region
  $region14: #{model_forward.3} parent=0 // pred_check
    _
  $region15: #{model_forward.3} parent=0 // pred_check_branch
    %18 = sbr.rel (0) target = $region17
  $region16: #{model_forward.3} parent=0 // pred_region
    _
  $region17: #{model_forward.3} parent=0 // pred_fallthru
    _
  // Predicated region
  $region18: #{model_forward.3} parent=0 // pred_check
    _
  $region19: #{model_forward.3} parent=0 // pred_check_branch
    %20 = sbr.rel (0) target = $region21
  $region20: #{model_forward.3} parent=0 // pred_region
    _
  $region21: #{model_forward.3} parent=0 // pred_fallthru
    _
  // Predicated region
  $region22: #{model_forward.3} parent=0 // pred_check
    _
  $region23: #{model_forward.3} parent=0 // pred_check_branch
    %22 = sbr.rel (0) target = $region25
  $region24: #{model_forward.3} parent=0 // pred_region
    _
  $region25: #{model_forward.3} parent=0 // pred_fallthru
    _
  %p23 = scmp.eq.s32.totalorder 0, 0
  // Predicated region
  $region26: #{model_forward.3} parent=0 // pred_check
    %p24 = pneg %p23
  $region27: #{model_forward.3} parent=0 // pred_check_branch
    %26 = sbr.rel (%p24) target = $region29
  $region28: #{model_forward.3} parent=0 // pred_region
    %27 = vst [vmem:[#allocation2] sm:$0x3] 0.0
  $region29: #{model_forward.3} parent=0 // pred_fallthru
    _
  %v28 = vld [vmem:[%s0] sm:$0xff]
  %v29 = vld [vmem:[%s1] sm:$0xff]
  %v30 = vunpack.c.l.bf16 %v28
  %v31 = vunpack.c.h.bf16 %v28
  %v32 = vunpack.c.l.bf16 %v29
  %v33 = vunpack.c.h.bf16 %v29
  %v34 = vmul.f32 %v30, %v32
  %v35 = vmul.f32 %v31, %v33
  %38 = vst [vmem:[#allocation1] ss:$4 sm:$0xff] %v34
  %s39 = scalar_lea.vmem [#allocation1], 32
  %40 = vst [vmem:[%s39] ss:$4 sm:$0xff] %v35
  %v41 = vld.sshfl [vmem:[#allocation1] sm:$0xff pattern:$0x73625140]
  %v42 = vld.sshfl [vmem:[#allocation1 + $0x8] sm:$0xff pattern:$0x73625140]
  %v43 = vld.sshfl [vmem:[#allocation1 + $0x10] sm:$0xff pattern:$0x73625140]
  %v44 = vld.sshfl [vmem:[#allocation1 + $0x18] sm:$0xff pattern:$0x73625140]
  %v45 = vld.sshfl [vmem:[#allocation1 + $0x20] sm:$0xff pattern:$0x73625140]
  %v46 = vld.sshfl [vmem:[#allocation1 + $0x28] sm:$0xff pattern:$0x73625140]
  %v47 = vld.sshfl [vmem:[#allocation1 + $0x30] sm:$0xff pattern:$0x73625140]
  %v48 = vld.sshfl [vmem:[#allocation1 + $0x38] sm:$0xff pattern:$0x73625140]
  %v57 = vpack.c.bf16 %v41, %v41
  %v58 = vpack.c.bf16 %v42, %v42
  %v59 = vpack.c.bf16 %v43, %v43
  %v60 = vpack.c.bf16 %v44, %v44
  %v61 = vpack.c.bf16 %v45, %v45
  %v62 = vpack.c.bf16 %v46, %v46
  %v63 = vpack.c.bf16 %v47, %v47
  %v64 = vpack.c.bf16 %v48, %v48
  %v65 = vld [vmem:[#allocation2] sm:$0x3]
  %v66 = vld [vmem:[%s2] sm:$0xf]
  %v67 = vld [vmem:[%s2 + $0x4] sm:$0xf]
  %v68 = vld [vmem:[%s2 + $0x8] sm:$0xf]
  %v69 = vld [vmem:[%s2 + $0xc] sm:$0xf]
  %v70 = vld [vmem:[%s2 + $0x10] sm:$0xf]
  %v71 = vld [vmem:[%s2 + $0x14] sm:$0xf]
  %v72 = vld [vmem:[%s2 + $0x18] sm:$0xf]
  %v73 = vld [vmem:[%s2 + $0x1c] sm:$0xf]
  %v74 = vld [vmem:[%s2 + $0x20] sm:$0xf]
  %v75 = vld [vmem:[%s2 + $0x24] sm:$0xf]
  %v76 = vld [vmem:[%s2 + $0x28] sm:$0xf]
  %v77 = vld [vmem:[%s2 + $0x2c] sm:$0xf]
  %v78 = vld [vmem:[%s2 + $0x30] sm:$0xf]
  %v79 = vld [vmem:[%s2 + $0x34] sm:$0xf]
  %v80 = vld [vmem:[%s2 + $0x38] sm:$0xf]
  %v81 = vld [vmem:[%s2 + $0x3c] sm:$0xf]
  %v82 = vld [vmem:[%s2 + $0x40] sm:$0xf]
  %v83 = vld [vmem:[%s2 + $0x44] sm:$0xf]
  %v84 = vld [vmem:[%s2 + $0x48] sm:$0xf]
  %v85 = vld [vmem:[%s2 + $0x4c] sm:$0xf]
  %v86 = vld [vmem:[%s2 + $0x50] sm:$0xf]
  %v87 = vld [vmem:[%s2 + $0x54] sm:$0xf]
  %v88 = vld [vmem:[%s2 + $0x58] sm:$0xf]
  %v89 = vld [vmem:[%s2 + $0x5c] sm:$0xf]
  %v90 = vld [vmem:[%s2 + $0x60] sm:$0xf]
  %v91 = vld [vmem:[%s2 + $0x64] sm:$0xf]
  %v92 = vld [vmem:[%s2 + $0x68] sm:$0xf]
  %v93 = vld [vmem:[%s2 + $0x6c] sm:$0xf]
  %v94 = vld [vmem:[%s2 + $0x70] sm:$0xf]
  %v95 = vld [vmem:[%s2 + $0x74] sm:$0xf]
  %v96 = vld [vmem:[%s2 + $0x78] sm:$0xf]
  %v97 = vld [vmem:[%s2 + $0x7c] sm:$0xf]
  %v98 = vld [vmem:[%s2 + $0x80] sm:$0xf]
  %v99 = vld [vmem:[%s2 + $0x84] sm:$0xf]
  %v100 = vld [vmem:[%s2 + $0x88] sm:$0xf]
  %v101 = vld [vmem:[%s2 + $0x8c] sm:$0xf]
  %v102 = vld [vmem:[%s2 + $0x90] sm:$0xf]
  %v103 = vld [vmem:[%s2 + $0x94] sm:$0xf]
  %v104 = vld [vmem:[%s2 + $0x98] sm:$0xf]
  %v105 = vld [vmem:[%s2 + $0x9c] sm:$0xf]
  %v106 = vld [vmem:[%s2 + $0xa0] sm:$0xf]
  %v107 = vld [vmem:[%s2 + $0xa4] sm:$0xf]
  %v108 = vld [vmem:[%s2 + $0xa8] sm:$0xf]
  %v109 = vld [vmem:[%s2 + $0xac] sm:$0xf]
  %v110 = vld [vmem:[%s2 + $0xb0] sm:$0xf]
  %v111 = vld [vmem:[%s2 + $0xb4] sm:$0xf]
  %v112 = vld [vmem:[%s2 + $0xb8] sm:$0xf]
  %v113 = vld [vmem:[%s2 + $0xbc] sm:$0xf]
  %v114 = vld [vmem:[%s2 + $0xc0] sm:$0xf]
  %v115 = vld [vmem:[%s2 + $0xc4] sm:$0xf]
  %v116 = vld [vmem:[%s2 + $0xc8] sm:$0xf]
  %v117 = vld [vmem:[%s2 + $0xcc] sm:$0xf]
  %v118 = vld [vmem:[%s2 + $0xd0] sm:$0xf]
  %v119 = vld [vmem:[%s2 + $0xd4] sm:$0xf]
  %v120 = vld [vmem:[%s2 + $0xd8] sm:$0xf]
  %v121 = vld [vmem:[%s2 + $0xdc] sm:$0xf]
  %v122 = vld [vmem:[%s2 + $0xe0] sm:$0xf]
  %v123 = vld [vmem:[%s2 + $0xe4] sm:$0xf]
  %v124 = vld [vmem:[%s2 + $0xe8] sm:$0xf]
  %v125 = vld [vmem:[%s2 + $0xec] sm:$0xf]
  %v126 = vld [vmem:[%s2 + $0xf0] sm:$0xf]
  %v127 = vld [vmem:[%s2 + $0xf4] sm:$0xf]
  %v128 = vld [vmem:[%s2 + $0xf8] sm:$0xf]
  %v129 = vld [vmem:[%s2 + $0xfc] sm:$0xf]
  %v130 = vld [vmem:[%s2 + $0x100] sm:$0xf]
  %v131 = vld [vmem:[%s2 + $0x104] sm:$0xf]
  %v132 = vld [vmem:[%s2 + $0x108] sm:$0xf]
  %v133 = vld [vmem:[%s2 + $0x10c] sm:$0xf]
  %v134 = vld [vmem:[%s2 + $0x110] sm:$0xf]
  %v135 = vld [vmem:[%s2 + $0x114] sm:$0xf]
  %v136 = vld [vmem:[%s2 + $0x118] sm:$0xf]
  %v137 = vld [vmem:[%s2 + $0x11c] sm:$0xf]
  %v138 = vld [vmem:[%s2 + $0x120] sm:$0xf]
  %v139 = vld [vmem:[%s2 + $0x124] sm:$0xf]
  %v140 = vld [vmem:[%s2 + $0x128] sm:$0xf]
  %v141 = vld [vmem:[%s2 + $0x12c] sm:$0xf]
  %v142 = vld [vmem:[%s2 + $0x130] sm:$0xf]
  %v143 = vld [vmem:[%s2 + $0x134] sm:$0xf]
  %v144 = vld [vmem:[%s2 + $0x138] sm:$0xf]
  %v145 = vld [vmem:[%s2 + $0x13c] sm:$0xf]
  %v146 = vld [vmem:[%s2 + $0x140] sm:$0xf]
  %v147 = vld [vmem:[%s2 + $0x144] sm:$0xf]
  %v148 = vld [vmem:[%s2 + $0x148] sm:$0xf]
  %v149 = vld [vmem:[%s2 + $0x14c] sm:$0xf]
  %v150 = vld [vmem:[%s2 + $0x150] sm:$0xf]
  %v151 = vld [vmem:[%s2 + $0x154] sm:$0xf]
  %v152 = vld [vmem:[%s2 + $0x158] sm:$0xf]
  %v153 = vld [vmem:[%s2 + $0x15c] sm:$0xf]
  %v154 = vld [vmem:[%s2 + $0x160] sm:$0xf]
  %v155 = vld [vmem:[%s2 + $0x164] sm:$0xf]
  %v156 = vld [vmem:[%s2 + $0x168] sm:$0xf]
  %v157 = vld [vmem:[%s2 + $0x16c] sm:$0xf]
  %v158 = vld [vmem:[%s2 + $0x170] sm:$0xf]
  %v159 = vld [vmem:[%s2 + $0x174] sm:$0xf]
  %v160 = vld [vmem:[%s2 + $0x178] sm:$0xf]
  %v161 = vld [vmem:[%s2 + $0x17c] sm:$0xf]
  %v162 = vld [vmem:[%s2 + $0x180] sm:$0xf]
  %v163 = vld [vmem:[%s2 + $0x184] sm:$0xf]
  %v164 = vld [vmem:[%s2 + $0x188] sm:$0xf]
  %v165 = vld [vmem:[%s2 + $0x18c] sm:$0xf]
  %v166 = vld [vmem:[%s2 + $0x190] sm:$0xf]
  %v167 = vld [vmem:[%s2 + $0x194] sm:$0xf]
  %v168 = vld [vmem:[%s2 + $0x198] sm:$0xf]
  %v169 = vld [vmem:[%s2 + $0x19c] sm:$0xf]
  %v170 = vld [vmem:[%s2 + $0x1a0] sm:$0xf]
  %v171 = vld [vmem:[%s2 + $0x1a4] sm:$0xf]
  %v172 = vld [vmem:[%s2 + $0x1a8] sm:$0xf]
  %v173 = vld [vmem:[%s2 + $0x1ac] sm:$0xf]
  %v174 = vld [vmem:[%s2 + $0x1b0] sm:$0xf]
  %v175 = vld [vmem:[%s2 + $0x1b4] sm:$0xf]
  %v176 = vld [vmem:[%s2 + $0x1b8] sm:$0xf]
  %v177 = vld [vmem:[%s2 + $0x1bc] sm:$0xf]
  %v178 = vld [vmem:[%s2 + $0x1c0] sm:$0xf]
  %v179 = vld [vmem:[%s2 + $0x1c4] sm:$0xf]
  %v180 = vld [vmem:[%s2 + $0x1c8] sm:$0xf]
  %v181 = vld [vmem:[%s2 + $0x1cc] sm:$0xf]
  %v182 = vld [vmem:[%s2 + $0x1d0] sm:$0xf]
  %v183 = vld [vmem:[%s2 + $0x1d4] sm:$0xf]
  %v184 = vld [vmem:[%s2 + $0x1d8] sm:$0xf]
  %v185 = vld [vmem:[%s2 + $0x1dc] sm:$0xf]
  %v186 = vld [vmem:[%s2 + $0x1e0] sm:$0xf]
  %v187 = vld [vmem:[%s2 + $0x1e4] sm:$0xf]
  %v188 = vld [vmem:[%s2 + $0x1e8] sm:$0xf]
  %v189 = vld [vmem:[%s2 + $0x1ec] sm:$0xf]
  %v190 = vld [vmem:[%s2 + $0x1f0] sm:$0xf]
  %v191 = vld [vmem:[%s2 + $0x1f4] sm:$0xf]
  %v192 = vld [vmem:[%s2 + $0x1f8] sm:$0xf]
  %v193 = vld [vmem:[%s2 + $0x1fc] sm:$0xf]
  %v322 = vunpack.c.l.b16 %v66
  %v323 = vunpack.c.l.b16 %v67
  %v324 = vunpack.c.l.b16 %v68
  %v325 = vunpack.c.l.b16 %v69
  %v326 = vunpack.c.l.b16 %v70
  %v327 = vunpack.c.l.b16 %v71
  %v328 = vunpack.c.l.b16 %v72
  %v329 = vunpack.c.l.b16 %v73
  %v330 = vunpack.c.l.b16 %v74
  %v331 = vunpack.c.l.b16 %v75
  %v332 = vunpack.c.l.b16 %v76
  %v333 = vunpack.c.l.b16 %v77
  %v334 = vunpack.c.l.b16 %v78
  %v335 = vunpack.c.l.b16 %v79
  %v336 = vunpack.c.l.b16 %v80
  %v337 = vunpack.c.l.b16 %v81
  %v338 = vunpack.c.l.b16 %v82
  %v339 = vunpack.c.l.b16 %v83
  %v340 = vunpack.c.l.b16 %v84
  %v341 = vunpack.c.l.b16 %v85
  %v342 = vunpack.c.l.b16 %v86
  %v343 = vunpack.c.l.b16 %v87
  %v344 = vunpack.c.l.b16 %v88
  %v345 = vunpack.c.l.b16 %v89
  %v346 = vunpack.c.l.b16 %v90
  %v347 = vunpack.c.l.b16 %v91
  %v348 = vunpack.c.l.b16 %v92
  %v349 = vunpack.c.l.b16 %v93
  %v350 = vunpack.c.l.b16 %v94
  %v351 = vunpack.c.l.b16 %v95
  %v352 = vunpack.c.l.b16 %v96
  %v353 = vunpack.c.l.b16 %v97
  %v354 = vunpack.c.l.b16 %v98
  %v355 = vunpack.c.l.b16 %v99
  %v356 = vunpack.c.l.b16 %v100
  %v357 = vunpack.c.l.b16 %v101
  %v358 = vunpack.c.l.b16 %v102
  %v359 = vunpack.c.l.b16 %v103
  %v360 = vunpack.c.l.b16 %v104
  %v361 = vunpack.c.l.b16 %v105
  %v362 = vunpack.c.l.b16 %v106
  %v363 = vunpack.c.l.b16 %v107
  %v364 = vunpack.c.l.b16 %v108
  %v365 = vunpack.c.l.b16 %v109
  %v366 = vunpack.c.l.b16 %v110
  %v367 = vunpack.c.l.b16 %v111
  %v368 = vunpack.c.l.b16 %v112
  %v369 = vunpack.c.l.b16 %v113
  %v370 = vunpack.c.l.b16 %v114
  %v371 = vunpack.c.l.b16 %v115
  %v372 = vunpack.c.l.b16 %v116
  %v373 = vunpack.c.l.b16 %v117
  %v374 = vunpack.c.l.b16 %v118
  %v375 = vunpack.c.l.b16 %v119
  %v376 = vunpack.c.l.b16 %v120
  %v377 = vunpack.c.l.b16 %v121
  %v378 = vunpack.c.l.b16 %v122
  %v379 = vunpack.c.l.b16 %v123
  %v380 = vunpack.c.l.b16 %v124
  %v381 = vunpack.c.l.b16 %v125
  %v382 = vunpack.c.l.b16 %v126
  %v383 = vunpack.c.l.b16 %v127
  %v384 = vunpack.c.l.b16 %v128
  %v385 = vunpack.c.l.b16 %v129
  %v386 = vunpack.c.l.b16 %v130
  %v387 = vunpack.c.l.b16 %v131
  %v388 = vunpack.c.l.b16 %v132
  %v389 = vunpack.c.l.b16 %v133
  %v390 = vunpack.c.l.b16 %v134
  %v391 = vunpack.c.l.b16 %v135
  %v392 = vunpack.c.l.b16 %v136
  %v393 = vunpack.c.l.b16 %v137
  %v394 = vunpack.c.l.b16 %v138
  %v395 = vunpack.c.l.b16 %v139
  %v396 = vunpack.c.l.b16 %v140
  %v397 = vunpack.c.l.b16 %v141
  %v398 = vunpack.c.l.b16 %v142
  %v399 = vunpack.c.l.b16 %v143
  %v400 = vunpack.c.l.b16 %v144
  %v401 = vunpack.c.l.b16 %v145
  %v402 = vunpack.c.l.b16 %v146
  %v403 = vunpack.c.l.b16 %v147
  %v404 = vunpack.c.l.b16 %v148
  %v405 = vunpack.c.l.b16 %v149
  %v406 = vunpack.c.l.b16 %v150
  %v407 = vunpack.c.l.b16 %v151
  %v408 = vunpack.c.l.b16 %v152
  %v409 = vunpack.c.l.b16 %v153
  %v410 = vunpack.c.l.b16 %v154
  %v411 = vunpack.c.l.b16 %v155
  %v412 = vunpack.c.l.b16 %v156
  %v413 = vunpack.c.l.b16 %v157
  %v414 = vunpack.c.l.b16 %v158
  %v415 = vunpack.c.l.b16 %v159
  %v416 = vunpack.c.l.b16 %v160
  %v417 = vunpack.c.l.b16 %v161
  %v418 = vunpack.c.l.b16 %v162
  %v419 = vunpack.c.l.b16 %v163
  %v420 = vunpack.c.l.b16 %v164
  %v421 = vunpack.c.l.b16 %v165
  %v422 = vunpack.c.l.b16 %v166
  %v423 = vunpack.c.l.b16 %v167
  %v424 = vunpack.c.l.b16 %v168
  %v425 = vunpack.c.l.b16 %v169
  %v426 = vunpack.c.l.b16 %v170
  %v427 = vunpack.c.l.b16 %v171
  %v428 = vunpack.c.l.b16 %v172
  %v429 = vunpack.c.l.b16 %v173
  %v430 = vunpack.c.l.b16 %v174
  %v431 = vunpack.c.l.b16 %v175
  %v432 = vunpack.c.l.b16 %v176
  %v433 = vunpack.c.l.b16 %v177
  %v434 = vunpack.c.l.b16 %v178
  %v435 = vunpack.c.l.b16 %v179
  %v436 = vunpack.c.l.b16 %v180
  %v437 = vunpack.c.l.b16 %v181
  %v438 = vunpack.c.l.b16 %v182
  %v439 = vunpack.c.l.b16 %v183
  %v440 = vunpack.c.l.b16 %v184
  %v441 = vunpack.c.l.b16 %v185
  %v442 = vunpack.c.l.b16 %v186
  %v443 = vunpack.c.l.b16 %v187
  %v444 = vunpack.c.l.b16 %v188
  %v445 = vunpack.c.l.b16 %v189
  %v446 = vunpack.c.l.b16 %v190
  %v447 = vunpack.c.l.b16 %v191
  %v448 = vunpack.c.l.b16 %v192
  %v449 = vunpack.c.l.b16 %v193
  %v450 = vpack.c.b16 %v323, %v322
  %v451 = vpack.c.b16 %v325, %v324
  %v452 = vpack.c.b16 %v327, %v326
  %v453 = vpack.c.b16 %v329, %v328
  %v454 = vpack.c.b16 %v331, %v330
  %v455 = vpack.c.b16 %v333, %v332
  %v456 = vpack.c.b16 %v335, %v334
  %v457 = vpack.c.b16 %v337, %v336
  %v458 = vpack.c.b16 %v339, %v338
  %v459 = vpack.c.b16 %v341, %v340
  %v460 = vpack.c.b16 %v343, %v342
  %v461 = vpack.c.b16 %v345, %v344
  %v462 = vpack.c.b16 %v347, %v346
  %v463 = vpack.c.b16 %v349, %v348
  %v464 = vpack.c.b16 %v351, %v350
  %v465 = vpack.c.b16 %v353, %v352
  %v466 = vpack.c.b16 %v355, %v354
  %v467 = vpack.c.b16 %v357, %v356
  %v468 = vpack.c.b16 %v359, %v358
  %v469 = vpack.c.b16 %v361, %v360
  %v470 = vpack.c.b16 %v363, %v362
  %v471 = vpack.c.b16 %v365, %v364
  %v472 = vpack.c.b16 %v367, %v366
  %v473 = vpack.c.b16 %v369, %v368
  %v474 = vpack.c.b16 %v371, %v370
  %v475 = vpack.c.b16 %v373, %v372
  %v476 = vpack.c.b16 %v375, %v374
  %v477 = vpack.c.b16 %v377, %v376
  %v478 = vpack.c.b16 %v379, %v378
  %v479 = vpack.c.b16 %v381, %v380
  %v480 = vpack.c.b16 %v383, %v382
  %v481 = vpack.c.b16 %v385, %v384
  %v482 = vpack.c.b16 %v387, %v386
  %v483 = vpack.c.b16 %v389, %v388
  %v484 = vpack.c.b16 %v391, %v390
  %v485 = vpack.c.b16 %v393, %v392
  %v486 = vpack.c.b16 %v395, %v394
  %v487 = vpack.c.b16 %v397, %v396
  %v488 = vpack.c.b16 %v399, %v398
  %v489 = vpack.c.b16 %v401, %v400
  %v490 = vpack.c.b16 %v403, %v402
  %v491 = vpack.c.b16 %v405, %v404
  %v492 = vpack.c.b16 %v407, %v406
  %v493 = vpack.c.b16 %v409, %v408
  %v494 = vpack.c.b16 %v411, %v410
  %v495 = vpack.c.b16 %v413, %v412
  %v496 = vpack.c.b16 %v415, %v414
  %v497 = vpack.c.b16 %v417, %v416
  %v498 = vpack.c.b16 %v419, %v418
  %v499 = vpack.c.b16 %v421, %v420
  %v500 = vpack.c.b16 %v423, %v422
  %v501 = vpack.c.b16 %v425, %v424
  %v502 = vpack.c.b16 %v427, %v426
  %v503 = vpack.c.b16 %v429, %v428
  %v504 = vpack.c.b16 %v431, %v430
  %v505 = vpack.c.b16 %v433, %v432
  %v506 = vpack.c.b16 %v435, %v434
  %v507 = vpack.c.b16 %v437, %v436
  %v508 = vpack.c.b16 %v439, %v438
  %v509 = vpack.c.b16 %v441, %v440
  %v510 = vpack.c.b16 %v443, %v442
  %v511 = vpack.c.b16 %v445, %v444
  %v512 = vpack.c.b16 %v447, %v446
  %v513 = vpack.c.b16 %v449, %v448
  %578 = vmatpush.bf16.msra.mxu0 %v457
  %579 = vmatpush.bf16.msra.mxu0 %v456
  %580 = vmatpush.bf16.msra.mxu0 %v455
  %581 = vmatpush.bf16.msra.mxu0 %v454
  %582 = vmatpush.bf16.msra.mxu0 %v453
  %583 = vmatpush.bf16.msra.mxu0 %v452
  %584 = vmatpush.bf16.msra.mxu0 %v451
  %585 = vmatpush.bf16.msra.mxu0 %v450
  %586 = vmatmul.bf16.gmra.mxu0 %v57
  %v587 = vpop.f32.mrf.mxu0
  %v588 = vadd.f32 0.0, %v587
  %v589 = vpop.f32.mrf.mxu0
  %590 = vdwg.mxu0
  %591 = vmatpush.bf16.msra.mxu0 %v465
  %592 = vmatpush.bf16.msra.mxu0 %v464
  %593 = vmatpush.bf16.msra.mxu0 %v463
  %594 = vmatpush.bf16.msra.mxu0 %v462
  %595 = vmatpush.bf16.msra.mxu0 %v461
  %596 = vmatpush.bf16.msra.mxu0 %v460
  %597 = vmatpush.bf16.msra.mxu0 %v459
  %598 = vmatpush.bf16.msra.mxu0 %v458
  %599 = vmatmul.bf16.gmra.mxu0 %v58
  %v600 = vpop.f32.mrf.mxu0
  %v601 = vadd.f32 %v588, %v600
  %v602 = vpop.f32.mrf.mxu0
  %603 = vdwg.mxu0
  %604 = vmatpush.bf16.msra.mxu0 %v473
  %605 = vmatpush.bf16.msra.mxu0 %v472
  %606 = vmatpush.bf16.msra.mxu0 %v471
  %607 = vmatpush.bf16.msra.mxu0 %v470
  %608 = vmatpush.bf16.msra.mxu0 %v469
  %609 = vmatpush.bf16.msra.mxu0 %v468
  %610 = vmatpush.bf16.msra.mxu0 %v467
  %611 = vmatpush.bf16.msra.mxu0 %v466
  %612 = vmatmul.bf16.gmra.mxu0 %v59
  %v613 = vpop.f32.mrf.mxu0
  %v614 = vadd.f32 %v601, %v613
  %v615 = vpop.f32.mrf.mxu0
  %616 = vdwg.mxu0
  %617 = vmatpush.bf16.msra.mxu0 %v481
  %618 = vmatpush.bf16.msra.mxu0 %v480
  %619 = vmatpush.bf16.msra.mxu0 %v479
  %620 = vmatpush.bf16.msra.mxu0 %v478
  %621 = vmatpush.bf16.msra.mxu0 %v477
  %622 = vmatpush.bf16.msra.mxu0 %v476
  %623 = vmatpush.bf16.msra.mxu0 %v475
  %624 = vmatpush.bf16.msra.mxu0 %v474
  %625 = vmatmul.bf16.gmra.mxu0 %v60
  %v626 = vpop.f32.mrf.mxu0
  %v627 = vadd.f32 %v614, %v626
  %v628 = vpop.f32.mrf.mxu0
  %629 = vdwg.mxu0
  %630 = vmatpush.bf16.msra.mxu0 %v489
  %631 = vmatpush.bf16.msra.mxu0 %v488
  %632 = vmatpush.bf16.msra.mxu0 %v487
  %633 = vmatpush.bf16.msra.mxu0 %v486
  %634 = vmatpush.bf16.msra.mxu0 %v485
  %635 = vmatpush.bf16.msra.mxu0 %v484
  %636 = vmatpush.bf16.msra.mxu0 %v483
  %637 = vmatpush.bf16.msra.mxu0 %v482
  %638 = vmatmul.bf16.gmra.mxu0 %v61
  %v639 = vpop.f32.mrf.mxu0
  %v640 = vadd.f32 %v627, %v639
  %v641 = vpop.f32.mrf.mxu0
  %642 = vdwg.mxu0
  %643 = vmatpush.bf16.msra.mxu0 %v497
  %644 = vmatpush.bf16.msra.mxu0 %v496
  %645 = vmatpush.bf16.msra.mxu0 %v495
  %646 = vmatpush.bf16.msra.mxu0 %v494
  %647 = vmatpush.bf16.msra.mxu0 %v493
  %648 = vmatpush.bf16.msra.mxu0 %v492
  %649 = vmatpush.bf16.msra.mxu0 %v491
  %650 = vmatpush.bf16.msra.mxu0 %v490
  %651 = vmatmul.bf16.gmra.mxu0 %v62
  %v652 = vpop.f32.mrf.mxu0
  %v653 = vadd.f32 %v640, %v652
  %v654 = vpop.f32.mrf.mxu0
  %655 = vdwg.mxu0
  %656 = vmatpush.bf16.msra.mxu0 %v505
  %657 = vmatpush.bf16.msra.mxu0 %v504
  %658 = vmatpush.bf16.msra.mxu0 %v503
  %659 = vmatpush.bf16.msra.mxu0 %v502
  %660 = vmatpush.bf16.msra.mxu0 %v501
  %661 = vmatpush.bf16.msra.mxu0 %v500
  %662 = vmatpush.bf16.msra.mxu0 %v499
  %663 = vmatpush.bf16.msra.mxu0 %v498
  %664 = vmatmul.bf16.gmra.mxu0 %v63
  %v665 = vpop.f32.mrf.mxu0
  %v666 = vadd.f32 %v653, %v665
  %v667 = vpop.f32.mrf.mxu0
  %668 = vdwg.mxu0
  %669 = vmatpush.bf16.msra.mxu0 %v513
  %670 = vmatpush.bf16.msra.mxu0 %v512
  %671 = vmatpush.bf16.msra.mxu0 %v511
  %672 = vmatpush.bf16.msra.mxu0 %v510
  %673 = vmatpush.bf16.msra.mxu0 %v509
  %674 = vmatpush.bf16.msra.mxu0 %v508
  %675 = vmatpush.bf16.msra.mxu0 %v507
  %676 = vmatpush.bf16.msra.mxu0 %v506
  %677 = vmatmul.bf16.gmra.mxu0 %v64
  %v678 = vpop.f32.mrf.mxu0
  %v679 = vadd.f32 %v666, %v678
  %v680 = vpop.f32.mrf.mxu0
  %681 = vdwg.mxu0
  %v682 = vadd.f32 %v65, %v679
  %683 = vst [vmem:[#allocation2] sm:$0x3] %v682
  // Predicated region
  $region30: #{model_forward.3} parent=0 // pred_check
    %p684 = pneg %p23
  $region31: #{model_forward.3} parent=0 // pred_check_branch
    %686 = sbr.rel (%p684) target = $region33
  $region32: #{model_forward.3} parent=0 // pred_region
    %v687 = vld [vmem:[#allocation2] sm:$0x3]
    %v688 = vld [vmem:[%s3] sm:$0x1]
    %v690 = vperm.slane %v688, 0
    %v692 = vadd.f32 %v687, %v690
    %v693 = vmax.f32 %v692, 0.0
    %v694 = vpack.c.bf16 %v693, %v693
    %v695 = vld [vmem:[%s4] sm:$0xf]
    %v696 = vld [vmem:[%s4 + $0x4] sm:$0xf]
    %v697 = vld [vmem:[%s4 + $0x8] sm:$0xf]
    %v698 = vld [vmem:[%s4 + $0xc] sm:$0xf]
    %v699 = vld [vmem:[%s4 + $0x10] sm:$0xf]
    %v700 = vld [vmem:[%s4 + $0x14] sm:$0xf]
    %v701 = vld [vmem:[%s4 + $0x18] sm:$0xf]
    %v702 = vld [vmem:[%s4 + $0x1c] sm:$0xf]
    %v703 = vld [vmem:[%s4 + $0x20] sm:$0xf]
    %v704 = vld [vmem:[%s4 + $0x24] sm:$0xf]
    %v705 = vld [vmem:[%s4 + $0x28] sm:$0xf]
    %v706 = vld [vmem:[%s4 + $0x2c] sm:$0xf]
    %v707 = vld [vmem:[%s4 + $0x30] sm:$0xf]
    %v708 = vld [vmem:[%s4 + $0x34] sm:$0xf]
    %v709 = vld [vmem:[%s4 + $0x38] sm:$0xf]
    %v710 = vld [vmem:[%s4 + $0x3c] sm:$0xf]
    %v711 = vld [vmem:[%s5] sm:$0x1]
    %v713 = vperm.slane %v711, 0
    %v731 = vunpack.c.l.b16 %v695
    %v732 = vunpack.c.l.b16 %v696
    %v733 = vunpack.c.l.b16 %v697
    %v734 = vunpack.c.l.b16 %v698
    %v735 = vunpack.c.l.b16 %v699
    %v736 = vunpack.c.l.b16 %v700
    %v737 = vunpack.c.l.b16 %v701
    %v738 = vunpack.c.l.b16 %v702
    %v739 = vunpack.c.l.b16 %v703
    %v740 = vunpack.c.l.b16 %v704
    %v741 = vunpack.c.l.b16 %v705
    %v742 = vunpack.c.l.b16 %v706
    %v743 = vunpack.c.l.b16 %v707
    %v744 = vunpack.c.l.b16 %v708
    %v745 = vunpack.c.l.b16 %v709
    %v746 = vunpack.c.l.b16 %v710
    %v747 = vpack.c.b16 %v732, %v731
    %v748 = vpack.c.b16 %v734, %v733
    %v749 = vpack.c.b16 %v736, %v735
    %v750 = vpack.c.b16 %v738, %v737
    %v751 = vpack.c.b16 %v740, %v739
    %v752 = vpack.c.b16 %v742, %v741
    %v753 = vpack.c.b16 %v744, %v743
    %v754 = vpack.c.b16 %v746, %v745
    %763 = vmatpush.bf16.msra.mxu0 %v754
    %764 = vmatpush.bf16.msra.mxu0 %v753
    %765 = vmatpush.bf16.msra.mxu0 %v752
    %766 = vmatpush.bf16.msra.mxu0 %v751
    %767 = vmatpush.bf16.msra.mxu0 %v750
    %768 = vmatpush.bf16.msra.mxu0 %v749
    %769 = vmatpush.bf16.msra.mxu0 %v748
    %770 = vmatpush.bf16.msra.mxu0 %v747
    %771 = vmatmul.bf16.gmra.mxu0 %v694
    %v772 = vpop.f32.mrf.mxu0
    %v773 = vadd.f32 %v713, %v772
    %v774 = vpop.f32.mrf.mxu0
    %775 = vdwg.mxu0
    %vm776 = vcmask 9216
    %777 = vst.msk [vmem:[%s6] sm:$0x3] %vm776, %v773
  $region33: #{model_forward.3} parent=0 // pred_fallthru
    _
  // Predicated region
  $region34: #{model_forward.3} parent=0 // pred_check
    _
  $region35: #{model_forward.3} parent=0 // pred_check_branch
    %779 = sbr.rel (0) target = $region37
  $region36: #{model_forward.3} parent=0 // pred_region
    _
  $region37: #{model_forward.3} parent=0 // pred_fallthru
    _
  // Predicated region
  $region38: #{model_forward.3} parent=0 // pred_check
    _
  $region39: #{model_forward.3} parent=0 // pred_check_branch
    %781 = sbr.rel (0) target = $region41
  $region40: #{model_forward.3} parent=0 // pred_region
    _
  $region41: #{model_forward.3} parent=0 // pred_fallthru
    _

// kernel: model_forward.2
$region0: #{model_forward.2}
  #allocation0 [shape = 'u32[]', space=smem, size = 0x4, offset = 0x4, fixed_abs, tag = 'smem constant byte address 0x4 - core index']
  #allocation1 [shape = 'u32[72,128]{1,0:T(1,128)}', space=vmem, size = 0x9000, scoped, tag = 'internal scratch']
  #allocation2 [shape = 'f32[2,18,18,3]{3,2,1,0:T(8,128)}', space=vmem, size = 0x6c000, scoped, tag = 'scratch operand']
  #allocation3 [shape = 'f32[2,10,10,32]{3,2,1,0:T(8,128)}', space=vmem, size = 0x28000, scoped, tag = 'scratch operand']
  %s0 = inlined_call_operand.vmem [shape: f32[2,16,16,3], index: 0, kind: input, shape index: {}]
  %s1 = inlined_call_operand.vmem [shape: bf16[27,32], index: 1, kind: input, shape index: {}]
  %s2 = inlined_call_operand.vmem [shape: f32[1,32], index: 2, kind: input, shape index: {}]
  %s3 = inlined_call_operand.vmem [shape: bf16[288,64], index: 3, kind: input, shape index: {}]
  %s4 = inlined_call_operand.vmem [shape: f32[1,64], index: 4, kind: input, shape index: {}]
  %s5 = inlined_call_operand.vmem [shape: bf16[2,16,64], index: 5, kind: output, shape index: {}]
  %s6 = sld [smem:[#allocation0]]
  $region30: #{model_forward.2} parent=0
    _
  %s8 = ssub.s32 1, %s6
  %s9 = scalar_select 0, %s8, %s6
  // Predicated region
  $region2: #{model_forward.2} parent=0 // pred_check
    _
  $region3: #{model_forward.2} parent=0 // pred_check_branch
    %11 = sbr.rel (0) target = $region5
  $region4: #{model_forward.2} parent=0 // pred_region
    _
  $region5: #{model_forward.2} parent=0 // pred_fallthru
    _
  // Predicated region
  $region6: #{model_forward.2} parent=0 // pred_check
    _
  $region7: #{model_forward.2} parent=0 // pred_check_branch
    %13 = sbr.rel (0) target = $region9
  $region8: #{model_forward.2} parent=0 // pred_region
    _
  $region9: #{model_forward.2} parent=0 // pred_fallthru
    _
  // Predicated region
  $region10: #{model_forward.2} parent=0 // pred_check
    _
  $region11: #{model_forward.2} parent=0 // pred_check_branch
    %15 = sbr.rel (0) target = $region13
  $region12: #{model_forward.2} parent=0 // pred_region
    _
  $region13: #{model_forward.2} parent=0 // pred_fallthru
    _
  // Predicated region
  $region14: #{model_forward.2} parent=0 // pred_check
    _
  $region15: #{model_forward.2} parent=0 // pred_check_branch
    %17 = sbr.rel (0) target = $region17
  $region16: #{model_forward.2} parent=0 // pred_region
    _
  $region17: #{model_forward.2} parent=0 // pred_fallthru
    _
  // Predicated region
  $region18: #{model_forward.2} parent=0 // pred_check
    _
  $region19: #{model_forward.2} parent=0 // pred_check_branch
    %19 = sbr.rel (0) target = $region21
  $region20: #{model_forward.2} parent=0 // pred_region
    _
  $region21: #{model_forward.2} parent=0 // pred_fallthru
    _
  %vm21 = vcmask 23552
  %22 = vst.msk [vmem:[#allocation2] sm:$0xff] %vm21, 0.0
  %23 = vst.msk [vmem:[#allocation2 + $0x8] sm:$0xff] %vm21, 0.0
  %vm24 = vcmask 17408
  %25 = vst.msk [vmem:[#allocation2 + $0x10] sm:$0x3] %vm24, 0.0
  %26 = vst.msk [vmem:[#allocation2 + $0x1b0] sm:$0xff] %vm21, 0.0
  %27 = vst.msk [vmem:[#allocation2 + $0x1b8] sm:$0xff] %vm21, 0.0
  %28 = vst.msk [vmem:[#allocation2 + $0x1c0] sm:$0x3] %vm24, 0.0
  %s29 = scalar_lea.vmem [#allocation2], 408
  %30 = vst.msk [vmem:[%s29] sm:$0xff] %vm21, 0.0
  %31 = vst.msk [vmem:[%s29 + $0x8] sm:$0xff] %vm21, 0.0
  %32 = vst.msk [vmem:[%s29 + $0x10] sm:$0x3] %vm24, 0.0
  %33 = vst.msk [vmem:[%s29 + $0x1b0] sm:$0xff] %vm21, 0.0
  %34 = vst.msk [vmem:[%s29 + $0x1b8] sm:$0xff] %vm21, 0.0
  %35 = vst.msk [vmem:[%s29 + $0x1c0] sm:$0x3] %vm24, 0.0
  %vm36 = vcmask 16384
  %37 = vst.msk [vmem:[#allocation2] sm:$0x1] %vm36, 0.0
  %38 = vst.msk [vmem:[#allocation2 + $0x18] sm:$0x1] %vm36, 0.0
  %39 = vst.msk [vmem:[#allocation2 + $0x30] sm:$0x1] %vm36, 0.0
  %40 = vst.msk [vmem:[#allocation2 + $0x48] sm:$0x1] %vm36, 0.0
  %41 = vst.msk [vmem:[#allocation2 + $0x60] sm:$0x1] %vm36, 0.0
  %42 = vst.msk [vmem:[#allocation2 + $0x78] sm:$0x1] %vm36, 0.0
  %43 = vst.msk [vmem:[#allocation2 + $0x90] sm:$0x1] %vm36, 0.0
  %44 = vst.msk [vmem:[#allocation2 + $0xa8] sm:$0x1] %vm36, 0.0
  %45 = vst.msk [vmem:[#allocation2 + $0xc0] sm:$0x1] %vm36, 0.0
  %46 = vst.msk [vmem:[#allocation2 + $0xd8] sm:$0x1] %vm36, 0.0
  %47 = vst.msk [vmem:[#allocation2 + $0xf0] sm:$0x1] %vm36, 0.0
  %48 = vst.msk [vmem:[#allocation2 + $0x108] sm:$0x1] %vm36, 0.0
  %49 = vst.msk [vmem:[#allocation2 + $0x120] sm:$0x1] %vm36, 0.0
  %50 = vst.msk [vmem:[#allocation2 + $0x138] sm:$0x1] %vm36, 0.0
  %51 = vst.msk [vmem:[#allocation2 + $0x150] sm:$0x1] %vm36, 0.0
  %52 = vst.msk [vmem:[#allocation2 + $0x168] sm:$0x1] %vm36, 0.0
  %53 = vst.msk [vmem:[#allocation2 + $0x180] sm:$0x1] %vm36, 0.0
  %54 = vst.msk [vmem:[#allocation2 + $0x198] sm:$0x1] %vm36, 0.0
  %55 = vst.msk [vmem:[#allocation2 + $0x1b0] sm:$0x1] %vm36, 0.0
  %56 = vst.msk [vmem:[#allocation2 + $0x1c8] sm:$0x1] %vm36, 0.0
  %57 = vst.msk [vmem:[#allocation2 + $0x1e0] sm:$0x1] %vm36, 0.0
  %58 = vst.msk [vmem:[#allocation2 + $0x1f8] sm:$0x1] %vm36, 0.0
  %59 = vst.msk [vmem:[#allocation2 + $0x210] sm:$0x1] %vm36, 0.0
  %60 = vst.msk [vmem:[#allocation2 + $0x228] sm:$0x1] %vm36, 0.0
  %61 = vst.msk [vmem:[#allocation2 + $0x240] sm:$0x1] %vm36, 0.0
  %62 = vst.msk [vmem:[#allocation2 + $0x258] sm:$0x1] %vm36, 0.0
  %63 = vst.msk [vmem:[#allocation2 + $0x270] sm:$0x1] %vm36, 0.0
  %64 = vst.msk [vmem:[#allocation2 + $0x288] sm:$0x1] %vm36, 0.0
  %65 = vst.msk [vmem:[#allocation2 + $0x2a0] sm:$0x1] %vm36, 0.0
  %66 = vst.msk [vmem:[#allocation2 + $0x2b8] sm:$0x1] %vm36, 0.0
  %67 = vst.msk [vmem:[#allocation2 + $0x2d0] sm:$0x1] %vm36, 0.0
  %68 = vst.msk [vmem:[#allocation2 + $0x2e8] sm:$0x1] %vm36, 0.0
  %69 = vst.msk [vmem:[#allocation2 + $0x300] sm:$0x1] %vm36, 0.0
  %70 = vst.msk [vmem:[#allocation2 + $0x318] sm:$0x1] %vm36, 0.0
  %71 = vst.msk [vmem:[#allocation2 + $0x330] sm:$0x1] %vm36, 0.0
  %72 = vst.msk [vmem:[#allocation2 + $0x348] sm:$0x1] %vm36, 0.0
  %73 = vst.msk [vmem:[#allocation2 + $0x11] sm:$0x1] %vm36, 0.0
  %74 = vst.msk [vmem:[#allocation2 + $0x29] sm:$0x1] %vm36, 0.0
  %75 = vst.msk [vmem:[#allocation2 + $0x41] sm:$0x1] %vm36, 0.0
  %76 = vst.msk [vmem:[#allocation2 + $0x59] sm:$0x1] %vm36, 0.0
  %77 = vst.msk [vmem:[#allocation2 + $0x71] sm:$0x1] %vm36, 0.0
  %78 = vst.msk [vmem:[#allocation2 + $0x89] sm:$0x1] %vm36, 0.0
  %79 = vst.msk [vmem:[#allocation2 + $0xa1] sm:$0x1] %vm36, 0.0
  %80 = vst.msk [vmem:[#allocation2 + $0xb9] sm:$0x1] %vm36, 0.0
  %81 = vst.msk [vmem:[#allocation2 + $0xd1] sm:$0x1] %vm36, 0.0
  %82 = vst.msk [vmem:[#allocation2 + $0xe9] sm:$0x1] %vm36, 0.0
  %83 = vst.msk [vmem:[#allocation2 + $0x101] sm:$0x1] %vm36, 0.0
  %84 = vst.msk [vmem:[#allocation2 + $0x119] sm:$0x1] %vm36, 0.0
  %85 = vst.msk [vmem:[#allocation2 + $0x131] sm:$0x1] %vm36, 0.0
  %86 = vst.msk [vmem:[#allocation2 + $0x149] sm:$0x1] %vm36, 0.0
  %87 = vst.msk [vmem:[#allocation2 + $0x161] sm:$0x1] %vm36, 0.0
  %88 = vst.msk [vmem:[#allocation2 + $0x179] sm:$0x1] %vm36, 0.0
  %89 = vst.msk [vmem:[#allocation2 + $0x191] sm:$0x1] %vm36, 0.0
  %90 = vst.msk [vmem:[#allocation2 + $0x1a9] sm:$0x1] %vm36, 0.0
  %91 = vst.msk [vmem:[#allocation2 + $0x1c1] sm:$0x1] %vm36, 0.0
  %92 = vst.msk [vmem:[#allocation2 + $0x1d9] sm:$0x1] %vm36, 0.0
  %93 = vst.msk [vmem:[#allocation2 + $0x1f1] sm:$0x1] %vm36, 0.0
  %94 = vst.msk [vmem:[#allocation2 + $0x209] sm:$0x1] %vm36, 0.0
  %95 = vst.msk [vmem:[#allocation2 + $0x221] sm:$0x1] %vm36, 0.0
  %96 = vst.msk [vmem:[#allocation2 + $0x239] sm:$0x1] %vm36, 0.0
  %97 = vst.msk [vmem:[#allocation2 + $0x251] sm:$0x1] %vm36, 0.0
  %98 = vst.msk [vmem:[#allocation2 + $0x269] sm:$0x1] %vm36, 0.0
  %99 = vst.msk [vmem:[#allocation2 + $0x281] sm:$0x1] %vm36, 0.0
  %100 = vst.msk [vmem:[#allocation2 + $0x299] sm:$0x1] %vm36, 0.0
  %101 = vst.msk [vmem:[#allocation2 + $0x2b1] sm:$0x1] %vm36, 0.0
  %102 = vst.msk [vmem:[#allocation2 + $0x2c9] sm:$0x1] %vm36, 0.0
  %103 = vst.msk [vmem:[#allocation2 + $0x2e1] sm:$0x1] %vm36, 0.0
  %104 = vst.msk [vmem:[#allocation2 + $0x2f9] sm:$0x1] %vm36, 0.0
  %105 = vst.msk [vmem:[#allocation2 + $0x311] sm:$0x1] %vm36, 0.0
  %106 = vst.msk [vmem:[#allocation2 + $0x329] sm:$0x1] %vm36, 0.0
  %107 = vst.msk [vmem:[#allocation2 + $0x341] sm:$0x1] %vm36, 0.0
  %108 = vst.msk [vmem:[#allocation2 + $0x359] sm:$0x1] %vm36, 0.0
  %vm109 = vcmask 261120
  %110 = vst.msk [vmem:[#allocation3] sm:$0xff] %vm109, 0.0
  %vm111 = vcmask 254976
  %112 = vst.msk [vmem:[#allocation3 + $0x8] sm:$0x3] %vm111, 0.0
  %113 = vst.msk [vmem:[#allocation3 + $0xa0] sm:$0xff] %vm109, 0.0
  %114 = vst.msk [vmem:[#allocation3 + $0xa8] sm:$0x3] %vm111, 0.0
  %s115 = scalar_lea.vmem [#allocation3], 144
  %116 = vst.msk [vmem:[%s115] sm:$0xff] %vm109, 0.0
  %117 = vst.msk [vmem:[%s115 + $0x8] sm:$0x3] %vm111, 0.0
  %118 = vst.msk [vmem:[%s115 + $0xa0] sm:$0xff] %vm109, 0.0
  %119 = vst.msk [vmem:[%s115 + $0xa8] sm:$0x3] %vm111, 0.0
  %vm120 = vcmask 253952
  %121 = vst.msk [vmem:[#allocation3] sm:$0x1] %vm120, 0.0
  %122 = vst.msk [vmem:[#allocation3 + $0x10] sm:$0x1] %vm120, 0.0
  %123 = vst.msk [vmem:[#allocation3 + $0x20] sm:$0x1] %vm120, 0.0
  %124 = vst.msk [vmem:[#allocation3 + $0x30] sm:$0x1] %vm120, 0.0
  %125 = vst.msk [vmem:[#allocation3 + $0x40] sm:$0x1] %vm120, 0.0
  %126 = vst.msk [vmem:[#allocation3 + $0x50] sm:$0x1] %vm120, 0.0
  %127 = vst.msk [vmem:[#allocation3 + $0x60] sm:$0x1] %vm120, 0.0
  %128 = vst.msk [vmem:[#allocation3 + $0x70] sm:$0x1] %vm120, 0.0
  %129 = vst.msk [vmem:[#allocation3 + $0x80] sm:$0x1] %vm120, 0.0
  %130 = vst.msk [vmem:[#allocation3 + $0x90] sm:$0x1] %vm120, 0.0
  %131 = vst.msk [vmem:[#allocation3 + $0xa0] sm:$0x1] %vm120, 0.0
  %132 = vst.msk [vmem:[#allocation3 + $0xb0] sm:$0x1] %vm120, 0.0
  %133 = vst.msk [vmem:[#allocation3 + $0xc0] sm:$0x1] %vm120, 0.0
  %134 = vst.msk [vmem:[#allocation3 + $0xd0] sm:$0x1] %vm120, 0.0
  %135 = vst.msk [vmem:[#allocation3 + $0xe0] sm:$0x1] %vm120, 0.0
  %136 = vst.msk [vmem:[#allocation3 + $0xf0] sm:$0x1] %vm120, 0.0
  %137 = vst.msk [vmem:[#allocation3 + $0x100] sm:$0x1] %vm120, 0.0
  %138 = vst.msk [vmem:[#allocation3 + $0x110] sm:$0x1] %vm120, 0.0
  %139 = vst.msk [vmem:[#allocation3 + $0x120] sm:$0x1] %vm120, 0.0
  %140 = vst.msk [vmem:[#allocation3 + $0x130] sm:$0x1] %vm120, 0.0
  %141 = vst.msk [vmem:[#allocation3 + $0x9] sm:$0x1] %vm120, 0.0
  %142 = vst.msk [vmem:[#allocation3 + $0x19] sm:$0x1] %vm120, 0.0
  %143 = vst.msk [vmem:[#allocation3 + $0x29] sm:$0x1] %vm120, 0.0
  %144 = vst.msk [vmem:[#allocation3 + $0x39] sm:$0x1] %vm120, 0.0
  %145 = vst.msk [vmem:[#allocation3 + $0x49] sm:$0x1] %vm120, 0.0
  %146 = vst.msk [vmem:[#allocation3 + $0x59] sm:$0x1] %vm120, 0.0
  %147 = vst.msk [vmem:[#allocation3 + $0x69] sm:$0x1] %vm120, 0.0
  %148 = vst.msk [vmem:[#allocation3 + $0x79] sm:$0x1] %vm120, 0.0
  %149 = vst.msk [vmem:[#allocation3 + $0x89] sm:$0x1] %vm120, 0.0
  %150 = vst.msk [vmem:[#allocation3 + $0x99] sm:$0x1] %vm120, 0.0
  %151 = vst.msk [vmem:[#allocation3 + $0xa9] sm:$0x1] %vm120, 0.0
  %152 = vst.msk [vmem:[#allocation3 + $0xb9] sm:$0x1] %vm120, 0.0
  %153 = vst.msk [vmem:[#allocation3 + $0xc9] sm:$0x1] %vm120, 0.0
  %154 = vst.msk [vmem:[#allocation3 + $0xd9] sm:$0x1] %vm120, 0.0
  %155 = vst.msk [vmem:[#allocation3 + $0xe9] sm:$0x1] %vm120, 0.0
  %156 = vst.msk [vmem:[#allocation3 + $0xf9] sm:$0x1] %vm120, 0.0
  %157 = vst.msk [vmem:[#allocation3 + $0x109] sm:$0x1] %vm120, 0.0
  %158 = vst.msk [vmem:[#allocation3 + $0x119] sm:$0x1] %vm120, 0.0
  %159 = vst.msk [vmem:[#allocation3 + $0x129] sm:$0x1] %vm120, 0.0
  %160 = vst.msk [vmem:[#allocation3 + $0x139] sm:$0x1] %vm120, 0.0
  %v161 = vld [vmem:[%s0] sm:$0xff]
  %v162 = vld [vmem:[%s0 + $0x8] sm:$0xff]
  %v163 = vld [vmem:[%s0 + $0x10] sm:$0xff]
  %v164 = vld [vmem:[%s0 + $0x18] sm:$0xff]
  %v165 = vld [vmem:[%s0 + $0x20] sm:$0xff]
  %v166 = vld [vmem:[%s0 + $0x28] sm:$0xff]
  %v167 = vld [vmem:[%s0 + $0x30] sm:$0xff]
  %v168 = vld [vmem:[%s0 + $0x38] sm:$0xff]
  %v169 = vld [vmem:[%s0 + $0x40] sm:$0xff]
  %v170 = vld [vmem:[%s0 + $0x48] sm:$0xff]
  %v171 = vld [vmem:[%s0 + $0x50] sm:$0xff]
  %v172 = vld [vmem:[%s0 + $0x58] sm:$0xff]
  %v173 = vld [vmem:[%s0 + $0x60] sm:$0xff]
  %v174 = vld [vmem:[%s0 + $0x68] sm:$0xff]
  %v175 = vld [vmem:[%s0 + $0x70] sm:$0xff]
  %v176 = vld [vmem:[%s0 + $0x78] sm:$0xff]
  %v177 = vld [vmem:[%s0 + $0x80] sm:$0xff]
  %v178 = vld [vmem:[%s0 + $0x88] sm:$0xff]
  %v179 = vld [vmem:[%s0 + $0x90] sm:$0xff]
  %v180 = vld [vmem:[%s0 + $0x98] sm:$0xff]
  %v181 = vld [vmem:[%s0 + $0xa0] sm:$0xff]
  %v182 = vld [vmem:[%s0 + $0xa8] sm:$0xff]
  %v183 = vld [vmem:[%s0 + $0xb0] sm:$0xff]
  %v184 = vld [vmem:[%s0 + $0xb8] sm:$0xff]
  %v185 = vld [vmem:[%s0 + $0xc0] sm:$0xff]
  %v186 = vld [vmem:[%s0 + $0xc8] sm:$0xff]
  %v187 = vld [vmem:[%s0 + $0xd0] sm:$0xff]
  %v188 = vld [vmem:[%s0 + $0xd8] sm:$0xff]
  %v189 = vld [vmem:[%s0 + $0xe0] sm:$0xff]
  %v190 = vld [vmem:[%s0 + $0xe8] sm:$0xff]
  %v191 = vld [vmem:[%s0 + $0xf0] sm:$0xff]
  %v192 = vld [vmem:[%s0 + $0xf8] sm:$0xff]
  %v193 = vld [vmem:[%s0 + $0x100] sm:$0xff]
  %v194 = vld [vmem:[%s0 + $0x108] sm:$0xff]
  %v195 = vld [vmem:[%s0 + $0x110] sm:$0xff]
  %v196 = vld [vmem:[%s0 + $0x118] sm:$0xff]
  %v197 = vld [vmem:[%s0 + $0x120] sm:$0xff]
  %v198 = vld [vmem:[%s0 + $0x128] sm:$0xff]
  %v199 = vld [vmem:[%s0 + $0x130] sm:$0xff]
  %v200 = vld [vmem:[%s0 + $0x138] sm:$0xff]
  %v201 = vld [vmem:[%s0 + $0x140] sm:$0xff]
  %v202 = vld [vmem:[%s0 + $0x148] sm:$0xff]
  %v203 = vld [vmem:[%s0 + $0x150] sm:$0xff]
  %v204 = vld [vmem:[%s0 + $0x158] sm:$0xff]
  %v205 = vld [vmem:[%s0 + $0x160] sm:$0xff]
  %v206 = vld [vmem:[%s0 + $0x168] sm:$0xff]
  %v207 = vld [vmem:[%s0 + $0x170] sm:$0xff]
  %v208 = vld [vmem:[%s0 + $0x178] sm:$0xff]
  %v209 = vld [vmem:[%s0 + $0x180] sm:$0xff]
  %v210 = vld [vmem:[%s0 + $0x188] sm:$0xff]
  %v211 = vld [vmem:[%s0 + $0x190] sm:$0xff]
  %v212 = vld [vmem:[%s0 + $0x198] sm:$0xff]
  %v213 = vld [vmem:[%s0 + $0x1a0] sm:$0xff]
  %v214 = vld [vmem:[%s0 + $0x1a8] sm:$0xff]
  %v215 = vld [vmem:[%s0 + $0x1b0] sm:$0xff]
  %v216 = vld [vmem:[%s0 + $0x1b8] sm:$0xff]
  %v217 = vld [vmem:[%s0 + $0x1c0] sm:$0xff]
  %v218 = vld [vmem:[%s0 + $0x1c8] sm:$0xff]
  %v219 = vld [vmem:[%s0 + $0x1d0] sm:$0xff]
  %v220 = vld [vmem:[%s0 + $0x1d8] sm:$0xff]
  %v221 = vld [vmem:[%s0 + $0x1e0] sm:$0xff]
  %v222 = vld [vmem:[%s0 + $0x1e8] sm:$0xff]
  %v223 = vld [vmem:[%s0 + $0x1f0] sm:$0xff]
  %v224 = vld [vmem:[%s0 + $0x1f8] sm:$0xff]
  %s225 = scalar_lea.vmem [#allocation2], 24
  %226 = vst.msk [vmem:[%s225 + $0x1] sm:$0xff] %vm21, %v161
  %227 = vst.msk [vmem:[%s225 + $0x9] sm:$0xff] %vm21, %v162
  %228 = vst.msk [vmem:[%s225 + $0x19] sm:$0xff] %vm21, %v163
  %229 = vst.msk [vmem:[%s225 + $0x21] sm:$0xff] %vm21, %v164
  %230 = vst.msk [vmem:[%s225 + $0x31] sm:$0xff] %vm21, %v165
  %231 = vst.msk [vmem:[%s225 + $0x39] sm:$0xff] %vm21, %v166
  %232 = vst.msk [vmem:[%s225 + $0x49] sm:$0xff] %vm21, %v167
  %233 = vst.msk [vmem:[%s225 + $0x51] sm:$0xff] %vm21, %v168
  %234 = vst.msk [vmem:[%s225 + $0x61] sm:$0xff] %vm21, %v169
  %235 = vst.msk [vmem:[%s225 + $0x69] sm:$0xff] %vm21, %v170
  %236 = vst.msk [vmem:[%s225 + $0x79] sm:$0xff] %vm21, %v171
  %237 = vst.msk [vmem:[%s225 + $0x81] sm:$0xff] %vm21, %v172
  %238 = vst.msk [vmem:[%s225 + $0x91] sm:$0xff] %vm21, %v173
  %239 = vst.msk [vmem:[%s225 + $0x99] sm:$0xff] %vm21, %v174
  %240 = vst.msk [vmem:[%s225 + $0xa9] sm:$0xff] %vm21, %v175
  %241 = vst.msk [vmem:[%s225 + $0xb1] sm:$0xff] %vm21, %v176
  %242 = vst.msk [vmem:[%s225 + $0xc1] sm:$0xff] %vm21, %v177
  %243 = vst.msk [vmem:[%s225 + $0xc9] sm:$0xff] %vm21, %v178
  %244 = vst.msk [vmem:[%s225 + $0xd9] sm:$0xff] %vm21, %v179
  %245 = vst.msk [vmem:[%s225 + $0xe1] sm:$0xff] %vm21, %v180
  %246 = vst.msk [vmem:[%s225 + $0xf1] sm:$0xff] %vm21, %v181
  %247 = vst.msk [vmem:[%s225 + $0xf9] sm:$0xff] %vm21, %v182
  %248 = vst.msk [vmem:[%s225 + $0x109] sm:$0xff] %vm21, %v183
  %249 = vst.msk [vmem:[%s225 + $0x111] sm:$0xff] %vm21, %v184
  %250 = vst.msk [vmem:[%s225 + $0x121] sm:$0xff] %vm21, %v185
  %251 = vst.msk [vmem:[%s225 + $0x129] sm:$0xff] %vm21, %v186
  %252 = vst.msk [vmem:[%s225 + $0x139] sm:$0xff] %vm21, %v187
  %253 = vst.msk [vmem:[%s225 + $0x141] sm:$0xff] %vm21, %v188
  %254 = vst.msk [vmem:[%s225 + $0x151] sm:$0xff] %vm21, %v189
  %255 = vst.msk [vmem:[%s225 + $0x159] sm:$0xff] %vm21, %v190
  %256 = vst.msk [vmem:[%s225 + $0x169] sm:$0xff] %vm21, %v191
  %257 = vst.msk [vmem:[%s225 + $0x171] sm:$0xff] %vm21, %v192
  %258 = vst.msk [vmem:[%s225 + $0x1b1] sm:$0xff] %vm21, %v193
  %259 = vst.msk [vmem:[%s225 + $0x1b9] sm:$0xff] %vm21, %v194
  %260 = vst.msk [vmem:[%s225 + $0x1c9] sm:$0xff] %vm21, %v195
  %261 = vst.msk [vmem:[%s225 + $0x1d1] sm:$0xff] %vm21, %v196
  %262 = vst.msk [vmem:[%s225 + $0x1e1] sm:$0xff] %vm21, %v197
  %263 = vst.msk [vmem:[%s225 + $0x1e9] sm:$0xff] %vm21, %v198
  %264 = vst.msk [vmem:[%s225 + $0x1f9] sm:$0xff] %vm21, %v199
  %265 = vst.msk [vmem:[%s225 + $0x201] sm:$0xff] %vm21, %v200
  %266 = vst.msk [vmem:[%s225 + $0x211] sm:$0xff] %vm21, %v201
  %267 = vst.msk [vmem:[%s225 + $0x219] sm:$0xff] %vm21, %v202
  %268 = vst.msk [vmem:[%s225 + $0x229] sm:$0xff] %vm21, %v203
  %269 = vst.msk [vmem:[%s225 + $0x231] sm:$0xff] %vm21, %v204
  %270 = vst.msk [vmem:[%s225 + $0x241] sm:$0xff] %vm21, %v205
  %271 = vst.msk [vmem:[%s225 + $0x249] sm:$0xff] %vm21, %v206
  %272 = vst.msk [vmem:[%s225 + $0x259] sm:$0xff] %vm21, %v207
  %273 = vst.msk [vmem:[%s225 + $0x261] sm:$0xff] %vm21, %v208
  %274 = vst.msk [vmem:[%s225 + $0x271] sm:$0xff] %vm21, %v209
  %275 = vst.msk [vmem:[%s225 + $0x279] sm:$0xff] %vm21, %v210
  %276 = vst.msk [vmem:[%s225 + $0x289] sm:$0xff] %vm21, %v211
  %277 = vst.msk [vmem:[%s225 + $0x291] sm:$0xff] %vm21, %v212
  %278 = vst.msk [vmem:[%s225 + $0x2a1] sm:$0xff] %vm21, %v213
  %279 = vst.msk [vmem:[%s225 + $0x2a9] sm:$0xff] %vm21, %v214
  %280 = vst.msk [vmem:[%s225 + $0x2b9] sm:$0xff] %vm21, %v215
  %281 = vst.msk [vmem:[%s225 + $0x2c1] sm:$0xff] %vm21, %v216
  %282 = vst.msk [vmem:[%s225 + $0x2d1] sm:$0xff] %vm21, %v217
  %283 = vst.msk [vmem:[%s225 + $0x2d9] sm:$0xff] %vm21, %v218
  %284 = vst.msk [vmem:[%s225 + $0x2e9] sm:$0xff] %vm21, %v219
  %285 = vst.msk [vmem:[%s225 + $0x2f1] sm:$0xff] %vm21, %v220
  %286 = vst.msk [vmem:[%s225 + $0x301] sm:$0xff] %vm21, %v221
  %287 = vst.msk [vmem:[%s225 + $0x309] sm:$0xff] %vm21, %v222
  %288 = vst.msk [vmem:[%s225 + $0x319] sm:$0xff] %vm21, %v223
  %289 = vst.msk [vmem:[%s225 + $0x321] sm:$0xff] %vm21, %v224
  %v290 = vld [vmem:[#allocation2] sm:$0xff]
  %v291 = vld [vmem:[#allocation2 + $0x8] sm:$0xff]
  %v292 = vld [vmem:[#allocation2 + $0x10] sm:$0x3]
  %v293 = vld [vmem:[#allocation2 + $0x18] sm:$0xff]
  %v294 = vld [vmem:[#allocation2 + $0x20] sm:$0xff]
  %v295 = vld [vmem:[#allocation2 + $0x28] sm:$0x3]
  %v296 = vld [vmem:[#allocation2 + $0x30] sm:$0xff]
  %v297 = vld [vmem:[#allocation2 + $0x38] sm:$0xff]
  %v298 = vld [vmem:[#allocation2 + $0x40] sm:$0x3]
  %v299 = vld [vmem:[#allocation2 + $0x48] sm:$0xff]
  %v300 = vld [vmem:[#allocation2 + $0x50] sm:$0xff]
  %v301 = vld [vmem:[#allocation2 + $0x58] sm:$0x3]
  %v302 = vld [vmem:[#allocation2 + $0x60] sm:$0xff]
  %v303 = vld [vmem:[#allocation2 + $0x68] sm:$0xff]
  %v304 = vld [vmem:[#allocation2 + $0x70] sm:$0x3]
  %v305 = vld [vmem:[#allocation2 + $0x78] sm:$0xff]
  %v306 = vld [vmem:[#allocation2 + $0x80] sm:$0xff]
  %v307 = vld [vmem:[#allocation2 + $0x88] sm:$0x3]
  %v308 = vld [vmem:[#allocation2 + $0x90] sm:$0xff]
  %v309 = vld [vmem:[#allocation2 + $0x98] sm:$0xff]
  %v310 = vld [vmem:[#allocation2 + $0xa0] sm:$0x3]
  %v311 = vld [vmem:[#allocation2 + $0xa8] sm:$0xff]
  %v312 = vld [vmem:[#allocation2 + $0xb0] sm:$0xff]
  %v313 = vld [vmem:[#allocation2 + $0xb8] sm:$0x3]
  %v314 = vld [vmem:[#allocation2 + $0xc0] sm:$0xff]
  %v315 = vld [vmem:[#allocation2 + $0xc8] sm:$0xff]
  %v316 = vld [vmem:[#allocation2 + $0xd0] sm:$0x3]
  %v317 = vld [vmem:[#allocation2 + $0xd8] sm:$0xff]
  %v318 = vld [vmem:[#allocation2 + $0xe0] sm:$0xff]
  %v319 = vld [vmem:[#allocation2 + $0xe8] sm:$0x3]
  %v320 = vld [vmem:[#allocation2 + $0x1b0] sm:$0xff]
  %v321 = vld [vmem:[#allocation2 + $0x1b8] sm:$0xff]
  %v322 = vld [vmem:[#allocation2 + $0x1c0] sm:$0x3]
  %v323 = vld [vmem:[#allocation2 + $0x1c8] sm:$0xff]
  %v324 = vld [vmem:[#allocation2 + $0x1d0] sm:$0xff]
  %v325 = vld [vmem:[#allocation2 + $0x1d8] sm:$0x3]
  %v326 = vld [vmem:[#allocation2 + $0x1e0] sm:$0xff]
  %v327 = vld [vmem:[#allocation2 + $0x1e8] sm:$0xff]
  %v328 = vld [vmem:[#allocation2 + $0x1f0] sm:$0x3]
  %v329 = vld [vmem:[#allocation2 + $0x1f8] sm:$0xff]
  %v330 = vld [vmem:[#allocation2 + $0x200] sm:$0xff]
  %v331 = vld [vmem:[#allocation2 + $0x208] sm:$0x3]
  %v332 = vld [vmem:[#allocation2 + $0x210] sm:$0xff]
  %v333 = vld [vmem:[#allocation2 + $0x218] sm:$0xff]
  %v334 = vld [vmem:[#allocation2 + $0x220] sm:$0x3]
  %v335 = vld [vmem:[#allocation2 + $0x228] sm:$0xff]
  %v336 = vld [vmem:[#allocation2 + $0x230] sm:$0xff]
  %v337 = vld [vmem:[#allocation2 + $0x238] sm:$0x3]
  %v338 = vld [vmem:[#allocation2 + $0x240] sm:$0xff]
  %v339 = vld [vmem:[#allocation2 + $0x248] sm:$0xff]
  %v340 = vld [vmem:[#allocation2 + $0x250] sm:$0x3]
  %v341 = vld [vmem:[#allocation2 + $0x258] sm:$0xff]
  %v342 = vld [vmem:[#allocation2 + $0x260] sm:$0xff]
  %v343 = vld [vmem:[#allocation2 + $0x268] sm:$0x3]
  %v344 = vld [vmem:[#allocation2 + $0x270] sm:$0xff]
  %v345 = vld [vmem:[#allocation2 + $0x278] sm:$0xff]
  %v346 = vld [vmem:[#allocation2 + $0x280] sm:$0x3]
  %v347 = vld [vmem:[#allocation2 + $0x288] sm:$0xff]
  %v348 = vld [vmem:[#allocation2 + $0x290] sm:$0xff]
  %v349 = vld [vmem:[#allocation2 + $0x298] sm:$0x3]
  %vm398 = vcmask 1046528
  %v399 = vrot.slane %v290, 1
  %v400 = vrot.slane %v291, 1
  %v401 = vsel %vm398, %v399, %v400
  %v402 = vrot.slane %v292, 1
  %v403 = vsel %vm398, %v400, %v402
  %v404 = vrot.slane %v293, 1
  %v405 = vrot.slane %v294, 1
  %v406 = vsel %vm398, %v404, %v405
  %v407 = vrot.slane %v295, 1
  %v408 = vsel %vm398, %v405, %v407
  %v409 = vrot.slane %v296, 1
  %v410 = vrot.slane %v297, 1
  %v411 = vsel %vm398, %v409, %v410
  %v412 = vrot.slane %v298, 1
  %v413 = vsel %vm398, %v410, %v412
  %v414 = vrot.slane %v299, 1
  %v415 = vrot.slane %v300, 1
  %v416 = vsel %vm398, %v414, %v415
  %v417 = vrot.slane %v301, 1
  %v418 = vsel %vm398, %v415, %v417
  %v419 = vrot.slane %v302, 1
  %v420 = vrot.slane %v303, 1
  %v421 = vsel %vm398, %v419, %v420
  %v422 = vrot.slane %v304, 1
  %v423 = vsel %vm398, %v420, %v422
  %v424 = vrot.slane %v305, 1
  %v425 = vrot.slane %v306, 1
  %v426 = vsel %vm398, %v424, %v425
  %v427 = vrot.slane %v307, 1
  %v428 = vsel %vm398, %v425, %v427
  %v429 = vrot.slane %v308, 1
  %v430 = vrot.slane %v309, 1
  %v431 = vsel %vm398, %v429, %v430
  %v432 = vrot.slane %v310, 1
  %v433 = vsel %vm398, %v430, %v432
  %v434 = vrot.slane %v311, 1
  %v435 = vrot.slane %v312, 1
  %v436 = vsel %vm398, %v434, %v435
  %v437 = vrot.slane %v313, 1
  %v438 = vsel %vm398, %v435, %v437
  %v439 = vrot.slane %v320, 1
  %v440 = vrot.slane %v321, 1
  %v441 = vsel %vm398, %v439, %v440
  %v442 = vrot.slane %v322, 1
  %v443 = vsel %vm398, %v440, %v442
  %v444 = vrot.slane %v323, 1
  %v445 = vrot.slane %v324, 1
  %v446 = vsel %vm398, %v444, %v445
  %v447 = vrot.slane %v325, 1
  %v448 = vsel %vm398, %v445, %v447
  %v449 = vrot.slane %v326, 1
  %v450 = vrot.slane %v327, 1
  %v451 = vsel %vm398, %v449, %v450
  %v452 = vrot.slane %v328, 1
  %v453 = vsel %vm398, %v450, %v452
  %v454 = vrot.slane %v329, 1
  %v455 = vrot.slane %v330, 1
  %v456 = vsel %vm398, %v454, %v455
  %v457 = vrot.slane %v331, 1
  %v458 = vsel %vm398, %v455, %v457
  %v459 = vrot.slane %v332, 1
  %v460 = vrot.slane %v333, 1
  %v461 = vsel %vm398, %v459, %v460
  %v462 = vrot.slane %v334, 1
  %v463 = vsel %vm398, %v460, %v462
  %v464 = vrot.slane %v335, 1
  %v465 = vrot.slane %v336, 1
  %v466 = vsel %vm398, %v464, %v465
  %v467 = vrot.slane %v337, 1
  %v468 = vsel %vm398, %v465, %v467
  %v469 = vrot.slane %v338, 1
  %v470 = vrot.slane %v339, 1
  %v471 = vsel %vm398, %v469, %v470
  %v472 = vrot.slane %v340, 1
  %v473 = vsel %vm398, %v470, %v472
  %v474 = vrot.slane %v341, 1
  %v475 = vrot.slane %v342, 1
  %v476 = vsel %vm398, %v474, %v475
  %v477 = vrot.slane %v343, 1
  %v478 = vsel %vm398, %v475, %v477
  %479 = vrot.lane.b32.xlu0 %v401, 3
  %v480 = vpop.permute.xlu0 %479
  %481 = vrot.lane.b32.xlu0 %v403, 3
  %v482 = vpop.permute.xlu0 %481
  %483 = vrot.lane.b32.xlu0 %v406, 3
  %v484 = vpop.permute.xlu0 %483
  %485 = vrot.lane.b32.xlu0 %v408, 3
  %v486 = vpop.permute.xlu0 %485
  %487 = vrot.lane.b32.xlu0 %v411, 3
  %v488 = vpop.permute.xlu0 %487
  %489 = vrot.lane.b32.xlu0 %v413, 3
  %v490 = vpop.permute.xlu0 %489
  %491 = vrot.lane.b32.xlu0 %v416, 3
  %v492 = vpop.permute.xlu0 %491
  %493 = vrot.lane.b32.xlu0 %v418, 3
  %v494 = vpop.permute.xlu0 %493
  %495 = vrot.lane.b32.xlu0 %v421, 3
  %v496 = vpop.permute.xlu0 %495
  %497 = vrot.lane.b32.xlu0 %v423, 3
  %v498 = vpop.permute.xlu0 %497
  %499 = vrot.lane.b32.xlu0 %v426, 3
  %v500 = vpop.permute.xlu0 %499
  %501 = vrot.lane.b32.xlu0 %v428, 3
  %v502 = vpop.permute.xlu0 %501
  %503 = vrot.lane.b32.xlu0 %v431, 3
  %v504 = vpop.permute.xlu0 %503
  %505 = vrot.lane.b32.xlu0 %v433, 3
  %v506 = vpop.permute.xlu0 %505
  %507 = vrot.lane.b32.xlu0 %v436, 3
  %v508 = vpop.permute.xlu0 %507
  %509 = vrot.lane.b32.xlu0 %v438, 3
  %v510 = vpop.permute.xlu0 %509
  %511 = vrot.lane.b32.xlu0 %v441, 3
  %v512 = vpop.permute.xlu0 %511
  %513 = vrot.lane.b32.xlu0 %v443, 3
  %v514 = vpop.permute.xlu0 %513
  %515 = vrot.lane.b32.xlu0 %v446, 3
  %v516 = vpop.permute.xlu0 %515
  %517 = vrot.lane.b32.xlu0 %v448, 3
  %v518 = vpop.permute.xlu0 %517
  %519 = vrot.lane.b32.xlu0 %v451, 3
  %v520 = vpop.permute.xlu0 %519
  %521 = vrot.lane.b32.xlu0 %v453, 3
  %v522 = vpop.permute.xlu0 %521
  %523 = vrot.lane.b32.xlu0 %v456, 3
  %v524 = vpop.permute.xlu0 %523
  %525 = vrot.lane.b32.xlu0 %v458, 3
  %v526 = vpop.permute.xlu0 %525
  %527 = vrot.lane.b32.xlu0 %v461, 3
  %v528 = vpop.permute.xlu0 %527
  %529 = vrot.lane.b32.xlu0 %v463, 3
  %v530 = vpop.permute.xlu0 %529
  %531 = vrot.lane.b32.xlu0 %v466, 3
  %v532 = vpop.permute.xlu0 %531
  %533 = vrot.lane.b32.xlu0 %v468, 3
  %v534 = vpop.permute.xlu0 %533
  %535 = vrot.lane.b32.xlu0 %v471, 3
  %v536 = vpop.permute.xlu0 %535
  %537 = vrot.lane.b32.xlu0 %v473, 3
  %v538 = vpop.permute.xlu0 %537
  %539 = vrot.lane.b32.xlu0 %v476, 3
  %v540 = vpop.permute.xlu0 %539
  %541 = vrot.lane.b32.xlu0 %v478, 3
  %v542 = vpop.permute.xlu0 %541
  %vm575 = vcmask 1045504
  %v576 = vrot.slane %v290, 2
  %v577 = vrot.slane %v291, 2
  %v578 = vsel %vm575, %v576, %v577
  %v579 = vrot.slane %v292, 2
  %v580 = vsel %vm575, %v577, %v579
  %v581 = vrot.slane %v293, 2
  %v582 = vrot.slane %v294, 2
  %v583 = vsel %vm575, %v581, %v582
  %v584 = vrot.slane %v295, 2
  %v585 = vsel %vm575, %v582, %v584
  %v586 = vrot.slane %v296, 2
  %v587 = vrot.slane %v297, 2
  %v588 = vsel %vm575, %v586, %v587
  %v589 = vrot.slane %v298, 2
  %v590 = vsel %vm575, %v587, %v589
  %v591 = vrot.slane %v299, 2
  %v592 = vrot.slane %v300, 2
  %v593 = vsel %vm575, %v591, %v592
  %v594 = vrot.slane %v301, 2
  %v595 = vsel %vm575, %v592, %v594
  %v596 = vrot.slane %v302, 2
  %v597 = vrot.slane %v303, 2
  %v598 = vsel %vm575, %v596, %v597
  %v599 = vrot.slane %v304, 2
  %v600 = vsel %vm575, %v597, %v599
  %v601 = vrot.slane %v305, 2
  %v602 = vrot.slane %v306, 2
  %v603 = vsel %vm575, %v601, %v602
  %v604 = vrot.slane %v307, 2
  %v605 = vsel %vm575, %v602, %v604
  %v606 = vrot.slane %v308, 2
  %v607 = vrot.slane %v309, 2
  %v608 = vsel %vm575, %v606, %v607
  %v609 = vrot.slane %v310, 2
  %v610 = vsel %vm575, %v607, %v609
  %v611 = vrot.slane %v311, 2
  %v612 = vrot.slane %v312, 2
  %v613 = vsel %vm575, %v611, %v612
  %v614 = vrot.slane %v313, 2
  %v615 = vsel %vm575, %v612, %v614
  %v616 = vrot.slane %v320, 2
  %v617 = vrot.slane %v321, 2
  %v618 = vsel %vm575, %v616, %v617
  %v619 = vrot.slane %v322, 2
  %v620 = vsel %vm575, %v617, %v619
  %v621 = vrot.slane %v323, 2
  %v622 = vrot.slane %v324, 2
  %v623 = vsel %vm575, %v621, %v622
  %v624 = vrot.slane %v325, 2
  %v625 = vsel %vm575, %v622, %v624
  %v626 = vrot.slane %v326, 2
  %v627 = vrot.slane %v327, 2
  %v628 = vsel %vm575, %v626, %v627
  %v629 = vrot.slane %v328, 2
  %v630 = vsel %vm575, %v627, %v629
  %v631 = vrot.slane %v329, 2
  %v632 = vrot.slane %v330, 2
  %v633 = vsel %vm575, %v631, %v632
  %v634 = vrot.slane %v331, 2
  %v635 = vsel %vm575, %v632, %v634
  %v636 = vrot.slane %v332, 2
  %v637 = vrot.slane %v333, 2
  %v638 = vsel %vm575, %v636, %v637
  %v639 = vrot.slane %v334, 2
  %v640 = vsel %vm575, %v637, %v639
  %v641 = vrot.slane %v335, 2
  %v642 = vrot.slane %v336, 2
  %v643 = vsel %vm575, %v641, %v642
  %v644 = vrot.slane %v337, 2
  %v645 = vsel %vm575, %v642, %v644
  %v646 = vrot.slane %v338, 2
  %v647 = vrot.slane %v339, 2
  %v648 = vsel %vm575, %v646, %v647
  %v649 = vrot.slane %v340, 2
  %v650 = vsel %vm575, %v647, %v649
  %v651 = vrot.slane %v341, 2
  %v652 = vrot.slane %v342, 2
  %v653 = vsel %vm575, %v651, %v652
  %v654 = vrot.slane %v343, 2
  %v655 = vsel %vm575, %v652, %v654
  %656 = vrot.lane.b32.xlu0 %v578, 6
  %v657 = vpop.permute.xlu0 %656
  %658 = vrot.lane.b32.xlu0 %v580, 6
  %v659 = vpop.permute.xlu0 %658
  %660 = vrot.lane.b32.xlu0 %v583, 6
  %v661 = vpop.permute.xlu0 %660
  %662 = vrot.lane.b32.xlu0 %v585, 6
  %v663 = vpop.permute.xlu0 %662
  %664 = vrot.lane.b32.xlu0 %v588, 6
  %v665 = vpop.permute.xlu0 %664
  %666 = vrot.lane.b32.xlu0 %v590, 6
  %v667 = vpop.permute.xlu0 %666
  %668 = vrot.lane.b32.xlu0 %v593, 6
  %v669 = vpop.permute.xlu0 %668
  %670 = vrot.lane.b32.xlu0 %v595, 6
  %v671 = vpop.permute.xlu0 %670
  %672 = vrot.lane.b32.xlu0 %v598, 6
  %v673 = vpop.permute.xlu0 %672
  %674 = vrot.lane.b32.xlu0 %v600, 6
  %v675 = vpop.permute.xlu0 %674
  %676 = vrot.lane.b32.xlu0 %v603, 6
  %v677 = vpop.permute.xlu0 %676
  %678 = vrot.lane.b32.xlu0 %v605, 6
  %v679 = vpop.permute.xlu0 %678
  %680 = vrot.lane.b32.xlu0 %v608, 6
  %v681 = vpop.permute.xlu0 %680
  %682 = vrot.lane.b32.xlu0 %v610, 6
  %v683 = vpop.permute.xlu0 %682
  %684 = vrot.lane.b32.xlu0 %v613, 6
  %v685 = vpop.permute.xlu0 %684
  %686 = vrot.lane.b32.xlu0 %v615, 6
  %v687 = vpop.permute.xlu0 %686
  %688 = vrot.lane.b32.xlu0 %v618, 6
  %v689 = vpop.permute.xlu0 %688
  %690 = vrot.lane.b32.xlu0 %v620, 6
  %v691 = vpop.permute.xlu0 %690
  %692 = vrot.lane.b32.xlu0 %v623, 6
  %v693 = vpop.permute.xlu0 %692
  %694 = vrot.lane.b32.xlu0 %v625, 6
  %v695 = vpop.permute.xlu0 %694
  %696 = vrot.lane.b32.xlu0 %v628, 6
  %v697 = vpop.permute.xlu0 %696
  %698 = vrot.lane.b32.xlu0 %v630, 6
  %v699 = vpop.permute.xlu0 %698
  %700 = vrot.lane.b32.xlu0 %v633, 6
  %v701 = vpop.permute.xlu0 %700
  %702 = vrot.lane.b32.xlu0 %v635, 6
  %v703 = vpop.permute.xlu0 %702
  %704 = vrot.lane.b32.xlu0 %v638, 6
  %v705 = vpop.permute.xlu0 %704
  %706 = vrot.lane.b32.xlu0 %v640, 6
  %v707 = vpop.permute.xlu0 %706
  %708 = vrot.lane.b32.xlu0 %v643, 6
  %v709 = vpop.permute.xlu0 %708
  %710 = vrot.lane.b32.xlu0 %v645, 6
  %v711 = vpop.permute.xlu0 %710
  %712 = vrot.lane.b32.xlu0 %v648, 6
  %v713 = vpop.permute.xlu0 %712
  %714 = vrot.lane.b32.xlu0 %v650, 6
  %v715 = vpop.permute.xlu0 %714
  %716 = vrot.lane.b32.xlu0 %v653, 6
  %v717 = vpop.permute.xlu0 %716
  %718 = vrot.lane.b32.xlu0 %v655, 6
  %v719 = vpop.permute.xlu0 %718
  %756 = vrot.lane.b32.xlu0 %v293, 9
  %v757 = vpop.permute.xlu0 %756
  %758 = vrot.lane.b32.xlu0 %v294, 9
  %v759 = vpop.permute.xlu0 %758
  %760 = vrot.lane.b32.xlu0 %v296, 9
  %v761 = vpop.permute.xlu0 %760
  %762 = vrot.lane.b32.xlu0 %v297, 9
  %v763 = vpop.permute.xlu0 %762
  %764 = vrot.lane.b32.xlu0 %v299, 9
  %v765 = vpop.permute.xlu0 %764
  %766 = vrot.lane.b32.xlu0 %v300, 9
  %v767 = vpop.permute.xlu0 %766
  %768 = vrot.lane.b32.xlu0 %v302, 9
  %v769 = vpop.permute.xlu0 %768
  %770 = vrot.lane.b32.xlu0 %v303, 9
  %v771 = vpop.permute.xlu0 %770
  %772 = vrot.lane.b32.xlu0 %v305, 9
  %v773 = vpop.permute.xlu0 %772
  %774 = vrot.lane.b32.xlu0 %v306, 9
  %v775 = vpop.permute.xlu0 %774
  %776 = vrot.lane.b32.xlu0 %v308, 9
  %v777 = vpop.permute.xlu0 %776
  %778 = vrot.lane.b32.xlu0 %v309, 9
  %v779 = vpop.permute.xlu0 %778
  %780 = vrot.lane.b32.xlu0 %v311, 9
  %v781 = vpop.permute.xlu0 %780
  %782 = vrot.lane.b32.xlu0 %v312, 9
  %v783 = vpop.permute.xlu0 %782
  %784 = vrot.lane.b32.xlu0 %v314, 9
  %v785 = vpop.permute.xlu0 %784
  %786 = vrot.lane.b32.xlu0 %v315, 9
  %v787 = vpop.permute.xlu0 %786
  %788 = vrot.lane.b32.xlu0 %v323, 9
  %v789 = vpop.permute.xlu0 %788
  %790 = vrot.lane.b32.xlu0 %v324, 9
  %v791 = vpop.permute.xlu0 %790
  %792 = vrot.lane.b32.xlu0 %v326, 9
  %v793 = vpop.permute.xlu0 %792
  %794 = vrot.lane.b32.xlu0 %v327, 9
  %v795 = vpop.permute.xlu0 %794
  %796 = vrot.lane.b32.xlu0 %v329, 9
  %v797 = vpop.permute.xlu0 %796
  %798 = vrot.lane.b32.xlu0 %v330, 9
  %v799 = vpop.permute.xlu0 %798
  %800 = vrot.lane.b32.xlu0 %v332, 9
  %v801 = vpop.permute.xlu0 %800
  %802 = vrot.lane.b32.xlu0 %v333, 9
  %v803 = vpop.permute.xlu0 %802
  %804 = vrot.lane.b32.xlu0 %v335, 9
  %v805 = vpop.permute.xlu0 %804
  %806 = vrot.lane.b32.xlu0 %v336, 9
  %v807 = vpop.permute.xlu0 %806
  %808 = vrot.lane.b32.xlu0 %v338, 9
  %v809 = vpop.permute.xlu0 %808
  %810 = vrot.lane.b32.xlu0 %v339, 9
  %v811 = vpop.permute.xlu0 %810
  %812 = vrot.lane.b32.xlu0 %v341, 9
  %v813 = vpop.permute.xlu0 %812
  %814 = vrot.lane.b32.xlu0 %v342, 9
  %v815 = vpop.permute.xlu0 %814
  %816 = vrot.lane.b32.xlu0 %v344, 9
  %v817 = vpop.permute.xlu0 %816
  %818 = vrot.lane.b32.xlu0 %v345, 9
  %v819 = vpop.permute.xlu0 %818
  %v854 = vrot.slane %v314, 1
  %v855 = vrot.slane %v315, 1
  %v856 = vsel %vm398, %v854, %v855
  %v857 = vrot.slane %v316, 1
  %v858 = vsel %vm398, %v855, %v857
  %v859 = vrot.slane %v344, 1
  %v860 = vrot.slane %v345, 1
  %v861 = vsel %vm398, %v859, %v860
  %v862 = vrot.slane %v346, 1
  %v863 = vsel %vm398, %v860, %v862
  %864 = vrot.lane.b32.xlu0 %v406, 12
  %v865 = vpop.permute.xlu0 %864
  %866 = vrot.lane.b32.xlu0 %v408, 12
  %v867 = vpop.permute.xlu0 %866
  %868 = vrot.lane.b32.xlu0 %v411, 12
  %v869 = vpop.permute.xlu0 %868
  %870 = vrot.lane.b32.xlu0 %v413, 12
  %v871 = vpop.permute.xlu0 %870
  %872 = vrot.lane.b32.xlu0 %v416, 12
  %v873 = vpop.permute.xlu0 %872
  %874 = vrot.lane.b32.xlu0 %v418, 12
  %v875 = vpop.permute.xlu0 %874
  %876 = vrot.lane.b32.xlu0 %v421, 12
  %v877 = vpop.permute.xlu0 %876
  %878 = vrot.lane.b32.xlu0 %v423, 12
  %v879 = vpop.permute.xlu0 %878
  %880 = vrot.lane.b32.xlu0 %v426, 12
  %v881 = vpop.permute.xlu0 %880
  %882 = vrot.lane.b32.xlu0 %v428, 12
  %v883 = vpop.permute.xlu0 %882
  %884 = vrot.lane.b32.xlu0 %v431, 12
  %v885 = vpop.permute.xlu0 %884
  %886 = vrot.lane.b32.xlu0 %v433, 12
  %v887 = vpop.permute.xlu0 %886
  %888 = vrot.lane.b32.xlu0 %v436, 12
  %v889 = vpop.permute.xlu0 %888
  %890 = vrot.lane.b32.xlu0 %v438, 12
  %v891 = vpop.permute.xlu0 %890
  %892 = vrot.lane.b32.xlu0 %v856, 12
  %v893 = vpop.permute.xlu0 %892
  %894 = vrot.lane.b32.xlu0 %v858, 12
  %v895 = vpop.permute.xlu0 %894
  %896 = vrot.lane.b32.xlu0 %v446, 12
  %v897 = vpop.permute.xlu0 %896
  %898 = vrot.lane.b32.xlu0 %v448, 12
  %v899 = vpop.permute.xlu0 %898
  %900 = vrot.lane.b32.xlu0 %v451, 12
  %v901 = vpop.permute.xlu0 %900
  %902 = vrot.lane.b32.xlu0 %v453, 12
  %v903 = vpop.permute.xlu0 %902
  %904 = vrot.lane.b32.xlu0 %v456, 12
  %v905 = vpop.permute.xlu0 %904
  %906 = vrot.lane.b32.xlu0 %v458, 12
  %v907 = vpop.permute.xlu0 %906
  %908 = vrot.lane.b32.xlu0 %v461, 12
  %v909 = vpop.permute.xlu0 %908
  %910 = vrot.lane.b32.xlu0 %v463, 12
  %v911 = vpop.permute.xlu0 %910
  %912 = vrot.lane.b32.xlu0 %v466, 12
  %v913 = vpop.permute.xlu0 %912
  %914 = vrot.lane.b32.xlu0 %v468, 12
  %v915 = vpop.permute.xlu0 %914
  %916 = vrot.lane.b32.xlu0 %v471, 12
  %v917 = vpop.permute.xlu0 %916
  %918 = vrot.lane.b32.xlu0 %v473, 12
  %v919 = vpop.permute.xlu0 %918
  %920 = vrot.lane.b32.xlu0 %v476, 12
  %v921 = vpop.permute.xlu0 %920
  %922 = vrot.lane.b32.xlu0 %v478, 12
  %v923 = vpop.permute.xlu0 %922
  %924 = vrot.lane.b32.xlu0 %v861, 12
  %v925 = vpop.permute.xlu0 %924
  %926 = vrot.lane.b32.xlu0 %v863, 12
  %v927 = vpop.permute.xlu0 %926
  %v960 = vrot.slane %v314, 2
  %v961 = vrot.slane %v315, 2
  %v962 = vsel %vm575, %v960, %v961
  %v963 = vrot.slane %v316, 2
  %v964 = vsel %vm575, %v961, %v963
  %v965 = vrot.slane %v344, 2
  %v966 = vrot.slane %v345, 2
  %v967 = vsel %vm575, %v965, %v966
  %v968 = vrot.slane %v346, 2
  %v969 = vsel %vm575, %v966, %v968
  %970 = vrot.lane.b32.xlu0 %v583, 15
  %v971 = vpop.permute.xlu0 %970
  %972 = vrot.lane.b32.xlu0 %v585, 15
  %v973 = vpop.permute.xlu0 %972
  %974 = vrot.lane.b32.xlu0 %v588, 15
  %v975 = vpop.permute.xlu0 %974
  %976 = vrot.lane.b32.xlu0 %v590, 15
  %v977 = vpop.permute.xlu0 %976
  %978 = vrot.lane.b32.xlu0 %v593, 15
  %v979 = vpop.permute.xlu0 %978
  %980 = vrot.lane.b32.xlu0 %v595, 15
  %v981 = vpop.permute.xlu0 %980
  %982 = vrot.lane.b32.xlu0 %v598, 15
  %v983 = vpop.permute.xlu0 %982
  %984 = vrot.lane.b32.xlu0 %v600, 15
  %v985 = vpop.permute.xlu0 %984
  %986 = vrot.lane.b32.xlu0 %v603, 15
  %v987 = vpop.permute.xlu0 %986
  %988 = vrot.lane.b32.xlu0 %v605, 15
  %v989 = vpop.permute.xlu0 %988
  %990 = vrot.lane.b32.xlu0 %v608, 15
  %v991 = vpop.permute.xlu0 %990
  %992 = vrot.lane.b32.xlu0 %v610, 15
  %v993 = vpop.permute.xlu0 %992
  %994 = vrot.lane.b32.xlu0 %v613, 15
  %v995 = vpop.permute.xlu0 %994
  %996 = vrot.lane.b32.xlu0 %v615, 15
  %v997 = vpop.permute.xlu0 %996
  %998 = vrot.lane.b32.xlu0 %v962, 15
  %v999 = vpop.permute.xlu0 %998
  %1000 = vrot.lane.b32.xlu0 %v964, 15
  %v1001 = vpop.permute.xlu0 %1000
  %1002 = vrot.lane.b32.xlu0 %v623, 15
  %v1003 = vpop.permute.xlu0 %1002
  %1004 = vrot.lane.b32.xlu0 %v625, 15
  %v1005 = vpop.permute.xlu0 %1004
  %1006 = vrot.lane.b32.xlu0 %v628, 15
  %v1007 = vpop.permute.xlu0 %1006
  %1008 = vrot.lane.b32.xlu0 %v630, 15
  %v1009 = vpop.permute.xlu0 %1008
  %1010 = vrot.lane.b32.xlu0 %v633, 15
  %v1011 = vpop.permute.xlu0 %1010
  %1012 = vrot.lane.b32.xlu0 %v635, 15
  %v1013 = vpop.permute.xlu0 %1012
  %1014 = vrot.lane.b32.xlu0 %v638, 15
  %v1015 = vpop.permute.xlu0 %1014
  %1016 = vrot.lane.b32.xlu0 %v640, 15
  %v1017 = vpop.permute.xlu0 %1016
  %1018 = vrot.lane.b32.xlu0 %v643, 15
  %v1019 = vpop.permute.xlu0 %1018
  %1020 = vrot.lane.b32.xlu0 %v645, 15
  %v1021 = vpop.permute.xlu0 %1020
  %1022 = vrot.lane.b32.xlu0 %v648, 15
  %v1023 = vpop.permute.xlu0 %1022
  %1024 = vrot.lane.b32.xlu0 %v650, 15
  %v1025 = vpop.permute.xlu0 %1024
  %1026 = vrot.lane.b32.xlu0 %v653, 15
  %v1027 = vpop.permute.xlu0 %1026
  %1028 = vrot.lane.b32.xlu0 %v655, 15
  %v1029 = vpop.permute.xlu0 %1028
  %1030 = vrot.lane.b32.xlu0 %v967, 15
  %v1031 = vpop.permute.xlu0 %1030
  %1032 = vrot.lane.b32.xlu0 %v969, 15
  %v1033 = vpop.permute.xlu0 %1032
  %1070 = vrot.lane.b32.xlu0 %v296, 18
  %v1071 = vpop.permute.xlu0 %1070
  %1072 = vrot.lane.b32.xlu0 %v297, 18
  %v1073 = vpop.permute.xlu0 %1072
  %1074 = vrot.lane.b32.xlu0 %v299, 18
  %v1075 = vpop.permute.xlu0 %1074
  %1076 = vrot.lane.b32.xlu0 %v300, 18
  %v1077 = vpop.permute.xlu0 %1076
  %1078 = vrot.lane.b32.xlu0 %v302, 18
  %v1079 = vpop.permute.xlu0 %1078
  %1080 = vrot.lane.b32.xlu0 %v303, 18
  %v1081 = vpop.permute.xlu0 %1080
  %1082 = vrot.lane.b32.xlu0 %v305, 18
  %v1083 = vpop.permute.xlu0 %1082
  %1084 = vrot.lane.b32.xlu0 %v306, 18
  %v1085 = vpop.permute.xlu0 %1084
  %1086 = vrot.lane.b32.xlu0 %v308, 18
  %v1087 = vpop.permute.xlu0 %1086
  %1088 = vrot.lane.b32.xlu0 %v309, 18
  %v1089 = vpop.permute.xlu0 %1088
  %1090 = vrot.lane.b32.xlu0 %v311, 18
  %v1091 = vpop.permute.xlu0 %1090
  %1092 = vrot.lane.b32.xlu0 %v312, 18
  %v1093 = vpop.permute.xlu0 %1092
  %1094 = vrot.lane.b32.xlu0 %v314, 18
  %v1095 = vpop.permute.xlu0 %1094
  %1096 = vrot.lane.b32.xlu0 %v315, 18
  %v1097 = vpop.permute.xlu0 %1096
  %1098 = vrot.lane.b32.xlu0 %v317, 18
  %v1099 = vpop.permute.xlu0 %1098
  %1100 = vrot.lane.b32.xlu0 %v318, 18
  %v1101 = vpop.permute.xlu0 %1100
  %1102 = vrot.lane.b32.xlu0 %v326, 18
  %v1103 = vpop.permute.xlu0 %1102
  %1104 = vrot.lane.b32.xlu0 %v327, 18
  %v1105 = vpop.permute.xlu0 %1104
  %1106 = vrot.lane.b32.xlu0 %v329, 18
  %v1107 = vpop.permute.xlu0 %1106
  %1108 = vrot.lane.b32.xlu0 %v330, 18
  %v1109 = vpop.permute.xlu0 %1108
  %1110 = vrot.lane.b32.xlu0 %v332, 18
  %v1111 = vpop.permute.xlu0 %1110
  %1112 = vrot.lane.b32.xlu0 %v333, 18
  %v1113 = vpop.permute.xlu0 %1112
  %1114 = vrot.lane.b32.xlu0 %v335, 18
  %v1115 = vpop.permute.xlu0 %1114
  %1116 = vrot.lane.b32.xlu0 %v336, 18
  %v1117 = vpop.permute.xlu0 %1116
  %1118 = vrot.lane.b32.xlu0 %v338, 18
  %v1119 = vpop.permute.xlu0 %1118
  %1120 = vrot.lane.b32.xlu0 %v339, 18
  %v1121 = vpop.permute.xlu0 %1120
  %1122 = vrot.lane.b32.xlu0 %v341, 18
  %v1123 = vpop.permute.xlu0 %1122
  %1124 = vrot.lane.b32.xlu0 %v342, 18
  %v1125 = vpop.permute.xlu0 %1124
  %1126 = vrot.lane.b32.xlu0 %v344, 18
  %v1127 = vpop.permute.xlu0 %1126
  %1128 = vrot.lane.b32.xlu0 %v345, 18
  %v1129 = vpop.permute.xlu0 %1128
  %1130 = vrot.lane.b32.xlu0 %v347, 18
  %v1131 = vpop.permute.xlu0 %1130
  %1132 = vrot.lane.b32.xlu0 %v348, 18
  %v1133 = vpop.permute.xlu0 %1132
  %v1168 = vrot.slane %v317, 1
  %v1169 = vrot.slane %v318, 1
  %v1170 = vsel %vm398, %v1168, %v1169
  %v1171 = vrot.slane %v319, 1
  %v1172 = vsel %vm398, %v1169, %v1171
  %v1173 = vrot.slane %v347, 1
  %v1174 = vrot.slane %v348, 1
  %v1175 = vsel %vm398, %v1173, %v1174
  %v1176 = vrot.slane %v349, 1
  %v1177 = vsel %vm398, %v1174, %v1176
  %1178 = vrot.lane.b32.xlu0 %v411, 21
  %v1179 = vpop.permute.xlu0 %1178
  %1180 = vrot.lane.b32.xlu0 %v413, 21
  %v1181 = vpop.permute.xlu0 %1180
  %1182 = vrot.lane.b32.xlu0 %v416, 21
  %v1183 = vpop.permute.xlu0 %1182
  %1184 = vrot.lane.b32.xlu0 %v418, 21
  %v1185 = vpop.permute.xlu0 %1184
  %1186 = vrot.lane.b32.xlu0 %v421, 21
  %v1187 = vpop.permute.xlu0 %1186
  %1188 = vrot.lane.b32.xlu0 %v423, 21
  %v1189 = vpop.permute.xlu0 %1188
  %1190 = vrot.lane.b32.xlu0 %v426, 21
  %v1191 = vpop.permute.xlu0 %1190
  %1192 = vrot.lane.b32.xlu0 %v428, 21
  %v1193 = vpop.permute.xlu0 %1192
  %1194 = vrot.lane.b32.xlu0 %v431, 21
  %v1195 = vpop.permute.xlu0 %1194
  %1196 = vrot.lane.b32.xlu0 %v433, 21
  %v1197 = vpop.permute.xlu0 %1196
  %1198 = vrot.lane.b32.xlu0 %v436, 21
  %v1199 = vpop.permute.xlu0 %1198
  %1200 = vrot.lane.b32.xlu0 %v438, 21
  %v1201 = vpop.permute.xlu0 %1200
  %1202 = vrot.lane.b32.xlu0 %v856, 21
  %v1203 = vpop.permute.xlu0 %1202
  %1204 = vrot.lane.b32.xlu0 %v858, 21
  %v1205 = vpop.permute.xlu0 %1204
  %1206 = vrot.lane.b32.xlu0 %v1170, 21
  %v1207 = vpop.permute.xlu0 %1206
  %1208 = vrot.lane.b32.xlu0 %v1172, 21
  %v1209 = vpop.permute.xlu0 %1208
  %1210 = vrot.lane.b32.xlu0 %v451, 21
  %v1211 = vpop.permute.xlu0 %1210
  %1212 = vrot.lane.b32.xlu0 %v453, 21
  %v1213 = vpop.permute.xlu0 %1212
  %1214 = vrot.lane.b32.xlu0 %v456, 21
  %v1215 = vpop.permute.xlu0 %1214
  %1216 = vrot.lane.b32.xlu0 %v458, 21
  %v1217 = vpop.permute.xlu0 %1216
  %1218 = vrot.lane.b32.xlu0 %v461, 21
  %v1219 = vpop.permute.xlu0 %1218
  %1220 = vrot.lane.b32.xlu0 %v463, 21
  %v1221 = vpop.permute.xlu0 %1220
  %1222 = vrot.lane.b32.xlu0 %v466, 21
  %v1223 = vpop.permute.xlu0 %1222
  %1224 = vrot.lane.b32.xlu0 %v468, 21
  %v1225 = vpop.permute.xlu0 %1224
  %1226 = vrot.lane.b32.xlu0 %v471, 21
  %v1227 = vpop.permute.xlu0 %1226
  %1228 = vrot.lane.b32.xlu0 %v473, 21
  %v1229 = vpop.permute.xlu0 %1228
  %1230 = vrot.lane.b32.xlu0 %v476, 21
  %v1231 = vpop.permute.xlu0 %1230
  %1232 = vrot.lane.b32.xlu0 %v478, 21
  %v1233 = vpop.permute.xlu0 %1232
  %1234 = vrot.lane.b32.xlu0 %v861, 21
  %v1235 = vpop.permute.xlu0 %1234
  %1236 = vrot.lane.b32.xlu0 %v863, 21
  %v1237 = vpop.permute.xlu0 %1236
  %1238 = vrot.lane.b32.xlu0 %v1175, 21
  %v1239 = vpop.permute.xlu0 %1238
  %1240 = vrot.lane.b32.xlu0 %v1177, 21
  %v1241 = vpop.permute.xlu0 %1240
  %v1274 = vrot.slane %v317, 2
  %v1275 = vrot.slane %v318, 2
  %v1276 = vsel %vm575, %v1274, %v1275
  %v1277 = vrot.slane %v319, 2
  %v1278 = vsel %vm575, %v1275, %v1277
  %v1279 = vrot.slane %v347, 2
  %v1280 = vrot.slane %v348, 2
  %v1281 = vsel %vm575, %v1279, %v1280
  %v1282 = vrot.slane %v349, 2
  %v1283 = vsel %vm575, %v1280, %v1282
  %1284 = vrot.lane.b32.xlu0 %v588, 24
  %v1285 = vpop.permute.xlu0 %1284
  %1286 = vrot.lane.b32.xlu0 %v590, 24
  %v1287 = vpop.permute.xlu0 %1286
  %1288 = vrot.lane.b32.xlu0 %v593, 24
  %v1289 = vpop.permute.xlu0 %1288
  %1290 = vrot.lane.b32.xlu0 %v595, 24
  %v1291 = vpop.permute.xlu0 %1290
  %1292 = vrot.lane.b32.xlu0 %v598, 24
  %v1293 = vpop.permute.xlu0 %1292
  %1294 = vrot.lane.b32.xlu0 %v600, 24
  %v1295 = vpop.permute.xlu0 %1294
  %1296 = vrot.lane.b32.xlu0 %v603, 24
  %v1297 = vpop.permute.xlu0 %1296
  %1298 = vrot.lane.b32.xlu0 %v605, 24
  %v1299 = vpop.permute.xlu0 %1298
  %1300 = vrot.lane.b32.xlu0 %v608, 24
  %v1301 = vpop.permute.xlu0 %1300
  %1302 = vrot.lane.b32.xlu0 %v610, 24
  %v1303 = vpop.permute.xlu0 %1302
  %1304 = vrot.lane.b32.xlu0 %v613, 24
  %v1305 = vpop.permute.xlu0 %1304
  %1306 = vrot.lane.b32.xlu0 %v615, 24
  %v1307 = vpop.permute.xlu0 %1306
  %1308 = vrot.lane.b32.xlu0 %v962, 24
  %v1309 = vpop.permute.xlu0 %1308
  %1310 = vrot.lane.b32.xlu0 %v964, 24
  %v1311 = vpop.permute.xlu0 %1310
  %1312 = vrot.lane.b32.xlu0 %v1276, 24
  %v1313 = vpop.permute.xlu0 %1312
  %1314 = vrot.lane.b32.xlu0 %v1278, 24
  %v1315 = vpop.permute.xlu0 %1314
  %1316 = vrot.lane.b32.xlu0 %v628, 24
  %v1317 = vpop.permute.xlu0 %1316
  %1318 = vrot.lane.b32.xlu0 %v630, 24
  %v1319 = vpop.permute.xlu0 %1318
  %1320 = vrot.lane.b32.xlu0 %v633, 24
  %v1321 = vpop.permute.xlu0 %1320
  %1322 = vrot.lane.b32.xlu0 %v635, 24
  %v1323 = vpop.permute.xlu0 %1322
  %1324 = vrot.lane.b32.xlu0 %v638, 24
  %v1325 = vpop.permute.xlu0 %1324
  %1326 = vrot.lane.b32.xlu0 %v640, 24
  %v1327 = vpop.permute.xlu0 %1326
  %1328 = vrot.lane.b32.xlu0 %v643, 24
  %v1329 = vpop.permute.xlu0 %1328
  %1330 = vrot.lane.b32.xlu0 %v645, 24
  %v1331 = vpop.permute.xlu0 %1330
  %1332 = vrot.lane.b32.xlu0 %v648, 24
  %v1333 = vpop.permute.xlu0 %1332
  %1334 = vrot.lane.b32.xlu0 %v650, 24
  %v1335 = vpop.permute.xlu0 %1334
  %1336 = vrot.lane.b32.xlu0 %v653, 24
  %v1337 = vpop.permute.xlu0 %1336
  %1338 = vrot.lane.b32.xlu0 %v655, 24
  %v1339 = vpop.permute.xlu0 %1338
  %1340 = vrot.lane.b32.xlu0 %v967, 24
  %v1341 = vpop.permute.xlu0 %1340
  %1342 = vrot.lane.b32.xlu0 %v969, 24
  %v1343 = vpop.permute.xlu0 %1342
  %1344 = vrot.lane.b32.xlu0 %v1281, 24
  %v1345 = vpop.permute.xlu0 %1344
  %1346 = vrot.lane.b32.xlu0 %v1283, 24
  %v1347 = vpop.permute.xlu0 %1346
  %v1380 = vsel %vm21, %v290, %v480
  %v1381 = vsel %vm21, %v291, %v482
  %v1382 = vsel %vm21, %v293, %v484
  %v1383 = vsel %vm21, %v294, %v486
  %v1384 = vsel %vm21, %v296, %v488
  %v1385 = vsel %vm21, %v297, %v490
  %v1386 = vsel %vm21, %v299, %v492
  %v1387 = vsel %vm21, %v300, %v494
  %v1388 = vsel %vm21, %v302, %v496
  %v1389 = vsel %vm21, %v303, %v498
  %v1390 = vsel %vm21, %v305, %v500
  %v1391 = vsel %vm21, %v306, %v502
  %v1392 = vsel %vm21, %v308, %v504
  %v1393 = vsel %vm21, %v309, %v506
  %v1394 = vsel %vm21, %v311, %v508
  %v1395 = vsel %vm21, %v312, %v510
  %v1396 = vsel %vm21, %v320, %v512
  %v1397 = vsel %vm21, %v321, %v514
  %v1398 = vsel %vm21, %v323, %v516
  %v1399 = vsel %vm21, %v324, %v518
  %v1400 = vsel %vm21, %v326, %v520
  %v1401 = vsel %vm21, %v327, %v522
  %v1402 = vsel %vm21, %v329, %v524
  %v1403 = vsel %vm21, %v330, %v526
  %v1404 = vsel %vm21, %v332, %v528
  %v1405 = vsel %vm21, %v333, %v530
  %v1406 = vsel %vm21, %v335, %v532
  %v1407 = vsel %vm21, %v336, %v534
  %v1408 = vsel %vm21, %v338, %v536
  %v1409 = vsel %vm21, %v339, %v538
  %v1410 = vsel %vm21, %v341, %v540
  %v1411 = vsel %vm21, %v342, %v542
  %vm1412 = vcmask 48128
  %v1413 = vsel %vm1412, %v1380, %v657
  %v1414 = vsel %vm1412, %v1381, %v659
  %v1415 = vsel %vm1412, %v1382, %v661
  %v1416 = vsel %vm1412, %v1383, %v663
  %v1417 = vsel %vm1412, %v1384, %v665
  %v1418 = vsel %vm1412, %v1385, %v667
  %v1419 = vsel %vm1412, %v1386, %v669
  %v1420 = vsel %vm1412, %v1387, %v671
  %v1421 = vsel %vm1412, %v1388, %v673
  %v1422 = vsel %vm1412, %v1389, %v675
  %v1423 = vsel %vm1412, %v1390, %v677
  %v1424 = vsel %vm1412, %v1391, %v679
  %v1425 = vsel %vm1412, %v1392, %v681
  %v1426 = vsel %vm1412, %v1393, %v683
  %v1427 = vsel %vm1412, %v1394, %v685
  %v1428 = vsel %vm1412, %v1395, %v687
  %v1429 = vsel %vm1412, %v1396, %v689
  %v1430 = vsel %vm1412, %v1397, %v691
  %v1431 = vsel %vm1412, %v1398, %v693
  %v1432 = vsel %vm1412, %v1399, %v695
  %v1433 = vsel %vm1412, %v1400, %v697
  %v1434 = vsel %vm1412, %v1401, %v699
  %v1435 = vsel %vm1412, %v1402, %v701
  %v1436 = vsel %vm1412, %v1403, %v703
  %v1437 = vsel %vm1412, %v1404, %v705
  %v1438 = vsel %vm1412, %v1405, %v707
  %v1439 = vsel %vm1412, %v1406, %v709
  %v1440 = vsel %vm1412, %v1407, %v711
  %v1441 = vsel %vm1412, %v1408, %v713
  %v1442 = vsel %vm1412, %v1409, %v715
  %v1443 = vsel %vm1412, %v1410, %v717
  %v1444 = vsel %vm1412, %v1411, %v719
  %vm1445 = vcmask 72704
  %v1446 = vsel %vm1445, %v1413, %v757
  %v1447 = vsel %vm1445, %v1414, %v759
  %v1448 = vsel %vm1445, %v1415, %v761
  %v1449 = vsel %vm1445, %v1416, %v763
  %v1450 = vsel %vm1445, %v1417, %v765
  %v1451 = vsel %vm1445, %v1418, %v767
  %v1452 = vsel %vm1445, %v1419, %v769
  %v1453 = vsel %vm1445, %v1420, %v771
  %v1454 = vsel %vm1445, %v1421, %v773
  %v1455 = vsel %vm1445, %v1422, %v775
  %v1456 = vsel %vm1445, %v1423, %v777
  %v1457 = vsel %vm1445, %v1424, %v779
  %v1458 = vsel %vm1445, %v1425, %v781
  %v1459 = vsel %vm1445, %v1426, %v783
  %v1460 = vsel %vm1445, %v1427, %v785
  %v1461 = vsel %vm1445, %v1428, %v787
  %v1462 = vsel %vm1445, %v1429, %v789
  %v1463 = vsel %vm1445, %v1430, %v791
  %v1464 = vsel %vm1445, %v1431, %v793
  %v1465 = vsel %vm1445, %v1432, %v795
  %v1466 = vsel %vm1445, %v1433, %v797
  %v1467 = vsel %vm1445, %v1434, %v799
  %v1468 = vsel %vm1445, %v1435, %v801
  %v1469 = vsel %vm1445, %v1436, %v803
  %v1470 = vsel %vm1445, %v1437, %v805
  %v1471 = vsel %vm1445, %v1438, %v807
  %v1472 = vsel %vm1445, %v1439, %v809
  %v1473 = vsel %vm1445, %v1440, %v811
  %v1474 = vsel %vm1445, %v1441, %v813
  %v1475 = vsel %vm1445, %v1442, %v815
  %v1476 = vsel %vm1445, %v1443, %v817
  %v1477 = vsel %vm1445, %v1444, %v819
  %vm1478 = vcmask 97280
  %v1479 = vsel %vm1478, %v1446, %v865
  %v1480 = vsel %vm1478, %v1447, %v867
  %v1481 = vsel %vm1478, %v1448, %v869
  %v1482 = vsel %vm1478, %v1449, %v871
  %v1483 = vsel %vm1478, %v1450, %v873
  %v1484 = vsel %vm1478, %v1451, %v875
  %v1485 = vsel %vm1478, %v1452, %v877
  %v1486 = vsel %vm1478, %v1453, %v879
  %v1487 = vsel %vm1478, %v1454, %v881
  %v1488 = vsel %vm1478, %v1455, %v883
  %v1489 = vsel %vm1478, %v1456, %v885
  %v1490 = vsel %vm1478, %v1457, %v887
  %v1491 = vsel %vm1478, %v1458, %v889
  %v1492 = vsel %vm1478, %v1459, %v891
  %v1493 = vsel %vm1478, %v1460, %v893
  %v1494 = vsel %vm1478, %v1461, %v895
  %v1495 = vsel %vm1478, %v1462, %v897
  %v1496 = vsel %vm1478, %v1463, %v899
  %v1497 = vsel %vm1478, %v1464, %v901
  %v1498 = vsel %vm1478, %v1465, %v903
  %v1499 = vsel %vm1478, %v1466, %v905
  %v1500 = vsel %vm1478, %v1467, %v907
  %v1501 = vsel %vm1478, %v1468, %v909
  %v1502 = vsel %vm1478, %v1469, %v911
  %v1503 = vsel %vm1478, %v1470, %v913
  %v1504 = vsel %vm1478, %v1471, %v915
  %v1505 = vsel %vm1478, %v1472, %v917
  %v1506 = vsel %vm1478, %v1473, %v919
  %v1507 = vsel %vm1478, %v1474, %v921
  %v1508 = vsel %vm1478, %v1475, %v923
  %v1509 = vsel %vm1478, %v1476, %v925
  %v1510 = vsel %vm1478, %v1477, %v927
  %vm1511 = vcmask 121856
  %v1512 = vsel %vm1511, %v1479, %v971
  %v1513 = vsel %vm1511, %v1480, %v973
  %v1514 = vsel %vm1511, %v1481, %v975
  %v1515 = vsel %vm1511, %v1482, %v977
  %v1516 = vsel %vm1511, %v1483, %v979
  %v1517 = vsel %vm1511, %v1484, %v981
  %v1518 = vsel %vm1511, %v1485, %v983
  %v1519 = vsel %vm1511, %v1486, %v985
  %v1520 = vsel %vm1511, %v1487, %v987
  %v1521 = vsel %vm1511, %v1488, %v989
  %v1522 = vsel %vm1511, %v1489, %v991
  %v1523 = vsel %vm1511, %v1490, %v993
  %v1524 = vsel %vm1511, %v1491, %v995
  %v1525 = vsel %vm1511, %v1492, %v997
  %v1526 = vsel %vm1511, %v1493, %v999
  %v1527 = vsel %vm1511, %v1494, %v1001
  %v1528 = vsel %vm1511, %v1495, %v1003
  %v1529 = vsel %vm1511, %v1496, %v1005
  %v1530 = vsel %vm1511, %v1497, %v1007
  %v1531 = vsel %vm1511, %v1498, %v1009
  %v1532 = vsel %vm1511, %v1499, %v1011
  %v1533 = vsel %vm1511, %v1500, %v1013
  %v1534 = vsel %vm1511, %v1501, %v1015
  %v1535 = vsel %vm1511, %v1502, %v1017
  %v1536 = vsel %vm1511, %v1503, %v1019
  %v1537 = vsel %vm1511, %v1504, %v1021
  %v1538 = vsel %vm1511, %v1505, %v1023
  %v1539 = vsel %vm1511, %v1506, %v1025
  %v1540 = vsel %vm1511, %v1507, %v1027
  %v1541 = vsel %vm1511, %v1508, %v1029
  %v1542 = vsel %vm1511, %v1509, %v1031
  %v1543 = vsel %vm1511, %v1510, %v1033
  %vm1544 = vcmask 146432
  %v1545 = vsel %vm1544, %v1512, %v1071
  %v1546 = vsel %vm1544, %v1513, %v1073
  %v1547 = vsel %vm1544, %v1514, %v1075
  %v1548 = vsel %vm1544, %v1515, %v1077
  %v1549 = vsel %vm1544, %v1516, %v1079
  %v1550 = vsel %vm1544, %v1517, %v1081
  %v1551 = vsel %vm1544, %v1518, %v1083
  %v1552 = vsel %vm1544, %v1519, %v1085
  %v1553 = vsel %vm1544, %v1520, %v1087
  %v1554 = vsel %vm1544, %v1521, %v1089
  %v1555 = vsel %vm1544, %v1522, %v1091
  %v1556 = vsel %vm1544, %v1523, %v1093
  %v1557 = vsel %vm1544, %v1524, %v1095
  %v1558 = vsel %vm1544, %v1525, %v1097
  %v1559 = vsel %vm1544, %v1526, %v1099
  %v1560 = vsel %vm1544, %v1527, %v1101
  %v1561 = vsel %vm1544, %v1528, %v1103
  %v1562 = vsel %vm1544, %v1529, %v1105
  %v1563 = vsel %vm1544, %v1530, %v1107
  %v1564 = vsel %vm1544, %v1531, %v1109
  %v1565 = vsel %vm1544, %v1532, %v1111
  %v1566 = vsel %vm1544, %v1533, %v1113
  %v1567 = vsel %vm1544, %v1534, %v1115
  %v1568 = vsel %vm1544, %v1535, %v1117
  %v1569 = vsel %vm1544, %v1536, %v1119
  %v1570 = vsel %vm1544, %v1537, %v1121
  %v1571 = vsel %vm1544, %v1538, %v1123
  %v1572 = vsel %vm1544, %v1539, %v1125
  %v1573 = vsel %vm1544, %v1540, %v1127
  %v1574 = vsel %vm1544, %v1541, %v1129
  %v1575 = vsel %vm1544, %v1542, %v1131
  %v1576 = vsel %vm1544, %v1543, %v1133
  %vm1577 = vcmask 171008
  %v1578 = vsel %vm1577, %v1545, %v1179
  %v1579 = vsel %vm1577, %v1546, %v1181
  %v1580 = vsel %vm1577, %v1547, %v1183
  %v1581 = vsel %vm1577, %v1548, %v1185
  %v1582 = vsel %vm1577, %v1549, %v1187
  %v1583 = vsel %vm1577, %v1550, %v1189
  %v1584 = vsel %vm1577, %v1551, %v1191
  %v1585 = vsel %vm1577, %v1552, %v1193
  %v1586 = vsel %vm1577, %v1553, %v1195
  %v1587 = vsel %vm1577, %v1554, %v1197
  %v1588 = vsel %vm1577, %v1555, %v1199
  %v1589 = vsel %vm1577, %v1556, %v1201
  %v1590 = vsel %vm1577, %v1557, %v1203
  %v1591 = vsel %vm1577, %v1558, %v1205
  %v1592 = vsel %vm1577, %v1559, %v1207
  %v1593 = vsel %vm1577, %v1560, %v1209
  %v1594 = vsel %vm1577, %v1561, %v1211
  %v1595 = vsel %vm1577, %v1562, %v1213
  %v1596 = vsel %vm1577, %v1563, %v1215
  %v1597 = vsel %vm1577, %v1564, %v1217
  %v1598 = vsel %vm1577, %v1565, %v1219
  %v1599 = vsel %vm1577, %v1566, %v1221
  %v1600 = vsel %vm1577, %v1567, %v1223
  %v1601 = vsel %vm1577, %v1568, %v1225
  %v1602 = vsel %vm1577, %v1569, %v1227
  %v1603 = vsel %vm1577, %v1570, %v1229
  %v1604 = vsel %vm1577, %v1571, %v1231
  %v1605 = vsel %vm1577, %v1572, %v1233
  %v1606 = vsel %vm1577, %v1573, %v1235
  %v1607 = vsel %vm1577, %v1574, %v1237
  %v1608 = vsel %vm1577, %v1575, %v1239
  %v1609 = vsel %vm1577, %v1576, %v1241
  %vm1610 = vcmask 195584
  %v1611 = vsel %vm1610, %v1578, %v1285
  %v1612 = vsel %vm1610, %v1579, %v1287
  %v1613 = vsel %vm1610, %v1580, %v1289
  %v1614 = vsel %vm1610, %v1581, %v1291
  %v1615 = vsel %vm1610, %v1582, %v1293
  %v1616 = vsel %vm1610, %v1583, %v1295
  %v1617 = vsel %vm1610, %v1584, %v1297
  %v1618 = vsel %vm1610, %v1585, %v1299
  %v1619 = vsel %vm1610, %v1586, %v1301
  %v1620 = vsel %vm1610, %v1587, %v1303
  %v1621 = vsel %vm1610, %v1588, %v1305
  %v1622 = vsel %vm1610, %v1589, %v1307
  %v1623 = vsel %vm1610, %v1590, %v1309
  %v1624 = vsel %vm1610, %v1591, %v1311
  %v1625 = vsel %vm1610, %v1592, %v1313
  %v1626 = vsel %vm1610, %v1593, %v1315
  %v1627 = vsel %vm1610, %v1594, %v1317
  %v1628 = vsel %vm1610, %v1595, %v1319
  %v1629 = vsel %vm1610, %v1596, %v1321
  %v1630 = vsel %vm1610, %v1597, %v1323
  %v1631 = vsel %vm1610, %v1598, %v1325
  %v1632 = vsel %vm1610, %v1599, %v1327
  %v1633 = vsel %vm1610, %v1600, %v1329
  %v1634 = vsel %vm1610, %v1601, %v1331
  %v1635 = vsel %vm1610, %v1602, %v1333
  %v1636 = vsel %vm1610, %v1603, %v1335
  %v1637 = vsel %vm1610, %v1604, %v1337
  %v1638 = vsel %vm1610, %v1605, %v1339
  %v1639 = vsel %vm1610, %v1606, %v1341
  %v1640 = vsel %vm1610, %v1607, %v1343
  %v1641 = vsel %vm1610, %v1608, %v1345
  %v1642 = vsel %vm1610, %v1609, %v1347
  %v1643 = vpack.c.bf16 %v1612, %v1611
  %v1644 = vpack.c.bf16 %v1614, %v1613
  %v1645 = vpack.c.bf16 %v1616, %v1615
  %v1646 = vpack.c.bf16 %v1618, %v1617
  %v1647 = vpack.c.bf16 %v1620, %v1619
  %v1648 = vpack.c.bf16 %v1622, %v1621
  %v1649 = vpack.c.bf16 %v1624, %v1623
  %v1650 = vpack.c.bf16 %v1626, %v1625
  %v1651 = vpack.c.bf16 %v1628, %v1627
  %v1652 = vpack.c.bf16 %v1630, %v1629
  %v1653 = vpack.c.bf16 %v1632, %v1631
  %v1654 = vpack.c.bf16 %v1634, %v1633
  %v1655 = vpack.c.bf16 %v1636, %v1635
  %v1656 = vpack.c.bf16 %v1638, %v1637
  %v1657 = vpack.c.bf16 %v1640, %v1639
  %v1658 = vpack.c.bf16 %v1642, %v1641
  %v1659 = vld [vmem:[%s1] sm:$0xf]
  %v1660 = vld [vmem:[%s1 + $0x4] sm:$0xf]
  %v1661 = vld [vmem:[%s1 + $0x8] sm:$0xf]
  %v1662 = vld [vmem:[%s1 + $0xc] sm:$0x3]
  %v1663 = vld [vmem:[%s2] sm:$0x1]
  %v1665 = vperm.slane %v1663, 0
  %v1671 = vunpack.c.l.b16 %v1659
  %v1672 = vunpack.c.l.b16 %v1660
  %v1673 = vunpack.c.l.b16 %v1661
  %v1674 = vunpack.c.l.b16 %v1662
  %v1675 = vpack.c.b16 %v1672, %v1671
  %v1676 = vpack.c.b16 %v1674, %v1673
  %vm1678 = vcmask 220160
  %v1680 = vsel %vm1678, %v1643, 0
  %v1683 = vsel %vm1678, %v1644, 0
  %v1686 = vsel %vm1678, %v1645, 0
  %v1689 = vsel %vm1678, %v1646, 0
  %v1692 = vsel %vm1678, %v1647, 0
  %v1695 = vsel %vm1678, %v1648, 0
  %v1698 = vsel %vm1678, %v1649, 0
  %v1701 = vsel %vm1678, %v1650, 0
  %v1704 = vsel %vm1678, %v1651, 0
  %v1707 = vsel %vm1678, %v1652, 0
  %v1710 = vsel %vm1678, %v1653, 0
  %v1713 = vsel %vm1678, %v1654, 0
  %v1716 = vsel %vm1678, %v1655, 0
  %v1719 = vsel %vm1678, %v1656, 0
  %v1722 = vsel %vm1678, %v1657, 0
  %v1725 = vsel %vm1678, %v1658, 0
  %vm1727 = vcmask 1044480
  %v1728 = vsel %vm1727, 4294967295, 65535
  %v1729 = vsel %vm575, %v1728, 0
  %v1731 = vand.u32 %v1676, %v1729
  %1733 = vmatpush.bf16.msra.mxu0 0
  %1734 = vmatpush.bf16.msra.mxu0 0
  %1735 = vmatpush.bf16.msra.mxu0 0
  %1736 = vmatpush.bf16.msra.mxu0 0
  %1737 = vmatpush.bf16.msra.mxu0 0
  %1738 = vmatpush.bf16.msra.mxu0 0
  %1739 = vmatpush.bf16.msra.mxu0 %v1731
  %1740 = vmatpush.bf16.msra.mxu0 %v1675
  %1741 = vmatmul.bf16.gmra.mxu0 %v1680
  %v1742 = vpop.f32.mrf.mxu0
  %v1743 = vadd.f32 %v1665, %v1742
  %v1744 = vpop.f32.mrf.mxu0
  %v1745 = vadd.f32 %v1665, %v1744
  %1746 = vmatmul.bf16.gmra.mxu0 %v1683
  %v1747 = vpop.f32.mrf.mxu0
  %v1748 = vadd.f32 %v1665, %v1747
  %v1749 = vpop.f32.mrf.mxu0
  %v1750 = vadd.f32 %v1665, %v1749
  %1751 = vmatmul.bf16.gmra.mxu0 %v1686
  %v1752 = vpop.f32.mrf.mxu0
  %v1753 = vadd.f32 %v1665, %v1752
  %v1754 = vpop.f32.mrf.mxu0
  %v1755 = vadd.f32 %v1665, %v1754
  %1756 = vmatmul.bf16.gmra.mxu0 %v1689
  %v1757 = vpop.f32.mrf.mxu0
  %v1758 = vadd.f32 %v1665, %v1757
  %v1759 = vpop.f32.mrf.mxu0
  %v1760 = vadd.f32 %v1665, %v1759
  %1761 = vmatmul.bf16.gmra.mxu0 %v1692
  %v1762 = vpop.f32.mrf.mxu0
  %v1763 = vadd.f32 %v1665, %v1762
  %v1764 = vpop.f32.mrf.mxu0
  %v1765 = vadd.f32 %v1665, %v1764
  %1766 = vmatmul.bf16.gmra.mxu0 %v1695
  %v1767 = vpop.f32.mrf.mxu0
  %v1768 = vadd.f32 %v1665, %v1767
  %v1769 = vpop.f32.mrf.mxu0
  %v1770 = vadd.f32 %v1665, %v1769
  %1771 = vmatmul.bf16.gmra.mxu0 %v1698
  %v1772 = vpop.f32.mrf.mxu0
  %v1773 = vadd.f32 %v1665, %v1772
  %v1774 = vpop.f32.mrf.mxu0
  %v1775 = vadd.f32 %v1665, %v1774
  %1776 = vmatmul.bf16.gmra.mxu0 %v1701
  %v1777 = vpop.f32.mrf.mxu0
  %v1778 = vadd.f32 %v1665, %v1777
  %v1779 = vpop.f32.mrf.mxu0
  %v1780 = vadd.f32 %v1665, %v1779
  %1781 = vmatmul.bf16.gmra.mxu0 %v1704
  %v1782 = vpop.f32.mrf.mxu0
  %v1783 = vadd.f32 %v1665, %v1782
  %v1784 = vpop.f32.mrf.mxu0
  %v1785 = vadd.f32 %v1665, %v1784
  %1786 = vmatmul.bf16.gmra.mxu0 %v1707
  %v1787 = vpop.f32.mrf.mxu0
  %v1788 = vadd.f32 %v1665, %v1787
  %v1789 = vpop.f32.mrf.mxu0
  %v1790 = vadd.f32 %v1665, %v1789
  %1791 = vmatmul.bf16.gmra.mxu0 %v1710
  %v1792 = vpop.f32.mrf.mxu0
  %v1793 = vadd.f32 %v1665, %v1792
  %v1794 = vpop.f32.mrf.mxu0
  %v1795 = vadd.f32 %v1665, %v1794
  %1796 = vmatmul.bf16.gmra.mxu0 %v1713
  %v1797 = vpop.f32.mrf.mxu0
  %v1798 = vadd.f32 %v1665, %v1797
  %v1799 = vpop.f32.mrf.mxu0
  %v1800 = vadd.f32 %v1665, %v1799
  %1801 = vmatmul.bf16.gmra.mxu0 %v1716
  %v1802 = vpop.f32.mrf.mxu0
  %v1803 = vadd.f32 %v1665, %v1802
  %v1804 = vpop.f32.mrf.mxu0
  %v1805 = vadd.f32 %v1665, %v1804
  %1806 = vmatmul.bf16.gmra.mxu0 %v1719
  %v1807 = vpop.f32.mrf.mxu0
  %v1808 = vadd.f32 %v1665, %v1807
  %v1809 = vpop.f32.mrf.mxu0
  %v1810 = vadd.f32 %v1665, %v1809
  %1811 = vmatmul.bf16.gmra.mxu0 %v1722
  %v1812 = vpop.f32.mrf.mxu0
  %v1813 = vadd.f32 %v1665, %v1812
  %v1814 = vpop.f32.mrf.mxu0
  %v1815 = vadd.f32 %v1665, %v1814
  %1816 = vmatmul.bf16.gmra.mxu0 %v1725
  %v1817 = vpop.f32.mrf.mxu0
  %v1818 = vadd.f32 %v1665, %v1817
  %v1819 = vpop.f32.mrf.mxu0
  %v1820 = vadd.f32 %v1665, %v1819
  %1821 = vdwg.mxu0
  %v1822 = vmax.f32 %v1743, 0.0
  %v1823 = vmax.f32 %v1745, 0.0
  %v1824 = vmax.f32 %v1748, 0.0
  %v1825 = vmax.f32 %v1750, 0.0
  %v1826 = vmax.f32 %v1753, 0.0
  %v1827 = vmax.f32 %v1755, 0.0
  %v1828 = vmax.f32 %v1758, 0.0
  %v1829 = vmax.f32 %v1760, 0.0
  %v1830 = vmax.f32 %v1763, 0.0
  %v1831 = vmax.f32 %v1765, 0.0
  %v1832 = vmax.f32 %v1768, 0.0
  %v1833 = vmax.f32 %v1770, 0.0
  %v1834 = vmax.f32 %v1773, 0.0
  %v1835 = vmax.f32 %v1775, 0.0
  %v1836 = vmax.f32 %v1778, 0.0
  %v1837 = vmax.f32 %v1780, 0.0
  %v1838 = vmax.f32 %v1783, 0.0
  %v1839 = vmax.f32 %v1785, 0.0
  %v1840 = vmax.f32 %v1788, 0.0
  %v1841 = vmax.f32 %v1790, 0.0
  %v1842 = vmax.f32 %v1793, 0.0
  %v1843 = vmax.f32 %v1795, 0.0
  %v1844 = vmax.f32 %v1798, 0.0
  %v1845 = vmax.f32 %v1800, 0.0
  %v1846 = vmax.f32 %v1803, 0.0
  %v1847 = vmax.f32 %v1805, 0.0
  %v1848 = vmax.f32 %v1808, 0.0
  %v1849 = vmax.f32 %v1810, 0.0
  %v1850 = vmax.f32 %v1813, 0.0
  %v1851 = vmax.f32 %v1815, 0.0
  %v1852 = vmax.f32 %v1818, 0.0
  %v1853 = vmax.f32 %v1820, 0.0
  %v1886 = vrot.slane %v1822, 2
  %v1887 = vrot.slane %v1822, 4
  %v1888 = vrot.slane %v1822, 6
  %v1889 = vrot.slane %v1823, 2
  %v1890 = vrot.slane %v1823, 4
  %v1891 = vrot.slane %v1823, 6
  %v1892 = vrot.slane %v1824, 2
  %v1893 = vrot.slane %v1824, 4
  %v1894 = vrot.slane %v1824, 6
  %v1895 = vrot.slane %v1825, 2
  %v1896 = vrot.slane %v1825, 4
  %v1897 = vrot.slane %v1825, 6
  %v1898 = vrot.slane %v1826, 2
  %v1899 = vrot.slane %v1826, 4
  %v1900 = vrot.slane %v1826, 6
  %v1901 = vrot.slane %v1827, 2
  %v1902 = vrot.slane %v1827, 4
  %v1903 = vrot.slane %v1827, 6
  %v1904 = vrot.slane %v1828, 2
  %v1905 = vrot.slane %v1828, 4
  %v1906 = vrot.slane %v1828, 6
  %v1907 = vrot.slane %v1829, 2
  %v1908 = vrot.slane %v1829, 4
  %v1909 = vrot.slane %v1829, 6
  %v1910 = vrot.slane %v1830, 2
  %v1911 = vrot.slane %v1830, 4
  %v1912 = vrot.slane %v1830, 6
  %v1913 = vrot.slane %v1831, 2
  %v1914 = vrot.slane %v1831, 4
  %v1915 = vrot.slane %v1831, 6
  %v1916 = vrot.slane %v1832, 2
  %v1917 = vrot.slane %v1832, 4
  %v1918 = vrot.slane %v1832, 6
  %v1919 = vrot.slane %v1833, 2
  %v1920 = vrot.slane %v1833, 4
  %v1921 = vrot.slane %v1833, 6
  %v1922 = vrot.slane %v1834, 2
  %v1923 = vrot.slane %v1834, 4
  %v1924 = vrot.slane %v1834, 6
  %v1925 = vrot.slane %v1835, 2
  %v1926 = vrot.slane %v1835, 4
  %v1927 = vrot.slane %v1835, 6
  %v1928 = vrot.slane %v1836, 2
  %v1929 = vrot.slane %v1836, 4
  %v1930 = vrot.slane %v1836, 6
  %v1931 = vrot.slane %v1837, 2
  %v1932 = vrot.slane %v1837, 4
  %v1933 = vrot.slane %v1837, 6
  %v1934 = vrot.slane %v1838, 2
  %v1935 = vrot.slane %v1838, 4
  %v1936 = vrot.slane %v1838, 6
  %v1937 = vrot.slane %v1839, 2
  %v1938 = vrot.slane %v1839, 4
  %v1939 = vrot.slane %v1839, 6
  %v1940 = vrot.slane %v1840, 2
  %v1941 = vrot.slane %v1840, 4
  %v1942 = vrot.slane %v1840, 6
  %v1943 = vrot.slane %v1841, 2
  %v1944 = vrot.slane %v1841, 4
  %v1945 = vrot.slane %v1841, 6
  %v1946 = vrot.slane %v1842, 2
  %v1947 = vrot.slane %v1842, 4
  %v1948 = vrot.slane %v1842, 6
  %v1949 = vrot.slane %v1843, 2
  %v1950 = vrot.slane %v1843, 4
  %v1951 = vrot.slane %v1843, 6
  %v1952 = vrot.slane %v1844, 2
  %v1953 = vrot.slane %v1844, 4
  %v1954 = vrot.slane %v1844, 6
  %v1955 = vrot.slane %v1845, 2
  %v1956 = vrot.slane %v1845, 4
  %v1957 = vrot.slane %v1845, 6
  %v1958 = vrot.slane %v1846, 2
  %v1959 = vrot.slane %v1846, 4
  %v1960 = vrot.slane %v1846, 6
  %v1961 = vrot.slane %v1847, 2
  %v1962 = vrot.slane %v1847, 4
  %v1963 = vrot.slane %v1847, 6
  %v1964 = vrot.slane %v1848, 2
  %v1965 = vrot.slane %v1848, 4
  %v1966 = vrot.slane %v1848, 6
  %v1967 = vrot.slane %v1849, 2
  %v1968 = vrot.slane %v1849, 4
  %v1969 = vrot.slane %v1849, 6
  %v1970 = vrot.slane %v1850, 2
  %v1971 = vrot.slane %v1850, 4
  %v1972 = vrot.slane %v1850, 6
  %v1973 = vrot.slane %v1851, 2
  %v1974 = vrot.slane %v1851, 4
  %v1975 = vrot.slane %v1851, 6
  %v1976 = vrot.slane %v1852, 2
  %v1977 = vrot.slane %v1852, 4
  %v1978 = vrot.slane %v1852, 6
  %v1979 = vrot.slane %v1853, 2
  %v1980 = vrot.slane %v1853, 4
  %v1981 = vrot.slane %v1853, 6
  %v2078 = vrot.slane %v1822, 7
  %v2079 = vrot.slane %v2078, 2
  %v2080 = vrot.slane %v1886, 7
  %v2081 = vrot.slane %v2080, 2
  %v2082 = vrot.slane %v1887, 7
  %v2083 = vrot.slane %v2082, 2
  %v2084 = vrot.slane %v1888, 7
  %v2085 = vrot.slane %v2084, 2
  %v2086 = vrot.slane %v1823, 7
  %v2087 = vrot.slane %v2086, 2
  %v2088 = vrot.slane %v1889, 7
  %v2089 = vrot.slane %v2088, 2
  %v2090 = vrot.slane %v1890, 7
  %v2091 = vrot.slane %v2090, 2
  %v2092 = vrot.slane %v1891, 7
  %v2093 = vrot.slane %v2092, 2
  %v2094 = vrot.slane %v1824, 7
  %v2095 = vrot.slane %v2094, 2
  %v2096 = vrot.slane %v1892, 7
  %v2097 = vrot.slane %v2096, 2
  %v2098 = vrot.slane %v1893, 7
  %v2099 = vrot.slane %v2098, 2
  %v2100 = vrot.slane %v1894, 7
  %v2101 = vrot.slane %v2100, 2
  %v2102 = vrot.slane %v1825, 7
  %v2103 = vrot.slane %v2102, 2
  %v2104 = vrot.slane %v1895, 7
  %v2105 = vrot.slane %v2104, 2
  %v2106 = vrot.slane %v1896, 7
  %v2107 = vrot.slane %v2106, 2
  %v2108 = vrot.slane %v1897, 7
  %v2109 = vrot.slane %v2108, 2
  %v2110 = vrot.slane %v1826, 7
  %v2111 = vrot.slane %v2110, 2
  %v2112 = vrot.slane %v1898, 7
  %v2113 = vrot.slane %v2112, 2
  %v2114 = vrot.slane %v1899, 7
  %v2115 = vrot.slane %v2114, 2
  %v2116 = vrot.slane %v1900, 7
  %v2117 = vrot.slane %v2116, 2
  %v2118 = vrot.slane %v1827, 7
  %v2119 = vrot.slane %v2118, 2
  %v2120 = vrot.slane %v1901, 7
  %v2121 = vrot.slane %v2120, 2
  %v2122 = vrot.slane %v1902, 7
  %v2123 = vrot.slane %v2122, 2
  %v2124 = vrot.slane %v1903, 7
  %v2125 = vrot.slane %v2124, 2
  %v2126 = vrot.slane %v1828, 7
  %v2127 = vrot.slane %v2126, 2
  %v2128 = vrot.slane %v1904, 7
  %v2129 = vrot.slane %v2128, 2
  %v2130 = vrot.slane %v1905, 7
  %v2131 = vrot.slane %v2130, 2
  %v2132 = vrot.slane %v1906, 7
  %v2133 = vrot.slane %v2132, 2
  %v2134 = vrot.slane %v1829, 7
  %v2135 = vrot.slane %v2134, 2
  %v2136 = vrot.slane %v1907, 7
  %v2137 = vrot.slane %v2136, 2
  %v2138 = vrot.slane %v1908, 7
  %v2139 = vrot.slane %v2138, 2
  %v2140 = vrot.slane %v1909, 7
  %v2141 = vrot.slane %v2140, 2
  %v2142 = vrot.slane %v1830, 7
  %v2143 = vrot.slane %v2142, 2
  %v2144 = vrot.slane %v1910, 7
  %v2145 = vrot.slane %v2144, 2
  %v2146 = vrot.slane %v1911, 7
  %v2147 = vrot.slane %v2146, 2
  %v2148 = vrot.slane %v1912, 7
  %v2149 = vrot.slane %v2148, 2
  %v2150 = vrot.slane %v1831, 7
  %v2151 = vrot.slane %v2150, 2
  %v2152 = vrot.slane %v1913, 7
  %v2153 = vrot.slane %v2152, 2
  %v2154 = vrot.slane %v1914, 7
  %v2155 = vrot.slane %v2154, 2
  %v2156 = vrot.slane %v1915, 7
  %v2157 = vrot.slane %v2156, 2
  %v2158 = vrot.slane %v1832, 7
  %v2159 = vrot.slane %v2158, 2
  %v2160 = vrot.slane %v1916, 7
  %v2161 = vrot.slane %v2160, 2
  %v2162 = vrot.slane %v1917, 7
  %v2163 = vrot.slane %v2162, 2
  %v2164 = vrot.slane %v1918, 7
  %v2165 = vrot.slane %v2164, 2
  %v2166 = vrot.slane %v1833, 7
  %v2167 = vrot.slane %v2166, 2
  %v2168 = vrot.slane %v1919, 7
  %v2169 = vrot.slane %v2168, 2
  %v2170 = vrot.slane %v1920, 7
  %v2171 = vrot.slane %v2170, 2
  %v2172 = vrot.slane %v1921, 7
  %v2173 = vrot.slane %v2172, 2
  %v2174 = vrot.slane %v1834, 7
  %v2175 = vrot.slane %v2174, 2
  %v2176 = vrot.slane %v1922, 7
  %v2177 = vrot.slane %v2176, 2
  %v2178 = vrot.slane %v1923, 7
  %v2179 = vrot.slane %v2178, 2
  %v2180 = vrot.slane %v1924, 7
  %v2181 = vrot.slane %v2180, 2
  %v2182 = vrot.slane %v1835, 7
  %v2183 = vrot.slane %v2182, 2
  %v2184 = vrot.slane %v1925, 7
  %v2185 = vrot.slane %v2184, 2
  %v2186 = vrot.slane %v1926, 7
  %v2187 = vrot.slane %v2186, 2
  %v2188 = vrot.slane %v1927, 7
  %v2189 = vrot.slane %v2188, 2
  %v2190 = vrot.slane %v1836, 7
  %v2191 = vrot.slane %v2190, 2
  %v2192 = vrot.slane %v1928, 7
  %v2193 = vrot.slane %v2192, 2
  %v2194 = vrot.slane %v1929, 7
  %v2195 = vrot.slane %v2194, 2
  %v2196 = vrot.slane %v1930, 7
  %v2197 = vrot.slane %v2196, 2
  %v2198 = vrot.slane %v1837, 7
  %v2199 = vrot.slane %v2198, 2
  %v2200 = vrot.slane %v1931, 7
  %v2201 = vrot.slane %v2200, 2
  %v2202 = vrot.slane %v1932, 7
  %v2203 = vrot.slane %v2202, 2
  %v2204 = vrot.slane %v1933, 7
  %v2205 = vrot.slane %v2204, 2
  %v2206 = vrot.slane %v1838, 7
  %v2207 = vrot.slane %v2206, 2
  %v2208 = vrot.slane %v1934, 7
  %v2209 = vrot.slane %v2208, 2
  %v2210 = vrot.slane %v1935, 7
  %v2211 = vrot.slane %v2210, 2
  %v2212 = vrot.slane %v1936, 7
  %v2213 = vrot.slane %v2212, 2
  %v2214 = vrot.slane %v1839, 7
  %v2215 = vrot.slane %v2214, 2
  %v2216 = vrot.slane %v1937, 7
  %v2217 = vrot.slane %v2216, 2
  %v2218 = vrot.slane %v1938, 7
  %v2219 = vrot.slane %v2218, 2
  %v2220 = vrot.slane %v1939, 7
  %v2221 = vrot.slane %v2220, 2
  %v2222 = vrot.slane %v1840, 7
  %v2223 = vrot.slane %v2222, 2
  %v2224 = vrot.slane %v1940, 7
  %v2225 = vrot.slane %v2224, 2
  %v2226 = vrot.slane %v1941, 7
  %v2227 = vrot.slane %v2226, 2
  %v2228 = vrot.slane %v1942, 7
  %v2229 = vrot.slane %v2228, 2
  %v2230 = vrot.slane %v1841, 7
  %v2231 = vrot.slane %v2230, 2
  %v2232 = vrot.slane %v1943, 7
  %v2233 = vrot.slane %v2232, 2
  %v2234 = vrot.slane %v1944, 7
  %v2235 = vrot.slane %v2234, 2
  %v2236 = vrot.slane %v1945, 7
  %v2237 = vrot.slane %v2236, 2
  %v2238 = vrot.slane %v1842, 7
  %v2239 = vrot.slane %v2238, 2
  %v2240 = vrot.slane %v1946, 7
  %v2241 = vrot.slane %v2240, 2
  %v2242 = vrot.slane %v1947, 7
  %v2243 = vrot.slane %v2242, 2
  %v2244 = vrot.slane %v1948, 7
  %v2245 = vrot.slane %v2244, 2
  %v2246 = vrot.slane %v1843, 7
  %v2247 = vrot.slane %v2246, 2
  %v2248 = vrot.slane %v1949, 7
  %v2249 = vrot.slane %v2248, 2
  %v2250 = vrot.slane %v1950, 7
  %v2251 = vrot.slane %v2250, 2
  %v2252 = vrot.slane %v1951, 7
  %v2253 = vrot.slane %v2252, 2
  %v2254 = vrot.slane %v1844, 7
  %v2255 = vrot.slane %v2254, 2
  %v2256 = vrot.slane %v1952, 7
  %v2257 = vrot.slane %v2256, 2
  %v2258 = vrot.slane %v1953, 7
  %v2259 = vrot.slane %v2258, 2
  %v2260 = vrot.slane %v1954, 7
  %v2261 = vrot.slane %v2260, 2
  %v2262 = vrot.slane %v1845, 7
  %v2263 = vrot.slane %v2262, 2
  %v2264 = vrot.slane %v1955, 7
  %v2265 = vrot.slane %v2264, 2
  %v2266 = vrot.slane %v1956, 7
  %v2267 = vrot.slane %v2266, 2
  %v2268 = vrot.slane %v1957, 7
  %v2269 = vrot.slane %v2268, 2
  %v2270 = vrot.slane %v1846, 7
  %v2271 = vrot.slane %v2270, 2
  %v2272 = vrot.slane %v1958, 7
  %v2273 = vrot.slane %v2272, 2
  %v2274 = vrot.slane %v1959, 7
  %v2275 = vrot.slane %v2274, 2
  %v2276 = vrot.slane %v1960, 7
  %v2277 = vrot.slane %v2276, 2
  %v2278 = vrot.slane %v1847, 7
  %v2279 = vrot.slane %v2278, 2
  %v2280 = vrot.slane %v1961, 7
  %v2281 = vrot.slane %v2280, 2
  %v2282 = vrot.slane %v1962, 7
  %v2283 = vrot.slane %v2282, 2
  %v2284 = vrot.slane %v1963, 7
  %v2285 = vrot.slane %v2284, 2
  %v2286 = vrot.slane %v1848, 7
  %v2287 = vrot.slane %v2286, 2
  %v2288 = vrot.slane %v1964, 7
  %v2289 = vrot.slane %v2288, 2
  %v2290 = vrot.slane %v1965, 7
  %v2291 = vrot.slane %v2290, 2
  %v2292 = vrot.slane %v1966, 7
  %v2293 = vrot.slane %v2292, 2
  %v2294 = vrot.slane %v1849, 7
  %v2295 = vrot.slane %v2294, 2
  %v2296 = vrot.slane %v1967, 7
  %v2297 = vrot.slane %v2296, 2
  %v2298 = vrot.slane %v1968, 7
  %v2299 = vrot.slane %v2298, 2
  %v2300 = vrot.slane %v1969, 7
  %v2301 = vrot.slane %v2300, 2
  %v2302 = vrot.slane %v1850, 7
  %v2303 = vrot.slane %v2302, 2
  %v2304 = vrot.slane %v1970, 7
  %v2305 = vrot.slane %v2304, 2
  %v2306 = vrot.slane %v1971, 7
  %v2307 = vrot.slane %v2306, 2
  %v2308 = vrot.slane %v1972, 7
  %v2309 = vrot.slane %v2308, 2
  %v2310 = vrot.slane %v1851, 7
  %v2311 = vrot.slane %v2310, 2
  %v2312 = vrot.slane %v1973, 7
  %v2313 = vrot.slane %v2312, 2
  %v2314 = vrot.slane %v1974, 7
  %v2315 = vrot.slane %v2314, 2
  %v2316 = vrot.slane %v1975, 7
  %v2317 = vrot.slane %v2316, 2
  %v2318 = vrot.slane %v1852, 7
  %v2319 = vrot.slane %v2318, 2
  %v2320 = vrot.slane %v1976, 7
  %v2321 = vrot.slane %v2320, 2
  %v2322 = vrot.slane %v1977, 7
  %v2323 = vrot.slane %v2322, 2
  %v2324 = vrot.slane %v1978, 7
  %v2325 = vrot.slane %v2324, 2
  %v2326 = vrot.slane %v1853, 7
  %v2327 = vrot.slane %v2326, 2
  %v2328 = vrot.slane %v1979, 7
  %v2329 = vrot.slane %v2328, 2
  %v2330 = vrot.slane %v1980, 7
  %v2331 = vrot.slane %v2330, 2
  %v2332 = vrot.slane %v1981, 7
  %v2333 = vrot.slane %v2332, 2
  %v2462 = vmax.f32 %v1822, %v2079
  %v2463 = vmax.f32 %v1886, %v2081
  %v2464 = vmax.f32 %v1887, %v2083
  %v2465 = vmax.f32 %v1888, %v2085
  %v2466 = vmax.f32 %v1823, %v2087
  %v2467 = vmax.f32 %v1889, %v2089
  %v2468 = vmax.f32 %v1890, %v2091
  %v2469 = vmax.f32 %v1891, %v2093
  %v2470 = vmax.f32 %v1824, %v2095
  %v2471 = vmax.f32 %v1892, %v2097
  %v2472 = vmax.f32 %v1893, %v2099
  %v2473 = vmax.f32 %v1894, %v2101
  %v2474 = vmax.f32 %v1825, %v2103
  %v2475 = vmax.f32 %v1895, %v2105
  %v2476 = vmax.f32 %v1896, %v2107
  %v2477 = vmax.f32 %v1897, %v2109
  %v2478 = vmax.f32 %v1826, %v2111
  %v2479 = vmax.f32 %v1898, %v2113
  %v2480 = vmax.f32 %v1899, %v2115
  %v2481 = vmax.f32 %v1900, %v2117
  %v2482 = vmax.f32 %v1827, %v2119
  %v2483 = vmax.f32 %v1901, %v2121
  %v2484 = vmax.f32 %v1902, %v2123
  %v2485 = vmax.f32 %v1903, %v2125
  %v2486 = vmax.f32 %v1828, %v2127
  %v2487 = vmax.f32 %v1904, %v2129
  %v2488 = vmax.f32 %v1905, %v2131
  %v2489 = vmax.f32 %v1906, %v2133
  %v2490 = vmax.f32 %v1829, %v2135
  %v2491 = vmax.f32 %v1907, %v2137
  %v2492 = vmax.f32 %v1908, %v2139
  %v2493 = vmax.f32 %v1909, %v2141
  %v2494 = vmax.f32 %v1830, %v2143
  %v2495 = vmax.f32 %v1910, %v2145
  %v2496 = vmax.f32 %v1911, %v2147
  %v2497 = vmax.f32 %v1912, %v2149
  %v2498 = vmax.f32 %v1831, %v2151
  %v2499 = vmax.f32 %v1913, %v2153
  %v2500 = vmax.f32 %v1914, %v2155
  %v2501 = vmax.f32 %v1915, %v2157
  %v2502 = vmax.f32 %v1832, %v2159
  %v2503 = vmax.f32 %v1916, %v2161
  %v2504 = vmax.f32 %v1917, %v2163
  %v2505 = vmax.f32 %v1918, %v2165
  %v2506 = vmax.f32 %v1833, %v2167
  %v2507 = vmax.f32 %v1919, %v2169
  %v2508 = vmax.f32 %v1920, %v2171
  %v2509 = vmax.f32 %v1921, %v2173
  %v2510 = vmax.f32 %v1834, %v2175
  %v2511 = vmax.f32 %v1922, %v2177
  %v2512 = vmax.f32 %v1923, %v2179
  %v2513 = vmax.f32 %v1924, %v2181
  %v2514 = vmax.f32 %v1835, %v2183
  %v2515 = vmax.f32 %v1925, %v2185
  %v2516 = vmax.f32 %v1926, %v2187
  %v2517 = vmax.f32 %v1927, %v2189
  %v2518 = vmax.f32 %v1836, %v2191
  %v2519 = vmax.f32 %v1928, %v2193
  %v2520 = vmax.f32 %v1929, %v2195
  %v2521 = vmax.f32 %v1930, %v2197
  %v2522 = vmax.f32 %v1837, %v2199
  %v2523 = vmax.f32 %v1931, %v2201
  %v2524 = vmax.f32 %v1932, %v2203
  %v2525 = vmax.f32 %v1933, %v2205
  %v2526 = vmax.f32 %v1838, %v2207
  %v2527 = vmax.f32 %v1934, %v2209
  %v2528 = vmax.f32 %v1935, %v2211
  %v2529 = vmax.f32 %v1936, %v2213
  %v2530 = vmax.f32 %v1839, %v2215
  %v2531 = vmax.f32 %v1937, %v2217
  %v2532 = vmax.f32 %v1938, %v2219
  %v2533 = vmax.f32 %v1939, %v2221
  %v2534 = vmax.f32 %v1840, %v2223
  %v2535 = vmax.f32 %v1940, %v2225
  %v2536 = vmax.f32 %v1941, %v2227
  %v2537 = vmax.f32 %v1942, %v2229
  %v2538 = vmax.f32 %v1841, %v2231
  %v2539 = vmax.f32 %v1943, %v2233
  %v2540 = vmax.f32 %v1944, %v2235
  %v2541 = vmax.f32 %v1945, %v2237
  %v2542 = vmax.f32 %v1842, %v2239
  %v2543 = vmax.f32 %v1946, %v2241
  %v2544 = vmax.f32 %v1947, %v2243
  %v2545 = vmax.f32 %v1948, %v2245
  %v2546 = vmax.f32 %v1843, %v2247
  %v2547 = vmax.f32 %v1949, %v2249
  %v2548 = vmax.f32 %v1950, %v2251
  %v2549 = vmax.f32 %v1951, %v2253
  %v2550 = vmax.f32 %v1844, %v2255
  %v2551 = vmax.f32 %v1952, %v2257
  %v2552 = vmax.f32 %v1953, %v2259
  %v2553 = vmax.f32 %v1954, %v2261
  %v2554 = vmax.f32 %v1845, %v2263
  %v2555 = vmax.f32 %v1955, %v2265
  %v2556 = vmax.f32 %v1956, %v2267
  %v2557 = vmax.f32 %v1957, %v2269
  %v2558 = vmax.f32 %v1846, %v2271
  %v2559 = vmax.f32 %v1958, %v2273
  %v2560 = vmax.f32 %v1959, %v2275
  %v2561 = vmax.f32 %v1960, %v2277
  %v2562 = vmax.f32 %v1847, %v2279
  %v2563 = vmax.f32 %v1961, %v2281
  %v2564 = vmax.f32 %v1962, %v2283
  %v2565 = vmax.f32 %v1963, %v2285
  %v2566 = vmax.f32 %v1848, %v2287
  %v2567 = vmax.f32 %v1964, %v2289
  %v2568 = vmax.f32 %v1965, %v2291
  %v2569 = vmax.f32 %v1966, %v2293
  %v2570 = vmax.f32 %v1849, %v2295
  %v2571 = vmax.f32 %v1967, %v2297
  %v2572 = vmax.f32 %v1968, %v2299
  %v2573 = vmax.f32 %v1969, %v2301
  %v2574 = vmax.f32 %v1850, %v2303
  %v2575 = vmax.f32 %v1970, %v2305
  %v2576 = vmax.f32 %v1971, %v2307
  %v2577 = vmax.f32 %v1972, %v2309
  %v2578 = vmax.f32 %v1851, %v2311
  %v2579 = vmax.f32 %v1973, %v2313
  %v2580 = vmax.f32 %v1974, %v2315
  %v2581 = vmax.f32 %v1975, %v2317
  %v2582 = vmax.f32 %v1852, %v2319
  %v2583 = vmax.f32 %v1976, %v2321
  %v2584 = vmax.f32 %v1977, %v2323
  %v2585 = vmax.f32 %v1978, %v2325
  %v2586 = vmax.f32 %v1853, %v2327
  %v2587 = vmax.f32 %v1979, %v2329
  %v2588 = vmax.f32 %v1980, %v2331
  %v2589 = vmax.f32 %v1981, %v2333
  %v2590 = vmax.f32 %v2462, %v2470
  %v2591 = vmax.f32 %v2463, %v2471
  %v2592 = vmax.f32 %v2464, %v2472
  %v2593 = vmax.f32 %v2465, %v2473
  %v2594 = vmax.f32 %v2466, %v2474
  %v2595 = vmax.f32 %v2467, %v2475
  %v2596 = vmax.f32 %v2468, %v2476
  %v2597 = vmax.f32 %v2469, %v2477
  %v2598 = vmax.f32 %v2478, %v2486
  %v2599 = vmax.f32 %v2479, %v2487
  %v2600 = vmax.f32 %v2480, %v2488
  %v2601 = vmax.f32 %v2481, %v2489
  %v2602 = vmax.f32 %v2482, %v2490
  %v2603 = vmax.f32 %v2483, %v2491
  %v2604 = vmax.f32 %v2484, %v2492
  %v2605 = vmax.f32 %v2485, %v2493
  %v2606 = vmax.f32 %v2494, %v2502
  %v2607 = vmax.f32 %v2495, %v2503
  %v2608 = vmax.f32 %v2496, %v2504
  %v2609 = vmax.f32 %v2497, %v2505
  %v2610 = vmax.f32 %v2498, %v2506
  %v2611 = vmax.f32 %v2499, %v2507
  %v2612 = vmax.f32 %v2500, %v2508
  %v2613 = vmax.f32 %v2501, %v2509
  %v2614 = vmax.f32 %v2510, %v2518
  %v2615 = vmax.f32 %v2511, %v2519
  %v2616 = vmax.f32 %v2512, %v2520
  %v2617 = vmax.f32 %v2513, %v2521
  %v2618 = vmax.f32 %v2514, %v2522
  %v2619 = vmax.f32 %v2515, %v2523
  %v2620 = vmax.f32 %v2516, %v2524
  %v2621 = vmax.f32 %v2517, %v2525
  %v2622 = vmax.f32 %v2526, %v2534
  %v2623 = vmax.f32 %v2527, %v2535
  %v2624 = vmax.f32 %v2528, %v2536
  %v2625 = vmax.f32 %v2529, %v2537
  %v2626 = vmax.f32 %v2530, %v2538
  %v2627 = vmax.f32 %v2531, %v2539
  %v2628 = vmax.f32 %v2532, %v2540
  %v2629 = vmax.f32 %v2533, %v2541
  %v2630 = vmax.f32 %v2542, %v2550
  %v2631 = vmax.f32 %v2543, %v2551
  %v2632 = vmax.f32 %v2544, %v2552
  %v2633 = vmax.f32 %v2545, %v2553
  %v2634 = vmax.f32 %v2546, %v2554
  %v2635 = vmax.f32 %v2547, %v2555
  %v2636 = vmax.f32 %v2548, %v2556
  %v2637 = vmax.f32 %v2549, %v2557
  %v2638 = vmax.f32 %v2558, %v2566
  %v2639 = vmax.f32 %v2559, %v2567
  %v2640 = vmax.f32 %v2560, %v2568
  %v2641 = vmax.f32 %v2561, %v2569
  %v2642 = vmax.f32 %v2562, %v2570
  %v2643 = vmax.f32 %v2563, %v2571
  %v2644 = vmax.f32 %v2564, %v2572
  %v2645 = vmax.f32 %v2565, %v2573
  %v2646 = vmax.f32 %v2574, %v2582
  %v2647 = vmax.f32 %v2575, %v2583
  %v2648 = vmax.f32 %v2576, %v2584
  %v2649 = vmax.f32 %v2577, %v2585
  %v2650 = vmax.f32 %v2578, %v2586
  %v2651 = vmax.f32 %v2579, %v2587
  %v2652 = vmax.f32 %v2580, %v2588
  %v2653 = vmax.f32 %v2581, %v2589
  %v2718 = vperm.slane %v2590, 0
  %v2719 = vperm.slane %v2591, 0
  %v2720 = vperm.slane %v2592, 0
  %v2721 = vperm.slane %v2593, 0
  %v2722 = vperm.slane %v2594, 0
  %v2723 = vperm.slane %v2595, 0
  %v2724 = vperm.slane %v2596, 0
  %v2725 = vperm.slane %v2597, 0
  %v2726 = vperm.slane %v2598, 0
  %v2727 = vperm.slane %v2599, 0
  %v2728 = vperm.slane %v2600, 0
  %v2729 = vperm.slane %v2601, 0
  %v2730 = vperm.slane %v2602, 0
  %v2731 = vperm.slane %v2603, 0
  %v2732 = vperm.slane %v2604, 0
  %v2733 = vperm.slane %v2605, 0
  %v2734 = vperm.slane %v2606, 0
  %v2735 = vperm.slane %v2607, 0
  %v2736 = vperm.slane %v2608, 0
  %v2737 = vperm.slane %v2609, 0
  %v2738 = vperm.slane %v2610, 0
  %v2739 = vperm.slane %v2611, 0
  %v2740 = vperm.slane %v2612, 0
  %v2741 = vperm.slane %v2613, 0
  %v2742 = vperm.slane %v2614, 0
  %v2743 = vperm.slane %v2615, 0
  %v2744 = vperm.slane %v2616, 0
  %v2745 = vperm.slane %v2617, 0
  %v2746 = vperm.slane %v2618, 0
  %v2747 = vperm.slane %v2619, 0
  %v2748 = vperm.slane %v2620, 0
  %v2749 = vperm.slane %v2621, 0
  %v2750 = vperm.slane %v2622, 0
  %v2751 = vperm.slane %v2623, 0
  %v2752 = vperm.slane %v2624, 0
  %v2753 = vperm.slane %v2625, 0
  %v2754 = vperm.slane %v2626, 0
  %v2755 = vperm.slane %v2627, 0
  %v2756 = vperm.slane %v2628, 0
  %v2757 = vperm.slane %v2629, 0
  %v2758 = vperm.slane %v2630, 0
  %v2759 = vperm.slane %v2631, 0
  %v2760 = vperm.slane %v2632, 0
  %v2761 = vperm.slane %v2633, 0
  %v2762 = vperm.slane %v2634, 0
  %v2763 = vperm.slane %v2635, 0
  %v2764 = vperm.slane %v2636, 0
  %v2765 = vperm.slane %v2637, 0
  %v2766 = vperm.slane %v2638, 0
  %v2767 = vperm.slane %v2639, 0
  %v2768 = vperm.slane %v2640, 0
  %v2769 = vperm.slane %v2641, 0
  %v2770 = vperm.slane %v2642, 0
  %v2771 = vperm.slane %v2643, 0
  %v2772 = vperm.slane %v2644, 0
  %v2773 = vperm.slane %v2645, 0
  %v2774 = vperm.slane %v2646, 0
  %v2775 = vperm.slane %v2647, 0
  %v2776 = vperm.slane %v2648, 0
  %v2777 = vperm.slane %v2649, 0
  %v2778 = vperm.slane %v2650, 0
  %v2779 = vperm.slane %v2651, 0
  %v2780 = vperm.slane %v2652, 0
  %v2781 = vperm.slane %v2653, 0
  %vm2782 = vcmask 1041409
  %v2783 = vsel %vm2782, %v2719, %v2718
  %vm2784 = vcmask 1042434
  %v2785 = vsel %vm2784, %v2720, %v2783
  %vm2786 = vcmask 1043459
  %v2787 = vsel %vm2786, %v2721, %v2785
  %vm2788 = vcmask 1044484
  %v2789 = vsel %vm2788, %v2722, %v2787
  %vm2790 = vcmask 1045509
  %v2791 = vsel %vm2790, %v2723, %v2789
  %vm2792 = vcmask 1046534
  %v2793 = vsel %vm2792, %v2724, %v2791
  %vm2794 = vcmask 1047559
  %v2795 = vsel %vm2794, %v2725, %v2793
  %v2796 = vsel %vm2782, %v2727, %v2726
  %v2797 = vsel %vm2784, %v2728, %v2796
  %v2798 = vsel %vm2786, %v2729, %v2797
  %v2799 = vsel %vm2788, %v2730, %v2798
  %v2800 = vsel %vm2790, %v2731, %v2799
  %v2801 = vsel %vm2792, %v2732, %v2800
  %v2802 = vsel %vm2794, %v2733, %v2801
  %v2803 = vsel %vm2782, %v2735, %v2734
  %v2804 = vsel %vm2784, %v2736, %v2803
  %v2805 = vsel %vm2786, %v2737, %v2804
  %v2806 = vsel %vm2788, %v2738, %v2805
  %v2807 = vsel %vm2790, %v2739, %v2806
  %v2808 = vsel %vm2792, %v2740, %v2807
  %v2809 = vsel %vm2794, %v2741, %v2808
  %v2810 = vsel %vm2782, %v2743, %v2742
  %v2811 = vsel %vm2784, %v2744, %v2810
  %v2812 = vsel %vm2786, %v2745, %v2811
  %v2813 = vsel %vm2788, %v2746, %v2812
  %v2814 = vsel %vm2790, %v2747, %v2813
  %v2815 = vsel %vm2792, %v2748, %v2814
  %v2816 = vsel %vm2794, %v2749, %v2815
  %v2817 = vsel %vm2782, %v2751, %v2750
  %v2818 = vsel %vm2784, %v2752, %v2817
  %v2819 = vsel %vm2786, %v2753, %v2818
  %v2820 = vsel %vm2788, %v2754, %v2819
  %v2821 = vsel %vm2790, %v2755, %v2820
  %v2822 = vsel %vm2792, %v2756, %v2821
  %v2823 = vsel %vm2794, %v2757, %v2822
  %v2824 = vsel %vm2782, %v2759, %v2758
  %v2825 = vsel %vm2784, %v2760, %v2824
  %v2826 = vsel %vm2786, %v2761, %v2825
  %v2827 = vsel %vm2788, %v2762, %v2826
  %v2828 = vsel %vm2790, %v2763, %v2827
  %v2829 = vsel %vm2792, %v2764, %v2828
  %v2830 = vsel %vm2794, %v2765, %v2829
  %v2831 = vsel %vm2782, %v2767, %v2766
  %v2832 = vsel %vm2784, %v2768, %v2831
  %v2833 = vsel %vm2786, %v2769, %v2832
  %v2834 = vsel %vm2788, %v2770, %v2833
  %v2835 = vsel %vm2790, %v2771, %v2834
  %v2836 = vsel %vm2792, %v2772, %v2835
  %v2837 = vsel %vm2794, %v2773, %v2836
  %v2838 = vsel %vm2782, %v2775, %v2774
  %v2839 = vsel %vm2784, %v2776, %v2838
  %v2840 = vsel %vm2786, %v2777, %v2839
  %v2841 = vsel %vm2788, %v2778, %v2840
  %v2842 = vsel %vm2790, %v2779, %v2841
  %v2843 = vsel %vm2792, %v2780, %v2842
  %v2844 = vsel %vm2794, %v2781, %v2843
  %s2853 = scalar_lea.vmem [#allocation3], 16
  %2854 = vst.msk [vmem:[%s2853 + $0x1] sm:$0xff] %vm109, %v2795
  %2855 = vst.msk [vmem:[%s2853 + $0x11] sm:$0xff] %vm109, %v2802
  %2856 = vst.msk [vmem:[%s2853 + $0x21] sm:$0xff] %vm109, %v2809
  %2857 = vst.msk [vmem:[%s2853 + $0x31] sm:$0xff] %vm109, %v2816
  %2858 = vst.msk [vmem:[%s2853 + $0xa1] sm:$0xff] %vm109, %v2823
  %2859 = vst.msk [vmem:[%s2853 + $0xb1] sm:$0xff] %vm109, %v2830
  %2860 = vst.msk [vmem:[%s2853 + $0xc1] sm:$0xff] %vm109, %v2837
  %2861 = vst.msk [vmem:[%s2853 + $0xd1] sm:$0xff] %vm109, %v2844
  %s2862 = scalar_lea.vmem [#allocation2], 192
  %v2863 = vld [vmem:[%s2862] sm:$0xff]
  %v2864 = vld [vmem:[%s2862 + $0x8] sm:$0xff]
  %v2865 = vld [vmem:[%s2862 + $0x10] sm:$0x3]
  %v2866 = vld [vmem:[%s2862 + $0x18] sm:$0xff]
  %v2867 = vld [vmem:[%s2862 + $0x20] sm:$0xff]
  %v2868 = vld [vmem:[%s2862 + $0x28] sm:$0x3]
  %v2869 = vld [vmem:[%s2862 + $0x30] sm:$0xff]
  %v2870 = vld [vmem:[%s2862 + $0x38] sm:$0xff]
  %v2871 = vld [vmem:[%s2862 + $0x40] sm:$0x3]
  %v2872 = vld [vmem:[%s2862 + $0x48] sm:$0xff]
  %v2873 = vld [vmem:[%s2862 + $0x50] sm:$0xff]
  %v2874 = vld [vmem:[%s2862 + $0x58] sm:$0x3]
  %v2875 = vld [vmem:[%s2862 + $0x60] sm:$0xff]
  %v2876 = vld [vmem:[%s2862 + $0x68] sm:$0xff]
  %v2877 = vld [vmem:[%s2862 + $0x70] sm:$0x3]
  %v2878 = vld [vmem:[%s2862 + $0x78] sm:$0xff]
  %v2879 = vld [vmem:[%s2862 + $0x80] sm:$0xff]
  %v2880 = vld [vmem:[%s2862 + $0x88] sm:$0x3]
  %v2881 = vld [vmem:[%s2862 + $0x90] sm:$0xff]
  %v2882 = vld [vmem:[%s2862 + $0x98] sm:$0xff]
  %v2883 = vld [vmem:[%s2862 + $0xa0] sm:$0x3]
  %v2884 = vld [vmem:[%s2862 + $0xa8] sm:$0xff]
  %v2885 = vld [vmem:[%s2862 + $0xb0] sm:$0xff]
  %v2886 = vld [vmem:[%s2862 + $0xb8] sm:$0x3]
  %v2887 = vld [vmem:[%s2862 + $0xc0] sm:$0xff]
  %v2888 = vld [vmem:[%s2862 + $0xc8] sm:$0xff]
  %v2889 = vld [vmem:[%s2862 + $0xd0] sm:$0x3]
  %v2890 = vld [vmem:[%s2862 + $0xd8] sm:$0xff]
  %v2891 = vld [vmem:[%s2862 + $0xe0] sm:$0xff]
  %v2892 = vld [vmem:[%s2862 + $0xe8] sm:$0x3]
  %v2893 = vld [vmem:[%s2862 + $0x1b0] sm:$0xff]
  %v2894 = vld [vmem:[%s2862 + $0x1b8] sm:$0xff]
  %v2895 = vld [vmem:[%s2862 + $0x1c0] sm:$0x3]
  %v2896 = vld [vmem:[%s2862 + $0x1c8] sm:$0xff]
  %v2897 = vld [vmem:[%s2862 + $0x1d0] sm:$0xff]
  %v2898 = vld [vmem:[%s2862 + $0x1d8] sm:$0x3]
  %v2899 = vld [vmem:[%s2862 + $0x1e0] sm:$0xff]
  %v2900 = vld [vmem:[%s2862 + $0x1e8] sm:$0xff]
  %v2901 = vld [vmem:[%s2862 + $0x1f0] sm:$0x3]
  %v2902 = vld [vmem:[%s2862 + $0x1f8] sm:$0xff]
  %v2903 = vld [vmem:[%s2862 + $0x200] sm:$0xff]
  %v2904 = vld [vmem:[%s2862 + $0x208] sm:$0x3]
  %v2905 = vld [vmem:[%s2862 + $0x210] sm:$0xff]
  %v2906 = vld [vmem:[%s2862 + $0x218] sm:$0xff]
  %v2907 = vld [vmem:[%s2862 + $0x220] sm:$0x3]
  %v2908 = vld [vmem:[%s2862 + $0x228] sm:$0xff]
  %v2909 = vld [vmem:[%s2862 + $0x230] sm:$0xff]
  %v2910 = vld [vmem:[%s2862 + $0x238] sm:$0x3]
  %v2911 = vld [vmem:[%s2862 + $0x240] sm:$0xff]
  %v2912 = vld [vmem:[%s2862 + $0x248] sm:$0xff]
  %v2913 = vld [vmem:[%s2862 + $0x250] sm:$0x3]
  %v2914 = vld [vmem:[%s2862 + $0x258] sm:$0xff]
  %v2915 = vld [vmem:[%s2862 + $0x260] sm:$0xff]
  %v2916 = vld [vmem:[%s2862 + $0x268] sm:$0x3]
  %v2917 = vld [vmem:[%s2862 + $0x270] sm:$0xff]
  %v2918 = vld [vmem:[%s2862 + $0x278] sm:$0xff]
  %v2919 = vld [vmem:[%s2862 + $0x280] sm:$0x3]
  %v2920 = vld [vmem:[%s2862 + $0x288] sm:$0xff]
  %v2921 = vld [vmem:[%s2862 + $0x290] sm:$0xff]
  %v2922 = vld [vmem:[%s2862 + $0x298] sm:$0x3]
  %v2971 = vrot.slane %v2863, 1
  %v2972 = vrot.slane %v2864, 1
  %v2973 = vsel %vm398, %v2971, %v2972
  %v2974 = vrot.slane %v2865, 1
  %v2975 = vsel %vm398, %v2972, %v2974
  %v2976 = vrot.slane %v2866, 1
  %v2977 = vrot.slane %v2867, 1
  %v2978 = vsel %vm398, %v2976, %v2977
  %v2979 = vrot.slane %v2868, 1
  %v2980 = vsel %vm398, %v2977, %v2979
  %v2981 = vrot.slane %v2869, 1
  %v2982 = vrot.slane %v2870, 1
  %v2983 = vsel %vm398, %v2981, %v2982
  %v2984 = vrot.slane %v2871, 1
  %v2985 = vsel %vm398, %v2982, %v2984
  %v2986 = vrot.slane %v2872, 1
  %v2987 = vrot.slane %v2873, 1
  %v2988 = vsel %vm398, %v2986, %v2987
  %v2989 = vrot.slane %v2874, 1
  %v2990 = vsel %vm398, %v2987, %v2989
  %v2991 = vrot.slane %v2875, 1
  %v2992 = vrot.slane %v2876, 1
  %v2993 = vsel %vm398, %v2991, %v2992
  %v2994 = vrot.slane %v2877, 1
  %v2995 = vsel %vm398, %v2992, %v2994
  %v2996 = vrot.slane %v2878, 1
  %v2997 = vrot.slane %v2879, 1
  %v2998 = vsel %vm398, %v2996, %v2997
  %v2999 = vrot.slane %v2880, 1
  %v3000 = vsel %vm398, %v2997, %v2999
  %v3001 = vrot.slane %v2881, 1
  %v3002 = vrot.slane %v2882, 1
  %v3003 = vsel %vm398, %v3001, %v3002
  %v3004 = vrot.slane %v2883, 1
  %v3005 = vsel %vm398, %v3002, %v3004
  %v3006 = vrot.slane %v2884, 1
  %v3007 = vrot.slane %v2885, 1
  %v3008 = vsel %vm398, %v3006, %v3007
  %v3009 = vrot.slane %v2886, 1
  %v3010 = vsel %vm398, %v3007, %v3009
  %v3011 = vrot.slane %v2893, 1
  %v3012 = vrot.slane %v2894, 1
  %v3013 = vsel %vm398, %v3011, %v3012
  %v3014 = vrot.slane %v2895, 1
  %v3015 = vsel %vm398, %v3012, %v3014
  %v3016 = vrot.slane %v2896, 1
  %v3017 = vrot.slane %v2897, 1
  %v3018 = vsel %vm398, %v3016, %v3017
  %v3019 = vrot.slane %v2898, 1
  %v3020 = vsel %vm398, %v3017, %v3019
  %v3021 = vrot.slane %v2899, 1
  %v3022 = vrot.slane %v2900, 1
  %v3023 = vsel %vm398, %v3021, %v3022
  %v3024 = vrot.slane %v2901, 1
  %v3025 = vsel %vm398, %v3022, %v3024
  %v3026 = vrot.slane %v2902, 1
  %v3027 = vrot.slane %v2903, 1
  %v3028 = vsel %vm398, %v3026, %v3027
  %v3029 = vrot.slane %v2904, 1
  %v3030 = vsel %vm398, %v3027, %v3029
  %v3031 = vrot.slane %v2905, 1
  %v3032 = vrot.slane %v2906, 1
  %v3033 = vsel %vm398, %v3031, %v3032
  %v3034 = vrot.slane %v2907, 1
  %v3035 = vsel %vm398, %v3032, %v3034
  %v3036 = vrot.slane %v2908, 1
  %v3037 = vrot.slane %v2909, 1
  %v3038 = vsel %vm398, %v3036, %v3037
  %v3039 = vrot.slane %v2910, 1
  %v3040 = vsel %vm398, %v3037, %v3039
  %v3041 = vrot.slane %v2911, 1
  %v3042 = vrot.slane %v2912, 1
  %v3043 = vsel %vm398, %v3041, %v3042
  %v3044 = vrot.slane %v2913, 1
  %v3045 = vsel %vm398, %v3042, %v3044
  %v3046 = vrot.slane %v2914, 1
  %v3047 = vrot.slane %v2915, 1
  %v3048 = vsel %vm398, %v3046, %v3047
  %v3049 = vrot.slane %v2916, 1
  %v3050 = vsel %vm398, %v3047, %v3049
  %3051 = vrot.lane.b32.xlu0 %v2973, 3
  %v3052 = vpop.permute.xlu0 %3051
  %3053 = vrot.lane.b32.xlu0 %v2975, 3
  %v3054 = vpop.permute.xlu0 %3053
  %3055 = vrot.lane.b32.xlu0 %v2978, 3
  %v3056 = vpop.permute.xlu0 %3055
  %3057 = vrot.lane.b32.xlu0 %v2980, 3
  %v3058 = vpop.permute.xlu0 %3057
  %3059 = vrot.lane.b32.xlu0 %v2983, 3
  %v3060 = vpop.permute.xlu0 %3059
  %3061 = vrot.lane.b32.xlu0 %v2985, 3
  %v3062 = vpop.permute.xlu0 %3061
  %3063 = vrot.lane.b32.xlu0 %v2988, 3
  %v3064 = vpop.permute.xlu0 %3063
  %3065 = vrot.lane.b32.xlu0 %v2990, 3
  %v3066 = vpop.permute.xlu0 %3065
  %3067 = vrot.lane.b32.xlu0 %v2993, 3
  %v3068 = vpop.permute.xlu0 %3067
  %3069 = vrot.lane.b32.xlu0 %v2995, 3
  %v3070 = vpop.permute.xlu0 %3069
  %3071 = vrot.lane.b32.xlu0 %v2998, 3
  %v3072 = vpop.permute.xlu0 %3071
  %3073 = vrot.lane.b32.xlu0 %v3000, 3
  %v3074 = vpop.permute.xlu0 %3073
  %3075 = vrot.lane.b32.xlu0 %v3003, 3
  %v3076 = vpop.permute.xlu0 %3075
  %3077 = vrot.lane.b32.xlu0 %v3005, 3
  %v3078 = vpop.permute.xlu0 %3077
  %3079 = vrot.lane.b32.xlu0 %v3008, 3
  %v3080 = vpop.permute.xlu0 %3079
  %3081 = vrot.lane.b32.xlu0 %v3010, 3
  %v3082 = vpop.permute.xlu0 %3081
  %3083 = vrot.lane.b32.xlu0 %v3013, 3
  %v3084 = vpop.permute.xlu0 %3083
  %3085 = vrot.lane.b32.xlu0 %v3015, 3
  %v3086 = vpop.permute.xlu0 %3085
  %3087 = vrot.lane.b32.xlu0 %v3018, 3
  %v3088 = vpop.permute.xlu0 %3087
  %3089 = vrot.lane.b32.xlu0 %v3020, 3
  %v3090 = vpop.permute.xlu0 %3089
  %3091 = vrot.lane.b32.xlu0 %v3023, 3
  %v3092 = vpop.permute.xlu0 %3091
  %3093 = vrot.lane.b32.xlu0 %v3025, 3
  %v3094 = vpop.permute.xlu0 %3093
  %3095 = vrot.lane.b32.xlu0 %v3028, 3
  %v3096 = vpop.permute.xlu0 %3095
  %3097 = vrot.lane.b32.xlu0 %v3030, 3
  %v3098 = vpop.permute.xlu0 %3097
  %3099 = vrot.lane.b32.xlu0 %v3033, 3
  %v3100 = vpop.permute.xlu0 %3099
  %3101 = vrot.lane.b32.xlu0 %v3035, 3
  %v3102 = vpop.permute.xlu0 %3101
  %3103 = vrot.lane.b32.xlu0 %v3038, 3
  %v3104 = vpop.permute.xlu0 %3103
  %3105 = vrot.lane.b32.xlu0 %v3040, 3
  %v3106 = vpop.permute.xlu0 %3105
  %3107 = vrot.lane.b32.xlu0 %v3043, 3
  %v3108 = vpop.permute.xlu0 %3107
  %3109 = vrot.lane.b32.xlu0 %v3045, 3
  %v3110 = vpop.permute.xlu0 %3109
  %3111 = vrot.lane.b32.xlu0 %v3048, 3
  %v3112 = vpop.permute.xlu0 %3111
  %3113 = vrot.lane.b32.xlu0 %v3050, 3
  %v3114 = vpop.permute.xlu0 %3113
  %v3147 = vrot.slane %v2863, 2
  %v3148 = vrot.slane %v2864, 2
  %v3149 = vsel %vm575, %v3147, %v3148
  %v3150 = vrot.slane %v2865, 2
  %v3151 = vsel %vm575, %v3148, %v3150
  %v3152 = vrot.slane %v2866, 2
  %v3153 = vrot.slane %v2867, 2
  %v3154 = vsel %vm575, %v3152, %v3153
  %v3155 = vrot.slane %v2868, 2
  %v3156 = vsel %vm575, %v3153, %v3155
  %v3157 = vrot.slane %v2869, 2
  %v3158 = vrot.slane %v2870, 2
  %v3159 = vsel %vm575, %v3157, %v3158
  %v3160 = vrot.slane %v2871, 2
  %v3161 = vsel %vm575, %v3158, %v3160
  %v3162 = vrot.slane %v2872, 2
  %v3163 = vrot.slane %v2873, 2
  %v3164 = vsel %vm575, %v3162, %v3163
  %v3165 = vrot.slane %v2874, 2
  %v3166 = vsel %vm575, %v3163, %v3165
  %v3167 = vrot.slane %v2875, 2
  %v3168 = vrot.slane %v2876, 2
  %v3169 = vsel %vm575, %v3167, %v3168
  %v3170 = vrot.slane %v2877, 2
  %v3171 = vsel %vm575, %v3168, %v3170
  %v3172 = vrot.slane %v2878, 2
  %v3173 = vrot.slane %v2879, 2
  %v3174 = vsel %vm575, %v3172, %v3173
  %v3175 = vrot.slane %v2880, 2
  %v3176 = vsel %vm575, %v3173, %v3175
  %v3177 = vrot.slane %v2881, 2
  %v3178 = vrot.slane %v2882, 2
  %v3179 = vsel %vm575, %v3177, %v3178
  %v3180 = vrot.slane %v2883, 2
  %v3181 = vsel %vm575, %v3178, %v3180
  %v3182 = vrot.slane %v2884, 2
  %v3183 = vrot.slane %v2885, 2
  %v3184 = vsel %vm575, %v3182, %v3183
  %v3185 = vrot.slane %v2886, 2
  %v3186 = vsel %vm575, %v3183, %v3185
  %v3187 = vrot.slane %v2893, 2
  %v3188 = vrot.slane %v2894, 2
  %v3189 = vsel %vm575, %v3187, %v3188
  %v3190 = vrot.slane %v2895, 2
  %v3191 = vsel %vm575, %v3188, %v3190
  %v3192 = vrot.slane %v2896, 2
  %v3193 = vrot.slane %v2897, 2
  %v3194 = vsel %vm575, %v3192, %v3193
  %v3195 = vrot.slane %v2898, 2
  %v3196 = vsel %vm575, %v3193, %v3195
  %v3197 = vrot.slane %v2899, 2
  %v3198 = vrot.slane %v2900, 2
  %v3199 = vsel %vm575, %v3197, %v3198
  %v3200 = vrot.slane %v2901, 2
  %v3201 = vsel %vm575, %v3198, %v3200
  %v3202 = vrot.slane %v2902, 2
  %v3203 = vrot.slane %v2903, 2
  %v3204 = vsel %vm575, %v3202, %v3203
  %v3205 = vrot.slane %v2904, 2
  %v3206 = vsel %vm575, %v3203, %v3205
  %v3207 = vrot.slane %v2905, 2
  %v3208 = vrot.slane %v2906, 2
  %v3209 = vsel %vm575, %v3207, %v3208
  %v3210 = vrot.slane %v2907, 2
  %v3211 = vsel %vm575, %v3208, %v3210
  %v3212 = vrot.slane %v2908, 2
  %v3213 = vrot.slane %v2909, 2
  %v3214 = vsel %vm575, %v3212, %v3213
  %v3215 = vrot.slane %v2910, 2
  %v3216 = vsel %vm575, %v3213, %v3215
  %v3217 = vrot.slane %v2911, 2
  %v3218 = vrot.slane %v2912, 2
  %v3219 = vsel %vm575, %v3217, %v3218
  %v3220 = vrot.slane %v2913, 2
  %v3221 = vsel %vm575, %v3218, %v3220
  %v3222 = vrot.slane %v2914, 2
  %v3223 = vrot.slane %v2915, 2
  %v3224 = vsel %vm575, %v3222, %v3223
  %v3225 = vrot.slane %v2916, 2
  %v3226 = vsel %vm575, %v3223, %v3225
  %3227 = vrot.lane.b32.xlu0 %v3149, 6
  %v3228 = vpop.permute.xlu0 %3227
  %3229 = vrot.lane.b32.xlu0 %v3151, 6
  %v3230 = vpop.permute.xlu0 %3229
  %3231 = vrot.lane.b32.xlu0 %v3154, 6
  %v3232 = vpop.permute.xlu0 %3231
  %3233 = vrot.lane.b32.xlu0 %v3156, 6
  %v3234 = vpop.permute.xlu0 %3233
  %3235 = vrot.lane.b32.xlu0 %v3159, 6
  %v3236 = vpop.permute.xlu0 %3235
  %3237 = vrot.lane.b32.xlu0 %v3161, 6
  %v3238 = vpop.permute.xlu0 %3237
  %3239 = vrot.lane.b32.xlu0 %v3164, 6
  %v3240 = vpop.permute.xlu0 %3239
  %3241 = vrot.lane.b32.xlu0 %v3166, 6
  %v3242 = vpop.permute.xlu0 %3241
  %3243 = vrot.lane.b32.xlu0 %v3169, 6
  %v3244 = vpop.permute.xlu0 %3243
  %3245 = vrot.lane.b32.xlu0 %v3171, 6
  %v3246 = vpop.permute.xlu0 %3245
  %3247 = vrot.lane.b32.xlu0 %v3174, 6
  %v3248 = vpop.permute.xlu0 %3247
  %3249 = vrot.lane.b32.xlu0 %v3176, 6
  %v3250 = vpop.permute.xlu0 %3249
  %3251 = vrot.lane.b32.xlu0 %v3179, 6
  %v3252 = vpop.permute.xlu0 %3251
  %3253 = vrot.lane.b32.xlu0 %v3181, 6
  %v3254 = vpop.permute.xlu0 %3253
  %3255 = vrot.lane.b32.xlu0 %v3184, 6
  %v3256 = vpop.permute.xlu0 %3255
  %3257 = vrot.lane.b32.xlu0 %v3186, 6
  %v3258 = vpop.permute.xlu0 %3257
  %3259 = vrot.lane.b32.xlu0 %v3189, 6
  %v3260 = vpop.permute.xlu0 %3259
  %3261 = vrot.lane.b32.xlu0 %v3191, 6
  %v3262 = vpop.permute.xlu0 %3261
  %3263 = vrot.lane.b32.xlu0 %v3194, 6
  %v3264 = vpop.permute.xlu0 %3263
  %3265 = vrot.lane.b32.xlu0 %v3196, 6
  %v3266 = vpop.permute.xlu0 %3265
  %3267 = vrot.lane.b32.xlu0 %v3199, 6
  %v3268 = vpop.permute.xlu0 %3267
  %3269 = vrot.lane.b32.xlu0 %v3201, 6
  %v3270 = vpop.permute.xlu0 %3269
  %3271 = vrot.lane.b32.xlu0 %v3204, 6
  %v3272 = vpop.permute.xlu0 %3271
  %3273 = vrot.lane.b32.xlu0 %v3206, 6
  %v3274 = vpop.permute.xlu0 %3273
  %3275 = vrot.lane.b32.xlu0 %v3209, 6
  %v3276 = vpop.permute.xlu0 %3275
  %3277 = vrot.lane.b32.xlu0 %v3211, 6
  %v3278 = vpop.permute.xlu0 %3277
  %3279 = vrot.lane.b32.xlu0 %v3214, 6
  %v3280 = vpop.permute.xlu0 %3279
  %3281 = vrot.lane.b32.xlu0 %v3216, 6
  %v3282 = vpop.permute.xlu0 %3281
  %3283 = vrot.lane.b32.xlu0 %v3219, 6
  %v3284 = vpop.permute.xlu0 %3283
  %3285 = vrot.lane.b32.xlu0 %v3221, 6
  %v3286 = vpop.permute.xlu0 %3285
  %3287 = vrot.lane.b32.xlu0 %v3224, 6
  %v3288 = vpop.permute.xlu0 %3287
  %3289 = vrot.lane.b32.xlu0 %v3226, 6
  %v3290 = vpop.permute.xlu0 %3289
  %3327 = vrot.lane.b32.xlu0 %v2866, 9
  %v3328 = vpop.permute.xlu0 %3327
  %3329 = vrot.lane.b32.xlu0 %v2867, 9
  %v3330 = vpop.permute.xlu0 %3329
  %3331 = vrot.lane.b32.xlu0 %v2869, 9
  %v3332 = vpop.permute.xlu0 %3331
  %3333 = vrot.lane.b32.xlu0 %v2870, 9
  %v3334 = vpop.permute.xlu0 %3333
  %3335 = vrot.lane.b32.xlu0 %v2872, 9
  %v3336 = vpop.permute.xlu0 %3335
  %3337 = vrot.lane.b32.xlu0 %v2873, 9
  %v3338 = vpop.permute.xlu0 %3337
  %3339 = vrot.lane.b32.xlu0 %v2875, 9
  %v3340 = vpop.permute.xlu0 %3339
  %3341 = vrot.lane.b32.xlu0 %v2876, 9
  %v3342 = vpop.permute.xlu0 %3341
  %3343 = vrot.lane.b32.xlu0 %v2878, 9
  %v3344 = vpop.permute.xlu0 %3343
  %3345 = vrot.lane.b32.xlu0 %v2879, 9
  %v3346 = vpop.permute.xlu0 %3345
  %3347 = vrot.lane.b32.xlu0 %v2881, 9
  %v3348 = vpop.permute.xlu0 %3347
  %3349 = vrot.lane.b32.xlu0 %v2882, 9
  %v3350 = vpop.permute.xlu0 %3349
  %3351 = vrot.lane.b32.xlu0 %v2884, 9
  %v3352 = vpop.permute.xlu0 %3351
  %3353 = vrot.lane.b32.xlu0 %v2885, 9
  %v3354 = vpop.permute.xlu0 %3353
  %3355 = vrot.lane.b32.xlu0 %v2887, 9
  %v3356 = vpop.permute.xlu0 %3355
  %3357 = vrot.lane.b32.xlu0 %v2888, 9
  %v3358 = vpop.permute.xlu0 %3357
  %3359 = vrot.lane.b32.xlu0 %v2896, 9
  %v3360 = vpop.permute.xlu0 %3359
  %3361 = vrot.lane.b32.xlu0 %v2897, 9
  %v3362 = vpop.permute.xlu0 %3361
  %3363 = vrot.lane.b32.xlu0 %v2899, 9
  %v3364 = vpop.permute.xlu0 %3363
  %3365 = vrot.lane.b32.xlu0 %v2900, 9
  %v3366 = vpop.permute.xlu0 %3365
  %3367 = vrot.lane.b32.xlu0 %v2902, 9
  %v3368 = vpop.permute.xlu0 %3367
  %3369 = vrot.lane.b32.xlu0 %v2903, 9
  %v3370 = vpop.permute.xlu0 %3369
  %3371 = vrot.lane.b32.xlu0 %v2905, 9
  %v3372 = vpop.permute.xlu0 %3371
  %3373 = vrot.lane.b32.xlu0 %v2906, 9
  %v3374 = vpop.permute.xlu0 %3373
  %3375 = vrot.lane.b32.xlu0 %v2908, 9
  %v3376 = vpop.permute.xlu0 %3375
  %3377 = vrot.lane.b32.xlu0 %v2909, 9
  %v3378 = vpop.permute.xlu0 %3377
  %3379 = vrot.lane.b32.xlu0 %v2911, 9
  %v3380 = vpop.permute.xlu0 %3379
  %3381 = vrot.lane.b32.xlu0 %v2912, 9
  %v3382 = vpop.permute.xlu0 %3381
  %3383 = vrot.lane.b32.xlu0 %v2914, 9
  %v3384 = vpop.permute.xlu0 %3383
  %3385 = vrot.lane.b32.xlu0 %v2915, 9
  %v3386 = vpop.permute.xlu0 %3385
  %3387 = vrot.lane.b32.xlu0 %v2917, 9
  %v3388 = vpop.permute.xlu0 %3387
  %3389 = vrot.lane.b32.xlu0 %v2918, 9
  %v3390 = vpop.permute.xlu0 %3389
  %v3425 = vrot.slane %v2887, 1
  %v3426 = vrot.slane %v2888, 1
  %v3427 = vsel %vm398, %v3425, %v3426
  %v3428 = vrot.slane %v2889, 1
  %v3429 = vsel %vm398, %v3426, %v3428
  %v3430 = vrot.slane %v2917, 1
  %v3431 = vrot.slane %v2918, 1
  %v3432 = vsel %vm398, %v3430, %v3431
  %v3433 = vrot.slane %v2919, 1
  %v3434 = vsel %vm398, %v3431, %v3433
  %3435 = vrot.lane.b32.xlu0 %v2978, 12
  %v3436 = vpop.permute.xlu0 %3435
  %3437 = vrot.lane.b32.xlu0 %v2980, 12
  %v3438 = vpop.permute.xlu0 %3437
  %3439 = vrot.lane.b32.xlu0 %v2983, 12
  %v3440 = vpop.permute.xlu0 %3439
  %3441 = vrot.lane.b32.xlu0 %v2985, 12
  %v3442 = vpop.permute.xlu0 %3441
  %3443 = vrot.lane.b32.xlu0 %v2988, 12
  %v3444 = vpop.permute.xlu0 %3443
  %3445 = vrot.lane.b32.xlu0 %v2990, 12
  %v3446 = vpop.permute.xlu0 %3445
  %3447 = vrot.lane.b32.xlu0 %v2993, 12
  %v3448 = vpop.permute.xlu0 %3447
  %3449 = vrot.lane.b32.xlu0 %v2995, 12
  %v3450 = vpop.permute.xlu0 %3449
  %3451 = vrot.lane.b32.xlu0 %v2998, 12
  %v3452 = vpop.permute.xlu0 %3451
  %3453 = vrot.lane.b32.xlu0 %v3000, 12
  %v3454 = vpop.permute.xlu0 %3453
  %3455 = vrot.lane.b32.xlu0 %v3003, 12
  %v3456 = vpop.permute.xlu0 %3455
  %3457 = vrot.lane.b32.xlu0 %v3005, 12
  %v3458 = vpop.permute.xlu0 %3457
  %3459 = vrot.lane.b32.xlu0 %v3008, 12
  %v3460 = vpop.permute.xlu0 %3459
  %3461 = vrot.lane.b32.xlu0 %v3010, 12
  %v3462 = vpop.permute.xlu0 %3461
  %3463 = vrot.lane.b32.xlu0 %v3427, 12
  %v3464 = vpop.permute.xlu0 %3463
  %3465 = vrot.lane.b32.xlu0 %v3429, 12
  %v3466 = vpop.permute.xlu0 %3465
  %3467 = vrot.lane.b32.xlu0 %v3018, 12
  %v3468 = vpop.permute.xlu0 %3467
  %3469 = vrot.lane.b32.xlu0 %v3020, 12
  %v3470 = vpop.permute.xlu0 %3469
  %3471 = vrot.lane.b32.xlu0 %v3023, 12
  %v3472 = vpop.permute.xlu0 %3471
  %3473 = vrot.lane.b32.xlu0 %v3025, 12
  %v3474 = vpop.permute.xlu0 %3473
  %3475 = vrot.lane.b32.xlu0 %v3028, 12
  %v3476 = vpop.permute.xlu0 %3475
  %3477 = vrot.lane.b32.xlu0 %v3030, 12
  %v3478 = vpop.permute.xlu0 %3477
  %3479 = vrot.lane.b32.xlu0 %v3033, 12
  %v3480 = vpop.permute.xlu0 %3479
  %3481 = vrot.lane.b32.xlu0 %v3035, 12
  %v3482 = vpop.permute.xlu0 %3481
  %3483 = vrot.lane.b32.xlu0 %v3038, 12
  %v3484 = vpop.permute.xlu0 %3483
  %3485 = vrot.lane.b32.xlu0 %v3040, 12
  %v3486 = vpop.permute.xlu0 %3485
  %3487 = vrot.lane.b32.xlu0 %v3043, 12
  %v3488 = vpop.permute.xlu0 %3487
  %3489 = vrot.lane.b32.xlu0 %v3045, 12
  %v3490 = vpop.permute.xlu0 %3489
  %3491 = vrot.lane.b32.xlu0 %v3048, 12
  %v3492 = vpop.permute.xlu0 %3491
  %3493 = vrot.lane.b32.xlu0 %v3050, 12
  %v3494 = vpop.permute.xlu0 %3493
  %3495 = vrot.lane.b32.xlu0 %v3432, 12
  %v3496 = vpop.permute.xlu0 %3495
  %3497 = vrot.lane.b32.xlu0 %v3434, 12
  %v3498 = vpop.permute.xlu0 %3497
  %v3531 = vrot.slane %v2887, 2
  %v3532 = vrot.slane %v2888, 2
  %v3533 = vsel %vm575, %v3531, %v3532
  %v3534 = vrot.slane %v2889, 2
  %v3535 = vsel %vm575, %v3532, %v3534
  %v3536 = vrot.slane %v2917, 2
  %v3537 = vrot.slane %v2918, 2
  %v3538 = vsel %vm575, %v3536, %v3537
  %v3539 = vrot.slane %v2919, 2
  %v3540 = vsel %vm575, %v3537, %v3539
  %3541 = vrot.lane.b32.xlu0 %v3154, 15
  %v3542 = vpop.permute.xlu0 %3541
  %3543 = vrot.lane.b32.xlu0 %v3156, 15
  %v3544 = vpop.permute.xlu0 %3543
  %3545 = vrot.lane.b32.xlu0 %v3159, 15
  %v3546 = vpop.permute.xlu0 %3545
  %3547 = vrot.lane.b32.xlu0 %v3161, 15
  %v3548 = vpop.permute.xlu0 %3547
  %3549 = vrot.lane.b32.xlu0 %v3164, 15
  %v3550 = vpop.permute.xlu0 %3549
  %3551 = vrot.lane.b32.xlu0 %v3166, 15
  %v3552 = vpop.permute.xlu0 %3551
  %3553 = vrot.lane.b32.xlu0 %v3169, 15
  %v3554 = vpop.permute.xlu0 %3553
  %3555 = vrot.lane.b32.xlu0 %v3171, 15
  %v3556 = vpop.permute.xlu0 %3555
  %3557 = vrot.lane.b32.xlu0 %v3174, 15
  %v3558 = vpop.permute.xlu0 %3557
  %3559 = vrot.lane.b32.xlu0 %v3176, 15
  %v3560 = vpop.permute.xlu0 %3559
  %3561 = vrot.lane.b32.xlu0 %v3179, 15
  %v3562 = vpop.permute.xlu0 %3561
  %3563 = vrot.lane.b32.xlu0 %v3181, 15
  %v3564 = vpop.permute.xlu0 %3563
  %3565 = vrot.lane.b32.xlu0 %v3184, 15
  %v3566 = vpop.permute.xlu0 %3565
  %3567 = vrot.lane.b32.xlu0 %v3186, 15
  %v3568 = vpop.permute.xlu0 %3567
  %3569 = vrot.lane.b32.xlu0 %v3533, 15
  %v3570 = vpop.permute.xlu0 %3569
  %3571 = vrot.lane.b32.xlu0 %v3535, 15
  %v3572 = vpop.permute.xlu0 %3571
  %3573 = vrot.lane.b32.xlu0 %v3194, 15
  %v3574 = vpop.permute.xlu0 %3573
  %3575 = vrot.lane.b32.xlu0 %v3196, 15
  %v3576 = vpop.permute.xlu0 %3575
  %3577 = vrot.lane.b32.xlu0 %v3199, 15
  %v3578 = vpop.permute.xlu0 %3577
  %3579 = vrot.lane.b32.xlu0 %v3201, 15
  %v3580 = vpop.permute.xlu0 %3579
  %3581 = vrot.lane.b32.xlu0 %v3204, 15
  %v3582 = vpop.permute.xlu0 %3581
  %3583 = vrot.lane.b32.xlu0 %v3206, 15
  %v3584 = vpop.permute.xlu0 %3583
  %3585 = vrot.lane.b32.xlu0 %v3209, 15
  %v3586 = vpop.permute.xlu0 %3585
  %3587 = vrot.lane.b32.xlu0 %v3211, 15
  %v3588 = vpop.permute.xlu0 %3587
  %3589 = vrot.lane.b32.xlu0 %v3214, 15
  %v3590 = vpop.permute.xlu0 %3589
  %3591 = vrot.lane.b32.xlu0 %v3216, 15
  %v3592 = vpop.permute.xlu0 %3591
  %3593 = vrot.lane.b32.xlu0 %v3219, 15
  %v3594 = vpop.permute.xlu0 %3593
  %3595 = vrot.lane.b32.xlu0 %v3221, 15
  %v3596 = vpop.permute.xlu0 %3595
  %3597 = vrot.lane.b32.xlu0 %v3224, 15
  %v3598 = vpop.permute.xlu0 %3597
  %3599 = vrot.lane.b32.xlu0 %v3226, 15
  %v3600 = vpop.permute.xlu0 %3599
  %3601 = vrot.lane.b32.xlu0 %v3538, 15
  %v3602 = vpop.permute.xlu0 %3601
  %3603 = vrot.lane.b32.xlu0 %v3540, 15
  %v3604 = vpop.permute.xlu0 %3603
  %3641 = vrot.lane.b32.xlu0 %v2869, 18
  %v3642 = vpop.permute.xlu0 %3641
  %3643 = vrot.lane.b32.xlu0 %v2870, 18
  %v3644 = vpop.permute.xlu0 %3643
  %3645 = vrot.lane.b32.xlu0 %v2872, 18
  %v3646 = vpop.permute.xlu0 %3645
  %3647 = vrot.lane.b32.xlu0 %v2873, 18
  %v3648 = vpop.permute.xlu0 %3647
  %3649 = vrot.lane.b32.xlu0 %v2875, 18
  %v3650 = vpop.permute.xlu0 %3649
  %3651 = vrot.lane.b32.xlu0 %v2876, 18
  %v3652 = vpop.permute.xlu0 %3651
  %3653 = vrot.lane.b32.xlu0 %v2878, 18
  %v3654 = vpop.permute.xlu0 %3653
  %3655 = vrot.lane.b32.xlu0 %v2879, 18
  %v3656 = vpop.permute.xlu0 %3655
  %3657 = vrot.lane.b32.xlu0 %v2881, 18
  %v3658 = vpop.permute.xlu0 %3657
  %3659 = vrot.lane.b32.xlu0 %v2882, 18
  %v3660 = vpop.permute.xlu0 %3659
  %3661 = vrot.lane.b32.xlu0 %v2884, 18
  %v3662 = vpop.permute.xlu0 %3661
  %3663 = vrot.lane.b32.xlu0 %v2885, 18
  %v3664 = vpop.permute.xlu0 %3663
  %3665 = vrot.lane.b32.xlu0 %v2887, 18
  %v3666 = vpop.permute.xlu0 %3665
  %3667 = vrot.lane.b32.xlu0 %v2888, 18
  %v3668 = vpop.permute.xlu0 %3667
  %3669 = vrot.lane.b32.xlu0 %v2890, 18
  %v3670 = vpop.permute.xlu0 %3669
  %3671 = vrot.lane.b32.xlu0 %v2891, 18
  %v3672 = vpop.permute.xlu0 %3671
  %3673 = vrot.lane.b32.xlu0 %v2899, 18
  %v3674 = vpop.permute.xlu0 %3673
  %3675 = vrot.lane.b32.xlu0 %v2900, 18
  %v3676 = vpop.permute.xlu0 %3675
  %3677 = vrot.lane.b32.xlu0 %v2902, 18
  %v3678 = vpop.permute.xlu0 %3677
  %3679 = vrot.lane.b32.xlu0 %v2903, 18
  %v3680 = vpop.permute.xlu0 %3679
  %3681 = vrot.lane.b32.xlu0 %v2905, 18
  %v3682 = vpop.permute.xlu0 %3681
  %3683 = vrot.lane.b32.xlu0 %v2906, 18
  %v3684 = vpop.permute.xlu0 %3683
  %3685 = vrot.lane.b32.xlu0 %v2908, 18
  %v3686 = vpop.permute.xlu0 %3685
  %3687 = vrot.lane.b32.xlu0 %v2909, 18
  %v3688 = vpop.permute.xlu0 %3687
  %3689 = vrot.lane.b32.xlu0 %v2911, 18
  %v3690 = vpop.permute.xlu0 %3689
  %3691 = vrot.lane.b32.xlu0 %v2912, 18
  %v3692 = vpop.permute.xlu0 %3691
  %3693 = vrot.lane.b32.xlu0 %v2914, 18
  %v3694 = vpop.permute.xlu0 %3693
  %3695 = vrot.lane.b32.xlu0 %v2915, 18
  %v3696 = vpop.permute.xlu0 %3695
  %3697 = vrot.lane.b32.xlu0 %v2917, 18
  %v3698 = vpop.permute.xlu0 %3697
  %3699 = vrot.lane.b32.xlu0 %v2918, 18
  %v3700 = vpop.permute.xlu0 %3699
  %3701 = vrot.lane.b32.xlu0 %v2920, 18
  %v3702 = vpop.permute.xlu0 %3701
  %3703 = vrot.lane.b32.xlu0 %v2921, 18
  %v3704 = vpop.permute.xlu0 %3703
  %v3739 = vrot.slane %v2890, 1
  %v3740 = vrot.slane %v2891, 1
  %v3741 = vsel %vm398, %v3739, %v3740
  %v3742 = vrot.slane %v2892, 1
  %v3743 = vsel %vm398, %v3740, %v3742
  %v3744 = vrot.slane %v2920, 1
  %v3745 = vrot.slane %v2921, 1
  %v3746 = vsel %vm398, %v3744, %v3745
  %v3747 = vrot.slane %v2922, 1
  %v3748 = vsel %vm398, %v3745, %v3747
  %3749 = vrot.lane.b32.xlu0 %v2983, 21
  %v3750 = vpop.permute.xlu0 %3749
  %3751 = vrot.lane.b32.xlu0 %v2985, 21
  %v3752 = vpop.permute.xlu0 %3751
  %3753 = vrot.lane.b32.xlu0 %v2988, 21
  %v3754 = vpop.permute.xlu0 %3753
  %3755 = vrot.lane.b32.xlu0 %v2990, 21
  %v3756 = vpop.permute.xlu0 %3755
  %3757 = vrot.lane.b32.xlu0 %v2993, 21
  %v3758 = vpop.permute.xlu0 %3757
  %3759 = vrot.lane.b32.xlu0 %v2995, 21
  %v3760 = vpop.permute.xlu0 %3759
  %3761 = vrot.lane.b32.xlu0 %v2998, 21
  %v3762 = vpop.permute.xlu0 %3761
  %3763 = vrot.lane.b32.xlu0 %v3000, 21
  %v3764 = vpop.permute.xlu0 %3763
  %3765 = vrot.lane.b32.xlu0 %v3003, 21
  %v3766 = vpop.permute.xlu0 %3765
  %3767 = vrot.lane.b32.xlu0 %v3005, 21
  %v3768 = vpop.permute.xlu0 %3767
  %3769 = vrot.lane.b32.xlu0 %v3008, 21
  %v3770 = vpop.permute.xlu0 %3769
  %3771 = vrot.lane.b32.xlu0 %v3010, 21
  %v3772 = vpop.permute.xlu0 %3771
  %3773 = vrot.lane.b32.xlu0 %v3427, 21
  %v3774 = vpop.permute.xlu0 %3773
  %3775 = vrot.lane.b32.xlu0 %v3429, 21
  %v3776 = vpop.permute.xlu0 %3775
  %3777 = vrot.lane.b32.xlu0 %v3741, 21
  %v3778 = vpop.permute.xlu0 %3777
  %3779 = vrot.lane.b32.xlu0 %v3743, 21
  %v3780 = vpop.permute.xlu0 %3779
  %3781 = vrot.lane.b32.xlu0 %v3023, 21
  %v3782 = vpop.permute.xlu0 %3781
  %3783 = vrot.lane.b32.xlu0 %v3025, 21
  %v3784 = vpop.permute.xlu0 %3783
  %3785 = vrot.lane.b32.xlu0 %v3028, 21
  %v3786 = vpop.permute.xlu0 %3785
  %3787 = vrot.lane.b32.xlu0 %v3030, 21
  %v3788 = vpop.permute.xlu0 %3787
  %3789 = vrot.lane.b32.xlu0 %v3033, 21
  %v3790 = vpop.permute.xlu0 %3789
  %3791 = vrot.lane.b32.xlu0 %v3035, 21
  %v3792 = vpop.permute.xlu0 %3791
  %3793 = vrot.lane.b32.xlu0 %v3038, 21
  %v3794 = vpop.permute.xlu0 %3793
  %3795 = vrot.lane.b32.xlu0 %v3040, 21
  %v3796 = vpop.permute.xlu0 %3795
  %3797 = vrot.lane.b32.xlu0 %v3043, 21
  %v3798 = vpop.permute.xlu0 %3797
  %3799 = vrot.lane.b32.xlu0 %v3045, 21
  %v3800 = vpop.permute.xlu0 %3799
  %3801 = vrot.lane.b32.xlu0 %v3048, 21
  %v3802 = vpop.permute.xlu0 %3801
  %3803 = vrot.lane.b32.xlu0 %v3050, 21
  %v3804 = vpop.permute.xlu0 %3803
  %3805 = vrot.lane.b32.xlu0 %v3432, 21
  %v3806 = vpop.permute.xlu0 %3805
  %3807 = vrot.lane.b32.xlu0 %v3434, 21
  %v3808 = vpop.permute.xlu0 %3807
  %3809 = vrot.lane.b32.xlu0 %v3746, 21
  %v3810 = vpop.permute.xlu0 %3809
  %3811 = vrot.lane.b32.xlu0 %v3748, 21
  %v3812 = vpop.permute.xlu0 %3811
  %v3845 = vrot.slane %v2890, 2
  %v3846 = vrot.slane %v2891, 2
  %v3847 = vsel %vm575, %v3845, %v3846
  %v3848 = vrot.slane %v2892, 2
  %v3849 = vsel %vm575, %v3846, %v3848
  %v3850 = vrot.slane %v2920, 2
  %v3851 = vrot.slane %v2921, 2
  %v3852 = vsel %vm575, %v3850, %v3851
  %v3853 = vrot.slane %v2922, 2
  %v3854 = vsel %vm575, %v3851, %v3853
  %3855 = vrot.lane.b32.xlu0 %v3159, 24
  %v3856 = vpop.permute.xlu0 %3855
  %3857 = vrot.lane.b32.xlu0 %v3161, 24
  %v3858 = vpop.permute.xlu0 %3857
  %3859 = vrot.lane.b32.xlu0 %v3164, 24
  %v3860 = vpop.permute.xlu0 %3859
  %3861 = vrot.lane.b32.xlu0 %v3166, 24
  %v3862 = vpop.permute.xlu0 %3861
  %3863 = vrot.lane.b32.xlu0 %v3169, 24
  %v3864 = vpop.permute.xlu0 %3863
  %3865 = vrot.lane.b32.xlu0 %v3171, 24
  %v3866 = vpop.permute.xlu0 %3865
  %3867 = vrot.lane.b32.xlu0 %v3174, 24
  %v3868 = vpop.permute.xlu0 %3867
  %3869 = vrot.lane.b32.xlu0 %v3176, 24
  %v3870 = vpop.permute.xlu0 %3869
  %3871 = vrot.lane.b32.xlu0 %v3179, 24
  %v3872 = vpop.permute.xlu0 %3871
  %3873 = vrot.lane.b32.xlu0 %v3181, 24
  %v3874 = vpop.permute.xlu0 %3873
  %3875 = vrot.lane.b32.xlu0 %v3184, 24
  %v3876 = vpop.permute.xlu0 %3875
  %3877 = vrot.lane.b32.xlu0 %v3186, 24
  %v3878 = vpop.permute.xlu0 %3877
  %3879 = vrot.lane.b32.xlu0 %v3533, 24
  %v3880 = vpop.permute.xlu0 %3879
  %3881 = vrot.lane.b32.xlu0 %v3535, 24
  %v3882 = vpop.permute.xlu0 %3881
  %3883 = vrot.lane.b32.xlu0 %v3847, 24
  %v3884 = vpop.permute.xlu0 %3883
  %3885 = vrot.lane.b32.xlu0 %v3849, 24
  %v3886 = vpop.permute.xlu0 %3885
  %3887 = vrot.lane.b32.xlu0 %v3199, 24
  %v3888 = vpop.permute.xlu0 %3887
  %3889 = vrot.lane.b32.xlu0 %v3201, 24
  %v3890 = vpop.permute.xlu0 %3889
  %3891 = vrot.lane.b32.xlu0 %v3204, 24
  %v3892 = vpop.permute.xlu0 %3891
  %3893 = vrot.lane.b32.xlu0 %v3206, 24
  %v3894 = vpop.permute.xlu0 %3893
  %3895 = vrot.lane.b32.xlu0 %v3209, 24
  %v3896 = vpop.permute.xlu0 %3895
  %3897 = vrot.lane.b32.xlu0 %v3211, 24
  %v3898 = vpop.permute.xlu0 %3897
  %3899 = vrot.lane.b32.xlu0 %v3214, 24
  %v3900 = vpop.permute.xlu0 %3899
  %3901 = vrot.lane.b32.xlu0 %v3216, 24
  %v3902 = vpop.permute.xlu0 %3901
  %3903 = vrot.lane.b32.xlu0 %v3219, 24
  %v3904 = vpop.permute.xlu0 %3903
  %3905 = vrot.lane.b32.xlu0 %v3221, 24
  %v3906 = vpop.permute.xlu0 %3905
  %3907 = vrot.lane.b32.xlu0 %v3224, 24
  %v3908 = vpop.permute.xlu0 %3907
  %3909 = vrot.lane.b32.xlu0 %v3226, 24
  %v3910 = vpop.permute.xlu0 %3909
  %3911 = vrot.lane.b32.xlu0 %v3538, 24
  %v3912 = vpop.permute.xlu0 %3911
  %3913 = vrot.lane.b32.xlu0 %v3540, 24
  %v3914 = vpop.permute.xlu0 %3913
  %3915 = vrot.lane.b32.xlu0 %v3852, 24
  %v3916 = vpop.permute.xlu0 %3915
  %3917 = vrot.lane.b32.xlu0 %v3854, 24
  %v3918 = vpop.permute.xlu0 %3917
  %v3951 = vsel %vm21, %v2863, %v3052
  %v3952 = vsel %vm21, %v2864, %v3054
  %v3953 = vsel %vm21, %v2866, %v3056
  %v3954 = vsel %vm21, %v2867, %v3058
  %v3955 = vsel %vm21, %v2869, %v3060
  %v3956 = vsel %vm21, %v2870, %v3062
  %v3957 = vsel %vm21, %v2872, %v3064
  %v3958 = vsel %vm21, %v2873, %v3066
  %v3959 = vsel %vm21, %v2875, %v3068
  %v3960 = vsel %vm21, %v2876, %v3070
  %v3961 = vsel %vm21, %v2878, %v3072
  %v3962 = vsel %vm21, %v2879, %v3074
  %v3963 = vsel %vm21, %v2881, %v3076
  %v3964 = vsel %vm21, %v2882, %v3078
  %v3965 = vsel %vm21, %v2884, %v3080
  %v3966 = vsel %vm21, %v2885, %v3082
  %v3967 = vsel %vm21, %v2893, %v3084
  %v3968 = vsel %vm21, %v2894, %v3086
  %v3969 = vsel %vm21, %v2896, %v3088
  %v3970 = vsel %vm21, %v2897, %v3090
  %v3971 = vsel %vm21, %v2899, %v3092
  %v3972 = vsel %vm21, %v2900, %v3094
  %v3973 = vsel %vm21, %v2902, %v3096
  %v3974 = vsel %vm21, %v2903, %v3098
  %v3975 = vsel %vm21, %v2905, %v3100
  %v3976 = vsel %vm21, %v2906, %v3102
  %v3977 = vsel %vm21, %v2908, %v3104
  %v3978 = vsel %vm21, %v2909, %v3106
  %v3979 = vsel %vm21, %v2911, %v3108
  %v3980 = vsel %vm21, %v2912, %v3110
  %v3981 = vsel %vm21, %v2914, %v3112
  %v3982 = vsel %vm21, %v2915, %v3114
  %v3983 = vsel %vm1412, %v3951, %v3228
  %v3984 = vsel %vm1412, %v3952, %v3230
  %v3985 = vsel %vm1412, %v3953, %v3232
  %v3986 = vsel %vm1412, %v3954, %v3234
  %v3987 = vsel %vm1412, %v3955, %v3236
  %v3988 = vsel %vm1412, %v3956, %v3238
  %v3989 = vsel %vm1412, %v3957, %v3240
  %v3990 = vsel %vm1412, %v3958, %v3242
  %v3991 = vsel %vm1412, %v3959, %v3244
  %v3992 = vsel %vm1412, %v3960, %v3246
  %v3993 = vsel %vm1412, %v3961, %v3248
  %v3994 = vsel %vm1412, %v3962, %v3250
  %v3995 = vsel %vm1412, %v3963, %v3252
  %v3996 = vsel %vm1412, %v3964, %v3254
  %v3997 = vsel %vm1412, %v3965, %v3256
  %v3998 = vsel %vm1412, %v3966, %v3258
  %v3999 = vsel %vm1412, %v3967, %v3260
  %v4000 = vsel %vm1412, %v3968, %v3262
  %v4001 = vsel %vm1412, %v3969, %v3264
  %v4002 = vsel %vm1412, %v3970, %v3266
  %v4003 = vsel %vm1412, %v3971, %v3268
  %v4004 = vsel %vm1412, %v3972, %v3270
  %v4005 = vsel %vm1412, %v3973, %v3272
  %v4006 = vsel %vm1412, %v3974, %v3274
  %v4007 = vsel %vm1412, %v3975, %v3276
  %v4008 = vsel %vm1412, %v3976, %v3278
  %v4009 = vsel %vm1412, %v3977, %v3280
  %v4010 = vsel %vm1412, %v3978, %v3282
  %v4011 = vsel %vm1412, %v3979, %v3284
  %v4012 = vsel %vm1412, %v3980, %v3286
  %v4013 = vsel %vm1412, %v3981, %v3288
  %v4014 = vsel %vm1412, %v3982, %v3290
  %v4015 = vsel %vm1445, %v3983, %v3328
  %v4016 = vsel %vm1445, %v3984, %v3330
  %v4017 = vsel %vm1445, %v3985, %v3332
  %v4018 = vsel %vm1445, %v3986, %v3334
  %v4019 = vsel %vm1445, %v3987, %v3336
  %v4020 = vsel %vm1445, %v3988, %v3338
  %v4021 = vsel %vm1445, %v3989, %v3340
  %v4022 = vsel %vm1445, %v3990, %v3342
  %v4023 = vsel %vm1445, %v3991, %v3344
  %v4024 = vsel %vm1445, %v3992, %v3346
  %v4025 = vsel %vm1445, %v3993, %v3348
  %v4026 = vsel %vm1445, %v3994, %v3350
  %v4027 = vsel %vm1445, %v3995, %v3352
  %v4028 = vsel %vm1445, %v3996, %v3354
  %v4029 = vsel %vm1445, %v3997, %v3356
  %v4030 = vsel %vm1445, %v3998, %v3358
  %v4031 = vsel %vm1445, %v3999, %v3360
  %v4032 = vsel %vm1445, %v4000, %v3362
  %v4033 = vsel %vm1445, %v4001, %v3364
  %v4034 = vsel %vm1445, %v4002, %v3366
  %v4035 = vsel %vm1445, %v4003, %v3368
  %v4036 = vsel %vm1445, %v4004, %v3370
  %v4037 = vsel %vm1445, %v4005, %v3372
  %v4038 = vsel %vm1445, %v4006, %v3374
  %v4039 = vsel %vm1445, %v4007, %v3376
  %v4040 = vsel %vm1445, %v4008, %v3378
  %v4041 = vsel %vm1445, %v4009, %v3380
  %v4042 = vsel %vm1445, %v4010, %v3382
  %v4043 = vsel %vm1445, %v4011, %v3384
  %v4044 = vsel %vm1445, %v4012, %v3386
  %v4045 = vsel %vm1445, %v4013, %v3388
  %v4046 = vsel %vm1445, %v4014, %v3390
  %v4047 = vsel %vm1478, %v4015, %v3436
  %v4048 = vsel %vm1478, %v4016, %v3438
  %v4049 = vsel %vm1478, %v4017, %v3440
  %v4050 = vsel %vm1478, %v4018, %v3442
  %v4051 = vsel %vm1478, %v4019, %v3444
  %v4052 = vsel %vm1478, %v4020, %v3446
  %v4053 = vsel %vm1478, %v4021, %v3448
  %v4054 = vsel %vm1478, %v4022, %v3450
  %v4055 = vsel %vm1478, %v4023, %v3452
  %v4056 = vsel %vm1478, %v4024, %v3454
  %v4057 = vsel %vm1478, %v4025, %v3456
  %v4058 = vsel %vm1478, %v4026, %v3458
  %v4059 = vsel %vm1478, %v4027, %v3460
  %v4060 = vsel %vm1478, %v4028, %v3462
  %v4061 = vsel %vm1478, %v4029, %v3464
  %v4062 = vsel %vm1478, %v4030, %v3466
  %v4063 = vsel %vm1478, %v4031, %v3468
  %v4064 = vsel %vm1478, %v4032, %v3470
  %v4065 = vsel %vm1478, %v4033, %v3472
  %v4066 = vsel %vm1478, %v4034, %v3474
  %v4067 = vsel %vm1478, %v4035, %v3476
  %v4068 = vsel %vm1478, %v4036, %v3478
  %v4069 = vsel %vm1478, %v4037, %v3480
  %v4070 = vsel %vm1478, %v4038, %v3482
  %v4071 = vsel %vm1478, %v4039, %v3484
  %v4072 = vsel %vm1478, %v4040, %v3486
  %v4073 = vsel %vm1478, %v4041, %v3488
  %v4074 = vsel %vm1478, %v4042, %v3490
  %v4075 = vsel %vm1478, %v4043, %v3492
  %v4076 = vsel %vm1478, %v4044, %v3494
  %v4077 = vsel %vm1478, %v4045, %v3496
  %v4078 = vsel %vm1478, %v4046, %v3498
  %v4079 = vsel %vm1511, %v4047, %v3542
  %v4080 = vsel %vm1511, %v4048, %v3544
  %v4081 = vsel %vm1511, %v4049, %v3546
  %v4082 = vsel %vm1511, %v4050, %v3548
  %v4083 = vsel %vm1511, %v4051, %v3550
  %v4084 = vsel %vm1511, %v4052, %v3552
  %v4085 = vsel %vm1511, %v4053, %v3554
  %v4086 = vsel %vm1511, %v4054, %v3556
  %v4087 = vsel %vm1511, %v4055, %v3558
  %v4088 = vsel %vm1511, %v4056, %v3560
  %v4089 = vsel %vm1511, %v4057, %v3562
  %v4090 = vsel %vm1511, %v4058, %v3564
  %v4091 = vsel %vm1511, %v4059, %v3566
  %v4092 = vsel %vm1511, %v4060, %v3568
  %v4093 = vsel %vm1511, %v4061, %v3570
  %v4094 = vsel %vm1511, %v4062, %v3572
  %v4095 = vsel %vm1511, %v4063, %v3574
  %v4096 = vsel %vm1511, %v4064, %v3576
  %v4097 = vsel %vm1511, %v4065, %v3578
  %v4098 = vsel %vm1511, %v4066, %v3580
  %v4099 = vsel %vm1511, %v4067, %v3582
  %v4100 = vsel %vm1511, %v4068, %v3584
  %v4101 = vsel %vm1511, %v4069, %v3586
  %v4102 = vsel %vm1511, %v4070, %v3588
  %v4103 = vsel %vm1511, %v4071, %v3590
  %v4104 = vsel %vm1511, %v4072, %v3592
  %v4105 = vsel %vm1511, %v4073, %v3594
  %v4106 = vsel %vm1511, %v4074, %v3596
  %v4107 = vsel %vm1511, %v4075, %v3598
  %v4108 = vsel %vm1511, %v4076, %v3600
  %v4109 = vsel %vm1511, %v4077, %v3602
  %v4110 = vsel %vm1511, %v4078, %v3604
  %v4111 = vsel %vm1544, %v4079, %v3642
  %v4112 = vsel %vm1544, %v4080, %v3644
  %v4113 = vsel %vm1544, %v4081, %v3646
  %v4114 = vsel %vm1544, %v4082, %v3648
  %v4115 = vsel %vm1544, %v4083, %v3650
  %v4116 = vsel %vm1544, %v4084, %v3652
  %v4117 = vsel %vm1544, %v4085, %v3654
  %v4118 = vsel %vm1544, %v4086, %v3656
  %v4119 = vsel %vm1544, %v4087, %v3658
  %v4120 = vsel %vm1544, %v4088, %v3660
  %v4121 = vsel %vm1544, %v4089, %v3662
  %v4122 = vsel %vm1544, %v4090, %v3664
  %v4123 = vsel %vm1544, %v4091, %v3666
  %v4124 = vsel %vm1544, %v4092, %v3668
  %v4125 = vsel %vm1544, %v4093, %v3670
  %v4126 = vsel %vm1544, %v4094, %v3672
  %v4127 = vsel %vm1544, %v4095, %v3674
  %v4128 = vsel %vm1544, %v4096, %v3676
  %v4129 = vsel %vm1544, %v4097, %v3678
  %v4130 = vsel %vm1544, %v4098, %v3680
  %v4131 = vsel %vm1544, %v4099, %v3682
  %v4132 = vsel %vm1544, %v4100, %v3684
  %v4133 = vsel %vm1544, %v4101, %v3686
  %v4134 = vsel %vm1544, %v4102, %v3688
  %v4135 = vsel %vm1544, %v4103, %v3690
  %v4136 = vsel %vm1544, %v4104, %v3692
  %v4137 = vsel %vm1544, %v4105, %v3694
  %v4138 = vsel %vm1544, %v4106, %v3696
  %v4139 = vsel %vm1544, %v4107, %v3698
  %v4140 = vsel %vm1544, %v4108, %v3700
  %v4141 = vsel %vm1544, %v4109, %v3702
  %v4142 = vsel %vm1544, %v4110, %v3704
  %v4143 = vsel %vm1577, %v4111, %v3750
  %v4144 = vsel %vm1577, %v4112, %v3752
  %v4145 = vsel %vm1577, %v4113, %v3754
  %v4146 = vsel %vm1577, %v4114, %v3756
  %v4147 = vsel %vm1577, %v4115, %v3758
  %v4148 = vsel %vm1577, %v4116, %v3760
  %v4149 = vsel %vm1577, %v4117, %v3762
  %v4150 = vsel %vm1577, %v4118, %v3764
  %v4151 = vsel %vm1577, %v4119, %v3766
  %v4152 = vsel %vm1577, %v4120, %v3768
  %v4153 = vsel %vm1577, %v4121, %v3770
  %v4154 = vsel %vm1577, %v4122, %v3772
  %v4155 = vsel %vm1577, %v4123, %v3774
  %v4156 = vsel %vm1577, %v4124, %v3776
  %v4157 = vsel %vm1577, %v4125, %v3778
  %v4158 = vsel %vm1577, %v4126, %v3780
  %v4159 = vsel %vm1577, %v4127, %v3782
  %v4160 = vsel %vm1577, %v4128, %v3784
  %v4161 = vsel %vm1577, %v4129, %v3786
  %v4162 = vsel %vm1577, %v4130, %v3788
  %v4163 = vsel %vm1577, %v4131, %v3790
  %v4164 = vsel %vm1577, %v4132, %v3792
  %v4165 = vsel %vm1577, %v4133, %v3794
  %v4166 = vsel %vm1577, %v4134, %v3796
  %v4167 = vsel %vm1577, %v4135, %v3798
  %v4168 = vsel %vm1577, %v4136, %v3800
  %v4169 = vsel %vm1577, %v4137, %v3802
  %v4170 = vsel %vm1577, %v4138, %v3804
  %v4171 = vsel %vm1577, %v4139, %v3806
  %v4172 = vsel %vm1577, %v4140, %v3808
  %v4173 = vsel %vm1577, %v4141, %v3810
  %v4174 = vsel %vm1577, %v4142, %v3812
  %v4175 = vsel %vm1610, %v4143, %v3856
  %v4176 = vsel %vm1610, %v4144, %v3858
  %v4177 = vsel %vm1610, %v4145, %v3860
  %v4178 = vsel %vm1610, %v4146, %v3862
  %v4179 = vsel %vm1610, %v4147, %v3864
  %v4180 = vsel %vm1610, %v4148, %v3866
  %v4181 = vsel %vm1610, %v4149, %v3868
  %v4182 = vsel %vm1610, %v4150, %v3870
  %v4183 = vsel %vm1610, %v4151, %v3872
  %v4184 = vsel %vm1610, %v4152, %v3874
  %v4185 = vsel %vm1610, %v4153, %v3876
  %v4186 = vsel %vm1610, %v4154, %v3878
  %v4187 = vsel %vm1610, %v4155, %v3880
  %v4188 = vsel %vm1610, %v4156, %v3882
  %v4189 = vsel %vm1610, %v4157, %v3884
  %v4190 = vsel %vm1610, %v4158, %v3886
  %v4191 = vsel %vm1610, %v4159, %v3888
  %v4192 = vsel %vm1610, %v4160, %v3890
  %v4193 = vsel %vm1610, %v4161, %v3892
  %v4194 = vsel %vm1610, %v4162, %v3894
  %v4195 = vsel %vm1610, %v4163, %v3896
  %v4196 = vsel %vm1610, %v4164, %v3898
  %v4197 = vsel %vm1610, %v4165, %v3900
  %v4198 = vsel %vm1610, %v4166, %v3902
  %v4199 = vsel %vm1610, %v4167, %v3904
  %v4200 = vsel %vm1610, %v4168, %v3906
  %v4201 = vsel %vm1610, %v4169, %v3908
  %v4202 = vsel %vm1610, %v4170, %v3910
  %v4203 = vsel %vm1610, %v4171, %v3912
  %v4204 = vsel %vm1610, %v4172, %v3914
  %v4205 = vsel %vm1610, %v4173, %v3916
  %v4206 = vsel %vm1610, %v4174, %v3918
  %v4207 = vpack.c.bf16 %v4176, %v4175
  %v4208 = vpack.c.bf16 %v4178, %v4177
  %v4209 = vpack.c.bf16 %v4180, %v4179
  %v4210 = vpack.c.bf16 %v4182, %v4181
  %v4211 = vpack.c.bf16 %v4184, %v4183
  %v4212 = vpack.c.bf16 %v4186, %v4185
  %v4213 = vpack.c.bf16 %v4188, %v4187
  %v4214 = vpack.c.bf16 %v4190, %v4189
  %v4215 = vpack.c.bf16 %v4192, %v4191
  %v4216 = vpack.c.bf16 %v4194, %v4193
  %v4217 = vpack.c.bf16 %v4196, %v4195
  %v4218 = vpack.c.bf16 %v4198, %v4197
  %v4219 = vpack.c.bf16 %v4200, %v4199
  %v4220 = vpack.c.bf16 %v4202, %v4201
  %v4221 = vpack.c.bf16 %v4204, %v4203
  %v4222 = vpack.c.bf16 %v4206, %v4205
  %v4223 = vld [vmem:[%s1] sm:$0xf]
  %v4224 = vld [vmem:[%s1 + $0x4] sm:$0xf]
  %v4225 = vld [vmem:[%s1 + $0x8] sm:$0xf]
  %v4226 = vld [vmem:[%s1 + $0xc] sm:$0x3]
  %v4227 = vld [vmem:[%s2] sm:$0x1]
  %v4229 = vperm.slane %v4227, 0
  %v4235 = vunpack.c.l.b16 %v4223
  %v4236 = vunpack.c.l.b16 %v4224
  %v4237 = vunpack.c.l.b16 %v4225
  %v4238 = vunpack.c.l.b16 %v4226
  %v4239 = vpack.c.b16 %v4236, %v4235
  %v4240 = vpack.c.b16 %v4238, %v4237
  %v4243 = vsel %vm1678, %v4207, 0
  %v4246 = vsel %vm1678, %v4208, 0
  %v4249 = vsel %vm1678, %v4209, 0
  %v4252 = vsel %vm1678, %v4210, 0
  %v4255 = vsel %vm1678, %v4211, 0
  %v4258 = vsel %vm1678, %v4212, 0
  %v4261 = vsel %vm1678, %v4213, 0
  %v4264 = vsel %vm1678, %v4214, 0
  %v4267 = vsel %vm1678, %v4215, 0
  %v4270 = vsel %vm1678, %v4216, 0
  %v4273 = vsel %vm1678, %v4217, 0
  %v4276 = vsel %vm1678, %v4218, 0
  %v4279 = vsel %vm1678, %v4219, 0
  %v4282 = vsel %vm1678, %v4220, 0
  %v4285 = vsel %vm1678, %v4221, 0
  %v4288 = vsel %vm1678, %v4222, 0
  %v4291 = vand.u32 %v4240, %v1729
  %4293 = vmatpush.bf16.msra.mxu0 0
  %4294 = vmatpush.bf16.msra.mxu0 0
  %4295 = vmatpush.bf16.msra.mxu0 0
  %4296 = vmatpush.bf16.msra.mxu0 0
  %4297 = vmatpush.bf16.msra.mxu0 0
  %4298 = vmatpush.bf16.msra.mxu0 0
  %4299 = vmatpush.bf16.msra.mxu0 %v4291
  %4300 = vmatpush.bf16.msra.mxu0 %v4239
  %4301 = vmatmul.bf16.gmra.mxu0 %v4243
  %v4302 = vpop.f32.mrf.mxu0
  %v4303 = vadd.f32 %v4229, %v4302
  %v4304 = vpop.f32.mrf.mxu0
  %v4305 = vadd.f32 %v4229, %v4304
  %4306 = vmatmul.bf16.gmra.mxu0 %v4246
  %v4307 = vpop.f32.mrf.mxu0
  %v4308 = vadd.f32 %v4229, %v4307
  %v4309 = vpop.f32.mrf.mxu0
  %v4310 = vadd.f32 %v4229, %v4309
  %4311 = vmatmul.bf16.gmra.mxu0 %v4249
  %v4312 = vpop.f32.mrf.mxu0
  %v4313 = vadd.f32 %v4229, %v4312
  %v4314 = vpop.f32.mrf.mxu0
  %v4315 = vadd.f32 %v4229, %v4314
  %4316 = vmatmul.bf16.gmra.mxu0 %v4252
  %v4317 = vpop.f32.mrf.mxu0
  %v4318 = vadd.f32 %v4229, %v4317
  %v4319 = vpop.f32.mrf.mxu0
  %v4320 = vadd.f32 %v4229, %v4319
  %4321 = vmatmul.bf16.gmra.mxu0 %v4255
  %v4322 = vpop.f32.mrf.mxu0
  %v4323 = vadd.f32 %v4229, %v4322
  %v4324 = vpop.f32.mrf.mxu0
  %v4325 = vadd.f32 %v4229, %v4324
  %4326 = vmatmul.bf16.gmra.mxu0 %v4258
  %v4327 = vpop.f32.mrf.mxu0
  %v4328 = vadd.f32 %v4229, %v4327
  %v4329 = vpop.f32.mrf.mxu0
  %v4330 = vadd.f32 %v4229, %v4329
  %4331 = vmatmul.bf16.gmra.mxu0 %v4261
  %v4332 = vpop.f32.mrf.mxu0
  %v4333 = vadd.f32 %v4229, %v4332
  %v4334 = vpop.f32.mrf.mxu0
  %v4335 = vadd.f32 %v4229, %v4334
  %4336 = vmatmul.bf16.gmra.mxu0 %v4264
  %v4337 = vpop.f32.mrf.mxu0
  %v4338 = vadd.f32 %v4229, %v4337
  %v4339 = vpop.f32.mrf.mxu0
  %v4340 = vadd.f32 %v4229, %v4339
  %4341 = vmatmul.bf16.gmra.mxu0 %v4267
  %v4342 = vpop.f32.mrf.mxu0
  %v4343 = vadd.f32 %v4229, %v4342
  %v4344 = vpop.f32.mrf.mxu0
  %v4345 = vadd.f32 %v4229, %v4344
  %4346 = vmatmul.bf16.gmra.mxu0 %v4270
  %v4347 = vpop.f32.mrf.mxu0
  %v4348 = vadd.f32 %v4229, %v4347
  %v4349 = vpop.f32.mrf.mxu0
  %v4350 = vadd.f32 %v4229, %v4349
  %4351 = vmatmul.bf16.gmra.mxu0 %v4273
  %v4352 = vpop.f32.mrf.mxu0
  %v4353 = vadd.f32 %v4229, %v4352
  %v4354 = vpop.f32.mrf.mxu0
  %v4355 = vadd.f32 %v4229, %v4354
  %4356 = vmatmul.bf16.gmra.mxu0 %v4276
  %v4357 = vpop.f32.mrf.mxu0
  %v4358 = vadd.f32 %v4229, %v4357
  %v4359 = vpop.f32.mrf.mxu0
  %v4360 = vadd.f32 %v4229, %v4359
  %4361 = vmatmul.bf16.gmra.mxu0 %v4279
  %v4362 = vpop.f32.mrf.mxu0
  %v4363 = vadd.f32 %v4229, %v4362
  %v4364 = vpop.f32.mrf.mxu0
  %v4365 = vadd.f32 %v4229, %v4364
  %4366 = vmatmul.bf16.gmra.mxu0 %v4282
  %v4367 = vpop.f32.mrf.mxu0
  %v4368 = vadd.f32 %v4229, %v4367
  %v4369 = vpop.f32.mrf.mxu0
  %v4370 = vadd.f32 %v4229, %v4369
  %4371 = vmatmul.bf16.gmra.mxu0 %v4285
  %v4372 = vpop.f32.mrf.mxu0
  %v4373 = vadd.f32 %v4229, %v4372
  %v4374 = vpop.f32.mrf.mxu0
  %v4375 = vadd.f32 %v4229, %v4374
  %4376 = vmatmul.bf16.gmra.mxu0 %v4288
  %v4377 = vpop.f32.mrf.mxu0
  %v4378 = vadd.f32 %v4229, %v4377
  %v4379 = vpop.f32.mrf.mxu0
  %v4380 = vadd.f32 %v4229, %v4379
  %4381 = vdwg.mxu0
  %v4382 = vmax.f32 %v4303, 0.0
  %v4383 = vmax.f32 %v4305, 0.0
  %v4384 = vmax.f32 %v4308, 0.0
  %v4385 = vmax.f32 %v4310, 0.0
  %v4386 = vmax.f32 %v4313, 0.0
  %v4387 = vmax.f32 %v4315, 0.0
  %v4388 = vmax.f32 %v4318, 0.0
  %v4389 = vmax.f32 %v4320, 0.0
  %v4390 = vmax.f32 %v4323, 0.0
  %v4391 = vmax.f32 %v4325, 0.0
  %v4392 = vmax.f32 %v4328, 0.0
  %v4393 = vmax.f32 %v4330, 0.0
  %v4394 = vmax.f32 %v4333, 0.0
  %v4395 = vmax.f32 %v4335, 0.0
  %v4396 = vmax.f32 %v4338, 0.0
  %v4397 = vmax.f32 %v4340, 0.0
  %v4398 = vmax.f32 %v4343, 0.0
  %v4399 = vmax.f32 %v4345, 0.0
  %v4400 = vmax.f32 %v4348, 0.0
  %v4401 = vmax.f32 %v4350, 0.0
  %v4402 = vmax.f32 %v4353, 0.0
  %v4403 = vmax.f32 %v4355, 0.0
  %v4404 = vmax.f32 %v4358, 0.0
  %v4405 = vmax.f32 %v4360, 0.0
  %v4406 = vmax.f32 %v4363, 0.0
  %v4407 = vmax.f32 %v4365, 0.0
  %v4408 = vmax.f32 %v4368, 0.0
  %v4409 = vmax.f32 %v4370, 0.0
  %v4410 = vmax.f32 %v4373, 0.0
  %v4411 = vmax.f32 %v4375, 0.0
  %v4412 = vmax.f32 %v4378, 0.0
  %v4413 = vmax.f32 %v4380, 0.0
  %v4446 = vrot.slane %v4382, 2
  %v4447 = vrot.slane %v4382, 4
  %v4448 = vrot.slane %v4382, 6
  %v4449 = vrot.slane %v4383, 2
  %v4450 = vrot.slane %v4383, 4
  %v4451 = vrot.slane %v4383, 6
  %v4452 = vrot.slane %v4384, 2
  %v4453 = vrot.slane %v4384, 4
  %v4454 = vrot.slane %v4384, 6
  %v4455 = vrot.slane %v4385, 2
  %v4456 = vrot.slane %v4385, 4
  %v4457 = vrot.slane %v4385, 6
  %v4458 = vrot.slane %v4386, 2
  %v4459 = vrot.slane %v4386, 4
  %v4460 = vrot.slane %v4386, 6
  %v4461 = vrot.slane %v4387, 2
  %v4462 = vrot.slane %v4387, 4
  %v4463 = vrot.slane %v4387, 6
  %v4464 = vrot.slane %v4388, 2
  %v4465 = vrot.slane %v4388, 4
  %v4466 = vrot.slane %v4388, 6
  %v4467 = vrot.slane %v4389, 2
  %v4468 = vrot.slane %v4389, 4
  %v4469 = vrot.slane %v4389, 6
  %v4470 = vrot.slane %v4390, 2
  %v4471 = vrot.slane %v4390, 4
  %v4472 = vrot.slane %v4390, 6
  %v4473 = vrot.slane %v4391, 2
  %v4474 = vrot.slane %v4391, 4
  %v4475 = vrot.slane %v4391, 6
  %v4476 = vrot.slane %v4392, 2
  %v4477 = vrot.slane %v4392, 4
  %v4478 = vrot.slane %v4392, 6
  %v4479 = vrot.slane %v4393, 2
  %v4480 = vrot.slane %v4393, 4
  %v4481 = vrot.slane %v4393, 6
  %v4482 = vrot.slane %v4394, 2
  %v4483 = vrot.slane %v4394, 4
  %v4484 = vrot.slane %v4394, 6
  %v4485 = vrot.slane %v4395, 2
  %v4486 = vrot.slane %v4395, 4
  %v4487 = vrot.slane %v4395, 6
  %v4488 = vrot.slane %v4396, 2
  %v4489 = vrot.slane %v4396, 4
  %v4490 = vrot.slane %v4396, 6
  %v4491 = vrot.slane %v4397, 2
  %v4492 = vrot.slane %v4397, 4
  %v4493 = vrot.slane %v4397, 6
  %v4494 = vrot.slane %v4398, 2
  %v4495 = vrot.slane %v4398, 4
  %v4496 = vrot.slane %v4398, 6
  %v4497 = vrot.slane %v4399, 2
  %v4498 = vrot.slane %v4399, 4
  %v4499 = vrot.slane %v4399, 6
  %v4500 = vrot.slane %v4400, 2
  %v4501 = vrot.slane %v4400, 4
  %v4502 = vrot.slane %v4400, 6
  %v4503 = vrot.slane %v4401, 2
  %v4504 = vrot.slane %v4401, 4
  %v4505 = vrot.slane %v4401, 6
  %v4506 = vrot.slane %v4402, 2
  %v4507 = vrot.slane %v4402, 4
  %v4508 = vrot.slane %v4402, 6
  %v4509 = vrot.slane %v4403, 2
  %v4510 = vrot.slane %v4403, 4
  %v4511 = vrot.slane %v4403, 6
  %v4512 = vrot.slane %v4404, 2
  %v4513 = vrot.slane %v4404, 4
  %v4514 = vrot.slane %v4404, 6
  %v4515 = vrot.slane %v4405, 2
  %v4516 = vrot.slane %v4405, 4
  %v4517 = vrot.slane %v4405, 6
  %v4518 = vrot.slane %v4406, 2
  %v4519 = vrot.slane %v4406, 4
  %v4520 = vrot.slane %v4406, 6
  %v4521 = vrot.slane %v4407, 2
  %v4522 = vrot.slane %v4407, 4
  %v4523 = vrot.slane %v4407, 6
  %v4524 = vrot.slane %v4408, 2
  %v4525 = vrot.slane %v4408, 4
  %v4526 = vrot.slane %v4408, 6
  %v4527 = vrot.slane %v4409, 2
  %v4528 = vrot.slane %v4409, 4
  %v4529 = vrot.slane %v4409, 6
  %v4530 = vrot.slane %v4410, 2
  %v4531 = vrot.slane %v4410, 4
  %v4532 = vrot.slane %v4410, 6
  %v4533 = vrot.slane %v4411, 2
  %v4534 = vrot.slane %v4411, 4
  %v4535 = vrot.slane %v4411, 6
  %v4536 = vrot.slane %v4412, 2
  %v4537 = vrot.slane %v4412, 4
  %v4538 = vrot.slane %v4412, 6
  %v4539 = vrot.slane %v4413, 2
  %v4540 = vrot.slane %v4413, 4
  %v4541 = vrot.slane %v4413, 6
  %v4638 = vrot.slane %v4382, 7
  %v4639 = vrot.slane %v4638, 2
  %v4640 = vrot.slane %v4446, 7
  %v4641 = vrot.slane %v4640, 2
  %v4642 = vrot.slane %v4447, 7
  %v4643 = vrot.slane %v4642, 2
  %v4644 = vrot.slane %v4448, 7
  %v4645 = vrot.slane %v4644, 2
  %v4646 = vrot.slane %v4383, 7
  %v4647 = vrot.slane %v4646, 2
  %v4648 = vrot.slane %v4449, 7
  %v4649 = vrot.slane %v4648, 2
  %v4650 = vrot.slane %v4450, 7
  %v4651 = vrot.slane %v4650, 2
  %v4652 = vrot.slane %v4451, 7
  %v4653 = vrot.slane %v4652, 2
  %v4654 = vrot.slane %v4384, 7
  %v4655 = vrot.slane %v4654, 2
  %v4656 = vrot.slane %v4452, 7
  %v4657 = vrot.slane %v4656, 2
  %v4658 = vrot.slane %v4453, 7
  %v4659 = vrot.slane %v4658, 2
  %v4660 = vrot.slane %v4454, 7
  %v4661 = vrot.slane %v4660, 2
  %v4662 = vrot.slane %v4385, 7
  %v4663 = vrot.slane %v4662, 2
  %v4664 = vrot.slane %v4455, 7
  %v4665 = vrot.slane %v4664, 2
  %v4666 = vrot.slane %v4456, 7
  %v4667 = vrot.slane %v4666, 2
  %v4668 = vrot.slane %v4457, 7
  %v4669 = vrot.slane %v4668, 2
  %v4670 = vrot.slane %v4386, 7
  %v4671 = vrot.slane %v4670, 2
  %v4672 = vrot.slane %v4458, 7
  %v4673 = vrot.slane %v4672, 2
  %v4674 = vrot.slane %v4459, 7
  %v4675 = vrot.slane %v4674, 2
  %v4676 = vrot.slane %v4460, 7
  %v4677 = vrot.slane %v4676, 2
  %v4678 = vrot.slane %v4387, 7
  %v4679 = vrot.slane %v4678, 2
  %v4680 = vrot.slane %v4461, 7
  %v4681 = vrot.slane %v4680, 2
  %v4682 = vrot.slane %v4462, 7
  %v4683 = vrot.slane %v4682, 2
  %v4684 = vrot.slane %v4463, 7
  %v4685 = vrot.slane %v4684, 2
  %v4686 = vrot.slane %v4388, 7
  %v4687 = vrot.slane %v4686, 2
  %v4688 = vrot.slane %v4464, 7
  %v4689 = vrot.slane %v4688, 2
  %v4690 = vrot.slane %v4465, 7
  %v4691 = vrot.slane %v4690, 2
  %v4692 = vrot.slane %v4466, 7
  %v4693 = vrot.slane %v4692, 2
  %v4694 = vrot.slane %v4389, 7
  %v4695 = vrot.slane %v4694, 2
  %v4696 = vrot.slane %v4467, 7
  %v4697 = vrot.slane %v4696, 2
  %v4698 = vrot.slane %v4468, 7
  %v4699 = vrot.slane %v4698, 2
  %v4700 = vrot.slane %v4469, 7
  %v4701 = vrot.slane %v4700, 2
  %v4702 = vrot.slane %v4390, 7
  %v4703 = vrot.slane %v4702, 2
  %v4704 = vrot.slane %v4470, 7
  %v4705 = vrot.slane %v4704, 2
  %v4706 = vrot.slane %v4471, 7
  %v4707 = vrot.slane %v4706, 2
  %v4708 = vrot.slane %v4472, 7
  %v4709 = vrot.slane %v4708, 2
  %v4710 = vrot.slane %v4391, 7
  %v4711 = vrot.slane %v4710, 2
  %v4712 = vrot.slane %v4473, 7
  %v4713 = vrot.slane %v4712, 2
  %v4714 = vrot.slane %v4474, 7
  %v4715 = vrot.slane %v4714, 2
  %v4716 = vrot.slane %v4475, 7
  %v4717 = vrot.slane %v4716, 2
  %v4718 = vrot.slane %v4392, 7
  %v4719 = vrot.slane %v4718, 2
  %v4720 = vrot.slane %v4476, 7
  %v4721 = vrot.slane %v4720, 2
  %v4722 = vrot.slane %v4477, 7
  %v4723 = vrot.slane %v4722, 2
  %v4724 = vrot.slane %v4478, 7
  %v4725 = vrot.slane %v4724, 2
  %v4726 = vrot.slane %v4393, 7
  %v4727 = vrot.slane %v4726, 2
  %v4728 = vrot.slane %v4479, 7
  %v4729 = vrot.slane %v4728, 2
  %v4730 = vrot.slane %v4480, 7
  %v4731 = vrot.slane %v4730, 2
  %v4732 = vrot.slane %v4481, 7
  %v4733 = vrot.slane %v4732, 2
  %v4734 = vrot.slane %v4394, 7
  %v4735 = vrot.slane %v4734, 2
  %v4736 = vrot.slane %v4482, 7
  %v4737 = vrot.slane %v4736, 2
  %v4738 = vrot.slane %v4483, 7
  %v4739 = vrot.slane %v4738, 2
  %v4740 = vrot.slane %v4484, 7
  %v4741 = vrot.slane %v4740, 2
  %v4742 = vrot.slane %v4395, 7
  %v4743 = vrot.slane %v4742, 2
  %v4744 = vrot.slane %v4485, 7
  %v4745 = vrot.slane %v4744, 2
  %v4746 = vrot.slane %v4486, 7
  %v4747 = vrot.slane %v4746, 2
  %v4748 = vrot.slane %v4487, 7
  %v4749 = vrot.slane %v4748, 2
  %v4750 = vrot.slane %v4396, 7
  %v4751 = vrot.slane %v4750, 2
  %v4752 = vrot.slane %v4488, 7
  %v4753 = vrot.slane %v4752, 2
  %v4754 = vrot.slane %v4489, 7
  %v4755 = vrot.slane %v4754, 2
  %v4756 = vrot.slane %v4490, 7
  %v4757 = vrot.slane %v4756, 2
  %v4758 = vrot.slane %v4397, 7
  %v4759 = vrot.slane %v4758, 2
  %v4760 = vrot.slane %v4491, 7
  %v4761 = vrot.slane %v4760, 2
  %v4762 = vrot.slane %v4492, 7
  %v4763 = vrot.slane %v4762, 2
  %v4764 = vrot.slane %v4493, 7
  %v4765 = vrot.slane %v4764, 2
  %v4766 = vrot.slane %v4398, 7
  %v4767 = vrot.slane %v4766, 2
  %v4768 = vrot.slane %v4494, 7
  %v4769 = vrot.slane %v4768, 2
  %v4770 = vrot.slane %v4495, 7
  %v4771 = vrot.slane %v4770, 2
  %v4772 = vrot.slane %v4496, 7
  %v4773 = vrot.slane %v4772, 2
  %v4774 = vrot.slane %v4399, 7
  %v4775 = vrot.slane %v4774, 2
  %v4776 = vrot.slane %v4497, 7
  %v4777 = vrot.slane %v4776, 2
  %v4778 = vrot.slane %v4498, 7
  %v4779 = vrot.slane %v4778, 2
  %v4780 = vrot.slane %v4499, 7
  %v4781 = vrot.slane %v4780, 2
  %v4782 = vrot.slane %v4400, 7
  %v4783 = vrot.slane %v4782, 2
  %v4784 = vrot.slane %v4500, 7
  %v4785 = vrot.slane %v4784, 2
  %v4786 = vrot.slane %v4501, 7
  %v4787 = vrot.slane %v4786, 2
  %v4788 = vrot.slane %v4502, 7
  %v4789 = vrot.slane %v4788, 2
  %v4790 = vrot.slane %v4401, 7
  %v4791 = vrot.slane %v4790, 2
  %v4792 = vrot.slane %v4503, 7
  %v4793 = vrot.slane %v4792, 2
  %v4794 = vrot.slane %v4504, 7
  %v4795 = vrot.slane %v4794, 2
  %v4796 = vrot.slane %v4505, 7
  %v4797 = vrot.slane %v4796, 2
  %v4798 = vrot.slane %v4402, 7
  %v4799 = vrot.slane %v4798, 2
  %v4800 = vrot.slane %v4506, 7
  %v4801 = vrot.slane %v4800, 2
  %v4802 = vrot.slane %v4507, 7
  %v4803 = vrot.slane %v4802, 2
  %v4804 = vrot.slane %v4508, 7
  %v4805 = vrot.slane %v4804, 2
  %v4806 = vrot.slane %v4403, 7
  %v4807 = vrot.slane %v4806, 2
  %v4808 = vrot.slane %v4509, 7
  %v4809 = vrot.slane %v4808, 2
  %v4810 = vrot.slane %v4510, 7
  %v4811 = vrot.slane %v4810, 2
  %v4812 = vrot.slane %v4511, 7
  %v4813 = vrot.slane %v4812, 2
  %v4814 = vrot.slane %v4404, 7
  %v4815 = vrot.slane %v4814, 2
  %v4816 = vrot.slane %v4512, 7
  %v4817 = vrot.slane %v4816, 2
  %v4818 = vrot.slane %v4513, 7
  %v4819 = vrot.slane %v4818, 2
  %v4820 = vrot.slane %v4514, 7
  %v4821 = vrot.slane %v4820, 2
  %v4822 = vrot.slane %v4405, 7
  %v4823 = vrot.slane %v4822, 2
  %v4824 = vrot.slane %v4515, 7
  %v4825 = vrot.slane %v4824, 2
  %v4826 = vrot.slane %v4516, 7
  %v4827 = vrot.slane %v4826, 2
  %v4828 = vrot.slane %v4517, 7
  %v4829 = vrot.slane %v4828, 2
  %v4830 = vrot.slane %v4406, 7
  %v4831 = vrot.slane %v4830, 2
  %v4832 = vrot.slane %v4518, 7
  %v4833 = vrot.slane %v4832, 2
  %v4834 = vrot.slane %v4519, 7
  %v4835 = vrot.slane %v4834, 2
  %v4836 = vrot.slane %v4520, 7
  %v4837 = vrot.slane %v4836, 2
  %v4838 = vrot.slane %v4407, 7
  %v4839 = vrot.slane %v4838, 2
  %v4840 = vrot.slane %v4521, 7
  %v4841 = vrot.slane %v4840, 2
  %v4842 = vrot.slane %v4522, 7
  %v4843 = vrot.slane %v4842, 2
  %v4844 = vrot.slane %v4523, 7
  %v4845 = vrot.slane %v4844, 2
  %v4846 = vrot.slane %v4408, 7
  %v4847 = vrot.slane %v4846, 2
  %v4848 = vrot.slane %v4524, 7
  %v4849 = vrot.slane %v4848, 2
  %v4850 = vrot.slane %v4525, 7
  %v4851 = vrot.slane %v4850, 2
  %v4852 = vrot.slane %v4526, 7
  %v4853 = vrot.slane %v4852, 2
  %v4854 = vrot.slane %v4409, 7
  %v4855 = vrot.slane %v4854, 2
  %v4856 = vrot.slane %v4527, 7
  %v4857 = vrot.slane %v4856, 2
  %v4858 = vrot.slane %v4528, 7
  %v4859 = vrot.slane %v4858, 2
  %v4860 = vrot.slane %v4529, 7
  %v4861 = vrot.slane %v4860, 2
  %v4862 = vrot.slane %v4410, 7
  %v4863 = vrot.slane %v4862, 2
  %v4864 = vrot.slane %v4530, 7
  %v4865 = vrot.slane %v4864, 2
  %v4866 = vrot.slane %v4531, 7
  %v4867 = vrot.slane %v4866, 2
  %v4868 = vrot.slane %v4532, 7
  %v4869 = vrot.slane %v4868, 2
  %v4870 = vrot.slane %v4411, 7
  %v4871 = vrot.slane %v4870, 2
  %v4872 = vrot.slane %v4533, 7
  %v4873 = vrot.slane %v4872, 2
  %v4874 = vrot.slane %v4534, 7
  %v4875 = vrot.slane %v4874, 2
  %v4876 = vrot.slane %v4535, 7
  %v4877 = vrot.slane %v4876, 2
  %v4878 = vrot.slane %v4412, 7
  %v4879 = vrot.slane %v4878, 2
  %v4880 = vrot.slane %v4536, 7
  %v4881 = vrot.slane %v4880, 2
  %v4882 = vrot.slane %v4537, 7
  %v4883 = vrot.slane %v4882, 2
  %v4884 = vrot.slane %v4538, 7
  %v4885 = vrot.slane %v4884, 2
  %v4886 = vrot.slane %v4413, 7
  %v4887 = vrot.slane %v4886, 2
  %v4888 = vrot.slane %v4539, 7
  %v4889 = vrot.slane %v4888, 2
  %v4890 = vrot.slane %v4540, 7
  %v4891 = vrot.slane %v4890, 2
  %v4892 = vrot.slane %v4541, 7
  %v4893 = vrot.slane %v4892, 2
  %v5022 = vmax.f32 %v4382, %v4639
  %v5023 = vmax.f32 %v4446, %v4641
  %v5024 = vmax.f32 %v4447, %v4643
  %v5025 = vmax.f32 %v4448, %v4645
  %v5026 = vmax.f32 %v4383, %v4647
  %v5027 = vmax.f32 %v4449, %v4649
  %v5028 = vmax.f32 %v4450, %v4651
  %v5029 = vmax.f32 %v4451, %v4653
  %v5030 = vmax.f32 %v4384, %v4655
  %v5031 = vmax.f32 %v4452, %v4657
  %v5032 = vmax.f32 %v4453, %v4659
  %v5033 = vmax.f32 %v4454, %v4661
  %v5034 = vmax.f32 %v4385, %v4663
  %v5035 = vmax.f32 %v4455, %v4665
  %v5036 = vmax.f32 %v4456, %v4667
  %v5037 = vmax.f32 %v4457, %v4669
  %v5038 = vmax.f32 %v4386, %v4671
  %v5039 = vmax.f32 %v4458, %v4673
  %v5040 = vmax.f32 %v4459, %v4675
  %v5041 = vmax.f32 %v4460, %v4677
  %v5042 = vmax.f32 %v4387, %v4679
  %v5043 = vmax.f32 %v4461, %v4681
  %v5044 = vmax.f32 %v4462, %v4683
  %v5045 = vmax.f32 %v4463, %v4685
  %v5046 = vmax.f32 %v4388, %v4687
  %v5047 = vmax.f32 %v4464, %v4689
  %v5048 = vmax.f32 %v4465, %v4691
  %v5049 = vmax.f32 %v4466, %v4693
  %v5050 = vmax.f32 %v4389, %v4695
  %v5051 = vmax.f32 %v4467, %v4697
  %v5052 = vmax.f32 %v4468, %v4699
  %v5053 = vmax.f32 %v4469, %v4701
  %v5054 = vmax.f32 %v4390, %v4703
  %v5055 = vmax.f32 %v4470, %v4705
  %v5056 = vmax.f32 %v4471, %v4707
  %v5057 = vmax.f32 %v4472, %v4709
  %v5058 = vmax.f32 %v4391, %v4711
  %v5059 = vmax.f32 %v4473, %v4713
  %v5060 = vmax.f32 %v4474, %v4715
  %v5061 = vmax.f32 %v4475, %v4717
  %v5062 = vmax.f32 %v4392, %v4719
  %v5063 = vmax.f32 %v4476, %v4721
  %v5064 = vmax.f32 %v4477, %v4723
  %v5065 = vmax.f32 %v4478, %v4725
  %v5066 = vmax.f32 %v4393, %v4727
  %v5067 = vmax.f32 %v4479, %v4729
  %v5068 = vmax.f32 %v4480, %v4731
  %v5069 = vmax.f32 %v4481, %v4733
  %v5070 = vmax.f32 %v4394, %v4735
  %v5071 = vmax.f32 %v4482, %v4737
  %v5072 = vmax.f32 %v4483, %v4739
  %v5073 = vmax.f32 %v4484, %v4741
  %v5074 = vmax.f32 %v4395, %v4743
  %v5075 = vmax.f32 %v4485, %v4745
  %v5076 = vmax.f32 %v4486, %v4747
  %v5077 = vmax.f32 %v4487, %v4749
  %v5078 = vmax.f32 %v4396, %v4751
  %v5079 = vmax.f32 %v4488, %v4753
  %v5080 = vmax.f32 %v4489, %v4755
  %v5081 = vmax.f32 %v4490, %v4757
  %v5082 = vmax.f32 %v4397, %v4759
  %v5083 = vmax.f32 %v4491, %v4761
  %v5084 = vmax.f32 %v4492, %v4763
  %v5085 = vmax.f32 %v4493, %v4765
  %v5086 = vmax.f32 %v4398, %v4767
  %v5087 = vmax.f32 %v4494, %v4769
  %v5088 = vmax.f32 %v4495, %v4771
  %v5089 = vmax.f32 %v4496, %v4773
  %v5090 = vmax.f32 %v4399, %v4775
  %v5091 = vmax.f32 %v4497, %v4777
  %v5092 = vmax.f32 %v4498, %v4779
  %v5093 = vmax.f32 %v4499, %v4781
  %v5094 = vmax.f32 %v4400, %v4783
  %v5095 = vmax.f32 %v4500, %v4785
  %v5096 = vmax.f32 %v4501, %v4787
  %v5097 = vmax.f32 %v4502, %v4789
  %v5098 = vmax.f32 %v4401, %v4791
  %v5099 = vmax.f32 %v4503, %v4793
  %v5100 = vmax.f32 %v4504, %v4795
  %v5101 = vmax.f32 %v4505, %v4797
  %v5102 = vmax.f32 %v4402, %v4799
  %v5103 = vmax.f32 %v4506, %v4801
  %v5104 = vmax.f32 %v4507, %v4803
  %v5105 = vmax.f32 %v4508, %v4805
  %v5106 = vmax.f32 %v4403, %v4807
  %v5107 = vmax.f32 %v4509, %v4809
  %v5108 = vmax.f32 %v4510, %v4811
  %v5109 = vmax.f32 %v4511, %v4813
  %v5110 = vmax.f32 %v4404, %v4815
  %v5111 = vmax.f32 %v4512, %v4817
  %v5112 = vmax.f32 %v4513, %v4819
  %v5113 = vmax.f32 %v4514, %v4821
  %v5114 = vmax.f32 %v4405, %v4823
  %v5115 = vmax.f32 %v4515, %v4825
  %v5116 = vmax.f32 %v4516, %v4827
  %v5117 = vmax.f32 %v4517, %v4829
  %v5118 = vmax.f32 %v4406, %v4831
  %v5119 = vmax.f32 %v4518, %v4833
  %v5120 = vmax.f32 %v4519, %v4835
  %v5121 = vmax.f32 %v4520, %v4837
  %v5122 = vmax.f32 %v4407, %v4839
  %v5123 = vmax.f32 %v4521, %v4841
  %v5124 = vmax.f32 %v4522, %v4843
  %v5125 = vmax.f32 %v4523, %v4845
  %v5126 = vmax.f32 %v4408, %v4847
  %v5127 = vmax.f32 %v4524, %v4849
  %v5128 = vmax.f32 %v4525, %v4851
  %v5129 = vmax.f32 %v4526, %v4853
  %v5130 = vmax.f32 %v4409, %v4855
  %v5131 = vmax.f32 %v4527, %v4857
  %v5132 = vmax.f32 %v4528, %v4859
  %v5133 = vmax.f32 %v4529, %v4861
  %v5134 = vmax.f32 %v4410, %v4863
  %v5135 = vmax.f32 %v4530, %v4865
  %v5136 = vmax.f32 %v4531, %v4867
  %v5137 = vmax.f32 %v4532, %v4869
  %v5138 = vmax.f32 %v4411, %v4871
  %v5139 = vmax.f32 %v4533, %v4873
  %v5140 = vmax.f32 %v4534, %v4875
  %v5141 = vmax.f32 %v4535, %v4877
  %v5142 = vmax.f32 %v4412, %v4879
  %v5143 = vmax.f32 %v4536, %v4881
  %v5144 = vmax.f32 %v4537, %v4883
  %v5145 = vmax.f32 %v4538, %v4885
  %v5146 = vmax.f32 %v4413, %v4887
  %v5147 = vmax.f32 %v4539, %v4889
  %v5148 = vmax.f32 %v4540, %v4891
  %v5149 = vmax.f32 %v4541, %v4893
  %v5150 = vmax.f32 %v5022, %v5030
  %v5151 = vmax.f32 %v5023, %v5031
  %v5152 = vmax.f32 %v5024, %v5032
  %v5153 = vmax.f32 %v5025, %v5033
  %v5154 = vmax.f32 %v5026, %v5034
  %v5155 = vmax.f32 %v5027, %v5035
  %v5156 = vmax.f32 %v5028, %v5036
  %v5157 = vmax.f32 %v5029, %v5037
  %v5158 = vmax.f32 %v5038, %v5046
  %v5159 = vmax.f32 %v5039, %v5047
  %v5160 = vmax.f32 %v5040, %v5048
  %v5161 = vmax.f32 %v5041, %v5049
  %v5162 = vmax.f32 %v5042, %v5050
  %v5163 = vmax.f32 %v5043, %v5051
  %v5164 = vmax.f32 %v5044, %v5052
  %v5165 = vmax.f32 %v5045, %v5053
  %v5166 = vmax.f32 %v5054, %v5062
  %v5167 = vmax.f32 %v5055, %v5063
  %v5168 = vmax.f32 %v5056, %v5064
  %v5169 = vmax.f32 %v5057, %v5065
  %v5170 = vmax.f32 %v5058, %v5066
  %v5171 = vmax.f32 %v5059, %v5067
  %v5172 = vmax.f32 %v5060, %v5068
  %v5173 = vmax.f32 %v5061, %v5069
  %v5174 = vmax.f32 %v5070, %v5078
  %v5175 = vmax.f32 %v5071, %v5079
  %v5176 = vmax.f32 %v5072, %v5080
  %v5177 = vmax.f32 %v5073, %v5081
  %v5178 = vmax.f32 %v5074, %v5082
  %v5179 = vmax.f32 %v5075, %v5083
  %v5180 = vmax.f32 %v5076, %v5084
  %v5181 = vmax.f32 %v5077, %v5085
  %v5182 = vmax.f32 %v5086, %v5094
  %v5183 = vmax.f32 %v5087, %v5095
  %v5184 = vmax.f32 %v5088, %v5096
  %v5185 = vmax.f32 %v5089, %v5097
  %v5186 = vmax.f32 %v5090, %v5098
  %v5187 = vmax.f32 %v5091, %v5099
  %v5188 = vmax.f32 %v5092, %v5100
  %v5189 = vmax.f32 %v5093, %v5101
  %v5190 = vmax.f32 %v5102, %v5110
  %v5191 = vmax.f32 %v5103, %v5111
  %v5192 = vmax.f32 %v5104, %v5112
  %v5193 = vmax.f32 %v5105, %v5113
  %v5194 = vmax.f32 %v5106, %v5114
  %v5195 = vmax.f32 %v5107, %v5115
  %v5196 = vmax.f32 %v5108, %v5116
  %v5197 = vmax.f32 %v5109, %v5117
  %v5198 = vmax.f32 %v5118, %v5126
  %v5199 = vmax.f32 %v5119, %v5127
  %v5200 = vmax.f32 %v5120, %v5128
  %v5201 = vmax.f32 %v5121, %v5129
  %v5202 = vmax.f32 %v5122, %v5130
  %v5203 = vmax.f32 %v5123, %v5131
  %v5204 = vmax.f32 %v5124, %v5132
  %v5205 = vmax.f32 %v5125, %v5133
  %v5206 = vmax.f32 %v5134, %v5142
  %v5207 = vmax.f32 %v5135, %v5143
  %v5208 = vmax.f32 %v5136, %v5144
  %v5209 = vmax.f32 %v5137, %v5145
  %v5210 = vmax.f32 %v5138, %v5146
  %v5211 = vmax.f32 %v5139, %v5147
  %v5212 = vmax.f32 %v5140, %v5148
  %v5213 = vmax.f32 %v5141, %v5149
  %v5278 = vperm.slane %v5150, 0
  %v5279 = vperm.slane %v5151, 0
  %v5280 = vperm.slane %v5152, 0
  %v5281 = vperm.slane %v5153, 0
  %v5282 = vperm.slane %v5154, 0
  %v5283 = vperm.slane %v5155, 0
  %v5284 = vperm.slane %v5156, 0
  %v5285 = vperm.slane %v5157, 0
  %v5286 = vperm.slane %v5158, 0
  %v5287 = vperm.slane %v5159, 0
  %v5288 = vperm.slane %v5160, 0
  %v5289 = vperm.slane %v5161, 0
  %v5290 = vperm.slane %v5162, 0
  %v5291 = vperm.slane %v5163, 0
  %v5292 = vperm.slane %v5164, 0
  %v5293 = vperm.slane %v5165, 0
  %v5294 = vperm.slane %v5166, 0
  %v5295 = vperm.slane %v5167, 0
  %v5296 = vperm.slane %v5168, 0
  %v5297 = vperm.slane %v5169, 0
  %v5298 = vperm.slane %v5170, 0
  %v5299 = vperm.slane %v5171, 0
  %v5300 = vperm.slane %v5172, 0
  %v5301 = vperm.slane %v5173, 0
  %v5302 = vperm.slane %v5174, 0
  %v5303 = vperm.slane %v5175, 0
  %v5304 = vperm.slane %v5176, 0
  %v5305 = vperm.slane %v5177, 0
  %v5306 = vperm.slane %v5178, 0
  %v5307 = vperm.slane %v5179, 0
  %v5308 = vperm.slane %v5180, 0
  %v5309 = vperm.slane %v5181, 0
  %v5310 = vperm.slane %v5182, 0
  %v5311 = vperm.slane %v5183, 0
  %v5312 = vperm.slane %v5184, 0
  %v5313 = vperm.slane %v5185, 0
  %v5314 = vperm.slane %v5186, 0
  %v5315 = vperm.slane %v5187, 0
  %v5316 = vperm.slane %v5188, 0
  %v5317 = vperm.slane %v5189, 0
  %v5318 = vperm.slane %v5190, 0
  %v5319 = vperm.slane %v5191, 0
  %v5320 = vperm.slane %v5192, 0
  %v5321 = vperm.slane %v5193, 0
  %v5322 = vperm.slane %v5194, 0
  %v5323 = vperm.slane %v5195, 0
  %v5324 = vperm.slane %v5196, 0
  %v5325 = vperm.slane %v5197, 0
  %v5326 = vperm.slane %v5198, 0
  %v5327 = vperm.slane %v5199, 0
  %v5328 = vperm.slane %v5200, 0
  %v5329 = vperm.slane %v5201, 0
  %v5330 = vperm.slane %v5202, 0
  %v5331 = vperm.slane %v5203, 0
  %v5332 = vperm.slane %v5204, 0
  %v5333 = vperm.slane %v5205, 0
  %v5334 = vperm.slane %v5206, 0
  %v5335 = vperm.slane %v5207, 0
  %v5336 = vperm.slane %v5208, 0
  %v5337 = vperm.slane %v5209, 0
  %v5338 = vperm.slane %v5210, 0
  %v5339 = vperm.slane %v5211, 0
  %v5340 = vperm.slane %v5212, 0
  %v5341 = vperm.slane %v5213, 0
  %v5342 = vsel %vm2782, %v5279, %v5278
  %v5343 = vsel %vm2784, %v5280, %v5342
  %v5344 = vsel %vm2786, %v5281, %v5343
  %v5345 = vsel %vm2788, %v5282, %v5344
  %v5346 = vsel %vm2790, %v5283, %v5345
  %v5347 = vsel %vm2792, %v5284, %v5346
  %v5348 = vsel %vm2794, %v5285, %v5347
  %v5349 = vsel %vm2782, %v5287, %v5286
  %v5350 = vsel %vm2784, %v5288, %v5349
  %v5351 = vsel %vm2786, %v5289, %v5350
  %v5352 = vsel %vm2788, %v5290, %v5351
  %v5353 = vsel %vm2790, %v5291, %v5352
  %v5354 = vsel %vm2792, %v5292, %v5353
  %v5355 = vsel %vm2794, %v5293, %v5354
  %v5356 = vsel %vm2782, %v5295, %v5294
  %v5357 = vsel %vm2784, %v5296, %v5356
  %v5358 = vsel %vm2786, %v5297, %v5357
  %v5359 = vsel %vm2788, %v5298, %v5358
  %v5360 = vsel %vm2790, %v5299, %v5359
  %v5361 = vsel %vm2792, %v5300, %v5360
  %v5362 = vsel %vm2794, %v5301, %v5361
  %v5363 = vsel %vm2782, %v5303, %v5302
  %v5364 = vsel %vm2784, %v5304, %v5363
  %v5365 = vsel %vm2786, %v5305, %v5364
  %v5366 = vsel %vm2788, %v5306, %v5365
  %v5367 = vsel %vm2790, %v5307, %v5366
  %v5368 = vsel %vm2792, %v5308, %v5367
  %v5369 = vsel %vm2794, %v5309, %v5368
  %v5370 = vsel %vm2782, %v5311, %v5310
  %v5371 = vsel %vm2784, %v5312, %v5370
  %v5372 = vsel %vm2786, %v5313, %v5371
  %v5373 = vsel %vm2788, %v5314, %v5372
  %v5374 = vsel %vm2790, %v5315, %v5373
  %v5375 = vsel %vm2792, %v5316, %v5374
  %v5376 = vsel %vm2794, %v5317, %v5375
  %v5377 = vsel %vm2782, %v5319, %v5318
  %v5378 = vsel %vm2784, %v5320, %v5377
  %v5379 = vsel %vm2786, %v5321, %v5378
  %v5380 = vsel %vm2788, %v5322, %v5379
  %v5381 = vsel %vm2790, %v5323, %v5380
  %v5382 = vsel %vm2792, %v5324, %v5381
  %v5383 = vsel %vm2794, %v5325, %v5382
  %v5384 = vsel %vm2782, %v5327, %v5326
  %v5385 = vsel %vm2784, %v5328, %v5384
  %v5386 = vsel %vm2786, %v5329, %v5385
  %v5387 = vsel %vm2788, %v5330, %v5386
  %v5388 = vsel %vm2790, %v5331, %v5387
  %v5389 = vsel %vm2792, %v5332, %v5388
  %v5390 = vsel %vm2794, %v5333, %v5389
  %v5391 = vsel %vm2782, %v5335, %v5334
  %v5392 = vsel %vm2784, %v5336, %v5391
  %v5393 = vsel %vm2786, %v5337, %v5392
  %v5394 = vsel %vm2788, %v5338, %v5393
  %v5395 = vsel %vm2790, %v5339, %v5394
  %v5396 = vsel %vm2792, %v5340, %v5395
  %v5397 = vsel %vm2794, %v5341, %v5396
  %s5406 = scalar_lea.vmem [#allocation3], 80
  %5407 = vst.msk [vmem:[%s5406 + $0x1] sm:$0xff] %vm109, %v5348
  %5408 = vst.msk [vmem:[%s5406 + $0x11] sm:$0xff] %vm109, %v5355
  %5409 = vst.msk [vmem:[%s5406 + $0x21] sm:$0xff] %vm109, %v5362
  %5410 = vst.msk [vmem:[%s5406 + $0x31] sm:$0xff] %vm109, %v5369
  %5411 = vst.msk [vmem:[%s5406 + $0xa1] sm:$0xff] %vm109, %v5376
  %5412 = vst.msk [vmem:[%s5406 + $0xb1] sm:$0xff] %vm109, %v5383
  %5413 = vst.msk [vmem:[%s5406 + $0xc1] sm:$0xff] %vm109, %v5390
  %5414 = vst.msk [vmem:[%s5406 + $0xd1] sm:$0xff] %vm109, %v5397
  %v5415 = vld [vmem:[#allocation3] sm:$0xff]
  %v5416 = vld [vmem:[#allocation3 + $0x8] sm:$0x3]
  %v5417 = vld [vmem:[#allocation3 + $0x10] sm:$0xff]
  %v5418 = vld [vmem:[#allocation3 + $0x18] sm:$0x3]
  %v5419 = vld [vmem:[#allocation3 + $0x20] sm:$0xff]
  %v5420 = vld [vmem:[#allocation3 + $0x28] sm:$0x3]
  %v5421 = vld [vmem:[#allocation3 + $0x30] sm:$0xff]
  %v5422 = vld [vmem:[#allocation3 + $0x38] sm:$0x3]
  %v5423 = vld [vmem:[#allocation3 + $0x40] sm:$0xff]
  %v5424 = vld [vmem:[#allocation3 + $0x48] sm:$0x3]
  %v5425 = vld [vmem:[#allocation3 + $0x50] sm:$0xff]
  %v5426 = vld [vmem:[#allocation3 + $0x58] sm:$0x3]
  %v5427 = vld [vmem:[#allocation3 + $0xa0] sm:$0xff]
  %v5428 = vld [vmem:[#allocation3 + $0xa8] sm:$0x3]
  %v5429 = vld [vmem:[#allocation3 + $0xb0] sm:$0xff]
  %v5430 = vld [vmem:[#allocation3 + $0xb8] sm:$0x3]
  %v5431 = vld [vmem:[#allocation3 + $0xc0] sm:$0xff]
  %v5432 = vld [vmem:[#allocation3 + $0xc8] sm:$0x3]
  %v5433 = vld [vmem:[#allocation3 + $0xd0] sm:$0xff]
  %v5434 = vld [vmem:[#allocation3 + $0xd8] sm:$0x3]
  %v5435 = vld [vmem:[#allocation3 + $0xe0] sm:$0xff]
  %v5436 = vld [vmem:[#allocation3 + $0xe8] sm:$0x3]
  %v5437 = vld [vmem:[#allocation3 + $0xf0] sm:$0xff]
  %v5438 = vld [vmem:[#allocation3 + $0xf8] sm:$0x3]
  %v5455 = vrot.slane %v5415, 1
  %v5456 = vrot.slane %v5416, 1
  %v5457 = vsel %vm398, %v5455, %v5456
  %v5458 = vrot.slane %v5417, 1
  %v5459 = vrot.slane %v5418, 1
  %v5460 = vsel %vm398, %v5458, %v5459
  %v5461 = vrot.slane %v5419, 1
  %v5462 = vrot.slane %v5420, 1
  %v5463 = vsel %vm398, %v5461, %v5462
  %v5464 = vrot.slane %v5421, 1
  %v5465 = vrot.slane %v5422, 1
  %v5466 = vsel %vm398, %v5464, %v5465
  %v5467 = vrot.slane %v5427, 1
  %v5468 = vrot.slane %v5428, 1
  %v5469 = vsel %vm398, %v5467, %v5468
  %v5470 = vrot.slane %v5429, 1
  %v5471 = vrot.slane %v5430, 1
  %v5472 = vsel %vm398, %v5470, %v5471
  %v5473 = vrot.slane %v5431, 1
  %v5474 = vrot.slane %v5432, 1
  %v5475 = vsel %vm398, %v5473, %v5474
  %v5476 = vrot.slane %v5433, 1
  %v5477 = vrot.slane %v5434, 1
  %v5478 = vsel %vm398, %v5476, %v5477
  %5479 = vrot.lane.b32.xlu0 %v5457, 32
  %v5480 = vpop.permute.xlu0 %5479
  %5481 = vrot.lane.b32.xlu0 %v5460, 32
  %v5482 = vpop.permute.xlu0 %5481
  %5483 = vrot.lane.b32.xlu0 %v5463, 32
  %v5484 = vpop.permute.xlu0 %5483
  %5485 = vrot.lane.b32.xlu0 %v5466, 32
  %v5486 = vpop.permute.xlu0 %5485
  %5487 = vrot.lane.b32.xlu0 %v5469, 32
  %v5488 = vpop.permute.xlu0 %5487
  %5489 = vrot.lane.b32.xlu0 %v5472, 32
  %v5490 = vpop.permute.xlu0 %5489
  %5491 = vrot.lane.b32.xlu0 %v5475, 32
  %v5492 = vpop.permute.xlu0 %5491
  %5493 = vrot.lane.b32.xlu0 %v5478, 32
  %v5494 = vpop.permute.xlu0 %5493
  %v5503 = vrot.slane %v5415, 2
  %v5504 = vrot.slane %v5416, 2
  %v5505 = vsel %vm575, %v5503, %v5504
  %v5506 = vrot.slane %v5417, 2
  %v5507 = vrot.slane %v5418, 2
  %v5508 = vsel %vm575, %v5506, %v5507
  %v5509 = vrot.slane %v5419, 2
  %v5510 = vrot.slane %v5420, 2
  %v5511 = vsel %vm575, %v5509, %v5510
  %v5512 = vrot.slane %v5421, 2
  %v5513 = vrot.slane %v5422, 2
  %v5514 = vsel %vm575, %v5512, %v5513
  %v5515 = vrot.slane %v5427, 2
  %v5516 = vrot.slane %v5428, 2
  %v5517 = vsel %vm575, %v5515, %v5516
  %v5518 = vrot.slane %v5429, 2
  %v5519 = vrot.slane %v5430, 2
  %v5520 = vsel %vm575, %v5518, %v5519
  %v5521 = vrot.slane %v5431, 2
  %v5522 = vrot.slane %v5432, 2
  %v5523 = vsel %vm575, %v5521, %v5522
  %v5524 = vrot.slane %v5433, 2
  %v5525 = vrot.slane %v5434, 2
  %v5526 = vsel %vm575, %v5524, %v5525
  %5527 = vrot.lane.b32.xlu0 %v5505, 64
  %v5528 = vpop.permute.xlu0 %5527
  %5529 = vrot.lane.b32.xlu0 %v5508, 64
  %v5530 = vpop.permute.xlu0 %5529
  %5531 = vrot.lane.b32.xlu0 %v5511, 64
  %v5532 = vpop.permute.xlu0 %5531
  %5533 = vrot.lane.b32.xlu0 %v5514, 64
  %v5534 = vpop.permute.xlu0 %5533
  %5535 = vrot.lane.b32.xlu0 %v5517, 64
  %v5536 = vpop.permute.xlu0 %5535
  %5537 = vrot.lane.b32.xlu0 %v5520, 64
  %v5538 = vpop.permute.xlu0 %5537
  %5539 = vrot.lane.b32.xlu0 %v5523, 64
  %v5540 = vpop.permute.xlu0 %5539
  %5541 = vrot.lane.b32.xlu0 %v5526, 64
  %v5542 = vpop.permute.xlu0 %5541
  %5553 = vrot.lane.b32.xlu0 %v5417, 96
  %v5554 = vpop.permute.xlu0 %5553
  %5555 = vrot.lane.b32.xlu0 %v5419, 96
  %v5556 = vpop.permute.xlu0 %5555
  %5557 = vrot.lane.b32.xlu0 %v5421, 96
  %v5558 = vpop.permute.xlu0 %5557
  %5559 = vrot.lane.b32.xlu0 %v5423, 96
  %v5560 = vpop.permute.xlu0 %5559
  %5561 = vrot.lane.b32.xlu0 %v5429, 96
  %v5562 = vpop.permute.xlu0 %5561
  %5563 = vrot.lane.b32.xlu0 %v5431, 96
  %v5564 = vpop.permute.xlu0 %5563
  %5565 = vrot.lane.b32.xlu0 %v5433, 96
  %v5566 = vpop.permute.xlu0 %5565
  %5567 = vrot.lane.b32.xlu0 %v5435, 96
  %v5568 = vpop.permute.xlu0 %5567
  %v5579 = vrot.slane %v5423, 1
  %v5580 = vrot.slane %v5424, 1
  %v5581 = vsel %vm398, %v5579, %v5580
  %v5582 = vrot.slane %v5435, 1
  %v5583 = vrot.slane %v5436, 1
  %v5584 = vsel %vm398, %v5582, %v5583
  %v5593 = vrot.slane %v5423, 2
  %v5594 = vrot.slane %v5424, 2
  %v5595 = vsel %vm575, %v5593, %v5594
  %v5596 = vrot.slane %v5435, 2
  %v5597 = vrot.slane %v5436, 2
  %v5598 = vsel %vm575, %v5596, %v5597
  %5599 = vrot.lane.b32.xlu0 %v5508, 32
  %v5600 = vpop.permute.xlu0 %5599
  %5601 = vrot.lane.b32.xlu0 %v5511, 32
  %v5602 = vpop.permute.xlu0 %5601
  %5603 = vrot.lane.b32.xlu0 %v5514, 32
  %v5604 = vpop.permute.xlu0 %5603
  %5605 = vrot.lane.b32.xlu0 %v5595, 32
  %v5606 = vpop.permute.xlu0 %5605
  %5607 = vrot.lane.b32.xlu0 %v5520, 32
  %v5608 = vpop.permute.xlu0 %5607
  %5609 = vrot.lane.b32.xlu0 %v5523, 32
  %v5610 = vpop.permute.xlu0 %5609
  %5611 = vrot.lane.b32.xlu0 %v5526, 32
  %v5612 = vpop.permute.xlu0 %5611
  %5613 = vrot.lane.b32.xlu0 %v5598, 32
  %v5614 = vpop.permute.xlu0 %5613
  %5625 = vrot.lane.b32.xlu0 %v5419, 64
  %v5626 = vpop.permute.xlu0 %5625
  %5627 = vrot.lane.b32.xlu0 %v5421, 64
  %v5628 = vpop.permute.xlu0 %5627
  %5629 = vrot.lane.b32.xlu0 %v5423, 64
  %v5630 = vpop.permute.xlu0 %5629
  %5631 = vrot.lane.b32.xlu0 %v5425, 64
  %v5632 = vpop.permute.xlu0 %5631
  %5633 = vrot.lane.b32.xlu0 %v5431, 64
  %v5634 = vpop.permute.xlu0 %5633
  %5635 = vrot.lane.b32.xlu0 %v5433, 64
  %v5636 = vpop.permute.xlu0 %5635
  %5637 = vrot.lane.b32.xlu0 %v5435, 64
  %v5638 = vpop.permute.xlu0 %5637
  %5639 = vrot.lane.b32.xlu0 %v5437, 64
  %v5640 = vpop.permute.xlu0 %5639
  %v5651 = vrot.slane %v5425, 1
  %v5652 = vrot.slane %v5426, 1
  %v5653 = vsel %vm398, %v5651, %v5652
  %v5654 = vrot.slane %v5437, 1
  %v5655 = vrot.slane %v5438, 1
  %v5656 = vsel %vm398, %v5654, %v5655
  %5657 = vrot.lane.b32.xlu0 %v5463, 96
  %v5658 = vpop.permute.xlu0 %5657
  %5659 = vrot.lane.b32.xlu0 %v5466, 96
  %v5660 = vpop.permute.xlu0 %5659
  %5661 = vrot.lane.b32.xlu0 %v5581, 96
  %v5662 = vpop.permute.xlu0 %5661
  %5663 = vrot.lane.b32.xlu0 %v5653, 96
  %v5664 = vpop.permute.xlu0 %5663
  %5665 = vrot.lane.b32.xlu0 %v5475, 96
  %v5666 = vpop.permute.xlu0 %5665
  %5667 = vrot.lane.b32.xlu0 %v5478, 96
  %v5668 = vpop.permute.xlu0 %5667
  %5669 = vrot.lane.b32.xlu0 %v5584, 96
  %v5670 = vpop.permute.xlu0 %5669
  %5671 = vrot.lane.b32.xlu0 %v5656, 96
  %v5672 = vpop.permute.xlu0 %5671
  %v5681 = vrot.slane %v5425, 2
  %v5682 = vrot.slane %v5426, 2
  %v5683 = vsel %vm575, %v5681, %v5682
  %v5684 = vrot.slane %v5437, 2
  %v5685 = vrot.slane %v5438, 2
  %v5686 = vsel %vm575, %v5684, %v5685
  %v5695 = vsel %vm109, %v5415, %v5480
  %v5696 = vsel %vm109, %v5417, %v5482
  %v5697 = vsel %vm109, %v5419, %v5484
  %v5698 = vsel %vm109, %v5421, %v5486
  %v5699 = vsel %vm109, %v5427, %v5488
  %v5700 = vsel %vm109, %v5429, %v5490
  %v5701 = vsel %vm109, %v5431, %v5492
  %v5702 = vsel %vm109, %v5433, %v5494
  %vm5703 = vcmask 523264
  %v5704 = vsel %vm5703, %v5695, %v5528
  %v5705 = vsel %vm5703, %v5696, %v5530
  %v5706 = vsel %vm5703, %v5697, %v5532
  %v5707 = vsel %vm5703, %v5698, %v5534
  %v5708 = vsel %vm5703, %v5699, %v5536
  %v5709 = vsel %vm5703, %v5700, %v5538
  %v5710 = vsel %vm5703, %v5701, %v5540
  %v5711 = vsel %vm5703, %v5702, %v5542
  %vm5712 = vcmask 785408
  %v5713 = vsel %vm5712, %v5704, %v5554
  %v5714 = vsel %vm5712, %v5705, %v5556
  %v5715 = vsel %vm5712, %v5706, %v5558
  %v5716 = vsel %vm5712, %v5707, %v5560
  %v5717 = vsel %vm5712, %v5708, %v5562
  %v5718 = vsel %vm5712, %v5709, %v5564
  %v5719 = vsel %vm5712, %v5710, %v5566
  %v5720 = vsel %vm5712, %v5711, %v5568
  %v5721 = vsel %vm109, %v5460, %v5600
  %v5722 = vsel %vm109, %v5463, %v5602
  %v5723 = vsel %vm109, %v5466, %v5604
  %v5724 = vsel %vm109, %v5581, %v5606
  %v5725 = vsel %vm109, %v5472, %v5608
  %v5726 = vsel %vm109, %v5475, %v5610
  %v5727 = vsel %vm109, %v5478, %v5612
  %v5728 = vsel %vm109, %v5584, %v5614
  %v5729 = vsel %vm5703, %v5721, %v5626
  %v5730 = vsel %vm5703, %v5722, %v5628
  %v5731 = vsel %vm5703, %v5723, %v5630
  %v5732 = vsel %vm5703, %v5724, %v5632
  %v5733 = vsel %vm5703, %v5725, %v5634
  %v5734 = vsel %vm5703, %v5726, %v5636
  %v5735 = vsel %vm5703, %v5727, %v5638
  %v5736 = vsel %vm5703, %v5728, %v5640
  %v5737 = vsel %vm5712, %v5729, %v5658
  %v5738 = vsel %vm5712, %v5730, %v5660
  %v5739 = vsel %vm5712, %v5731, %v5662
  %v5740 = vsel %vm5712, %v5732, %v5664
  %v5741 = vsel %vm5712, %v5733, %v5666
  %v5742 = vsel %vm5712, %v5734, %v5668
  %v5743 = vsel %vm5712, %v5735, %v5670
  %v5744 = vsel %vm5712, %v5736, %v5672
  %v5745 = vpack.c.bf16 %v5714, %v5713
  %v5746 = vpack.c.bf16 %v5738, %v5737
  %v5747 = vpack.c.bf16 %v5514, %v5511
  %v5748 = vpack.c.bf16 %v5716, %v5715
  %v5749 = vpack.c.bf16 %v5740, %v5739
  %v5750 = vpack.c.bf16 %v5683, %v5595
  %v5751 = vpack.c.bf16 %v5718, %v5717
  %v5752 = vpack.c.bf16 %v5742, %v5741
  %v5753 = vpack.c.bf16 %v5526, %v5523
  %v5754 = vpack.c.bf16 %v5720, %v5719
  %v5755 = vpack.c.bf16 %v5744, %v5743
  %v5756 = vpack.c.bf16 %v5686, %v5598
  %v5757 = vld [vmem:[%s3] sm:$0xf]
  %v5758 = vld [vmem:[%s3 + $0x4] sm:$0xf]
  %v5759 = vld [vmem:[%s3 + $0x8] sm:$0xf]
  %v5760 = vld [vmem:[%s3 + $0xc] sm:$0xf]
  %v5761 = vld [vmem:[%s3 + $0x10] sm:$0xf]
  %v5762 = vld [vmem:[%s3 + $0x14] sm:$0xf]
  %v5763 = vld [vmem:[%s3 + $0x18] sm:$0xf]
  %v5764 = vld [vmem:[%s3 + $0x1c] sm:$0xf]
  %v5765 = vld [vmem:[%s3 + $0x20] sm:$0xf]
  %v5766 = vld [vmem:[%s3 + $0x24] sm:$0xf]
  %v5767 = vld [vmem:[%s3 + $0x28] sm:$0xf]
  %v5768 = vld [vmem:[%s3 + $0x2c] sm:$0xf]
  %v5769 = vld [vmem:[%s3 + $0x30] sm:$0xf]
  %v5770 = vld [vmem:[%s3 + $0x34] sm:$0xf]
  %v5771 = vld [vmem:[%s3 + $0x38] sm:$0xf]
  %v5772 = vld [vmem:[%s3 + $0x3c] sm:$0xf]
  %v5773 = vld [vmem:[%s3 + $0x40] sm:$0xf]
  %v5774 = vld [vmem:[%s3 + $0x44] sm:$0xf]
  %v5775 = vld [vmem:[%s3 + $0x48] sm:$0xf]
  %v5776 = vld [vmem:[%s3 + $0x4c] sm:$0xf]
  %v5777 = vld [vmem:[%s3 + $0x50] sm:$0xf]
  %v5778 = vld [vmem:[%s3 + $0x54] sm:$0xf]
  %v5779 = vld [vmem:[%s3 + $0x58] sm:$0xf]
  %v5780 = vld [vmem:[%s3 + $0x5c] sm:$0xf]
  %v5781 = vld [vmem:[%s3 + $0x60] sm:$0xf]
  %v5782 = vld [vmem:[%s3 + $0x64] sm:$0xf]
  %v5783 = vld [vmem:[%s3 + $0x68] sm:$0xf]
  %v5784 = vld [vmem:[%s3 + $0x6c] sm:$0xf]
  %v5785 = vld [vmem:[%s3 + $0x70] sm:$0xf]
  %v5786 = vld [vmem:[%s3 + $0x74] sm:$0xf]
  %v5787 = vld [vmem:[%s3 + $0x78] sm:$0xf]
  %v5788 = vld [vmem:[%s3 + $0x7c] sm:$0xf]
  %v5789 = vld [vmem:[%s3 + $0x80] sm:$0xf]
  %v5790 = vld [vmem:[%s3 + $0x84] sm:$0xf]
  %v5791 = vld [vmem:[%s3 + $0x88] sm:$0xf]
  %v5792 = vld [vmem:[%s3 + $0x8c] sm:$0xf]
  %v5793 = vld [vmem:[%s4] sm:$0x1]
  %v5795 = vperm.slane %v5793, 0
  %v5833 = vunpack.c.l.b16 %v5757
  %v5834 = vunpack.c.l.b16 %v5758
  %v5835 = vunpack.c.l.b16 %v5759
  %v5836 = vunpack.c.l.b16 %v5760
  %v5837 = vunpack.c.l.b16 %v5761
  %v5838 = vunpack.c.l.b16 %v5762
  %v5839 = vunpack.c.l.b16 %v5763
  %v5840 = vunpack.c.l.b16 %v5764
  %v5841 = vunpack.c.l.b16 %v5765
  %v5842 = vunpack.c.l.b16 %v5766
  %v5843 = vunpack.c.l.b16 %v5767
  %v5844 = vunpack.c.l.b16 %v5768
  %v5845 = vunpack.c.l.b16 %v5769
  %v5846 = vunpack.c.l.b16 %v5770
  %v5847 = vunpack.c.l.b16 %v5771
  %v5848 = vunpack.c.l.b16 %v5772
  %v5849 = vunpack.c.l.b16 %v5773
  %v5850 = vunpack.c.l.b16 %v5774
  %v5851 = vunpack.c.l.b16 %v5775
  %v5852 = vunpack.c.l.b16 %v5776
  %v5853 = vunpack.c.l.b16 %v5777
  %v5854 = vunpack.c.l.b16 %v5778
  %v5855 = vunpack.c.l.b16 %v5779
  %v5856 = vunpack.c.l.b16 %v5780
  %v5857 = vunpack.c.l.b16 %v5781
  %v5858 = vunpack.c.l.b16 %v5782
  %v5859 = vunpack.c.l.b16 %v5783
  %v5860 = vunpack.c.l.b16 %v5784
  %v5861 = vunpack.c.l.b16 %v5785
  %v5862 = vunpack.c.l.b16 %v5786
  %v5863 = vunpack.c.l.b16 %v5787
  %v5864 = vunpack.c.l.b16 %v5788
  %v5865 = vunpack.c.l.b16 %v5789
  %v5866 = vunpack.c.l.b16 %v5790
  %v5867 = vunpack.c.l.b16 %v5791
  %v5868 = vunpack.c.l.b16 %v5792
  %v5869 = vpack.c.b16 %v5834, %v5833
  %v5870 = vpack.c.b16 %v5836, %v5835
  %v5871 = vpack.c.b16 %v5838, %v5837
  %v5872 = vpack.c.b16 %v5840, %v5839
  %v5873 = vpack.c.b16 %v5842, %v5841
  %v5874 = vpack.c.b16 %v5844, %v5843
  %v5875 = vpack.c.b16 %v5846, %v5845
  %v5876 = vpack.c.b16 %v5848, %v5847
  %v5877 = vpack.c.b16 %v5850, %v5849
  %v5878 = vpack.c.b16 %v5852, %v5851
  %v5879 = vpack.c.b16 %v5854, %v5853
  %v5880 = vpack.c.b16 %v5856, %v5855
  %v5881 = vpack.c.b16 %v5858, %v5857
  %v5882 = vpack.c.b16 %v5860, %v5859
  %v5883 = vpack.c.b16 %v5862, %v5861
  %v5884 = vpack.c.b16 %v5864, %v5863
  %v5885 = vpack.c.b16 %v5866, %v5865
  %v5886 = vpack.c.b16 %v5868, %v5867
  %v5906 = vsel %vm109, %v5747, 0
  %v5909 = vsel %vm109, %v5750, 0
  %v5912 = vsel %vm109, %v5753, 0
  %v5915 = vsel %vm109, %v5756, 0
  %5917 = vmatpush.bf16.msra.mxu0 %v5876
  %5918 = vmatpush.bf16.msra.mxu0 %v5875
  %5919 = vmatpush.bf16.msra.mxu0 %v5874
  %5920 = vmatpush.bf16.msra.mxu0 %v5873
  %5921 = vmatpush.bf16.msra.mxu0 %v5872
  %5922 = vmatpush.bf16.msra.mxu0 %v5871
  %5923 = vmatpush.bf16.msra.mxu0 %v5870
  %5924 = vmatpush.bf16.msra.mxu0 %v5869
  %5925 = vmatmul.bf16.gmra.mxu0 %v5745
  %v5926 = vpop.f32.mrf.mxu0
  %v5927 = vadd.f32 %v5795, %v5926
  %v5928 = vpop.f32.mrf.mxu0
  %v5929 = vadd.f32 %v5795, %v5928
  %5930 = vmatmul.bf16.gmra.mxu0 %v5748
  %v5931 = vpop.f32.mrf.mxu0
  %v5932 = vadd.f32 %v5795, %v5931
  %v5933 = vpop.f32.mrf.mxu0
  %v5934 = vadd.f32 %v5795, %v5933
  %5935 = vmatmul.bf16.gmra.mxu0 %v5751
  %v5936 = vpop.f32.mrf.mxu0
  %v5937 = vadd.f32 %v5795, %v5936
  %v5938 = vpop.f32.mrf.mxu0
  %v5939 = vadd.f32 %v5795, %v5938
  %5940 = vmatmul.bf16.gmra.mxu0 %v5754
  %v5941 = vpop.f32.mrf.mxu0
  %v5942 = vadd.f32 %v5795, %v5941
  %v5943 = vpop.f32.mrf.mxu0
  %v5944 = vadd.f32 %v5795, %v5943
  %5945 = vdwg.mxu0
  %5946 = vmatpush.bf16.msra.mxu0 %v5884
  %5947 = vmatpush.bf16.msra.mxu0 %v5883
  %5948 = vmatpush.bf16.msra.mxu0 %v5882
  %5949 = vmatpush.bf16.msra.mxu0 %v5881
  %5950 = vmatpush.bf16.msra.mxu0 %v5880
  %5951 = vmatpush.bf16.msra.mxu0 %v5879
  %5952 = vmatpush.bf16.msra.mxu0 %v5878
  %5953 = vmatpush.bf16.msra.mxu0 %v5877
  %5954 = vmatmul.bf16.gmra.mxu0 %v5746
  %v5955 = vpop.f32.mrf.mxu0
  %v5956 = vadd.f32 %v5927, %v5955
  %v5957 = vpop.f32.mrf.mxu0
  %v5958 = vadd.f32 %v5929, %v5957
  %5959 = vmatmul.bf16.gmra.mxu0 %v5749
  %v5960 = vpop.f32.mrf.mxu0
  %v5961 = vadd.f32 %v5932, %v5960
  %v5962 = vpop.f32.mrf.mxu0
  %v5963 = vadd.f32 %v5934, %v5962
  %5964 = vmatmul.bf16.gmra.mxu0 %v5752
  %v5965 = vpop.f32.mrf.mxu0
  %v5966 = vadd.f32 %v5937, %v5965
  %v5967 = vpop.f32.mrf.mxu0
  %v5968 = vadd.f32 %v5939, %v5967
  %5969 = vmatmul.bf16.gmra.mxu0 %v5755
  %v5970 = vpop.f32.mrf.mxu0
  %v5971 = vadd.f32 %v5942, %v5970
  %v5972 = vpop.f32.mrf.mxu0
  %v5973 = vadd.f32 %v5944, %v5972
  %5974 = vdwg.mxu0
  %5975 = vmatpush.bf16.msra.mxu0 0
  %5976 = vmatpush.bf16.msra.mxu0 0
  %5977 = vmatpush.bf16.msra.mxu0 0
  %5978 = vmatpush.bf16.msra.mxu0 0
  %5979 = vmatpush.bf16.msra.mxu0 0
  %5980 = vmatpush.bf16.msra.mxu0 0
  %5981 = vmatpush.bf16.msra.mxu0 %v5886
  %5982 = vmatpush.bf16.msra.mxu0 %v5885
  %5983 = vmatmul.bf16.gmra.mxu0 %v5906
  %v5984 = vpop.f32.mrf.mxu0
  %v5985 = vadd.f32 %v5956, %v5984
  %v5986 = vpop.f32.mrf.mxu0
  %v5987 = vadd.f32 %v5958, %v5986
  %5988 = vmatmul.bf16.gmra.mxu0 %v5909
  %v5989 = vpop.f32.mrf.mxu0
  %v5990 = vadd.f32 %v5961, %v5989
  %v5991 = vpop.f32.mrf.mxu0
  %v5992 = vadd.f32 %v5963, %v5991
  %5993 = vmatmul.bf16.gmra.mxu0 %v5912
  %v5994 = vpop.f32.mrf.mxu0
  %v5995 = vadd.f32 %v5966, %v5994
  %v5996 = vpop.f32.mrf.mxu0
  %v5997 = vadd.f32 %v5968, %v5996
  %5998 = vmatmul.bf16.gmra.mxu0 %v5915
  %v5999 = vpop.f32.mrf.mxu0
  %v6000 = vadd.f32 %v5971, %v5999
  %v6001 = vpop.f32.mrf.mxu0
  %v6002 = vadd.f32 %v5973, %v6001
  %6003 = vdwg.mxu0
  %v6004 = vmax.f32 %v5985, 0.0
  %v6005 = vmax.f32 %v5987, 0.0
  %v6006 = vmax.f32 %v5990, 0.0
  %v6007 = vmax.f32 %v5992, 0.0
  %v6008 = vmax.f32 %v5995, 0.0
  %v6009 = vmax.f32 %v5997, 0.0
  %v6010 = vmax.f32 %v6000, 0.0
  %v6011 = vmax.f32 %v6002, 0.0
  %v6020 = vrot.slane %v6004, 2
  %v6021 = vrot.slane %v6004, 4
  %v6022 = vrot.slane %v6004, 6
  %v6023 = vrot.slane %v6005, 2
  %v6024 = vrot.slane %v6005, 4
  %v6025 = vrot.slane %v6005, 6
  %v6026 = vrot.slane %v6006, 2
  %v6027 = vrot.slane %v6006, 4
  %v6028 = vrot.slane %v6006, 6
  %v6029 = vrot.slane %v6007, 2
  %v6030 = vrot.slane %v6007, 4
  %v6031 = vrot.slane %v6007, 6
  %v6032 = vrot.slane %v6008, 2
  %v6033 = vrot.slane %v6008, 4
  %v6034 = vrot.slane %v6008, 6
  %v6035 = vrot.slane %v6009, 2
  %v6036 = vrot.slane %v6009, 4
  %v6037 = vrot.slane %v6009, 6
  %v6038 = vrot.slane %v6010, 2
  %v6039 = vrot.slane %v6010, 4
  %v6040 = vrot.slane %v6010, 6
  %v6041 = vrot.slane %v6011, 2
  %v6042 = vrot.slane %v6011, 4
  %v6043 = vrot.slane %v6011, 6
  %v6068 = vrot.slane %v6004, 7
  %v6069 = vrot.slane %v6068, 2
  %v6070 = vrot.slane %v6020, 7
  %v6071 = vrot.slane %v6070, 2
  %v6072 = vrot.slane %v6021, 7
  %v6073 = vrot.slane %v6072, 2
  %v6074 = vrot.slane %v6022, 7
  %v6075 = vrot.slane %v6074, 2
  %v6076 = vrot.slane %v6005, 7
  %v6077 = vrot.slane %v6076, 2
  %v6078 = vrot.slane %v6023, 7
  %v6079 = vrot.slane %v6078, 2
  %v6080 = vrot.slane %v6024, 7
  %v6081 = vrot.slane %v6080, 2
  %v6082 = vrot.slane %v6025, 7
  %v6083 = vrot.slane %v6082, 2
  %v6084 = vrot.slane %v6006, 7
  %v6085 = vrot.slane %v6084, 2
  %v6086 = vrot.slane %v6026, 7
  %v6087 = vrot.slane %v6086, 2
  %v6088 = vrot.slane %v6027, 7
  %v6089 = vrot.slane %v6088, 2
  %v6090 = vrot.slane %v6028, 7
  %v6091 = vrot.slane %v6090, 2
  %v6092 = vrot.slane %v6007, 7
  %v6093 = vrot.slane %v6092, 2
  %v6094 = vrot.slane %v6029, 7
  %v6095 = vrot.slane %v6094, 2
  %v6096 = vrot.slane %v6030, 7
  %v6097 = vrot.slane %v6096, 2
  %v6098 = vrot.slane %v6031, 7
  %v6099 = vrot.slane %v6098, 2
  %v6100 = vrot.slane %v6008, 7
  %v6101 = vrot.slane %v6100, 2
  %v6102 = vrot.slane %v6032, 7
  %v6103 = vrot.slane %v6102, 2
  %v6104 = vrot.slane %v6033, 7
  %v6105 = vrot.slane %v6104, 2
  %v6106 = vrot.slane %v6034, 7
  %v6107 = vrot.slane %v6106, 2
  %v6108 = vrot.slane %v6009, 7
  %v6109 = vrot.slane %v6108, 2
  %v6110 = vrot.slane %v6035, 7
  %v6111 = vrot.slane %v6110, 2
  %v6112 = vrot.slane %v6036, 7
  %v6113 = vrot.slane %v6112, 2
  %v6114 = vrot.slane %v6037, 7
  %v6115 = vrot.slane %v6114, 2
  %v6116 = vrot.slane %v6010, 7
  %v6117 = vrot.slane %v6116, 2
  %v6118 = vrot.slane %v6038, 7
  %v6119 = vrot.slane %v6118, 2
  %v6120 = vrot.slane %v6039, 7
  %v6121 = vrot.slane %v6120, 2
  %v6122 = vrot.slane %v6040, 7
  %v6123 = vrot.slane %v6122, 2
  %v6124 = vrot.slane %v6011, 7
  %v6125 = vrot.slane %v6124, 2
  %v6126 = vrot.slane %v6041, 7
  %v6127 = vrot.slane %v6126, 2
  %v6128 = vrot.slane %v6042, 7
  %v6129 = vrot.slane %v6128, 2
  %v6130 = vrot.slane %v6043, 7
  %v6131 = vrot.slane %v6130, 2
  %v6164 = vmax.f32 %v6004, %v6069
  %v6165 = vmax.f32 %v6020, %v6071
  %v6166 = vmax.f32 %v6021, %v6073
  %v6167 = vmax.f32 %v6022, %v6075
  %v6168 = vmax.f32 %v6005, %v6077
  %v6169 = vmax.f32 %v6023, %v6079
  %v6170 = vmax.f32 %v6024, %v6081
  %v6171 = vmax.f32 %v6025, %v6083
  %v6172 = vmax.f32 %v6006, %v6085
  %v6173 = vmax.f32 %v6026, %v6087
  %v6174 = vmax.f32 %v6027, %v6089
  %v6175 = vmax.f32 %v6028, %v6091
  %v6176 = vmax.f32 %v6007, %v6093
  %v6177 = vmax.f32 %v6029, %v6095
  %v6178 = vmax.f32 %v6030, %v6097
  %v6179 = vmax.f32 %v6031, %v6099
  %v6180 = vmax.f32 %v6008, %v6101
  %v6181 = vmax.f32 %v6032, %v6103
  %v6182 = vmax.f32 %v6033, %v6105
  %v6183 = vmax.f32 %v6034, %v6107
  %v6184 = vmax.f32 %v6009, %v6109
  %v6185 = vmax.f32 %v6035, %v6111
  %v6186 = vmax.f32 %v6036, %v6113
  %v6187 = vmax.f32 %v6037, %v6115
  %v6188 = vmax.f32 %v6010, %v6117
  %v6189 = vmax.f32 %v6038, %v6119
  %v6190 = vmax.f32 %v6039, %v6121
  %v6191 = vmax.f32 %v6040, %v6123
  %v6192 = vmax.f32 %v6011, %v6125
  %v6193 = vmax.f32 %v6041, %v6127
  %v6194 = vmax.f32 %v6042, %v6129
  %v6195 = vmax.f32 %v6043, %v6131
  %v6196 = vmax.f32 %v6164, %v6168
  %v6197 = vmax.f32 %v6165, %v6169
  %v6198 = vmax.f32 %v6166, %v6170
  %v6199 = vmax.f32 %v6167, %v6171
  %v6200 = vmax.f32 %v6172, %v6176
  %v6201 = vmax.f32 %v6173, %v6177
  %v6202 = vmax.f32 %v6174, %v6178
  %v6203 = vmax.f32 %v6175, %v6179
  %v6204 = vmax.f32 %v6180, %v6184
  %v6205 = vmax.f32 %v6181, %v6185
  %v6206 = vmax.f32 %v6182, %v6186
  %v6207 = vmax.f32 %v6183, %v6187
  %v6208 = vmax.f32 %v6188, %v6192
  %v6209 = vmax.f32 %v6189, %v6193
  %v6210 = vmax.f32 %v6190, %v6194
  %v6211 = vmax.f32 %v6191, %v6195
  %v6212 = vpack.c.bf16 %v6196, %v6196
  %v6213 = vpack.c.bf16 %v6197, %v6197
  %v6214 = vpack.c.bf16 %v6198, %v6198
  %v6215 = vpack.c.bf16 %v6199, %v6199
  %v6216 = vpack.c.bf16 %v6200, %v6200
  %v6217 = vpack.c.bf16 %v6201, %v6201
  %v6218 = vpack.c.bf16 %v6202, %v6202
  %v6219 = vpack.c.bf16 %v6203, %v6203
  %v6220 = vpack.c.bf16 %v6204, %v6204
  %v6221 = vpack.c.bf16 %v6205, %v6205
  %v6222 = vpack.c.bf16 %v6206, %v6206
  %v6223 = vpack.c.bf16 %v6207, %v6207
  %v6224 = vpack.c.bf16 %v6208, %v6208
  %v6225 = vpack.c.bf16 %v6209, %v6209
  %v6226 = vpack.c.bf16 %v6210, %v6210
  %v6227 = vpack.c.bf16 %v6211, %v6211
  %v6244 = vunpack.c.l.b16 %v6212
  %v6245 = vunpack.c.l.b16 %v6213
  %v6246 = vunpack.c.l.b16 %v6214
  %v6247 = vunpack.c.l.b16 %v6215
  %v6248 = vunpack.c.l.b16 %v6216
  %v6249 = vunpack.c.l.b16 %v6217
  %v6250 = vunpack.c.l.b16 %v6218
  %v6251 = vunpack.c.l.b16 %v6219
  %v6252 = vunpack.c.l.b16 %v6220
  %v6253 = vunpack.c.l.b16 %v6221
  %v6254 = vunpack.c.l.b16 %v6222
  %v6255 = vunpack.c.l.b16 %v6223
  %v6256 = vunpack.c.l.b16 %v6224
  %v6257 = vunpack.c.l.b16 %v6225
  %v6258 = vunpack.c.l.b16 %v6226
  %v6259 = vunpack.c.l.b16 %v6227
  %v6260 = vrot.slane %v6245, 7
  %v6261 = vsel %vm2782, %v6260, %v6244
  %v6262 = vrot.slane %v6246, 6
  %v6263 = vsel %vm2784, %v6262, %v6261
  %v6264 = vrot.slane %v6247, 5
  %v6265 = vsel %vm2786, %v6264, %v6263
  %v6266 = vrot.slane %v6248, 4
  %v6267 = vsel %vm2788, %v6266, %v6265
  %v6268 = vrot.slane %v6249, 3
  %v6269 = vsel %vm2790, %v6268, %v6267
  %v6270 = vrot.slane %v6250, 2
  %v6271 = vsel %vm2792, %v6270, %v6269
  %v6272 = vrot.slane %v6251, 1
  %v6273 = vsel %vm2794, %v6272, %v6271
  %v6274 = vrot.slane %v6253, 7
  %v6275 = vsel %vm2782, %v6274, %v6252
  %v6276 = vrot.slane %v6254, 6
  %v6277 = vsel %vm2784, %v6276, %v6275
  %v6278 = vrot.slane %v6255, 5
  %v6279 = vsel %vm2786, %v6278, %v6277
  %v6280 = vrot.slane %v6256, 4
  %v6281 = vsel %vm2788, %v6280, %v6279
  %v6282 = vrot.slane %v6257, 3
  %v6283 = vsel %vm2790, %v6282, %v6281
  %v6284 = vrot.slane %v6258, 2
  %v6285 = vsel %vm2792, %v6284, %v6283
  %v6286 = vrot.slane %v6259, 1
  %v6287 = vsel %vm2794, %v6286, %v6285
  %v6288 = vpack.c.b16 %v6273, %v6273
  %v6289 = vpack.c.b16 %v6287, %v6287
  %vm6292 = vcmask 519168
  %6293 = vst.msk [vmem:[%s5] sm:$0xf] %vm6292, %v6288
  %6294 = vst.msk [vmem:[%s5 + $0x8] sm:$0xf] %vm6292, %v6289
  %s6295 = scalar_lea.vmem [#allocation3], 64
  %v6296 = vld [vmem:[%s6295] sm:$0xff]
  %v6297 = vld [vmem:[%s6295 + $0x8] sm:$0x3]
  %v6298 = vld [vmem:[%s6295 + $0x10] sm:$0xff]
  %v6299 = vld [vmem:[%s6295 + $0x18] sm:$0x3]
  %v6300 = vld [vmem:[%s6295 + $0x20] sm:$0xff]
  %v6301 = vld [vmem:[%s6295 + $0x28] sm:$0x3]
  %v6302 = vld [vmem:[%s6295 + $0x30] sm:$0xff]
  %v6303 = vld [vmem:[%s6295 + $0x38] sm:$0x3]
  %v6304 = vld [vmem:[%s6295 + $0x40] sm:$0xff]
  %v6305 = vld [vmem:[%s6295 + $0x48] sm:$0x3]
  %v6306 = vld [vmem:[%s6295 + $0x50] sm:$0xff]
  %v6307 = vld [vmem:[%s6295 + $0x58] sm:$0x3]
  %v6308 = vld [vmem:[%s6295 + $0xa0] sm:$0xff]
  %v6309 = vld [vmem:[%s6295 + $0xa8] sm:$0x3]
  %v6310 = vld [vmem:[%s6295 + $0xb0] sm:$0xff]
  %v6311 = vld [vmem:[%s6295 + $0xb8] sm:$0x3]
  %v6312 = vld [vmem:[%s6295 + $0xc0] sm:$0xff]
  %v6313 = vld [vmem:[%s6295 + $0xc8] sm:$0x3]
  %v6314 = vld [vmem:[%s6295 + $0xd0] sm:$0xff]
  %v6315 = vld [vmem:[%s6295 + $0xd8] sm:$0x3]
  %v6316 = vld [vmem:[%s6295 + $0xe0] sm:$0xff]
  %v6317 = vld [vmem:[%s6295 + $0xe8] sm:$0x3]
  %v6318 = vld [vmem:[%s6295 + $0xf0] sm:$0xff]
  %v6319 = vld [vmem:[%s6295 + $0xf8] sm:$0x3]
  %v6336 = vrot.slane %v6296, 1
  %v6337 = vrot.slane %v6297, 1
  %v6338 = vsel %vm398, %v6336, %v6337
  %v6339 = vrot.slane %v6298, 1
  %v6340 = vrot.slane %v6299, 1
  %v6341 = vsel %vm398, %v6339, %v6340
  %v6342 = vrot.slane %v6300, 1
  %v6343 = vrot.slane %v6301, 1
  %v6344 = vsel %vm398, %v6342, %v6343
  %v6345 = vrot.slane %v6302, 1
  %v6346 = vrot.slane %v6303, 1
  %v6347 = vsel %vm398, %v6345, %v6346
  %v6348 = vrot.slane %v6308, 1
  %v6349 = vrot.slane %v6309, 1
  %v6350 = vsel %vm398, %v6348, %v6349
  %v6351 = vrot.slane %v6310, 1
  %v6352 = vrot.slane %v6311, 1
  %v6353 = vsel %vm398, %v6351, %v6352
  %v6354 = vrot.slane %v6312, 1
  %v6355 = vrot.slane %v6313, 1
  %v6356 = vsel %vm398, %v6354, %v6355
  %v6357 = vrot.slane %v6314, 1
  %v6358 = vrot.slane %v6315, 1
  %v6359 = vsel %vm398, %v6357, %v6358
  %6360 = vrot.lane.b32.xlu0 %v6338, 32
  %v6361 = vpop.permute.xlu0 %6360
  %6362 = vrot.lane.b32.xlu0 %v6341, 32
  %v6363 = vpop.permute.xlu0 %6362
  %6364 = vrot.lane.b32.xlu0 %v6344, 32
  %v6365 = vpop.permute.xlu0 %6364
  %6366 = vrot.lane.b32.xlu0 %v6347, 32
  %v6367 = vpop.permute.xlu0 %6366
  %6368 = vrot.lane.b32.xlu0 %v6350, 32
  %v6369 = vpop.permute.xlu0 %6368
  %6370 = vrot.lane.b32.xlu0 %v6353, 32
  %v6371 = vpop.permute.xlu0 %6370
  %6372 = vrot.lane.b32.xlu0 %v6356, 32
  %v6373 = vpop.permute.xlu0 %6372
  %6374 = vrot.lane.b32.xlu0 %v6359, 32
  %v6375 = vpop.permute.xlu0 %6374
  %v6384 = vrot.slane %v6296, 2
  %v6385 = vrot.slane %v6297, 2
  %v6386 = vsel %vm575, %v6384, %v6385
  %v6387 = vrot.slane %v6298, 2
  %v6388 = vrot.slane %v6299, 2
  %v6389 = vsel %vm575, %v6387, %v6388
  %v6390 = vrot.slane %v6300, 2
  %v6391 = vrot.slane %v6301, 2
  %v6392 = vsel %vm575, %v6390, %v6391
  %v6393 = vrot.slane %v6302, 2
  %v6394 = vrot.slane %v6303, 2
  %v6395 = vsel %vm575, %v6393, %v6394
  %v6396 = vrot.slane %v6308, 2
  %v6397 = vrot.slane %v6309, 2
  %v6398 = vsel %vm575, %v6396, %v6397
  %v6399 = vrot.slane %v6310, 2
  %v6400 = vrot.slane %v6311, 2
  %v6401 = vsel %vm575, %v6399, %v6400
  %v6402 = vrot.slane %v6312, 2
  %v6403 = vrot.slane %v6313, 2
  %v6404 = vsel %vm575, %v6402, %v6403
  %v6405 = vrot.slane %v6314, 2
  %v6406 = vrot.slane %v6315, 2
  %v6407 = vsel %vm575, %v6405, %v6406
  %6408 = vrot.lane.b32.xlu0 %v6386, 64
  %v6409 = vpop.permute.xlu0 %6408
  %6410 = vrot.lane.b32.xlu0 %v6389, 64
  %v6411 = vpop.permute.xlu0 %6410
  %6412 = vrot.lane.b32.xlu0 %v6392, 64
  %v6413 = vpop.permute.xlu0 %6412
  %6414 = vrot.lane.b32.xlu0 %v6395, 64
  %v6415 = vpop.permute.xlu0 %6414
  %6416 = vrot.lane.b32.xlu0 %v6398, 64
  %v6417 = vpop.permute.xlu0 %6416
  %6418 = vrot.lane.b32.xlu0 %v6401, 64
  %v6419 = vpop.permute.xlu0 %6418
  %6420 = vrot.lane.b32.xlu0 %v6404, 64
  %v6421 = vpop.permute.xlu0 %6420
  %6422 = vrot.lane.b32.xlu0 %v6407, 64
  %v6423 = vpop.permute.xlu0 %6422
  %6434 = vrot.lane.b32.xlu0 %v6298, 96
  %v6435 = vpop.permute.xlu0 %6434
  %6436 = vrot.lane.b32.xlu0 %v6300, 96
  %v6437 = vpop.permute.xlu0 %6436
  %6438 = vrot.lane.b32.xlu0 %v6302, 96
  %v6439 = vpop.permute.xlu0 %6438
  %6440 = vrot.lane.b32.xlu0 %v6304, 96
  %v6441 = vpop.permute.xlu0 %6440
  %6442 = vrot.lane.b32.xlu0 %v6310, 96
  %v6443 = vpop.permute.xlu0 %6442
  %6444 = vrot.lane.b32.xlu0 %v6312, 96
  %v6445 = vpop.permute.xlu0 %6444
  %6446 = vrot.lane.b32.xlu0 %v6314, 96
  %v6447 = vpop.permute.xlu0 %6446
  %6448 = vrot.lane.b32.xlu0 %v6316, 96
  %v6449 = vpop.permute.xlu0 %6448
  %v6460 = vrot.slane %v6304, 1
  %v6461 = vrot.slane %v6305, 1
  %v6462 = vsel %vm398, %v6460, %v6461
  %v6463 = vrot.slane %v6316, 1
  %v6464 = vrot.slane %v6317, 1
  %v6465 = vsel %vm398, %v6463, %v6464
  %v6474 = vrot.slane %v6304, 2
  %v6475 = vrot.slane %v6305, 2
  %v6476 = vsel %vm575, %v6474, %v6475
  %v6477 = vrot.slane %v6316, 2
  %v6478 = vrot.slane %v6317, 2
  %v6479 = vsel %vm575, %v6477, %v6478
  %6480 = vrot.lane.b32.xlu0 %v6389, 32
  %v6481 = vpop.permute.xlu0 %6480
  %6482 = vrot.lane.b32.xlu0 %v6392, 32
  %v6483 = vpop.permute.xlu0 %6482
  %6484 = vrot.lane.b32.xlu0 %v6395, 32
  %v6485 = vpop.permute.xlu0 %6484
  %6486 = vrot.lane.b32.xlu0 %v6476, 32
  %v6487 = vpop.permute.xlu0 %6486
  %6488 = vrot.lane.b32.xlu0 %v6401, 32
  %v6489 = vpop.permute.xlu0 %6488
  %6490 = vrot.lane.b32.xlu0 %v6404, 32
  %v6491 = vpop.permute.xlu0 %6490
  %6492 = vrot.lane.b32.xlu0 %v6407, 32
  %v6493 = vpop.permute.xlu0 %6492
  %6494 = vrot.lane.b32.xlu0 %v6479, 32
  %v6495 = vpop.permute.xlu0 %6494
  %6506 = vrot.lane.b32.xlu0 %v6300, 64
  %v6507 = vpop.permute.xlu0 %6506
  %6508 = vrot.lane.b32.xlu0 %v6302, 64
  %v6509 = vpop.permute.xlu0 %6508
  %6510 = vrot.lane.b32.xlu0 %v6304, 64
  %v6511 = vpop.permute.xlu0 %6510
  %6512 = vrot.lane.b32.xlu0 %v6306, 64
  %v6513 = vpop.permute.xlu0 %6512
  %6514 = vrot.lane.b32.xlu0 %v6312, 64
  %v6515 = vpop.permute.xlu0 %6514
  %6516 = vrot.lane.b32.xlu0 %v6314, 64
  %v6517 = vpop.permute.xlu0 %6516
  %6518 = vrot.lane.b32.xlu0 %v6316, 64
  %v6519 = vpop.permute.xlu0 %6518
  %6520 = vrot.lane.b32.xlu0 %v6318, 64
  %v6521 = vpop.permute.xlu0 %6520
  %v6532 = vrot.slane %v6306, 1
  %v6533 = vrot.slane %v6307, 1
  %v6534 = vsel %vm398, %v6532, %v6533
  %v6535 = vrot.slane %v6318, 1
  %v6536 = vrot.slane %v6319, 1
  %v6537 = vsel %vm398, %v6535, %v6536
  %6538 = vrot.lane.b32.xlu0 %v6344, 96
  %v6539 = vpop.permute.xlu0 %6538
  %6540 = vrot.lane.b32.xlu0 %v6347, 96
  %v6541 = vpop.permute.xlu0 %6540
  %6542 = vrot.lane.b32.xlu0 %v6462, 96
  %v6543 = vpop.permute.xlu0 %6542
  %6544 = vrot.lane.b32.xlu0 %v6534, 96
  %v6545 = vpop.permute.xlu0 %6544
  %6546 = vrot.lane.b32.xlu0 %v6356, 96
  %v6547 = vpop.permute.xlu0 %6546
  %6548 = vrot.lane.b32.xlu0 %v6359, 96
  %v6549 = vpop.permute.xlu0 %6548
  %6550 = vrot.lane.b32.xlu0 %v6465, 96
  %v6551 = vpop.permute.xlu0 %6550
  %6552 = vrot.lane.b32.xlu0 %v6537, 96
  %v6553 = vpop.permute.xlu0 %6552
  %v6562 = vrot.slane %v6306, 2
  %v6563 = vrot.slane %v6307, 2
  %v6564 = vsel %vm575, %v6562, %v6563
  %v6565 = vrot.slane %v6318, 2
  %v6566 = vrot.slane %v6319, 2
  %v6567 = vsel %vm575, %v6565, %v6566
  %v6576 = vsel %vm109, %v6296, %v6361
  %v6577 = vsel %vm109, %v6298, %v6363
  %v6578 = vsel %vm109, %v6300, %v6365
  %v6579 = vsel %vm109, %v6302, %v6367
  %v6580 = vsel %vm109, %v6308, %v6369
  %v6581 = vsel %vm109, %v6310, %v6371
  %v6582 = vsel %vm109, %v6312, %v6373
  %v6583 = vsel %vm109, %v6314, %v6375
  %v6584 = vsel %vm5703, %v6576, %v6409
  %v6585 = vsel %vm5703, %v6577, %v6411
  %v6586 = vsel %vm5703, %v6578, %v6413
  %v6587 = vsel %vm5703, %v6579, %v6415
  %v6588 = vsel %vm5703, %v6580, %v6417
  %v6589 = vsel %vm5703, %v6581, %v6419
  %v6590 = vsel %vm5703, %v6582, %v6421
  %v6591 = vsel %vm5703, %v6583, %v6423
  %v6592 = vsel %vm5712, %v6584, %v6435
  %v6593 = vsel %vm5712, %v6585, %v6437
  %v6594 = vsel %vm5712, %v6586, %v6439
  %v6595 = vsel %vm5712, %v6587, %v6441
  %v6596 = vsel %vm5712, %v6588, %v6443
  %v6597 = vsel %vm5712, %v6589, %v6445
  %v6598 = vsel %vm5712, %v6590, %v6447
  %v6599 = vsel %vm5712, %v6591, %v6449
  %v6600 = vsel %vm109, %v6341, %v6481
  %v6601 = vsel %vm109, %v6344, %v6483
  %v6602 = vsel %vm109, %v6347, %v6485
  %v6603 = vsel %vm109, %v6462, %v6487
  %v6604 = vsel %vm109, %v6353, %v6489
  %v6605 = vsel %vm109, %v6356, %v6491
  %v6606 = vsel %vm109, %v6359, %v6493
  %v6607 = vsel %vm109, %v6465, %v6495
  %v6608 = vsel %vm5703, %v6600, %v6507
  %v6609 = vsel %vm5703, %v6601, %v6509
  %v6610 = vsel %vm5703, %v6602, %v6511
  %v6611 = vsel %vm5703, %v6603, %v6513
  %v6612 = vsel %vm5703, %v6604, %v6515
  %v6613 = vsel %vm5703, %v6605, %v6517
  %v6614 = vsel %vm5703, %v6606, %v6519
  %v6615 = vsel %vm5703, %v6607, %v6521
  %v6616 = vsel %vm5712, %v6608, %v6539
  %v6617 = vsel %vm5712, %v6609, %v6541
  %v6618 = vsel %vm5712, %v6610, %v6543
  %v6619 = vsel %vm5712, %v6611, %v6545
  %v6620 = vsel %vm5712, %v6612, %v6547
  %v6621 = vsel %vm5712, %v6613, %v6549
  %v6622 = vsel %vm5712, %v6614, %v6551
  %v6623 = vsel %vm5712, %v6615, %v6553
  %v6624 = vpack.c.bf16 %v6593, %v6592
  %v6625 = vpack.c.bf16 %v6617, %v6616
  %v6626 = vpack.c.bf16 %v6395, %v6392
  %v6627 = vpack.c.bf16 %v6595, %v6594
  %v6628 = vpack.c.bf16 %v6619, %v6618
  %v6629 = vpack.c.bf16 %v6564, %v6476
  %v6630 = vpack.c.bf16 %v6597, %v6596
  %v6631 = vpack.c.bf16 %v6621, %v6620
  %v6632 = vpack.c.bf16 %v6407, %v6404
  %v6633 = vpack.c.bf16 %v6599, %v6598
  %v6634 = vpack.c.bf16 %v6623, %v6622
  %v6635 = vpack.c.bf16 %v6567, %v6479
  %v6636 = vld [vmem:[%s3] sm:$0xf]
  %v6637 = vld [vmem:[%s3 + $0x4] sm:$0xf]
  %v6638 = vld [vmem:[%s3 + $0x8] sm:$0xf]
  %v6639 = vld [vmem:[%s3 + $0xc] sm:$0xf]
  %v6640 = vld [vmem:[%s3 + $0x10] sm:$0xf]
  %v6641 = vld [vmem:[%s3 + $0x14] sm:$0xf]
  %v6642 = vld [vmem:[%s3 + $0x18] sm:$0xf]
  %v6643 = vld [vmem:[%s3 + $0x1c] sm:$0xf]
  %v6644 = vld [vmem:[%s3 + $0x20] sm:$0xf]
  %v6645 = vld [vmem:[%s3 + $0x24] sm:$0xf]
  %v6646 = vld [vmem:[%s3 + $0x28] sm:$0xf]
  %v6647 = vld [vmem:[%s3 + $0x2c] sm:$0xf]
  %v6648 = vld [vmem:[%s3 + $0x30] sm:$0xf]
  %v6649 = vld [vmem:[%s3 + $0x34] sm:$0xf]
  %v6650 = vld [vmem:[%s3 + $0x38] sm:$0xf]
  %v6651 = vld [vmem:[%s3 + $0x3c] sm:$0xf]
  %v6652 = vld [vmem:[%s3 + $0x40] sm:$0xf]
  %v6653 = vld [vmem:[%s3 + $0x44] sm:$0xf]
  %v6654 = vld [vmem:[%s3 + $0x48] sm:$0xf]
  %v6655 = vld [vmem:[%s3 + $0x4c] sm:$0xf]
  %v6656 = vld [vmem:[%s3 + $0x50] sm:$0xf]
  %v6657 = vld [vmem:[%s3 + $0x54] sm:$0xf]
  %v6658 = vld [vmem:[%s3 + $0x58] sm:$0xf]
  %v6659 = vld [vmem:[%s3 + $0x5c] sm:$0xf]
  %v6660 = vld [vmem:[%s3 + $0x60] sm:$0xf]
  %v6661 = vld [vmem:[%s3 + $0x64] sm:$0xf]
  %v6662 = vld [vmem:[%s3 + $0x68] sm:$0xf]
  %v6663 = vld [vmem:[%s3 + $0x6c] sm:$0xf]
  %v6664 = vld [vmem:[%s3 + $0x70] sm:$0xf]
  %v6665 = vld [vmem:[%s3 + $0x74] sm:$0xf]
  %v6666 = vld [vmem:[%s3 + $0x78] sm:$0xf]
  %v6667 = vld [vmem:[%s3 + $0x7c] sm:$0xf]
  %v6668 = vld [vmem:[%s3 + $0x80] sm:$0xf]
  %v6669 = vld [vmem:[%s3 + $0x84] sm:$0xf]
  %v6670 = vld [vmem:[%s3 + $0x88] sm:$0xf]
  %v6671 = vld [vmem:[%s3 + $0x8c] sm:$0xf]
  %v6672 = vld [vmem:[%s4] sm:$0x1]
  %v6674 = vperm.slane %v6672, 0
  %v6712 = vunpack.c.l.b16 %v6636
  %v6713 = vunpack.c.l.b16 %v6637
  %v6714 = vunpack.c.l.b16 %v6638
  %v6715 = vunpack.c.l.b16 %v6639
  %v6716 = vunpack.c.l.b16 %v6640
  %v6717 = vunpack.c.l.b16 %v6641
  %v6718 = vunpack.c.l.b16 %v6642
  %v6719 = vunpack.c.l.b16 %v6643
  %v6720 = vunpack.c.l.b16 %v6644
  %v6721 = vunpack.c.l.b16 %v6645
  %v6722 = vunpack.c.l.b16 %v6646
  %v6723 = vunpack.c.l.b16 %v6647
  %v6724 = vunpack.c.l.b16 %v6648
  %v6725 = vunpack.c.l.b16 %v6649
  %v6726 = vunpack.c.l.b16 %v6650
  %v6727 = vunpack.c.l.b16 %v6651
  %v6728 = vunpack.c.l.b16 %v6652
  %v6729 = vunpack.c.l.b16 %v6653
  %v6730 = vunpack.c.l.b16 %v6654
  %v6731 = vunpack.c.l.b16 %v6655
  %v6732 = vunpack.c.l.b16 %v6656
  %v6733 = vunpack.c.l.b16 %v6657
  %v6734 = vunpack.c.l.b16 %v6658
  %v6735 = vunpack.c.l.b16 %v6659
  %v6736 = vunpack.c.l.b16 %v6660
  %v6737 = vunpack.c.l.b16 %v6661
  %v6738 = vunpack.c.l.b16 %v6662
  %v6739 = vunpack.c.l.b16 %v6663
  %v6740 = vunpack.c.l.b16 %v6664
  %v6741 = vunpack.c.l.b16 %v6665
  %v6742 = vunpack.c.l.b16 %v6666
  %v6743 = vunpack.c.l.b16 %v6667
  %v6744 = vunpack.c.l.b16 %v6668
  %v6745 = vunpack.c.l.b16 %v6669
  %v6746 = vunpack.c.l.b16 %v6670
  %v6747 = vunpack.c.l.b16 %v6671
  %v6748 = vpack.c.b16 %v6713, %v6712
  %v6749 = vpack.c.b16 %v6715, %v6714
  %v6750 = vpack.c.b16 %v6717, %v6716
  %v6751 = vpack.c.b16 %v6719, %v6718
  %v6752 = vpack.c.b16 %v6721, %v6720
  %v6753 = vpack.c.b16 %v6723, %v6722
  %v6754 = vpack.c.b16 %v6725, %v6724
  %v6755 = vpack.c.b16 %v6727, %v6726
  %v6756 = vpack.c.b16 %v6729, %v6728
  %v6757 = vpack.c.b16 %v6731, %v6730
  %v6758 = vpack.c.b16 %v6733, %v6732
  %v6759 = vpack.c.b16 %v6735, %v6734
  %v6760 = vpack.c.b16 %v6737, %v6736
  %v6761 = vpack.c.b16 %v6739, %v6738
  %v6762 = vpack.c.b16 %v6741, %v6740
  %v6763 = vpack.c.b16 %v6743, %v6742
  %v6764 = vpack.c.b16 %v6745, %v6744
  %v6765 = vpack.c.b16 %v6747, %v6746
  %v6785 = vsel %vm109, %v6626, 0
  %v6788 = vsel %vm109, %v6629, 0
  %v6791 = vsel %vm109, %v6632, 0
  %v6794 = vsel %vm109, %v6635, 0
  %6796 = vmatpush.bf16.msra.mxu0 %v6755
  %6797 = vmatpush.bf16.msra.mxu0 %v6754
  %6798 = vmatpush.bf16.msra.mxu0 %v6753
  %6799 = vmatpush.bf16.msra.mxu0 %v6752
  %6800 = vmatpush.bf16.msra.mxu0 %v6751
  %6801 = vmatpush.bf16.msra.mxu0 %v6750
  %6802 = vmatpush.bf16.msra.mxu0 %v6749
  %6803 = vmatpush.bf16.msra.mxu0 %v6748
  %6804 = vmatmul.bf16.gmra.mxu0 %v6624
  %v6805 = vpop.f32.mrf.mxu0
  %v6806 = vadd.f32 %v6674, %v6805
  %v6807 = vpop.f32.mrf.mxu0
  %v6808 = vadd.f32 %v6674, %v6807
  %6809 = vmatmul.bf16.gmra.mxu0 %v6627
  %v6810 = vpop.f32.mrf.mxu0
  %v6811 = vadd.f32 %v6674, %v6810
  %v6812 = vpop.f32.mrf.mxu0
  %v6813 = vadd.f32 %v6674, %v6812
  %6814 = vmatmul.bf16.gmra.mxu0 %v6630
  %v6815 = vpop.f32.mrf.mxu0
  %v6816 = vadd.f32 %v6674, %v6815
  %v6817 = vpop.f32.mrf.mxu0
  %v6818 = vadd.f32 %v6674, %v6817
  %6819 = vmatmul.bf16.gmra.mxu0 %v6633
  %v6820 = vpop.f32.mrf.mxu0
  %v6821 = vadd.f32 %v6674, %v6820
  %v6822 = vpop.f32.mrf.mxu0
  %v6823 = vadd.f32 %v6674, %v6822
  %6824 = vdwg.mxu0
  %6825 = vmatpush.bf16.msra.mxu0 %v6763
  %6826 = vmatpush.bf16.msra.mxu0 %v6762
  %6827 = vmatpush.bf16.msra.mxu0 %v6761
  %6828 = vmatpush.bf16.msra.mxu0 %v6760
  %6829 = vmatpush.bf16.msra.mxu0 %v6759
  %6830 = vmatpush.bf16.msra.mxu0 %v6758
  %6831 = vmatpush.bf16.msra.mxu0 %v6757
  %6832 = vmatpush.bf16.msra.mxu0 %v6756
  %6833 = vmatmul.bf16.gmra.mxu0 %v6625
  %v6834 = vpop.f32.mrf.mxu0
  %v6835 = vadd.f32 %v6806, %v6834
  %v6836 = vpop.f32.mrf.mxu0
  %v6837 = vadd.f32 %v6808, %v6836
  %6838 = vmatmul.bf16.gmra.mxu0 %v6628
  %v6839 = vpop.f32.mrf.mxu0
  %v6840 = vadd.f32 %v6811, %v6839
  %v6841 = vpop.f32.mrf.mxu0
  %v6842 = vadd.f32 %v6813, %v6841
  %6843 = vmatmul.bf16.gmra.mxu0 %v6631
  %v6844 = vpop.f32.mrf.mxu0
  %v6845 = vadd.f32 %v6816, %v6844
  %v6846 = vpop.f32.mrf.mxu0
  %v6847 = vadd.f32 %v6818, %v6846
  %6848 = vmatmul.bf16.gmra.mxu0 %v6634
  %v6849 = vpop.f32.mrf.mxu0
  %v6850 = vadd.f32 %v6821, %v6849
  %v6851 = vpop.f32.mrf.mxu0
  %v6852 = vadd.f32 %v6823, %v6851
  %6853 = vdwg.mxu0
  %6854 = vmatpush.bf16.msra.mxu0 0
  %6855 = vmatpush.bf16.msra.mxu0 0
  %6856 = vmatpush.bf16.msra.mxu0 0
  %6857 = vmatpush.bf16.msra.mxu0 0
  %6858 = vmatpush.bf16.msra.mxu0 0
  %6859 = vmatpush.bf16.msra.mxu0 0
  %6860 = vmatpush.bf16.msra.mxu0 %v6765
  %6861 = vmatpush.bf16.msra.mxu0 %v6764
  %6862 = vmatmul.bf16.gmra.mxu0 %v6785
  %v6863 = vpop.f32.mrf.mxu0
  %v6864 = vadd.f32 %v6835, %v6863
  %v6865 = vpop.f32.mrf.mxu0
  %v6866 = vadd.f32 %v6837, %v6865
  %6867 = vmatmul.bf16.gmra.mxu0 %v6788
  %v6868 = vpop.f32.mrf.mxu0
  %v6869 = vadd.f32 %v6840, %v6868
  %v6870 = vpop.f32.mrf.mxu0
  %v6871 = vadd.f32 %v6842, %v6870
  %6872 = vmatmul.bf16.gmra.mxu0 %v6791
  %v6873 = vpop.f32.mrf.mxu0
  %v6874 = vadd.f32 %v6845, %v6873
  %v6875 = vpop.f32.mrf.mxu0
  %v6876 = vadd.f32 %v6847, %v6875
  %6877 = vmatmul.bf16.gmra.mxu0 %v6794
  %v6878 = vpop.f32.mrf.mxu0
  %v6879 = vadd.f32 %v6850, %v6878
  %v6880 = vpop.f32.mrf.mxu0
  %v6881 = vadd.f32 %v6852, %v6880
  %6882 = vdwg.mxu0
  %v6883 = vmax.f32 %v6864, 0.0
  %v6884 = vmax.f32 %v6866, 0.0
  %v6885 = vmax.f32 %v6869, 0.0
  %v6886 = vmax.f32 %v6871, 0.0
  %v6887 = vmax.f32 %v6874, 0.0
  %v6888 = vmax.f32 %v6876, 0.0
  %v6889 = vmax.f32 %v6879, 0.0
  %v6890 = vmax.f32 %v6881, 0.0
  %v6899 = vrot.slane %v6883, 2
  %v6900 = vrot.slane %v6883, 4
  %v6901 = vrot.slane %v6883, 6
  %v6902 = vrot.slane %v6884, 2
  %v6903 = vrot.slane %v6884, 4
  %v6904 = vrot.slane %v6884, 6
  %v6905 = vrot.slane %v6885, 2
  %v6906 = vrot.slane %v6885, 4
  %v6907 = vrot.slane %v6885, 6
  %v6908 = vrot.slane %v6886, 2
  %v6909 = vrot.slane %v6886, 4
  %v6910 = vrot.slane %v6886, 6
  %v6911 = vrot.slane %v6887, 2
  %v6912 = vrot.slane %v6887, 4
  %v6913 = vrot.slane %v6887, 6
  %v6914 = vrot.slane %v6888, 2
  %v6915 = vrot.slane %v6888, 4
  %v6916 = vrot.slane %v6888, 6
  %v6917 = vrot.slane %v6889, 2
  %v6918 = vrot.slane %v6889, 4
  %v6919 = vrot.slane %v6889, 6
  %v6920 = vrot.slane %v6890, 2
  %v6921 = vrot.slane %v6890, 4
  %v6922 = vrot.slane %v6890, 6
  %v6947 = vrot.slane %v6883, 7
  %v6948 = vrot.slane %v6947, 2
  %v6949 = vrot.slane %v6899, 7
  %v6950 = vrot.slane %v6949, 2
  %v6951 = vrot.slane %v6900, 7
  %v6952 = vrot.slane %v6951, 2
  %v6953 = vrot.slane %v6901, 7
  %v6954 = vrot.slane %v6953, 2
  %v6955 = vrot.slane %v6884, 7
  %v6956 = vrot.slane %v6955, 2
  %v6957 = vrot.slane %v6902, 7
  %v6958 = vrot.slane %v6957, 2
  %v6959 = vrot.slane %v6903, 7
  %v6960 = vrot.slane %v6959, 2
  %v6961 = vrot.slane %v6904, 7
  %v6962 = vrot.slane %v6961, 2
  %v6963 = vrot.slane %v6885, 7
  %v6964 = vrot.slane %v6963, 2
  %v6965 = vrot.slane %v6905, 7
  %v6966 = vrot.slane %v6965, 2
  %v6967 = vrot.slane %v6906, 7
  %v6968 = vrot.slane %v6967, 2
  %v6969 = vrot.slane %v6907, 7
  %v6970 = vrot.slane %v6969, 2
  %v6971 = vrot.slane %v6886, 7
  %v6972 = vrot.slane %v6971, 2
  %v6973 = vrot.slane %v6908, 7
  %v6974 = vrot.slane %v6973, 2
  %v6975 = vrot.slane %v6909, 7
  %v6976 = vrot.slane %v6975, 2
  %v6977 = vrot.slane %v6910, 7
  %v6978 = vrot.slane %v6977, 2
  %v6979 = vrot.slane %v6887, 7
  %v6980 = vrot.slane %v6979, 2
  %v6981 = vrot.slane %v6911, 7
  %v6982 = vrot.slane %v6981, 2
  %v6983 = vrot.slane %v6912, 7
  %v6984 = vrot.slane %v6983, 2
  %v6985 = vrot.slane %v6913, 7
  %v6986 = vrot.slane %v6985, 2
  %v6987 = vrot.slane %v6888, 7
  %v6988 = vrot.slane %v6987, 2
  %v6989 = vrot.slane %v6914, 7
  %v6990 = vrot.slane %v6989, 2
  %v6991 = vrot.slane %v6915, 7
  %v6992 = vrot.slane %v6991, 2
  %v6993 = vrot.slane %v6916, 7
  %v6994 = vrot.slane %v6993, 2
  %v6995 = vrot.slane %v6889, 7
  %v6996 = vrot.slane %v6995, 2
  %v6997 = vrot.slane %v6917, 7
  %v6998 = vrot.slane %v6997, 2
  %v6999 = vrot.slane %v6918, 7
  %v7000 = vrot.slane %v6999, 2
  %v7001 = vrot.slane %v6919, 7
  %v7002 = vrot.slane %v7001, 2
  %v7003 = vrot.slane %v6890, 7
  %v7004 = vrot.slane %v7003, 2
  %v7005 = vrot.slane %v6920, 7
  %v7006 = vrot.slane %v7005, 2
  %v7007 = vrot.slane %v6921, 7
  %v7008 = vrot.slane %v7007, 2
  %v7009 = vrot.slane %v6922, 7
  %v7010 = vrot.slane %v7009, 2
  %v7043 = vmax.f32 %v6883, %v6948
  %v7044 = vmax.f32 %v6899, %v6950
  %v7045 = vmax.f32 %v6900, %v6952
  %v7046 = vmax.f32 %v6901, %v6954
  %v7047 = vmax.f32 %v6884, %v6956
  %v7048 = vmax.f32 %v6902, %v6958
  %v7049 = vmax.f32 %v6903, %v6960
  %v7050 = vmax.f32 %v6904, %v6962
  %v7051 = vmax.f32 %v6885, %v6964
  %v7052 = vmax.f32 %v6905, %v6966
  %v7053 = vmax.f32 %v6906, %v6968
  %v7054 = vmax.f32 %v6907, %v6970
  %v7055 = vmax.f32 %v6886, %v6972
  %v7056 = vmax.f32 %v6908, %v6974
  %v7057 = vmax.f32 %v6909, %v6976
  %v7058 = vmax.f32 %v6910, %v6978
  %v7059 = vmax.f32 %v6887, %v6980
  %v7060 = vmax.f32 %v6911, %v6982
  %v7061 = vmax.f32 %v6912, %v6984
  %v7062 = vmax.f32 %v6913, %v6986
  %v7063 = vmax.f32 %v6888, %v6988
  %v7064 = vmax.f32 %v6914, %v6990
  %v7065 = vmax.f32 %v6915, %v6992
  %v7066 = vmax.f32 %v6916, %v6994
  %v7067 = vmax.f32 %v6889, %v6996
  %v7068 = vmax.f32 %v6917, %v6998
  %v7069 = vmax.f32 %v6918, %v7000
  %v7070 = vmax.f32 %v6919, %v7002
  %v7071 = vmax.f32 %v6890, %v7004
  %v7072 = vmax.f32 %v6920, %v7006
  %v7073 = vmax.f32 %v6921, %v7008
  %v7074 = vmax.f32 %v6922, %v7010
  %v7075 = vmax.f32 %v7043, %v7047
  %v7076 = vmax.f32 %v7044, %v7048
  %v7077 = vmax.f32 %v7045, %v7049
  %v7078 = vmax.f32 %v7046, %v7050
  %v7079 = vmax.f32 %v7051, %v7055
  %v7080 = vmax.f32 %v7052, %v7056
  %v7081 = vmax.f32 %v7053, %v7057
  %v7082 = vmax.f32 %v7054, %v7058
  %v7083 = vmax.f32 %v7059, %v7063
  %v7084 = vmax.f32 %v7060, %v7064
  %v7085 = vmax.f32 %v7061, %v7065
  %v7086 = vmax.f32 %v7062, %v7066
  %v7087 = vmax.f32 %v7067, %v7071
  %v7088 = vmax.f32 %v7068, %v7072
  %v7089 = vmax.f32 %v7069, %v7073
  %v7090 = vmax.f32 %v7070, %v7074
  %v7091 = vpack.c.bf16 %v7075, %v7075
  %v7092 = vpack.c.bf16 %v7076, %v7076
  %v7093 = vpack.c.bf16 %v7077, %v7077
  %v7094 = vpack.c.bf16 %v7078, %v7078
  %v7095 = vpack.c.bf16 %v7079, %v7079
  %v7096 = vpack.c.bf16 %v7080, %v7080
  %v7097 = vpack.c.bf16 %v7081, %v7081
  %v7098 = vpack.c.bf16 %v7082, %v7082
  %v7099 = vpack.c.bf16 %v7083, %v7083
  %v7100 = vpack.c.bf16 %v7084, %v7084
  %v7101 = vpack.c.bf16 %v7085, %v7085
  %v7102 = vpack.c.bf16 %v7086, %v7086
  %v7103 = vpack.c.bf16 %v7087, %v7087
  %v7104 = vpack.c.bf16 %v7088, %v7088
  %v7105 = vpack.c.bf16 %v7089, %v7089
  %v7106 = vpack.c.bf16 %v7090, %v7090
  %v7123 = vunpack.c.l.b16 %v7091
  %v7124 = vunpack.c.l.b16 %v7092
  %v7125 = vunpack.c.l.b16 %v7093
  %v7126 = vunpack.c.l.b16 %v7094
  %v7127 = vunpack.c.l.b16 %v7095
  %v7128 = vunpack.c.l.b16 %v7096
  %v7129 = vunpack.c.l.b16 %v7097
  %v7130 = vunpack.c.l.b16 %v7098
  %v7131 = vunpack.c.l.b16 %v7099
  %v7132 = vunpack.c.l.b16 %v7100
  %v7133 = vunpack.c.l.b16 %v7101
  %v7134 = vunpack.c.l.b16 %v7102
  %v7135 = vunpack.c.l.b16 %v7103
  %v7136 = vunpack.c.l.b16 %v7104
  %v7137 = vunpack.c.l.b16 %v7105
  %v7138 = vunpack.c.l.b16 %v7106
  %v7139 = vrot.slane %v7124, 7
  %v7140 = vsel %vm2782, %v7139, %v7123
  %v7141 = vrot.slane %v7125, 6
  %v7142 = vsel %vm2784, %v7141, %v7140
  %v7143 = vrot.slane %v7126, 5
  %v7144 = vsel %vm2786, %v7143, %v7142
  %v7145 = vrot.slane %v7127, 4
  %v7146 = vsel %vm2788, %v7145, %v7144
  %v7147 = vrot.slane %v7128, 3
  %v7148 = vsel %vm2790, %v7147, %v7146
  %v7149 = vrot.slane %v7129, 2
  %v7150 = vsel %vm2792, %v7149, %v7148
  %v7151 = vrot.slane %v7130, 1
  %v7152 = vsel %vm2794, %v7151, %v7150
  %v7153 = vrot.slane %v7132, 7
  %v7154 = vsel %vm2782, %v7153, %v7131
  %v7155 = vrot.slane %v7133, 6
  %v7156 = vsel %vm2784, %v7155, %v7154
  %v7157 = vrot.slane %v7134, 5
  %v7158 = vsel %vm2786, %v7157, %v7156
  %v7159 = vrot.slane %v7135, 4
  %v7160 = vsel %vm2788, %v7159, %v7158
  %v7161 = vrot.slane %v7136, 3
  %v7162 = vsel %vm2790, %v7161, %v7160
  %v7163 = vrot.slane %v7137, 2
  %v7164 = vsel %vm2792, %v7163, %v7162
  %v7165 = vrot.slane %v7138, 1
  %v7166 = vsel %vm2794, %v7165, %v7164
  %v7167 = vpack.c.b16 %v7152, %v7152
  %v7168 = vpack.c.b16 %v7166, %v7166
  %7171 = vst.msk [vmem:[%s5 + $0x4] sm:$0xf] %vm6292, %v7167
  %7172 = vst.msk [vmem:[%s5 + $0xc] sm:$0xf] %vm6292, %v7168
  // Predicated region
  $region22: #{model_forward.2} parent=0 // pred_check
    _
  $region23: #{model_forward.2} parent=0 // pred_check_branch
    %7174 = sbr.rel (0) target = $region25
  $region24: #{model_forward.2} parent=0 // pred_region
    _
  $region25: #{model_forward.2} parent=0 // pred_fallthru
    _
  // Predicated region
  $region26: #{model_forward.2} parent=0 // pred_check
    _
  $region27: #{model_forward.2} parent=0 // pred_check_branch
    %7176 = sbr.rel (0) target = $region29
  $region28: #{model_forward.2} parent=0 // pred_region
    _
  $region29: #{model_forward.2} parent=0 // pred_fallthru
    _

</llo_original>
